<compile_context>
chip_gen: v6e
topology: v6e:2x2x1
jax: 0.10.0
libtpu: 0.0.40
codegen_flags: <defaults>
</compile_context>

<pallas_src>
import functools

import jax
import jax.numpy as jnp
from jax.experimental import pallas as pl
from jax.experimental.pallas import tpu as pltpu

SAMPLE_TIME = 0.85
H_DIM = 4
VMEM_SMALL = 16 * 1024 * 1024
VMEM_BIG = 32 * 1024 * 1024

KH_MASK = jnp.array([[-1, 0, 0, 0], [1, 0, 0, 0], [0, 0, 0, 0], [0, 0, 0, 0]], jnp.float32)
KI_MASK = jnp.array([[0, 0, 0, 0], [0, -1, 0, 0], [0, 1, 0, 0], [0, 0, 0, 0]], jnp.float32)
KP_MASK = jnp.array([[0, 0, 0, 0], [0, 0, 0, 0], [0, 0, -1, 0], [0, 0, 1, 0]], jnp.float32)


# ---------------------------------------------------------------------------
# Glue: im2col^T for "3x3 same conv followed by 2x2 maxpool", planar (C,H,W) input.
#   result[gy*2+gx, (dy*3+dx)*C + c, h2*(W//2)+w2] = xpad[c, 2*h2+gy+dy, 2*w2+gx+dx]
# ---------------------------------------------------------------------------
def _pool_conv_im2col(x_chw):
    C, H, W = x_chw.shape
    H2, W2 = H // 2, W // 2
    xp = jnp.pad(x_chw, ((0, 0), (1, 1), (1, 1)))
    groups = []
    for gy in range(2):
        for gx in range(2):
            taps = []
            for dy in range(3):
                for dx in range(3):
                    s = jax.lax.slice(xp, (0, gy + dy, gx + dx),
                                      (C, gy + dy + H - 1, gx + dx + W - 1), (1, 2, 2))
                    taps.append(s.reshape(C, H2 * W2))
            groups.append(jnp.concatenate(taps, axis=0))          # (9*C, H2*W2)
    return jnp.stack(groups, axis=0)                              # (4, 9*C, H2*W2)


def _cspec(shape):
    rank = len(shape)
    return pl.BlockSpec(shape, lambda i, _r=rank: (0,) * _r)


# ---------------------------------------------------------------------------
# Kernel 1: conv1 (3x3, pad=1) + bias + ReLU + 2x2 maxpool, channel-major output.
# One matmul per 2x2-pool member: (Cout, 9*Cin) @ (9*Cin, spatial_block).
# ---------------------------------------------------------------------------
def _conv_pool_kernel(ic_ref, w_ref, b_ref, o_ref):
    w = w_ref[...]                                                # (Cout, 9*Cin)
    acc = jnp.dot(w, ic_ref[0], preferred_element_type=jnp.float32)
    for g in range(1, ic_ref.shape[0]):
        acc = jnp.maximum(acc, jnp.dot(w, ic_ref[g], preferred_element_type=jnp.float32))
    # maxpool(ReLU(conv + b)) == ReLU(max(conv) + b): shared bias, monotone ReLU.
    o_ref[...] = jnp.maximum(acc + b_ref[...], 0.0)


def conv_pool(ic, w_row, b_col, *, spatial_block):
    G, K, S = ic.shape
    Cout = w_row.shape[0]
    return pl.pallas_call(
        _conv_pool_kernel,
        out_shape=jax.ShapeDtypeStruct((Cout, S), jnp.float32),
        grid=(S // spatial_block,),
        in_specs=[
            pl.BlockSpec((G, K, spatial_block), lambda i: (0, 0, i)),
            pl.BlockSpec((Cout, K), lambda i: (0, 0)),
            pl.BlockSpec((Cout, 1), lambda i: (0, 0)),
        ],
        out_specs=pl.BlockSpec((Cout, spatial_block), lambda i: (0, i)),
        compiler_params=pltpu.CompilerParams(
            dimension_semantics=("parallel",), vmem_limit_bytes=VMEM_SMALL),
    )(ic, w_row, b_col)


# ---------------------------------------------------------------------------
# Kernel 2: conv2+pool+ReLU -> enc_fc1+ReLU -> enc_fc2 -> softmax -> RK4 shift
#           -> decoder FC head (batched over {z, z_next})
#           -> fused t_conv1+ReLU / t_conv2+sigmoid (taps folded into rows).
# ---------------------------------------------------------------------------
def _fused_tail_kernel(ic2_ref, wc2_ref, bc2_ref, w1e_ref, b1e_ref,
                       w2e_ref, b2e_ref, a_ref, wd1_ref, bd1_ref,
                       wd2_ref, bd2_ref, wt1_ref, bt1_ref, wt2_ref, bt2_ref,
                       zz_ref, rec_ref, *, dt):
    # conv2 + 2x2 maxpool + ReLU, channel-major: (4, 1024) == CHW-flattened features.
    wc2 = wc2_ref[...]                                            # (4, 144)
    acc = jnp.dot(wc2, ic2_ref[0], preferred_element_type=jnp.float32)
    for g in range(1, 4):
        acc = jnp.maximum(acc, jnp.dot(wc2, ic2_ref[g], preferred_element_type=jnp.float32))
    feat = jnp.maximum(acc + bc2_ref[...], 0.0)                   # (4, 1024)

    # enc_fc1 + ReLU  (weight pre-split per channel so no in-kernel transpose is needed).
    h = b1e_ref[...]                                              # (1, 128)
    for c in range(4):
        h = h + jnp.dot(feat[c:c + 1, :], w1e_ref[c], preferred_element_type=jnp.float32)
    h = jnp.maximum(h, 0.0)

    # enc_fc2 + softmax(dim=1)
    logits = jnp.dot(h, w2e_ref[...], preferred_element_type=jnp.float32) + b2e_ref[...]
    m = jnp.max(logits, axis=1, keepdims=True)
    e = jnp.exp(logits - m)
    z = e / jnp.sum(e, axis=1, keepdims=True)                     # (1, h_dim)

    # RK4 shift:  k_i = dt * A @ v,  z_next = z + dt/6 * (k1 + 2k2 + 2k3 + k4)
    A = a_ref[...]                                                # (h_dim, h_dim)
    zv = z[0]
    matvec = lambda v: jnp.sum(A * v, axis=1)
    k1 = dt * matvec(zv)
    k2 = dt * matvec(0.5 * k1 + zv)
    k3 = dt * matvec(0.5 * k2 + zv)
    k4 = dt * matvec(k3 + zv)
    zn = zv + (dt / 6.0) * (k1 + 2.0 * k2 + 2.0 * k3 + k4)

    zz = jnp.concatenate([z, zn[None, :]], axis=0)                # (2, h_dim)
    zz_ref[...] = zz

    # dec_fc1 + ReLU, batched over {z, z_next} (M = 2).
    hd = jnp.maximum(jnp.dot(zz, wd1_ref[...], preferred_element_type=jnp.float32)
                     + bd1_ref[...], 0.0)                         # (2, 128)

    # dec_fc2 + ReLU, channel-major: one (2,128)@(128,1024) matmul per decoder channel.
    decs = [jnp.maximum(jnp.dot(hd, wd2_ref[c], preferred_element_type=jnp.float32)
                        + bd2_ref[c:c + 1, :], 0.0)
            for c in range(4)]                                    # 4 x (2, 1024)

    # t_conv1 + ReLU and t_conv2 + sigmoid, taps folded into the row (sublane) dim,
    # spatial (32x32 -> 1024) kept in the lane dim, per latent.
    wt1 = wt1_ref[...]                                            # (64, 4)
    bt1 = bt1_ref[...]                                            # (64, 1)
    wt2 = wt2_ref[...]                                            # (48, 64) block-diag
    bt2 = bt2_ref[...]                                            # (48, 1)
    for n in range(2):
        feat_n = jnp.concatenate([decs[c][n:n + 1, :] for c in range(4)], axis=0)  # (4, 1024)
        t1 = jnp.maximum(jnp.dot(wt1, feat_n, preferred_element_type=jnp.float32) + bt1, 0.0)
        t2 = jnp.dot(wt2, t1, preferred_element_type=jnp.float32) + bt2
        rec_ref[n] = jax.nn.sigmoid(t2)                           # (48, 1024)


def fused_tail(ic2, wc2, bc2, w1e, b1e, w2e, b2e, A, wd1, bd1, wd2, bd2,
               wt1, bt1, wt2, bt2):
    args = (ic2, wc2, bc2, w1e, b1e, w2e, b2e, A, wd1, bd1, wd2, bd2, wt1, bt1, wt2, bt2)
    return pl.pallas_call(
        functools.partial(_fused_tail_kernel, dt=SAMPLE_TIME),
        out_shape=(jax.ShapeDtypeStruct((2, H_DIM), jnp.float32),
                   jax.ShapeDtypeStruct((2, 48, 1024), jnp.float32)),
        grid=(1,),
        in_specs=[_cspec(a.shape) for a in args],
        out_specs=(_cspec((2, H_DIM)), _cspec((2, 48, 1024))),
        compiler_params=pltpu.CompilerParams(
            dimension_semantics=("arbitrary",), vmem_limit_bytes=VMEM_BIG),
    )(*args)


# ---------------------------------------------------------------------------
# Full forward.
# ---------------------------------------------------------------------------
@jax.jit
def forward(x_nchw, p):
    x_chw = x_nchw[0].astype(jnp.float32)                         # (3, 128, 128) planar

    # ---- conv1 + pool (kernel 1) ----
    ic1 = _pool_conv_im2col(x_chw)                                # (4, 27, 4096)
    wc1 = p["conv1_w"].reshape(27, 16).T                          # (16, 27)
    bc1 = p["conv1_b"].reshape(16, 1)
    p1 = conv_pool(ic1, wc1, bc1, spatial_block=1024)             # (16, 4096) = (C, 64*64)

    # ---- everything downstream, fully fused (kernel 2) ----
    ic2 = _pool_conv_im2col(p1.reshape(16, 64, 64))               # (4, 144, 1024)
    wc2 = p["conv2_w"].reshape(144, 4).T                          # (4, 144)
    bc2 = p["conv2_b"].reshape(4, 1)
    w1e = p["enc_fc1_w"].reshape(128, 4, 1024).transpose(1, 2, 0)  # (4, 1024, 128)
    b1e = p["enc_fc1_b"].reshape(1, 128)
    w2e = p["enc_fc2_w"].T                                        # (128, h_dim)
    b2e = p["enc_fc2_b"].reshape(1, H_DIM)
    A = (jax.nn.sigmoid(p["Kh"][0]) * KH_MASK
         + jax.nn.sigmoid(p["Ki"][0]) * KI_MASK
         + jax.nn.sigmoid(p["Kp"][0]) * KP_MASK)                  # (h_dim, h_dim)
    wd1 = p["dec_fc1_w"].T                                        # (h_dim, 128)
    bd1 = p["dec_fc1_b"].reshape(1, 128)
    wd2 = p["dec_fc2_w"].reshape(4, 1024, 128).transpose(0, 2, 1)  # (4, 128, 1024) per channel
    bd2 = p["dec_fc2_b"].reshape(4, 1024)
    # t_conv1: rows ordered (dy1, dx1, cout); t_conv2 block-diagonal over the 4 t_conv1 taps,
    # rows ordered (dy1, dx1, dy2, dx2, c).
    wt1 = jnp.transpose(p["t_conv1_w"], (0, 1, 3, 2)).reshape(64, 4)        # (4taps*16, Cin)
    bt1 = jnp.tile(p["t_conv1_b"], 4).reshape(64, 1)
    w2small = jnp.transpose(p["t_conv2_w"], (0, 1, 3, 2)).reshape(12, 16)   # (4taps*3, 16)
    wt2 = jnp.kron(jnp.eye(4, dtype=jnp.float32), w2small)                  # (48, 64)
    bt2 = jnp.tile(p["t_conv2_b"], 16).reshape(48, 1)

    zz, rec = fused_tail(ic2, wc2, bc2, w1e, b1e, w2e, b2e, A,
                         wd1, bd1, wd2, bd2, wt1, bt1, wt2, bt2)

    # tap de-interleave (glue): rec[n, (dy1,dx1,dy2,dx2,c), h*32+w] -> (n, c, 4h+2dy1+dy2, 4w+2dx1+dx2)
    q = rec.reshape(2, 2, 2, 2, 2, 3, 32, 32)                     # (n,dy1,dx1,dy2,dx2,c,h,w)
    recon = q.transpose(0, 5, 6, 1, 3, 7, 2, 4).reshape(2, 3, 128, 128)

    return zz[0:1], zz[1:2], recon[0:1], recon[1:2]


def init_params(key):
    ks = jax.random.split(key, 16)

    def nrm(k, shape, scale=0.05):
        return (scale * jax.random.normal(k, shape)).astype(jnp.float32)

    return dict(
        conv1_w=nrm(ks[0], (3, 3, 3, 16)),                  # (kh, kw, Cin, Cout)
        conv1_b=nrm(ks[1], (16,)),
        conv2_w=nrm(ks[2], (3, 3, 16, 4)),
        conv2_b=nrm(ks[3], (4,)),
        enc_fc1_w=nrm(ks[4], (128, 4 * 32 * 32), 0.02),     # (out, in), in features CHW order
        enc_fc1_b=nrm(ks[5], (128,)),
        enc_fc2_w=nrm(ks[6], (H_DIM, 128)),
        enc_fc2_b=nrm(ks[7], (H_DIM,)),
        dec_fc1_w=nrm(ks[8], (128, H_DIM)),
        dec_fc1_b=nrm(ks[9], (128,)),
        dec_fc2_w=nrm(ks[10], (4 * 32 * 32, 128), 0.02),    # (out, in), out features CHW order
        dec_fc2_b=nrm(ks[11], (4 * 32 * 32,)),
        t_conv1_w=nrm(ks[12], (2, 2, 4, 16)),               # (kh, kw, Cin, Cout)
        t_conv1_b=nrm(ks[13], (16,)),
        t_conv2_w=nrm(ks[14], (2, 2, 16, 3)),
        t_conv2_b=nrm(ks[15], (3,)),
        Kh=jnp.array([0.5], jnp.float32),
        Ki=jnp.array([0.3], jnp.float32),
        Kp=jnp.array([0.1], jnp.float32),
    )


if __name__ == "__main__":
    key = jax.random.PRNGKey(0)
    pkey, xkey = jax.random.split(key)
    params = init_params(pkey)
    # enc_fc1 expects 4*32*32 features after two 2x2 pools -> input spatial must be 128x128.
    x = jax.random.normal(xkey, (1, 3, 128, 128), jnp.float32)    # NCHW, as in PyTorch
    z, z_next, x_hat, x_next_hat = forward(x, params)
    jax.block_until_ready((z, z_next, x_hat, x_next_hat))
    assert z.shape == (1, H_DIM) and z_next.shape == (1, H_DIM)
    assert x_hat.shape == (1, 3, 128, 128) and x_next_hat.shape == (1, 3, 128, 128)
    assert bool(jnp.isfinite(z).all()) and bool(jnp.isfinite(z_next).all())
    assert bool(jnp.isfinite(x_hat).all()) and bool(jnp.isfinite(x_next_hat).all())
    print("KERNEL_OK")
</pallas_src>

<mosaic_0001>
module attributes {stable_mosaic.version = 11 : i64} {
  func.func @_conv_pool_kernel(%arg0: i32, %arg1: memref<4x27x1024xf32, #tpu.memory_space<vmem>>, %arg2: memref<16x27xf32, #tpu.memory_space<vmem>>, %arg3: memref<16x1xf32, #tpu.memory_space<vmem>>, %arg4: memref<16x1024xf32, #tpu.memory_space<vmem>>) attributes {dimension_semantics = [#tpu.dimension_semantics<parallel>], iteration_bounds = array<i64: 4>, scalar_prefetch = 0 : i64, scratch_operands = 0 : i64, tpu.core_type = #tpu.core_type<tc>, window_params = [{transform_indices = @transform_0, window_bounds = array<i64: 4, 27, 1024>}, {pipeline_mode = #tpu.pipeline_mode<synchronous>, transform_indices = @transform_1, window_bounds = array<i64: 16, 27>}, {pipeline_mode = #tpu.pipeline_mode<synchronous>, transform_indices = @transform_2, window_bounds = array<i64: 16, 1>}, {transform_indices = @transform_3, window_bounds = array<i64: 16, 1024>}]} {
    %c0 = arith.constant 0 : index
    %c0_0 = arith.constant 0 : index
    %0 = vector.load %arg2[%c0, %c0_0] : memref<16x27xf32, #tpu.memory_space<vmem>>, vector<16x27xf32>
    %c0_1 = arith.constant 0 : index
    %c0_2 = arith.constant 0 : index
    %c0_3 = arith.constant 0 : index
    %1 = vector.load %arg1[%c0_1, %c0_2, %c0_3] : memref<4x27x1024xf32, #tpu.memory_space<vmem>>, vector<1x27x1024xf32>
    %2 = vector.shape_cast %1 : vector<1x27x1024xf32> to vector<27x1024xf32>
    %cst = arith.constant dense<0.000000e+00> : vector<16x1024xf32>
    %3 = tpu.matmul %0, %2, %cst {dimension_numbers = #tpu.dot_dimension_numbers<[1], [0], [0], [1], [0, 0, 1, 1], [], []>} : vector<16x27xf32>, vector<27x1024xf32>, vector<16x1024xf32> -> vector<16x1024xf32>
    %c1 = arith.constant 1 : index
    %c0_4 = arith.constant 0 : index
    %c0_5 = arith.constant 0 : index
    %4 = vector.load %arg1[%c1, %c0_4, %c0_5] : memref<4x27x1024xf32, #tpu.memory_space<vmem>>, vector<1x27x1024xf32>
    %5 = vector.shape_cast %4 : vector<1x27x1024xf32> to vector<27x1024xf32>
    %cst_6 = arith.constant dense<0.000000e+00> : vector<16x1024xf32>
    %6 = tpu.matmul %0, %5, %cst_6 {dimension_numbers = #tpu.dot_dimension_numbers<[1], [0], [0], [1], [0, 0, 1, 1], [], []>} : vector<16x27xf32>, vector<27x1024xf32>, vector<16x1024xf32> -> vector<16x1024xf32>
    %7 = arith.maximumf %3, %6 : vector<16x1024xf32>
    %c2 = arith.constant 2 : index
    %c0_7 = arith.constant 0 : index
    %c0_8 = arith.constant 0 : index
    %8 = vector.load %arg1[%c2, %c0_7, %c0_8] : memref<4x27x1024xf32, #tpu.memory_space<vmem>>, vector<1x27x1024xf32>
    %9 = vector.shape_cast %8 : vector<1x27x1024xf32> to vector<27x1024xf32>
    %cst_9 = arith.constant dense<0.000000e+00> : vector<16x1024xf32>
    %10 = tpu.matmul %0, %9, %cst_9 {dimension_numbers = #tpu.dot_dimension_numbers<[1], [0], [0], [1], [0, 0, 1, 1], [], []>} : vector<16x27xf32>, vector<27x1024xf32>, vector<16x1024xf32> -> vector<16x1024xf32>
    %11 = arith.maximumf %7, %10 : vector<16x1024xf32>
    %c3 = arith.constant 3 : index
    %c0_10 = arith.constant 0 : index
    %c0_11 = arith.constant 0 : index
    %12 = vector.load %arg1[%c3, %c0_10, %c0_11] : memref<4x27x1024xf32, #tpu.memory_space<vmem>>, vector<1x27x1024xf32>
    %13 = vector.shape_cast %12 : vector<1x27x1024xf32> to vector<27x1024xf32>
    %cst_12 = arith.constant dense<0.000000e+00> : vector<16x1024xf32>
    %14 = tpu.matmul %0, %13, %cst_12 {dimension_numbers = #tpu.dot_dimension_numbers<[1], [0], [0], [1], [0, 0, 1, 1], [], []>} : vector<16x27xf32>, vector<27x1024xf32>, vector<16x1024xf32> -> vector<16x1024xf32>
    %15 = arith.maximumf %11, %14 : vector<16x1024xf32>
    %c0_13 = arith.constant 0 : index
    %c0_14 = arith.constant 0 : index
    %16 = vector.load %arg3[%c0_13, %c0_14] : memref<16x1xf32, #tpu.memory_space<vmem>>, vector<16x1xf32>
    %17 = vector.broadcast %16 : vector<16x1xf32> to vector<16x1024xf32>
    %18 = arith.addf %15, %17 : vector<16x1024xf32>
    %cst_15 = arith.constant 0.000000e+00 : f32
    %19 = vector.broadcast %cst_15 : f32 to vector<16x1024xf32>
    %20 = arith.maximumf %18, %19 : vector<16x1024xf32>
    %c0_16 = arith.constant 0 : index
    %c0_17 = arith.constant 0 : index
    %21 = vector.load %arg4[%c0_16, %c0_17] : memref<16x1024xf32, #tpu.memory_space<vmem>>, vector<16x1024xf32>
    tpu.vector_store %arg4[%c0_16, %c0_17], %20 {strides = array<i32>} : memref<16x1024xf32, #tpu.memory_space<vmem>>, vector<16x1024xf32>,
    return
  }
  func.func @transform_0(%arg0: i32) -> (i32, i32, i32) {
    %c0_i32 = arith.constant 0 : i32
    %c0_i32_0 = arith.constant 0 : i32
    %c0_i32_1 = arith.constant 0 : i32
    return %c0_i32, %c0_i32_0, %arg0 : i32, i32, i32
  }
  func.func @transform_1(%arg0: i32) -> (i32, i32) {
    %c0_i32 = arith.constant 0 : i32
    %c0_i32_0 = arith.constant 0 : i32
    %c0_i32_1 = arith.constant 0 : i32
    return %c0_i32, %c0_i32_0 : i32, i32
  }
  func.func @transform_2(%arg0: i32) -> (i32, i32) {
    %c0_i32 = arith.constant 0 : i32
    %c0_i32_0 = arith.constant 0 : i32
    %c0_i32_1 = arith.constant 0 : i32
    return %c0_i32, %c0_i32_0 : i32, i32
  }
  func.func @transform_3(%arg0: i32) -> (i32, i32) {
    %c0_i32 = arith.constant 0 : i32
    %c0_i32_0 = arith.constant 0 : i32
    return %c0_i32, %arg0 : i32, i32
  }
}

module attributes {stable_mosaic.version = 11 : i64} {
  func.func @_fused_tail_kernel(%arg0: i32, %arg1: memref<4x144x1024xf32, #tpu.memory_space<vmem>>, %arg2: memref<4x144xf32, #tpu.memory_space<vmem>>, %arg3: memref<4x1xf32, #tpu.memory_space<vmem>>, %arg4: memref<4x1024x128xf32, #tpu.memory_space<vmem>>, %arg5: memref<1x128xf32, #tpu.memory_space<vmem>>, %arg6: memref<128x4xf32, #tpu.memory_space<vmem>>, %arg7: memref<1x4xf32, #tpu.memory_space<vmem>>, %arg8: memref<4x4xf32, #tpu.memory_space<vmem>>, %arg9: memref<4x128xf32, #tpu.memory_space<vmem>>, %arg10: memref<1x128xf32, #tpu.memory_space<vmem>>, %arg11: memref<4x128x1024xf32, #tpu.memory_space<vmem>>, %arg12: memref<4x1024xf32, #tpu.memory_space<vmem>>, %arg13: memref<64x4xf32, #tpu.memory_space<vmem>>, %arg14: memref<64x1xf32, #tpu.memory_space<vmem>>, %arg15: memref<48x64xf32, #tpu.memory_space<vmem>>, %arg16: memref<48x1xf32, #tpu.memory_space<vmem>>, %arg17: memref<2x4xf32, #tpu.memory_space<vmem>>, %arg18: memref<2x48x1024xf32, #tpu.memory_space<vmem>>) attributes {dimension_semantics = [#tpu.dimension_semantics<arbitrary>], iteration_bounds = array<i64: 1>, scalar_prefetch = 0 : i64, scratch_operands = 0 : i64, tpu.core_type = #tpu.core_type<tc>, window_params = [{pipeline_mode = #tpu.pipeline_mode<synchronous>, transform_indices = @transform_0, window_bounds = array<i64: 4, 144, 1024>}, {pipeline_mode = #tpu.pipeline_mode<synchronous>, transform_indices = @transform_1, window_bounds = array<i64: 4, 144>}, {pipeline_mode = #tpu.pipeline_mode<synchronous>, transform_indices = @transform_2, window_bounds = array<i64: 4, 1>}, {pipeline_mode = #tpu.pipeline_mode<synchronous>, transform_indices = @transform_3, window_bounds = array<i64: 4, 1024, 128>}, {pipeline_mode = #tpu.pipeline_mode<synchronous>, transform_indices = @transform_4, window_bounds = array<i64: 1, 128>}, {pipeline_mode = #tpu.pipeline_mode<synchronous>, transform_indices = @transform_5, window_bounds = array<i64: 128, 4>}, {pipeline_mode = #tpu.pipeline_mode<synchronous>, transform_indices = @transform_6, window_bounds = array<i64: 1, 4>}, {pipeline_mode = #tpu.pipeline_mode<synchronous>, transform_indices = @transform_7, window_bounds = array<i64: 4, 4>}, {pipeline_mode = #tpu.pipeline_mode<synchronous>, transform_indices = @transform_8, window_bounds = array<i64: 4, 128>}, {pipeline_mode = #tpu.pipeline_mode<synchronous>, transform_indices = @transform_9, window_bounds = array<i64: 1, 128>}, {pipeline_mode = #tpu.pipeline_mode<synchronous>, transform_indices = @transform_10, window_bounds = array<i64: 4, 128, 1024>}, {pipeline_mode = #tpu.pipeline_mode<synchronous>, transform_indices = @transform_11, window_bounds = array<i64: 4, 1024>}, {pipeline_mode = #tpu.pipeline_mode<synchronous>, transform_indices = @transform_12, window_bounds = array<i64: 64, 4>}, {pipeline_mode = #tpu.pipeline_mode<synchronous>, transform_indices = @transform_13, window_bounds = array<i64: 64, 1>}, {pipeline_mode = #tpu.pipeline_mode<synchronous>, transform_indices = @transform_14, window_bounds = array<i64: 48, 64>}, {pipeline_mode = #tpu.pipeline_mode<synchronous>, transform_indices = @transform_15, window_bounds = array<i64: 48, 1>}, {pipeline_mode = #tpu.pipeline_mode<synchronous>, transform_indices = @transform_16, window_bounds = array<i64: 2, 4>}, {pipeline_mode = #tpu.pipeline_mode<synchronous>, transform_indices = @transform_17, window_bounds = array<i64: 2, 48, 1024>}]} {
    %c0 = arith.constant 0 : index
    %c0_0 = arith.constant 0 : index
    %0 = vector.load %arg2[%c0, %c0_0] : memref<4x144xf32, #tpu.memory_space<vmem>>, vector<4x144xf32>
    %c0_1 = arith.constant 0 : index
    %c0_2 = arith.constant 0 : index
    %c0_3 = arith.constant 0 : index
    %1 = vector.load %arg1[%c0_1, %c0_2, %c0_3] : memref<4x144x1024xf32, #tpu.memory_space<vmem>>, vector<1x144x1024xf32>
    %2 = vector.shape_cast %1 : vector<1x144x1024xf32> to vector<144x1024xf32>
    %cst = arith.constant dense<0.000000e+00> : vector<4x1024xf32>
    %3 = tpu.matmul %0, %2, %cst {dimension_numbers = #tpu.dot_dimension_numbers<[1], [0], [0], [1], [0, 0, 1, 1], [], []>} : vector<4x144xf32>, vector<144x1024xf32>, vector<4x1024xf32> -> vector<4x1024xf32>
    %c1 = arith.constant 1 : index
    %c0_4 = arith.constant 0 : index
    %c0_5 = arith.constant 0 : index
    %4 = vector.load %arg1[%c1, %c0_4, %c0_5] : memref<4x144x1024xf32, #tpu.memory_space<vmem>>, vector<1x144x1024xf32>
    %5 = vector.shape_cast %4 : vector<1x144x1024xf32> to vector<144x1024xf32>
    %cst_6 = arith.constant dense<0.000000e+00> : vector<4x1024xf32>
    %6 = tpu.matmul %0, %5, %cst_6 {dimension_numbers = #tpu.dot_dimension_numbers<[1], [0], [0], [1], [0, 0, 1, 1], [], []>} : vector<4x144xf32>, vector<144x1024xf32>, vector<4x1024xf32> -> vector<4x1024xf32>
    %7 = arith.maximumf %3, %6 : vector<4x1024xf32>
    %c2 = arith.constant 2 : index
    %c0_7 = arith.constant 0 : index
    %c0_8 = arith.constant 0 : index
    %8 = vector.load %arg1[%c2, %c0_7, %c0_8] : memref<4x144x1024xf32, #tpu.memory_space<vmem>>, vector<1x144x1024xf32>
    %9 = vector.shape_cast %8 : vector<1x144x1024xf32> to vector<144x1024xf32>
    %cst_9 = arith.constant dense<0.000000e+00> : vector<4x1024xf32>
    %10 = tpu.matmul %0, %9, %cst_9 {dimension_numbers = #tpu.dot_dimension_numbers<[1], [0], [0], [1], [0, 0, 1, 1], [], []>} : vector<4x144xf32>, vector<144x1024xf32>, vector<4x1024xf32> -> vector<4x1024xf32>
    %11 = arith.maximumf %7, %10 : vector<4x1024xf32>
    %c3 = arith.constant 3 : index
    %c0_10 = arith.constant 0 : index
    %c0_11 = arith.constant 0 : index
    %12 = vector.load %arg1[%c3, %c0_10, %c0_11] : memref<4x144x1024xf32, #tpu.memory_space<vmem>>, vector<1x144x1024xf32>
    %13 = vector.shape_cast %12 : vector<1x144x1024xf32> to vector<144x1024xf32>
    %cst_12 = arith.constant dense<0.000000e+00> : vector<4x1024xf32>
    %14 = tpu.matmul %0, %13, %cst_12 {dimension_numbers = #tpu.dot_dimension_numbers<[1], [0], [0], [1], [0, 0, 1, 1], [], []>} : vector<4x144xf32>, vector<144x1024xf32>, vector<4x1024xf32> -> vector<4x1024xf32>
    %15 = arith.maximumf %11, %14 : vector<4x1024xf32>
    %c0_13 = arith.constant 0 : index
    %c0_14 = arith.constant 0 : index
    %16 = vector.load %arg3[%c0_13, %c0_14] : memref<4x1xf32, #tpu.memory_space<vmem>>, vector<4x1xf32>
    %17 = vector.broadcast %16 : vector<4x1xf32> to vector<4x1024xf32>
    %18 = arith.addf %15, %17 : vector<4x1024xf32>
    %cst_15 = arith.constant 0.000000e+00 : f32
    %19 = vector.broadcast %cst_15 : f32 to vector<4x1024xf32>
    %20 = arith.maximumf %18, %19 : vector<4x1024xf32>
    %c0_16 = arith.constant 0 : index
    %c0_17 = arith.constant 0 : index
    %21 = vector.load %arg5[%c0_16, %c0_17] : memref<1x128xf32, #tpu.memory_space<vmem>>, vector<1x128xf32>
    %22 = vector.extract_strided_slice %20 {offsets = [0, 0], sizes = [1, 1024], strides = [1, 1]} : vector<4x1024xf32> to vector<1x1024xf32>
    %c0_18 = arith.constant 0 : index
    %c0_19 = arith.constant 0 : index
    %c0_20 = arith.constant 0 : index
    %23 = vector.load %arg4[%c0_18, %c0_19, %c0_20] : memref<4x1024x128xf32, #tpu.memory_space<vmem>>, vector<1x1024x128xf32>
    %24 = vector.shape_cast %23 : vector<1x1024x128xf32> to vector<1024x128xf32>
    %cst_21 = arith.constant dense<0.000000e+00> : vector<1x128xf32>
    %25 = tpu.matmul %22, %24, %cst_21 {dimension_numbers = #tpu.dot_dimension_numbers<[1], [0], [0], [1], [0, 0, 1, 1], [], []>} : vector<1x1024xf32>, vector<1024x128xf32>, vector<1x128xf32> -> vector<1x128xf32>
    %26 = arith.addf %21, %25 : vector<1x128xf32>
    %27 = vector.extract_strided_slice %20 {offsets = [1, 0], sizes = [1, 1024], strides = [1, 1]} : vector<4x1024xf32> to vector<1x1024xf32>
    %c1_22 = arith.constant 1 : index
    %c0_23 = arith.constant 0 : index
    %c0_24 = arith.constant 0 : index
    %28 = vector.load %arg4[%c1_22, %c0_23, %c0_24] : memref<4x1024x128xf32, #tpu.memory_space<vmem>>, vector<1x1024x128xf32>
    %29 = vector.shape_cast %28 : vector<1x1024x128xf32> to vector<1024x128xf32>
    %cst_25 = arith.constant dense<0.000000e+00> : vector<1x128xf32>
    %30 = tpu.matmul %27, %29, %cst_25 {dimension_numbers = #tpu.dot_dimension_numbers<[1], [0], [0], [1], [0, 0, 1, 1], [], []>} : vector<1x1024xf32>, vector<1024x128xf32>, vector<1x128xf32> -> vector<1x128xf32>
    %31 = arith.addf %26, %30 : vector<1x128xf32>
    %32 = vector.extract_strided_slice %20 {offsets = [2, 0], sizes = [1, 1024], strides = [1, 1]} : vector<4x1024xf32> to vector<1x1024xf32>
    %c2_26 = arith.constant 2 : index
    %c0_27 = arith.constant 0 : index
    %c0_28 = arith.constant 0 : index
    %33 = vector.load %arg4[%c2_26, %c0_27, %c0_28] : memref<4x1024x128xf32, #tpu.memory_space<vmem>>, vector<1x1024x128xf32>
    %34 = vector.shape_cast %33 : vector<1x1024x128xf32> to vector<1024x128xf32>
    %cst_29 = arith.constant dense<0.000000e+00> : vector<1x128xf32>
    %35 = tpu.matmul %32, %34, %cst_29 {dimension_numbers = #tpu.dot_dimension_numbers<[1], [0], [0], [1], [0, 0, 1, 1], [], []>} : vector<1x1024xf32>, vector<1024x128xf32>, vector<1x128xf32> -> vector<1x128xf32>
    %36 = arith.addf %31, %35 : vector<1x128xf32>
    %37 = vector.extract_strided_slice %20 {offsets = [3, 0], sizes = [1, 1024], strides = [1, 1]} : vector<4x1024xf32> to vector<1x1024xf32>
    %c3_30 = arith.constant 3 : index
    %c0_31 = arith.constant 0 : index
    %c0_32 = arith.constant 0 : index
    %38 = vector.load %arg4[%c3_30, %c0_31, %c0_32] : memref<4x1024x128xf32, #tpu.memory_space<vmem>>, vector<1x1024x128xf32>
    %39 = vector.shape_cast %38 : vector<1x1024x128xf32> to vector<1024x128xf32>
    %cst_33 = arith.constant dense<0.000000e+00> : vector<1x128xf32>
    %40 = tpu.matmul %37, %39, %cst_33 {dimension_numbers = #tpu.dot_dimension_numbers<[1], [0], [0], [1], [0, 0, 1, 1], [], []>} : vector<1x1024xf32>, vector<1024x128xf32>, vector<1x128xf32> -> vector<1x128xf32>
    %41 = arith.addf %36, %40 : vector<1x128xf32>
    %cst_34 = arith.constant 0.000000e+00 : f32
    %42 = vector.broadcast %cst_34 : f32 to vector<1x128xf32>
    %43 = arith.maximumf %41, %42 : vector<1x128xf32>
    %c0_35 = arith.constant 0 : index
    %c0_36 = arith.constant 0 : index
    %44 = vector.load %arg6[%c0_35, %c0_36] : memref<128x4xf32, #tpu.memory_space<vmem>>, vector<128x4xf32>
    %cst_37 = arith.constant dense<0.000000e+00> : vector<1x4xf32>
    %45 = tpu.matmul %43, %44, %cst_37 {dimension_numbers = #tpu.dot_dimension_numbers<[1], [0], [0], [1], [0, 0, 1, 1], [], []>} : vector<1x128xf32>, vector<128x4xf32>, vector<1x4xf32> -> vector<1x4xf32>
    %c0_38 = arith.constant 0 : index
    %c0_39 = arith.constant 0 : index
    %46 = vector.load %arg7[%c0_38, %c0_39] : memref<1x4xf32, #tpu.memory_space<vmem>>, vector<1x4xf32>
    %47 = arith.addf %45, %46 : vector<1x4xf32>
    %cst_40 = arith.constant dense<0xFF800000> : vector<1xf32>
    %48 = vector.multi_reduction <maximumf>, %47, %cst_40 [1] : vector<1x4xf32> to vector<1xf32>
    %49 = vector.shape_cast %48 : vector<1xf32> to vector<1x1xf32>
    %50 = vector.broadcast %49 : vector<1x1xf32> to vector<1x4xf32>
    %51 = arith.subf %47, %50 : vector<1x4xf32>
    %52 = math.exp %51 : vector<1x4xf32>
    %cst_41 = arith.constant dense<0.000000e+00> : vector<1xf32>
    %53 = vector.multi_reduction <add>, %52, %cst_41 [1] : vector<1x4xf32> to vector<1xf32>
    %54 = vector.shape_cast %53 : vector<1xf32> to vector<1x1xf32>
    %55 = vector.broadcast %54 : vector<1x1xf32> to vector<1x4xf32>
    %56 = arith.divf %52, %55 : vector<1x4xf32>
    %c0_42 = arith.constant 0 : index
    %c0_43 = arith.constant 0 : index
    %57 = vector.load %arg8[%c0_42, %c0_43] : memref<4x4xf32, #tpu.memory_space<vmem>>, vector<4x4xf32>
    %58 = vector.shape_cast %56 : vector<1x4xf32> to vector<4xf32>
    %59 = vector.shape_cast %58 : vector<4xf32> to vector<1x4xf32>
    %60 = vector.broadcast %59 : vector<1x4xf32> to vector<4x4xf32>
    %61 = arith.mulf %57, %60 : vector<4x4xf32>
    %cst_44 = arith.constant dense<0.000000e+00> : vector<4xf32>
    %62 = vector.multi_reduction <add>, %61, %cst_44 [1] : vector<4x4xf32> to vector<4xf32>
    %cst_45 = arith.constant 8.500000e-01 : f32
    %63 = vector.broadcast %cst_45 : f32 to vector<4xf32>
    %64 = arith.mulf %63, %62 : vector<4xf32>
    %cst_46 = arith.constant 5.000000e-01 : f32
    %65 = vector.broadcast %cst_46 : f32 to vector<4xf32>
    %66 = arith.mulf %65, %64 : vector<4xf32>
    %67 = arith.addf %66, %58 : vector<4xf32>
    %68 = vector.shape_cast %67 : vector<4xf32> to vector<1x4xf32>
    %69 = vector.broadcast %68 : vector<1x4xf32> to vector<4x4xf32>
    %70 = arith.mulf %57, %69 : vector<4x4xf32>
    %cst_47 = arith.constant dense<0.000000e+00> : vector<4xf32>
    %71 = vector.multi_reduction <add>, %70, %cst_47 [1] : vector<4x4xf32> to vector<4xf32>
    %cst_48 = arith.constant 8.500000e-01 : f32
    %72 = vector.broadcast %cst_48 : f32 to vector<4xf32>
    %73 = arith.mulf %72, %71 : vector<4xf32>
    %cst_49 = arith.constant 5.000000e-01 : f32
    %74 = vector.broadcast %cst_49 : f32 to vector<4xf32>
    %75 = arith.mulf %74, %73 : vector<4xf32>
    %76 = arith.addf %75, %58 : vector<4xf32>
    %77 = vector.shape_cast %76 : vector<4xf32> to vector<1x4xf32>
    %78 = vector.broadcast %77 : vector<1x4xf32> to vector<4x4xf32>
    %79 = arith.mulf %57, %78 : vector<4x4xf32>
    %cst_50 = arith.constant dense<0.000000e+00> : vector<4xf32>
    %80 = vector.multi_reduction <add>, %79, %cst_50 [1] : vector<4x4xf32> to vector<4xf32>
    %cst_51 = arith.constant 8.500000e-01 : f32
    %81 = vector.broadcast %cst_51 : f32 to vector<4xf32>
    %82 = arith.mulf %81, %80 : vector<4xf32>
    %83 = arith.addf %82, %58 : vector<4xf32>
    %84 = vector.shape_cast %83 : vector<4xf32> to vector<1x4xf32>
    %85 = vector.broadcast %84 : vector<1x4xf32> to vector<4x4xf32>
    %86 = arith.mulf %57, %85 : vector<4x4xf32>
    %cst_52 = arith.constant dense<0.000000e+00> : vector<4xf32>
    %87 = vector.multi_reduction <add>, %86, %cst_52 [1] : vector<4x4xf32> to vector<4xf32>
    %cst_53 = arith.constant 8.500000e-01 : f32
    %88 = vector.broadcast %cst_53 : f32 to vector<4xf32>
    %89 = arith.mulf %88, %87 : vector<4xf32>
    %cst_54 = arith.constant 2.000000e+00 : f32
    %90 = vector.broadcast %cst_54 : f32 to vector<4xf32>
    %91 = arith.mulf %90, %73 : vector<4xf32>
    %92 = arith.addf %64, %91 : vector<4xf32>
    %cst_55 = arith.constant 2.000000e+00 : f32
    %93 = vector.broadcast %cst_55 : f32 to vector<4xf32>
    %94 = arith.mulf %93, %82 : vector<4xf32>
    %95 = arith.addf %92, %94 : vector<4xf32>
    %96 = arith.addf %95, %89 : vector<4xf32>
    %cst_56 = arith.constant 0.141666666 : f32
    %97 = vector.broadcast %cst_56 : f32 to vector<4xf32>
    %98 = arith.mulf %97, %96 : vector<4xf32>
    %99 = arith.addf %58, %98 : vector<4xf32>
    %100 = vector.shape_cast %99 : vector<4xf32> to vector<1x4xf32>
    %101 = tpu.concatenate %56, %100 in 0 : vector<1x4xf32>, vector<1x4xf32> -> vector<2x4xf32>
    %c0_57 = arith.constant 0 : index
    %c0_58 = arith.constant 0 : index
    %102 = vector.load %arg17[%c0_57, %c0_58] : memref<2x4xf32, #tpu.memory_space<vmem>>, vector<2x4xf32>
    tpu.vector_store %arg17[%c0_57, %c0_58], %101 {strides = array<i32>} : memref<2x4xf32, #tpu.memory_space<vmem>>, vector<2x4xf32>,
    %c0_59 = arith.constant 0 : index
    %c0_60 = arith.constant 0 : index
    %103 = vector.load %arg9[%c0_59, %c0_60] : memref<4x128xf32, #tpu.memory_space<vmem>>, vector<4x128xf32>
    %cst_61 = arith.constant dense<0.000000e+00> : vector<2x128xf32>
    %104 = tpu.matmul %101, %103, %cst_61 {dimension_numbers = #tpu.dot_dimension_numbers<[1], [0], [0], [1], [0, 0, 1, 1], [], []>} : vector<2x4xf32>, vector<4x128xf32>, vector<2x128xf32> -> vector<2x128xf32>
    %c0_62 = arith.constant 0 : index
    %c0_63 = arith.constant 0 : index
    %105 = vector.load %arg10[%c0_62, %c0_63] : memref<1x128xf32, #tpu.memory_space<vmem>>, vector<1x128xf32>
    %106 = vector.broadcast %105 : vector<1x128xf32> to vector<2x128xf32>
    %107 = arith.addf %104, %106 : vector<2x128xf32>
    %cst_64 = arith.constant 0.000000e+00 : f32
    %108 = vector.broadcast %cst_64 : f32 to vector<2x128xf32>
    %109 = arith.maximumf %107, %108 : vector<2x128xf32>
    %c0_65 = arith.constant 0 : index
    %c0_66 = arith.constant 0 : index
    %c0_67 = arith.constant 0 : index
    %110 = vector.load %arg11[%c0_65, %c0_66, %c0_67] : memref<4x128x1024xf32, #tpu.memory_space<vmem>>, vector<1x128x1024xf32>
    %111 = vector.shape_cast %110 : vector<1x128x1024xf32> to vector<128x1024xf32>
    %cst_68 = arith.constant dense<0.000000e+00> : vector<2x1024xf32>
    %112 = tpu.matmul %109, %111, %cst_68 {dimension_numbers = #tpu.dot_dimension_numbers<[1], [0], [0], [1], [0, 0, 1, 1], [], []>} : vector<2x128xf32>, vector<128x1024xf32>, vector<2x1024xf32> -> vector<2x1024xf32>
    %c0_69 = arith.constant 0 : index
    %c0_70 = arith.constant 0 : index
    %113 = vector.load %arg12[%c0_69, %c0_70] : memref<4x1024xf32, #tpu.memory_space<vmem>>, vector<1x1024xf32>
    %114 = vector.broadcast %113 : vector<1x1024xf32> to vector<2x1024xf32>
    %115 = arith.addf %112, %114 : vector<2x1024xf32>
    %cst_71 = arith.constant 0.000000e+00 : f32
    %116 = vector.broadcast %cst_71 : f32 to vector<2x1024xf32>
    %117 = arith.maximumf %115, %116 : vector<2x1024xf32>
    %c1_72 = arith.constant 1 : index
    %c0_73 = arith.constant 0 : index
    %c0_74 = arith.constant 0 : index
    %118 = vector.load %arg11[%c1_72, %c0_73, %c0_74] : memref<4x128x1024xf32, #tpu.memory_space<vmem>>, vector<1x128x1024xf32>
    %119 = vector.shape_cast %118 : vector<1x128x1024xf32> to vector<128x1024xf32>
    %cst_75 = arith.constant dense<0.000000e+00> : vector<2x1024xf32>
    %120 = tpu.matmul %109, %119, %cst_75 {dimension_numbers = #tpu.dot_dimension_numbers<[1], [0], [0], [1], [0, 0, 1, 1], [], []>} : vector<2x128xf32>, vector<128x1024xf32>, vector<2x1024xf32> -> vector<2x1024xf32>
    %c1_76 = arith.constant 1 : index
    %c0_77 = arith.constant 0 : index
    %121 = vector.load %arg12[%c1_76, %c0_77] : memref<4x1024xf32, #tpu.memory_space<vmem>>, vector<1x1024xf32>
    %122 = vector.broadcast %121 : vector<1x1024xf32> to vector<2x1024xf32>
    %123 = arith.addf %120, %122 : vector<2x1024xf32>
    %cst_78 = arith.constant 0.000000e+00 : f32
    %124 = vector.broadcast %cst_78 : f32 to vector<2x1024xf32>
    %125 = arith.maximumf %123, %124 : vector<2x1024xf32>
    %c2_79 = arith.constant 2 : index
    %c0_80 = arith.constant 0 : index
    %c0_81 = arith.constant 0 : index
    %126 = vector.load %arg11[%c2_79, %c0_80, %c0_81] : memref<4x128x1024xf32, #tpu.memory_space<vmem>>, vector<1x128x1024xf32>
    %127 = vector.shape_cast %126 : vector<1x128x1024xf32> to vector<128x1024xf32>
    %cst_82 = arith.constant dense<0.000000e+00> : vector<2x1024xf32>
    %128 = tpu.matmul %109, %127, %cst_82 {dimension_numbers = #tpu.dot_dimension_numbers<[1], [0], [0], [1], [0, 0, 1, 1], [], []>} : vector<2x128xf32>, vector<128x1024xf32>, vector<2x1024xf32> -> vector<2x1024xf32>
    %c2_83 = arith.constant 2 : index
    %c0_84 = arith.constant 0 : index
    %129 = vector.load %arg12[%c2_83, %c0_84] : memref<4x1024xf32, #tpu.memory_space<vmem>>, vector<1x1024xf32>
    %130 = vector.broadcast %129 : vector<1x1024xf32> to vector<2x1024xf32>
    %131 = arith.addf %128, %130 : vector<2x1024xf32>
    %cst_85 = arith.constant 0.000000e+00 : f32
    %132 = vector.broadcast %cst_85 : f32 to vector<2x1024xf32>
    %133 = arith.maximumf %131, %132 : vector<2x1024xf32>
    %c3_86 = arith.constant 3 : index
    %c0_87 = arith.constant 0 : index
    %c0_88 = arith.constant 0 : index
    %134 = vector.load %arg11[%c3_86, %c0_87, %c0_88] : memref<4x128x1024xf32, #tpu.memory_space<vmem>>, vector<1x128x1024xf32>
    %135 = vector.shape_cast %134 : vector<1x128x1024xf32> to vector<128x1024xf32>
    %cst_89 = arith.constant dense<0.000000e+00> : vector<2x1024xf32>
    %136 = tpu.matmul %109, %135, %cst_89 {dimension_numbers = #tpu.dot_dimension_numbers<[1], [0], [0], [1], [0, 0, 1, 1], [], []>} : vector<2x128xf32>, vector<128x1024xf32>, vector<2x1024xf32> -> vector<2x1024xf32>
    %c3_90 = arith.constant 3 : index
    %c0_91 = arith.constant 0 : index
    %137 = vector.load %arg12[%c3_90, %c0_91] : memref<4x1024xf32, #tpu.memory_space<vmem>>, vector<1x1024xf32>
    %138 = vector.broadcast %137 : vector<1x1024xf32> to vector<2x1024xf32>
    %139 = arith.addf %136, %138 : vector<2x1024xf32>
    %cst_92 = arith.constant 0.000000e+00 : f32
    %140 = vector.broadcast %cst_92 : f32 to vector<2x1024xf32>
    %141 = arith.maximumf %139, %140 : vector<2x1024xf32>
    %c0_93 = arith.constant 0 : index
    %c0_94 = arith.constant 0 : index
    %142 = vector.load %arg13[%c0_93, %c0_94] : memref<64x4xf32, #tpu.memory_space<vmem>>, vector<64x4xf32>
    %c0_95 = arith.constant 0 : index
    %c0_96 = arith.constant 0 : index
    %143 = vector.load %arg14[%c0_95, %c0_96] : memref<64x1xf32, #tpu.memory_space<vmem>>, vector<64x1xf32>
    %c0_97 = arith.constant 0 : index
    %c0_98 = arith.constant 0 : index
    %144 = vector.load %arg15[%c0_97, %c0_98] : memref<48x64xf32, #tpu.memory_space<vmem>>, vector<48x64xf32>
    %c0_99 = arith.constant 0 : index
    %c0_100 = arith.constant 0 : index
    %145 = vector.load %arg16[%c0_99, %c0_100] : memref<48x1xf32, #tpu.memory_space<vmem>>, vector<48x1xf32>
    %146 = vector.extract_strided_slice %117 {offsets = [0, 0], sizes = [1, 1024], strides = [1, 1]} : vector<2x1024xf32> to vector<1x1024xf32>
    %147 = vector.extract_strided_slice %125 {offsets = [0, 0], sizes = [1, 1024], strides = [1, 1]} : vector<2x1024xf32> to vector<1x1024xf32>
    %148 = vector.extract_strided_slice %133 {offsets = [0, 0], sizes = [1, 1024], strides = [1, 1]} : vector<2x1024xf32> to vector<1x1024xf32>
    %149 = vector.extract_strided_slice %141 {offsets = [0, 0], sizes = [1, 1024], strides = [1, 1]} : vector<2x1024xf32> to vector<1x1024xf32>
    %150 = tpu.concatenate %146, %147, %148, %149 in 0 : vector<1x1024xf32>, vector<1x1024xf32>, vector<1x1024xf32>, vector<1x1024xf32> -> vector<4x1024xf32>
    %cst_101 = arith.constant dense<0.000000e+00> : vector<64x1024xf32>
    %151 = tpu.matmul %142, %150, %cst_101 {dimension_numbers = #tpu.dot_dimension_numbers<[1], [0], [0], [1], [0, 0, 1, 1], [], []>} : vector<64x4xf32>, vector<4x1024xf32>, vector<64x1024xf32> -> vector<64x1024xf32>
    %152 = vector.broadcast %143 : vector<64x1xf32> to vector<64x1024xf32>
    %153 = arith.addf %151, %152 : vector<64x1024xf32>
    %cst_102 = arith.constant 0.000000e+00 : f32
    %154 = vector.broadcast %cst_102 : f32 to vector<64x1024xf32>
    %155 = arith.maximumf %153, %154 : vector<64x1024xf32>
    %cst_103 = arith.constant dense<0.000000e+00> : vector<48x1024xf32>
    %156 = tpu.matmul %144, %155, %cst_103 {dimension_numbers = #tpu.dot_dimension_numbers<[1], [0], [0], [1], [0, 0, 1, 1], [], []>} : vector<48x64xf32>, vector<64x1024xf32>, vector<48x1024xf32> -> vector<48x1024xf32>
    %157 = vector.broadcast %145 : vector<48x1xf32> to vector<48x1024xf32>
    %158 = arith.addf %156, %157 : vector<48x1024xf32>
    %159 = arith.negf %158 : vector<48x1024xf32>
    %160 = math.exp %159 : vector<48x1024xf32>
    %cst_104 = arith.constant 1.000000e+00 : f32
    %161 = vector.broadcast %cst_104 : f32 to vector<48x1024xf32>
    %162 = arith.addf %161, %160 : vector<48x1024xf32>
    %163 = arith.divf %161, %162 : vector<48x1024xf32>
    %c0_105 = arith.constant 0 : index
    %c0_106 = arith.constant 0 : index
    %c0_107 = arith.constant 0 : index
    %164 = vector.load %arg18[%c0_105, %c0_106, %c0_107] : memref<2x48x1024xf32, #tpu.memory_space<vmem>>, vector<1x48x1024xf32>
    %165 = vector.shape_cast %164 : vector<1x48x1024xf32> to vector<48x1024xf32>
    %166 = vector.shape_cast %163 : vector<48x1024xf32> to vector<1x48x1024xf32>
    tpu.vector_store %arg18[%c0_105, %c0_106, %c0_107], %166 {strides = array<i32>} : memref<2x48x1024xf32, #tpu.memory_space<vmem>>, vector<1x48x1024xf32>,
    %167 = vector.extract_strided_slice %117 {offsets = [1, 0], sizes = [1, 1024], strides = [1, 1]} : vector<2x1024xf32> to vector<1x1024xf32>
    %168 = vector.extract_strided_slice %125 {offsets = [1, 0], sizes = [1, 1024], strides = [1, 1]} : vector<2x1024xf32> to vector<1x1024xf32>
    %169 = vector.extract_strided_slice %133 {offsets = [1, 0], sizes = [1, 1024], strides = [1, 1]} : vector<2x1024xf32> to vector<1x1024xf32>
    %170 = vector.extract_strided_slice %141 {offsets = [1, 0], sizes = [1, 1024], strides = [1, 1]} : vector<2x1024xf32> to vector<1x1024xf32>
    %171 = tpu.concatenate %167, %168, %169, %170 in 0 : vector<1x1024xf32>, vector<1x1024xf32>, vector<1x1024xf32>, vector<1x1024xf32> -> vector<4x1024xf32>
    %cst_108 = arith.constant dense<0.000000e+00> : vector<64x1024xf32>
    %172 = tpu.matmul %142, %171, %cst_108 {dimension_numbers = #tpu.dot_dimension_numbers<[1], [0], [0], [1], [0, 0, 1, 1], [], []>} : vector<64x4xf32>, vector<4x1024xf32>, vector<64x1024xf32> -> vector<64x1024xf32>
    %173 = vector.broadcast %143 : vector<64x1xf32> to vector<64x1024xf32>
    %174 = arith.addf %172, %173 : vector<64x1024xf32>
    %cst_109 = arith.constant 0.000000e+00 : f32
    %175 = vector.broadcast %cst_109 : f32 to vector<64x1024xf32>
    %176 = arith.maximumf %174, %175 : vector<64x1024xf32>
    %cst_110 = arith.constant dense<0.000000e+00> : vector<48x1024xf32>
    %177 = tpu.matmul %144, %176, %cst_110 {dimension_numbers = #tpu.dot_dimension_numbers<[1], [0], [0], [1], [0, 0, 1, 1], [], []>} : vector<48x64xf32>, vector<64x1024xf32>, vector<48x1024xf32> -> vector<48x1024xf32>
    %178 = vector.broadcast %145 : vector<48x1xf32> to vector<48x1024xf32>
    %179 = arith.addf %177, %178 : vector<48x1024xf32>
    %180 = arith.negf %179 : vector<48x1024xf32>
    %181 = math.exp %180 : vector<48x1024xf32>
    %cst_111 = arith.constant 1.000000e+00 : f32
    %182 = vector.broadcast %cst_111 : f32 to vector<48x1024xf32>
    %183 = arith.addf %182, %181 : vector<48x1024xf32>
    %184 = arith.divf %182, %183 : vector<48x1024xf32>
    %c1_112 = arith.constant 1 : index
    %c0_113 = arith.constant 0 : index
    %c0_114 = arith.constant 0 : index
    %185 = vector.load %arg18[%c1_112, %c0_113, %c0_114] : memref<2x48x1024xf32, #tpu.memory_space<vmem>>, vector<1x48x1024xf32>
    %186 = vector.shape_cast %185 : vector<1x48x1024xf32> to vector<48x1024xf32>
    %187 = vector.shape_cast %184 : vector<48x1024xf32> to vector<1x48x1024xf32>
    tpu.vector_store %arg18[%c1_112, %c0_113, %c0_114], %187 {strides = array<i32>} : memref<2x48x1024xf32, #tpu.memory_space<vmem>>, vector<1x48x1024xf32>,
    return
  }
  func.func @transform_0(%arg0: i32) -> (i32, i32, i32) {
    %c0_i32 = arith.constant 0 : i32
    %c0_i32_0 = arith.constant 0 : i32
    %c0_i32_1 = arith.constant 0 : i32
    %c0_i32_2 = arith.constant 0 : i32
    return %c0_i32, %c0_i32_0, %c0_i32_1 : i32, i32, i32
  }
  func.func @transform_1(%arg0: i32) -> (i32, i32) {
    %c0_i32 = arith.constant 0 : i32
    %c0_i32_0 = arith.constant 0 : i32
    %c0_i32_1 = arith.constant 0 : i32
    return %c0_i32, %c0_i32_0 : i32, i32
  }
  func.func @transform_2(%arg0: i32) -> (i32, i32) {
    %c0_i32 = arith.constant 0 : i32
    %c0_i32_0 = arith.constant 0 : i32
    %c0_i32_1 = arith.constant 0 : i32
    return %c0_i32, %c0_i32_0 : i32, i32
  }
  func.func @transform_3(%arg0: i32) -> (i32, i32, i32) {
    %c0_i32 = arith.constant 0 : i32
    %c0_i32_0 = arith.constant 0 : i32
    %c0_i32_1 = arith.constant 0 : i32
    %c0_i32_2 = arith.constant 0 : i32
    return %c0_i32, %c0_i32_0, %c0_i32_1 : i32, i32, i32
  }
  func.func @transform_4(%arg0: i32) -> (i32, i32) {
    %c0_i32 = arith.constant 0 : i32
    %c0_i32_0 = arith.constant 0 : i32
    %c0_i32_1 = arith.constant 0 : i32
    return %c0_i32, %c0_i32_0 : i32, i32
  }
  func.func @transform_5(%arg0: i32) -> (i32, i32) {
    %c0_i32 = arith.constant 0 : i32
    %c0_i32_0 = arith.constant 0 : i32
    %c0_i32_1 = arith.constant 0 : i32
    return %c0_i32, %c0_i32_0 : i32, i32
  }
  func.func @transform_6(%arg0: i32) -> (i32, i32) {
    %c0_i32 = arith.constant 0 : i32
    %c0_i32_0 = arith.constant 0 : i32
    %c0_i32_1 = arith.constant 0 : i32
    return %c0_i32, %c0_i32_0 : i32, i32
  }
  func.func @transform_7(%arg0: i32) -> (i32, i32) {
    %c0_i32 = arith.constant 0 : i32
    %c0_i32_0 = arith.constant 0 : i32
    %c0_i32_1 = arith.constant 0 : i32
    return %c0_i32, %c0_i32_0 : i32, i32
  }
  func.func @transform_8(%arg0: i32) -> (i32, i32) {
    %c0_i32 = arith.constant 0 : i32
    %c0_i32_0 = arith.constant 0 : i32
    %c0_i32_1 = arith.constant 0 : i32
    return %c0_i32, %c0_i32_0 : i32, i32
  }
  func.func @transform_9(%arg0: i32) -> (i32, i32) {
    %c0_i32 = arith.constant 0 : i32
    %c0_i32_0 = arith.constant 0 : i32
    %c0_i32_1 = arith.constant 0 : i32
    return %c0_i32, %c0_i32_0 : i32, i32
  }
  func.func @transform_10(%arg0: i32) -> (i32, i32, i32) {
    %c0_i32 = arith.constant 0 : i32
    %c0_i32_0 = arith.constant 0 : i32
    %c0_i32_1 = arith.constant 0 : i32
    %c0_i32_2 = arith.constant 0 : i32
    return %c0_i32, %c0_i32_0, %c0_i32_1 : i32, i32, i32
  }
  func.func @transform_11(%arg0: i32) -> (i32, i32) {
    %c0_i32 = arith.constant 0 : i32
    %c0_i32_0 = arith.constant 0 : i32
    %c0_i32_1 = arith.constant 0 : i32
    return %c0_i32, %c0_i32_0 : i32, i32
  }
  func.func @transform_12(%arg0: i32) -> (i32, i32) {
    %c0_i32 = arith.constant 0 : i32
    %c0_i32_0 = arith.constant 0 : i32
    %c0_i32_1 = arith.constant 0 : i32
    return %c0_i32, %c0_i32_0 : i32, i32
  }
  func.func @transform_13(%arg0: i32) -> (i32, i32) {
    %c0_i32 = arith.constant 0 : i32
    %c0_i32_0 = arith.constant 0 : i32
    %c0_i32_1 = arith.constant 0 : i32
    return %c0_i32, %c0_i32_0 : i32, i32
  }
  func.func @transform_14(%arg0: i32) -> (i32, i32) {
    %c0_i32 = arith.constant 0 : i32
    %c0_i32_0 = arith.constant 0 : i32
    %c0_i32_1 = arith.constant 0 : i32
    return %c0_i32, %c0_i32_0 : i32, i32
  }
  func.func @transform_15(%arg0: i32) -> (i32, i32) {
    %c0_i32 = arith.constant 0 : i32
    %c0_i32_0 = arith.constant 0 : i32
    %c0_i32_1 = arith.constant 0 : i32
    return %c0_i32, %c0_i32_0 : i32, i32
  }
  func.func @transform_16(%arg0: i32) -> (i32, i32) {
    %c0_i32 = arith.constant 0 : i32
    %c0_i32_0 = arith.constant 0 : i32
    %c0_i32_1 = arith.constant 0 : i32
    return %c0_i32, %c0_i32_0 : i32, i32
  }
  func.func @transform_17(%arg0: i32) -> (i32, i32, i32) {
    %c0_i32 = arith.constant 0 : i32
    %c0_i32_0 = arith.constant 0 : i32
    %c0_i32_1 = arith.constant 0 : i32
    %c0_i32_2 = arith.constant 0 : i32
    return %c0_i32, %c0_i32_0, %c0_i32_1 : i32, i32, i32
  }
}

</mosaic_0001>

<llo_original>
// kernel: forward.2
$region0: #{forward.2}
  #allocation0 [shape = 'u32[]', space=smem, size = 0x4, offset = 0x4, fixed_abs, tag = 'smem constant byte address 0x4 - core index']
  #allocation1 [shape = 'u32[144,128]{1,0:T(1,128)}', space=vmem, size = 0x12000, scoped, tag = 'internal scratch']
  %s0 = inlined_call_operand.vmem [shape: f32[4,27,4096], index: 0, kind: input, shape index: {}]
  %s1 = inlined_call_operand.vmem [shape: f32[16,27], index: 1, kind: input, shape index: {}]
  %s2 = inlined_call_operand.vmem [shape: f32[16,1], index: 2, kind: input, shape index: {}]
  %s3 = inlined_call_operand.vmem [shape: f32[16,4096], index: 3, kind: output, shape index: {}]
  %s4 = sld [smem:[#allocation0]]
  $region87: #{forward.2} parent=0
    _
  %s6 = ssub.s32 1, %s4
  %s7 = scalar_select 0, %s6, %s4
  $region1: #{forward.2} parent=0
    #allocation2 [shape = 'u8[1048576]{0}', space=vmem, size = 0x100000, scoped, tag = 'input window, operand 0']
    #allocation3 [shape = 'u8[131072]{0}', space=vmem, size = 0x20000, scoped, tag = 'output window, operand 0']
    loop: start=0, step=1, limit=6
    $region2: #{forward.2} parent=1 // loop_pre_header
      _
    $region3: #{forward.2} parent=1 // loop_header
      %s9 = sphi 0, %s13
      %p10 = scmp.ge.s32.totalorder %s9, 6
      %s19 = sphi 0, %s21
      %s22 = sphi 0, %s19
      %s23 = sphi 0, %s22
      %s39 = sphi 0, %s23
      %s43 = sphi 0, %s43
      %s45 = sphi 0, %s43
      %s46 = sphi 0, %s45
      %s60 = sphi 0, %s46
      %s64 = sphi 0, %s64
      %s66 = sphi 0, %s64
      %s67 = sphi 0, %s66
      %s81 = sphi 0, %s67
      %s87 = sphi 0, %s89
      %s90 = sphi 0, %s87
      %s91 = sphi 0, %s90
      %s107 = sphi 0, %s91
    $region4: #{forward.2} parent=1 // loop_header_branch
      %12 = sbr.rel (%p10) target = $region8
    $region5: #{forward.2} parent=1 // loop_body
      %s14 = ssub.s32 %s9, 1
      %s15 = ssub.s32 %s9, 2
      %s16 = sadd.s32 %s9, 1
      %s17 = ssub.s32 %s9, %s16
      %p18 = scmp.eq.s32.totalorder %s17, 0
      %s20 = sadd.s32 %s19, 1
      %s21 = scalar_select %p18, %s19, %s20
      %p24 = pneg %p18
      %p25 = scmp.eq.s32.totalorder %s9, 3
      %p26 = por %p24, %p25
      %p27 = scmp.ne.s32.totalorder %s19, %s22
      %p28 = scmp.eq.s32.totalorder %s9, 0
      %p29 = por %p27, %p28
      %p30 = scmp.ne.s32.totalorder %s19, %s22
      %p31 = scmp.eq.s32.totalorder %s14, 3
      %p32 = por %p30, %p31
      %p33 = scmp.ne.s32.totalorder %s22, %s23
      %p34 = scmp.eq.s32.totalorder %s14, 0
      %p35 = por %p33, %p34
      %p36 = scmp.ne.s32.totalorder %s22, %s23
      %p37 = scmp.eq.s32.totalorder %s15, 3
      %p38 = por %p36, %p37
      %p40 = scmp.ne.s32.totalorder %s23, %s39
      %p41 = scmp.eq.s32.totalorder %s15, 0
      %p42 = por %p40, %p41
      %s44 = sadd.s32 %s43, 1
      %p47 = scmp.eq.s32.totalorder %s9, 3
      %p48 = scmp.ne.s32.totalorder %s43, %s45
      %p49 = scmp.eq.s32.totalorder %s9, 0
      %p50 = por %p48, %p49
      %p51 = scmp.ne.s32.totalorder %s43, %s45
      %p52 = scmp.eq.s32.totalorder %s14, 3
      %p53 = por %p51, %p52
      %p54 = scmp.ne.s32.totalorder %s45, %s46
      %p55 = scmp.eq.s32.totalorder %s14, 0
      %p56 = por %p54, %p55
      %p57 = scmp.ne.s32.totalorder %s45, %s46
      %p58 = scmp.eq.s32.totalorder %s15, 3
      %p59 = por %p57, %p58
      %p61 = scmp.ne.s32.totalorder %s46, %s60
      %p62 = scmp.eq.s32.totalorder %s15, 0
      %p63 = por %p61, %p62
      %s65 = sadd.s32 %s64, 1
      %p68 = scmp.eq.s32.totalorder %s9, 3
      %p69 = scmp.ne.s32.totalorder %s64, %s66
      %p70 = scmp.eq.s32.totalorder %s9, 0
      %p71 = por %p69, %p70
      %p72 = scmp.ne.s32.totalorder %s64, %s66
      %p73 = scmp.eq.s32.totalorder %s14, 3
      %p74 = por %p72, %p73
      %p75 = scmp.ne.s32.totalorder %s66, %s67
      %p76 = scmp.eq.s32.totalorder %s14, 0
      %p77 = por %p75, %p76
      %p78 = scmp.ne.s32.totalorder %s66, %s67
      %p79 = scmp.eq.s32.totalorder %s15, 3
      %p80 = por %p78, %p79
      %p82 = scmp.ne.s32.totalorder %s67, %s81
      %p83 = scmp.eq.s32.totalorder %s15, 0
      %p84 = por %p82, %p83
      %s85 = ssub.s32 %s9, %s16
      %p86 = scmp.eq.s32.totalorder %s85, 0
      %s88 = sadd.s32 %s87, 1
      %s89 = scalar_select %p86, %s87, %s88
      %p92 = pneg %p86
      %p93 = scmp.eq.s32.totalorder %s9, 3
      %p94 = por %p92, %p93
      %p95 = scmp.ne.s32.totalorder %s87, %s90
      %p96 = scmp.eq.s32.totalorder %s9, 0
      %p97 = por %p95, %p96
      %p98 = scmp.ne.s32.totalorder %s87, %s90
      %p99 = scmp.eq.s32.totalorder %s14, 3
      %p100 = por %p98, %p99
      %p101 = scmp.ne.s32.totalorder %s90, %s91
      %p102 = scmp.eq.s32.totalorder %s14, 0
      %p103 = por %p101, %p102
      %p104 = scmp.ne.s32.totalorder %s90, %s91
      %p105 = scmp.eq.s32.totalorder %s15, 3
      %p106 = por %p104, %p105
      %p108 = scmp.ne.s32.totalorder %s91, %s107
      %p109 = scmp.eq.s32.totalorder %s15, 0
      %p110 = por %p108, %p109
      %p111 = scmp.le.s32.totalorder 1, %s9
      %p112 = scmp.lt.s32.totalorder %s9, 5
      %p113 = pnand %p111, %p112
      %p114 = pneg %p113
      // Predicated region
      $region9: #{forward.2} parent=5 // pred_check
        _
      $region10: #{forward.2} parent=5 // pred_check_branch
        %116 = sbr.rel (%p113) target = $region12
      $region11: #{forward.2} parent=5 // pred_region
        %s117 = ssub.s32 %s9, 1
        // Predicated region
        $region13: #{forward.2} parent=11 // pred_check
          %p118 = pneg %p56
        $region14: #{forward.2} parent=11 // pred_check_branch
          %120 = sbr.rel (%p118) target = $region16
        $region15: #{forward.2} parent=11 // pred_region
          _
        $region16: #{forward.2} parent=11 // pred_fallthru
          _
        // Predicated region
        $region17: #{forward.2} parent=11 // pred_check
          %p121 = pneg %p77
        $region18: #{forward.2} parent=11 // pred_check_branch
          %123 = sbr.rel (%p121) target = $region20
        $region19: #{forward.2} parent=11 // pred_region
          _
        $region20: #{forward.2} parent=11 // pred_fallthru
          _
      $region12: #{forward.2} parent=5 // pred_fallthru
        _
      %p124 = scmp.lt.s32.totalorder %s9, 4
      // Predicated region
      $region21: #{forward.2} parent=5 // pred_check
        %p125 = pneg %p124
      $region22: #{forward.2} parent=5 // pred_check_branch
        %127 = sbr.rel (%p125) target = $region24
      $region23: #{forward.2} parent=5 // pred_region
        // Predicated region
        $region25: #{forward.2} parent=23 // pred_check
          %p128 = pneg %p29
        $region26: #{forward.2} parent=23 // pred_check_branch
          %130 = sbr.rel (%p128) target = $region28
        $region27: #{forward.2} parent=23 // pred_region
          %s131 = sand.u32 %s19, 1
          %s132 = sand.u32 %s19, 1
          %s133 = smul.addr %s132, 1024
          %s134 = scalar_lea.vmem [#allocation2], %s133
          %s135 = smul.u32 8, %s9
          %s136 = smul.addr %s135, 8
          %s137 = scalar_lea.vmem %s0, %s136
          // Predicated region
          $region29: #{forward.2} parent=27 // pred_check
            _
          $region30: #{forward.2} parent=27 // pred_check_branch
            %139 = sbr.rel (0) target = $region32
          $region31: #{forward.2} parent=27 // pred_region
            // Predicated region
            $region33: #{forward.2} parent=31 // pred_check
              _
            $region34: #{forward.2} parent=31 // pred_check_branch
              %141 = sbr.rel (0) target = $region36
            $region35: #{forward.2} parent=31 // pred_region
              loop: start=0, step=1, limit=1
              $region37: #{forward.2} parent=35 // loop_pre_header
                _
              $region38: #{forward.2} parent=35 // loop_header
                %s143 = sphi 0, %s147
                %p144 = scmp.ge.s32.totalorder %s143, 1
                %s148 = sphi %s137, %s137
                %s149 = sphi %s134, %s134
              $region39: #{forward.2} parent=35 // loop_header_branch
                %146 = sbr.rel (%p144) target = $region43
              $region40: #{forward.2} parent=35 // loop_body
                %v150 = vld [vmem:[%s148] sm:$0xff]
                %151 = vst [vmem:[%s149] sm:$0xff] %v150
                %v152 = vld [vmem:[%s148 + $0x8] sm:$0xff]
                %153 = vst [vmem:[%s149 + $0x8] sm:$0xff] %v152
                %v154 = vld [vmem:[%s148 + $0x10] sm:$0xff]
                %155 = vst [vmem:[%s149 + $0x10] sm:$0xff] %v154
                %v156 = vld [vmem:[%s148 + $0x18] sm:$0xff]
                %157 = vst [vmem:[%s149 + $0x18] sm:$0xff] %v156
                %v158 = vld [vmem:[%s148 + $0x20] sm:$0xff]
                %159 = vst [vmem:[%s149 + $0x20] sm:$0xff] %v158
                %v160 = vld [vmem:[%s148 + $0x28] sm:$0xff]
                %161 = vst [vmem:[%s149 + $0x28] sm:$0xff] %v160
                %v162 = vld [vmem:[%s148 + $0x30] sm:$0xff]
                %163 = vst [vmem:[%s149 + $0x30] sm:$0xff] %v162
                %v164 = vld [vmem:[%s148 + $0x38] sm:$0xff]
                %165 = vst [vmem:[%s149 + $0x38] sm:$0xff] %v164
                %v166 = vld [vmem:[%s148 + $0x100] sm:$0xff]
                %167 = vst [vmem:[%s149 + $0x40] sm:$0xff] %v166
                %v168 = vld [vmem:[%s148 + $0x108] sm:$0xff]
                %169 = vst [vmem:[%s149 + $0x48] sm:$0xff] %v168
                %v170 = vld [vmem:[%s148 + $0x110] sm:$0xff]
                %171 = vst [vmem:[%s149 + $0x50] sm:$0xff] %v170
                %v172 = vld [vmem:[%s148 + $0x118] sm:$0xff]
                %173 = vst [vmem:[%s149 + $0x58] sm:$0xff] %v172
                %v174 = vld [vmem:[%s148 + $0x120] sm:$0xff]
                %175 = vst [vmem:[%s149 + $0x60] sm:$0xff] %v174
                %v176 = vld [vmem:[%s148 + $0x128] sm:$0xff]
                %177 = vst [vmem:[%s149 + $0x68] sm:$0xff] %v176
                %v178 = vld [vmem:[%s148 + $0x130] sm:$0xff]
                %179 = vst [vmem:[%s149 + $0x70] sm:$0xff] %v178
                %v180 = vld [vmem:[%s148 + $0x138] sm:$0xff]
                %181 = vst [vmem:[%s149 + $0x78] sm:$0xff] %v180
                %v182 = vld [vmem:[%s148 + $0x200] sm:$0xff]
                %183 = vst [vmem:[%s149 + $0x80] sm:$0xff] %v182
                %v184 = vld [vmem:[%s148 + $0x208] sm:$0xff]
                %185 = vst [vmem:[%s149 + $0x88] sm:$0xff] %v184
                %v186 = vld [vmem:[%s148 + $0x210] sm:$0xff]
                %187 = vst [vmem:[%s149 + $0x90] sm:$0xff] %v186
                %v188 = vld [vmem:[%s148 + $0x218] sm:$0xff]
                %189 = vst [vmem:[%s149 + $0x98] sm:$0xff] %v188
                %v190 = vld [vmem:[%s148 + $0x220] sm:$0xff]
                %191 = vst [vmem:[%s149 + $0xa0] sm:$0xff] %v190
                %v192 = vld [vmem:[%s148 + $0x228] sm:$0xff]
                %193 = vst [vmem:[%s149 + $0xa8] sm:$0xff] %v192
                %v194 = vld [vmem:[%s148 + $0x230] sm:$0xff]
                %195 = vst [vmem:[%s149 + $0xb0] sm:$0xff] %v194
                %v196 = vld [vmem:[%s148 + $0x238] sm:$0xff]
                %197 = vst [vmem:[%s149 + $0xb8] sm:$0xff] %v196
                %v198 = vld [vmem:[%s148 + $0x300] sm:$0xff]
                %199 = vst [vmem:[%s149 + $0xc0] sm:$0xff] %v198
                %v200 = vld [vmem:[%s148 + $0x308] sm:$0xff]
                %201 = vst [vmem:[%s149 + $0xc8] sm:$0xff] %v200
                %v202 = vld [vmem:[%s148 + $0x310] sm:$0xff]
                %203 = vst [vmem:[%s149 + $0xd0] sm:$0xff] %v202
                %v204 = vld [vmem:[%s148 + $0x318] sm:$0xff]
                %205 = vst [vmem:[%s149 + $0xd8] sm:$0xff] %v204
                %v206 = vld [vmem:[%s148 + $0x320] sm:$0xff]
                %207 = vst [vmem:[%s149 + $0xe0] sm:$0xff] %v206
                %v208 = vld [vmem:[%s148 + $0x328] sm:$0xff]
                %209 = vst [vmem:[%s149 + $0xe8] sm:$0xff] %v208
                %v210 = vld [vmem:[%s148 + $0x330] sm:$0xff]
                %211 = vst [vmem:[%s149 + $0xf0] sm:$0xff] %v210
                %v212 = vld [vmem:[%s148 + $0x338] sm:$0xff]
                %213 = vst [vmem:[%s149 + $0xf8] sm:$0xff] %v212
                %v214 = vld [vmem:[%s148 + $0x400] sm:$0xff]
                %215 = vst [vmem:[%s149 + $0x100] sm:$0xff] %v214
                %v216 = vld [vmem:[%s148 + $0x408] sm:$0xff]
                %217 = vst [vmem:[%s149 + $0x108] sm:$0xff] %v216
                %v218 = vld [vmem:[%s148 + $0x410] sm:$0xff]
                %219 = vst [vmem:[%s149 + $0x110] sm:$0xff] %v218
                %v220 = vld [vmem:[%s148 + $0x418] sm:$0xff]
                %221 = vst [vmem:[%s149 + $0x118] sm:$0xff] %v220
                %v222 = vld [vmem:[%s148 + $0x420] sm:$0xff]
                %223 = vst [vmem:[%s149 + $0x120] sm:$0xff] %v222
                %v224 = vld [vmem:[%s148 + $0x428] sm:$0xff]
                %225 = vst [vmem:[%s149 + $0x128] sm:$0xff] %v224
                %v226 = vld [vmem:[%s148 + $0x430] sm:$0xff]
                %227 = vst [vmem:[%s149 + $0x130] sm:$0xff] %v226
                %v228 = vld [vmem:[%s148 + $0x438] sm:$0xff]
                %229 = vst [vmem:[%s149 + $0x138] sm:$0xff] %v228
                %v230 = vld [vmem:[%s148 + $0x500] sm:$0xff]
                %231 = vst [vmem:[%s149 + $0x140] sm:$0xff] %v230
                %v232 = vld [vmem:[%s148 + $0x508] sm:$0xff]
                %233 = vst [vmem:[%s149 + $0x148] sm:$0xff] %v232
                %v234 = vld [vmem:[%s148 + $0x510] sm:$0xff]
                %235 = vst [vmem:[%s149 + $0x150] sm:$0xff] %v234
                %v236 = vld [vmem:[%s148 + $0x518] sm:$0xff]
                %237 = vst [vmem:[%s149 + $0x158] sm:$0xff] %v236
                %v238 = vld [vmem:[%s148 + $0x520] sm:$0xff]
                %239 = vst [vmem:[%s149 + $0x160] sm:$0xff] %v238
                %v240 = vld [vmem:[%s148 + $0x528] sm:$0xff]
                %241 = vst [vmem:[%s149 + $0x168] sm:$0xff] %v240
                %v242 = vld [vmem:[%s148 + $0x530] sm:$0xff]
                %243 = vst [vmem:[%s149 + $0x170] sm:$0xff] %v242
                %v244 = vld [vmem:[%s148 + $0x538] sm:$0xff]
                %245 = vst [vmem:[%s149 + $0x178] sm:$0xff] %v244
                %v246 = vld [vmem:[%s148 + $0x600] sm:$0xff]
                %247 = vst [vmem:[%s149 + $0x180] sm:$0xff] %v246
                %v248 = vld [vmem:[%s148 + $0x608] sm:$0xff]
                %249 = vst [vmem:[%s149 + $0x188] sm:$0xff] %v248
                %v250 = vld [vmem:[%s148 + $0x610] sm:$0xff]
                %251 = vst [vmem:[%s149 + $0x190] sm:$0xff] %v250
                %v252 = vld [vmem:[%s148 + $0x618] sm:$0xff]
                %253 = vst [vmem:[%s149 + $0x198] sm:$0xff] %v252
                %v254 = vld [vmem:[%s148 + $0x620] sm:$0xff]
                %255 = vst [vmem:[%s149 + $0x1a0] sm:$0xff] %v254
                %v256 = vld [vmem:[%s148 + $0x628] sm:$0xff]
                %257 = vst [vmem:[%s149 + $0x1a8] sm:$0xff] %v256
                %v258 = vld [vmem:[%s148 + $0x630] sm:$0xff]
                %259 = vst [vmem:[%s149 + $0x1b0] sm:$0xff] %v258
                %v260 = vld [vmem:[%s148 + $0x638] sm:$0xff]
                %261 = vst [vmem:[%s149 + $0x1b8] sm:$0xff] %v260
                %v262 = vld [vmem:[%s148 + $0x700] sm:$0xff]
                %263 = vst [vmem:[%s149 + $0x1c0] sm:$0xff] %v262
                %v264 = vld [vmem:[%s148 + $0x708] sm:$0xff]
                %265 = vst [vmem:[%s149 + $0x1c8] sm:$0xff] %v264
                %v266 = vld [vmem:[%s148 + $0x710] sm:$0xff]
                %267 = vst [vmem:[%s149 + $0x1d0] sm:$0xff] %v266
                %v268 = vld [vmem:[%s148 + $0x718] sm:$0xff]
                %269 = vst [vmem:[%s149 + $0x1d8] sm:$0xff] %v268
                %v270 = vld [vmem:[%s148 + $0x720] sm:$0xff]
                %271 = vst [vmem:[%s149 + $0x1e0] sm:$0xff] %v270
                %v272 = vld [vmem:[%s148 + $0x728] sm:$0xff]
                %273 = vst [vmem:[%s149 + $0x1e8] sm:$0xff] %v272
                %v274 = vld [vmem:[%s148 + $0x730] sm:$0xff]
                %275 = vst [vmem:[%s149 + $0x1f0] sm:$0xff] %v274
                %v276 = vld [vmem:[%s148 + $0x738] sm:$0xff]
                %277 = vst [vmem:[%s149 + $0x1f8] sm:$0xff] %v276
                %v278 = vld [vmem:[%s148 + $0x800] sm:$0xff]
                %279 = vst [vmem:[%s149 + $0x200] sm:$0xff] %v278
                %v280 = vld [vmem:[%s148 + $0x808] sm:$0xff]
                %281 = vst [vmem:[%s149 + $0x208] sm:$0xff] %v280
                %v282 = vld [vmem:[%s148 + $0x810] sm:$0xff]
                %283 = vst [vmem:[%s149 + $0x210] sm:$0xff] %v282
                %v284 = vld [vmem:[%s148 + $0x818] sm:$0xff]
                %285 = vst [vmem:[%s149 + $0x218] sm:$0xff] %v284
                %v286 = vld [vmem:[%s148 + $0x820] sm:$0xff]
                %287 = vst [vmem:[%s149 + $0x220] sm:$0xff] %v286
                %v288 = vld [vmem:[%s148 + $0x828] sm:$0xff]
                %289 = vst [vmem:[%s149 + $0x228] sm:$0xff] %v288
                %v290 = vld [vmem:[%s148 + $0x830] sm:$0xff]
                %291 = vst [vmem:[%s149 + $0x230] sm:$0xff] %v290
                %v292 = vld [vmem:[%s148 + $0x838] sm:$0xff]
                %293 = vst [vmem:[%s149 + $0x238] sm:$0xff] %v292
                %v294 = vld [vmem:[%s148 + $0x900] sm:$0xff]
                %295 = vst [vmem:[%s149 + $0x240] sm:$0xff] %v294
                %v296 = vld [vmem:[%s148 + $0x908] sm:$0xff]
                %297 = vst [vmem:[%s149 + $0x248] sm:$0xff] %v296
                %v298 = vld [vmem:[%s148 + $0x910] sm:$0xff]
                %299 = vst [vmem:[%s149 + $0x250] sm:$0xff] %v298
                %v300 = vld [vmem:[%s148 + $0x918] sm:$0xff]
                %301 = vst [vmem:[%s149 + $0x258] sm:$0xff] %v300
                %v302 = vld [vmem:[%s148 + $0x920] sm:$0xff]
                %303 = vst [vmem:[%s149 + $0x260] sm:$0xff] %v302
                %v304 = vld [vmem:[%s148 + $0x928] sm:$0xff]
                %305 = vst [vmem:[%s149 + $0x268] sm:$0xff] %v304
                %v306 = vld [vmem:[%s148 + $0x930] sm:$0xff]
                %307 = vst [vmem:[%s149 + $0x270] sm:$0xff] %v306
                %v308 = vld [vmem:[%s148 + $0x938] sm:$0xff]
                %309 = vst [vmem:[%s149 + $0x278] sm:$0xff] %v308
                %v310 = vld [vmem:[%s148 + $0xa00] sm:$0xff]
                %311 = vst [vmem:[%s149 + $0x280] sm:$0xff] %v310
                %v312 = vld [vmem:[%s148 + $0xa08] sm:$0xff]
                %313 = vst [vmem:[%s149 + $0x288] sm:$0xff] %v312
                %v314 = vld [vmem:[%s148 + $0xa10] sm:$0xff]
                %315 = vst [vmem:[%s149 + $0x290] sm:$0xff] %v314
                %v316 = vld [vmem:[%s148 + $0xa18] sm:$0xff]
                %317 = vst [vmem:[%s149 + $0x298] sm:$0xff] %v316
                %v318 = vld [vmem:[%s148 + $0xa20] sm:$0xff]
                %319 = vst [vmem:[%s149 + $0x2a0] sm:$0xff] %v318
                %v320 = vld [vmem:[%s148 + $0xa28] sm:$0xff]
                %321 = vst [vmem:[%s149 + $0x2a8] sm:$0xff] %v320
                %v322 = vld [vmem:[%s148 + $0xa30] sm:$0xff]
                %323 = vst [vmem:[%s149 + $0x2b0] sm:$0xff] %v322
                %v324 = vld [vmem:[%s148 + $0xa38] sm:$0xff]
                %325 = vst [vmem:[%s149 + $0x2b8] sm:$0xff] %v324
                %v326 = vld [vmem:[%s148 + $0xb00] sm:$0xff]
                %327 = vst [vmem:[%s149 + $0x2c0] sm:$0xff] %v326
                %v328 = vld [vmem:[%s148 + $0xb08] sm:$0xff]
                %329 = vst [vmem:[%s149 + $0x2c8] sm:$0xff] %v328
                %v330 = vld [vmem:[%s148 + $0xb10] sm:$0xff]
                %331 = vst [vmem:[%s149 + $0x2d0] sm:$0xff] %v330
                %v332 = vld [vmem:[%s148 + $0xb18] sm:$0xff]
                %333 = vst [vmem:[%s149 + $0x2d8] sm:$0xff] %v332
                %v334 = vld [vmem:[%s148 + $0xb20] sm:$0xff]
                %335 = vst [vmem:[%s149 + $0x2e0] sm:$0xff] %v334
                %v336 = vld [vmem:[%s148 + $0xb28] sm:$0xff]
                %337 = vst [vmem:[%s149 + $0x2e8] sm:$0xff] %v336
                %v338 = vld [vmem:[%s148 + $0xb30] sm:$0xff]
                %339 = vst [vmem:[%s149 + $0x2f0] sm:$0xff] %v338
                %v340 = vld [vmem:[%s148 + $0xb38] sm:$0xff]
                %341 = vst [vmem:[%s149 + $0x2f8] sm:$0xff] %v340
                %v342 = vld [vmem:[%s148 + $0xc00] sm:$0xff]
                %343 = vst [vmem:[%s149 + $0x300] sm:$0xff] %v342
                %v344 = vld [vmem:[%s148 + $0xc08] sm:$0xff]
                %345 = vst [vmem:[%s149 + $0x308] sm:$0xff] %v344
                %v346 = vld [vmem:[%s148 + $0xc10] sm:$0xff]
                %347 = vst [vmem:[%s149 + $0x310] sm:$0xff] %v346
                %v348 = vld [vmem:[%s148 + $0xc18] sm:$0xff]
                %349 = vst [vmem:[%s149 + $0x318] sm:$0xff] %v348
                %v350 = vld [vmem:[%s148 + $0xc20] sm:$0xff]
                %351 = vst [vmem:[%s149 + $0x320] sm:$0xff] %v350
                %v352 = vld [vmem:[%s148 + $0xc28] sm:$0xff]
                %353 = vst [vmem:[%s149 + $0x328] sm:$0xff] %v352
                %v354 = vld [vmem:[%s148 + $0xc30] sm:$0xff]
                %355 = vst [vmem:[%s149 + $0x330] sm:$0xff] %v354
                %v356 = vld [vmem:[%s148 + $0xc38] sm:$0xff]
                %357 = vst [vmem:[%s149 + $0x338] sm:$0xff] %v356
                %v358 = vld [vmem:[%s148 + $0xd00] sm:$0xff]
                %359 = vst [vmem:[%s149 + $0x340] sm:$0xff] %v358
                %v360 = vld [vmem:[%s148 + $0xd08] sm:$0xff]
                %361 = vst [vmem:[%s149 + $0x348] sm:$0xff] %v360
                %v362 = vld [vmem:[%s148 + $0xd10] sm:$0xff]
                %363 = vst [vmem:[%s149 + $0x350] sm:$0xff] %v362
                %v364 = vld [vmem:[%s148 + $0xd18] sm:$0xff]
                %365 = vst [vmem:[%s149 + $0x358] sm:$0xff] %v364
                %v366 = vld [vmem:[%s148 + $0xd20] sm:$0xff]
                %367 = vst [vmem:[%s149 + $0x360] sm:$0xff] %v366
                %v368 = vld [vmem:[%s148 + $0xd28] sm:$0xff]
                %369 = vst [vmem:[%s149 + $0x368] sm:$0xff] %v368
                %v370 = vld [vmem:[%s148 + $0xd30] sm:$0xff]
                %371 = vst [vmem:[%s149 + $0x370] sm:$0xff] %v370
                %v372 = vld [vmem:[%s148 + $0xd38] sm:$0xff]
                %373 = vst [vmem:[%s149 + $0x378] sm:$0xff] %v372
                %v374 = vld [vmem:[%s148 + $0xe00] sm:$0xff]
                %375 = vst [vmem:[%s149 + $0x380] sm:$0xff] %v374
                %v376 = vld [vmem:[%s148 + $0xe08] sm:$0xff]
                %377 = vst [vmem:[%s149 + $0x388] sm:$0xff] %v376
                %v378 = vld [vmem:[%s148 + $0xe10] sm:$0xff]
                %379 = vst [vmem:[%s149 + $0x390] sm:$0xff] %v378
                %v380 = vld [vmem:[%s148 + $0xe18] sm:$0xff]
                %381 = vst [vmem:[%s149 + $0x398] sm:$0xff] %v380
                %v382 = vld [vmem:[%s148 + $0xe20] sm:$0xff]
                %383 = vst [vmem:[%s149 + $0x3a0] sm:$0xff] %v382
                %v384 = vld [vmem:[%s148 + $0xe28] sm:$0xff]
                %385 = vst [vmem:[%s149 + $0x3a8] sm:$0xff] %v384
                %v386 = vld [vmem:[%s148 + $0xe30] sm:$0xff]
                %387 = vst [vmem:[%s149 + $0x3b0] sm:$0xff] %v386
                %v388 = vld [vmem:[%s148 + $0xe38] sm:$0xff]
                %389 = vst [vmem:[%s149 + $0x3b8] sm:$0xff] %v388
                %v390 = vld [vmem:[%s148 + $0xf00] sm:$0xff]
                %391 = vst [vmem:[%s149 + $0x3c0] sm:$0xff] %v390
                %v392 = vld [vmem:[%s148 + $0xf08] sm:$0xff]
                %393 = vst [vmem:[%s149 + $0x3c8] sm:$0xff] %v392
                %v394 = vld [vmem:[%s148 + $0xf10] sm:$0xff]
                %395 = vst [vmem:[%s149 + $0x3d0] sm:$0xff] %v394
                %v396 = vld [vmem:[%s148 + $0xf18] sm:$0xff]
                %397 = vst [vmem:[%s149 + $0x3d8] sm:$0xff] %v396
                %v398 = vld [vmem:[%s148 + $0xf20] sm:$0xff]
                %399 = vst [vmem:[%s149 + $0x3e0] sm:$0xff] %v398
                %v400 = vld [vmem:[%s148 + $0xf28] sm:$0xff]
                %401 = vst [vmem:[%s149 + $0x3e8] sm:$0xff] %v400
                %v402 = vld [vmem:[%s148 + $0xf30] sm:$0xff]
                %403 = vst [vmem:[%s149 + $0x3f0] sm:$0xff] %v402
                %v404 = vld [vmem:[%s148 + $0xf38] sm:$0xff]
                %405 = vst [vmem:[%s149 + $0x3f8] sm:$0xff] %v404
              $region41: #{forward.2} parent=35 // loop_footer
                %s147 = sadd.s32 1, %s143
              $region42: #{forward.2} parent=35 // loop_footer_branch
                %142 = sbr.rel target = $region38
              $region43: #{forward.2} parent=35 // loop_exit
                _
            $region36: #{forward.2} parent=31 // pred_fallthru
              _
            // Predicated region
            $region44: #{forward.2} parent=31 // pred_check
              _
            $region45: #{forward.2} parent=31 // pred_check_branch
              %407 = sbr.rel target = $region47
            $region46: #{forward.2} parent=31 // pred_region
              _
            $region47: #{forward.2} parent=31 // pred_fallthru
              _
          $region32: #{forward.2} parent=27 // pred_fallthru
            _
          %408 = vnop
        $region28: #{forward.2} parent=23 // pred_fallthru
          _
      $region24: #{forward.2} parent=5 // pred_fallthru
        _
      %p409 = scmp.le.s32.totalorder 1, %s9
      %p410 = scmp.lt.s32.totalorder %s9, 5
      %p411 = pnand %p409, %p410
      %p412 = pneg %p411
      // Predicated region
      $region48: #{forward.2} parent=5 // pred_check
        _
      $region49: #{forward.2} parent=5 // pred_check_branch
        %414 = sbr.rel (%p411) target = $region51
      $region50: #{forward.2} parent=5 // pred_region
        %s415 = ssub.s32 %s9, 1
        %s416 = sand.u32 %s22, 1
        %s417 = sand.u32 %s22, 1
        %s418 = smul.addr %s417, 1024
        %s419 = scalar_lea.vmem [#allocation2], %s418
        // Predicated region
        $region52: #{forward.2} parent=50 // pred_check
          %p420 = pneg %p35
        $region53: #{forward.2} parent=50 // pred_check_branch
          %422 = sbr.rel (%p420) target = $region55
        $region54: #{forward.2} parent=50 // pred_region
          _
        $region55: #{forward.2} parent=50 // pred_fallthru
          _
        %s423 = sand.u32 %s22, 1
        %s424 = sand.u32 %s22, 1
        %s425 = smul.addr %s424, 1024
        %s426 = scalar_lea.vmem [#allocation2], %s425
        %p427 = pneg %p35
        %p428 = pneg %p32
        %p429 = pneg %p56
        %p430 = pneg %p53
        %p431 = pneg %p77
        %p432 = pneg %p74
        %p433 = pneg %p103
        %p434 = pneg %p100
        %s435 = sand.u32 %s90, 1
        %s436 = sand.u32 %s90, 1
        %s437 = smul.addr %s436, 128
        %s438 = scalar_lea.vmem [#allocation3], %s437
        %s439 = smul.u32 8, %s14
        %s440 = smul.u32 8, %s14
        %v441 = vld [vmem:[%s1] sm:$0xff]
        %v442 = vld [vmem:[%s1 + $0x8] sm:$0xff]
        %v443 = vld [vmem:[%s419] sm:$0xff]
        %v444 = vld [vmem:[%s419 + $0x8] sm:$0xff]
        %v445 = vld [vmem:[%s419 + $0x10] sm:$0xff]
        %v446 = vld [vmem:[%s419 + $0x18] sm:$0xff]
        %v447 = vld [vmem:[%s419 + $0x20] sm:$0xff]
        %v448 = vld [vmem:[%s419 + $0x28] sm:$0xff]
        %v449 = vld [vmem:[%s419 + $0x30] sm:$0xff]
        %v450 = vld [vmem:[%s419 + $0x38] sm:$0xff]
        %v451 = vld [vmem:[%s419 + $0x40] sm:$0xff]
        %v452 = vld [vmem:[%s419 + $0x48] sm:$0xff]
        %v453 = vld [vmem:[%s419 + $0x50] sm:$0xff]
        %v454 = vld [vmem:[%s419 + $0x58] sm:$0xff]
        %v455 = vld [vmem:[%s419 + $0x60] sm:$0xff]
        %v456 = vld [vmem:[%s419 + $0x68] sm:$0xff]
        %v457 = vld [vmem:[%s419 + $0x70] sm:$0xff]
        %v458 = vld [vmem:[%s419 + $0x78] sm:$0xff]
        %v459 = vld [vmem:[%s419 + $0x80] sm:$0xff]
        %v460 = vld [vmem:[%s419 + $0x88] sm:$0xff]
        %v461 = vld [vmem:[%s419 + $0x90] sm:$0xff]
        %v462 = vld [vmem:[%s419 + $0x98] sm:$0xff]
        %v463 = vld [vmem:[%s419 + $0xa0] sm:$0xff]
        %v464 = vld [vmem:[%s419 + $0xa8] sm:$0xff]
        %v465 = vld [vmem:[%s419 + $0xb0] sm:$0xff]
        %v466 = vld [vmem:[%s419 + $0xb8] sm:$0xff]
        %v467 = vld [vmem:[%s419 + $0xc0] sm:$0x7]
        %v468 = vld [vmem:[%s419 + $0xc8] sm:$0x7]
        %v469 = vld [vmem:[%s419 + $0xd0] sm:$0x7]
        %v470 = vld [vmem:[%s419 + $0xd8] sm:$0x7]
        %v471 = vld [vmem:[%s419 + $0xe0] sm:$0x7]
        %v472 = vld [vmem:[%s419 + $0xe8] sm:$0x7]
        %v473 = vld [vmem:[%s419 + $0xf0] sm:$0x7]
        %v474 = vld [vmem:[%s419 + $0xf8] sm:$0x7]
        %vm475 = vcmask 220160
        %v477 = vsel %vm475, %v441, 0
        %v480 = vsel %vm475, %v442, 0
        %vm482 = vcmask 1042432
        %v484 = vsel %vm482, %v467, 0
        %v487 = vsel %vm482, %v468, 0
        %v490 = vsel %vm482, %v469, 0
        %v493 = vsel %vm482, %v470, 0
        %v496 = vsel %vm482, %v471, 0
        %v499 = vsel %vm482, %v472, 0
        %v502 = vsel %vm482, %v473, 0
        %v505 = vsel %vm482, %v474, 0
        %507 = vmatprep.subr.mxu0 0.0
        %508 = vmatpush1.msra.mxu0 0.0
        %509 = vmatprep.subr.mxu0 0.0
        %510 = vmatpush1.msra.mxu0 0.0
        %511 = vmatprep.subr.mxu0 0.0
        %512 = vmatpush1.msra.mxu0 0.0
        %513 = vmatprep.subr.mxu0 0.0
        %514 = vmatpush1.msra.mxu0 0.0
        %515 = vmatprep.subr.mxu0 0.0
        %516 = vmatpush1.msra.mxu0 0.0
        %517 = vmatprep.subr.mxu0 0.0
        %518 = vmatpush1.msra.mxu0 0.0
        %519 = vmatprep.subr.mxu0 0.0
        %520 = vmatpush1.msra.mxu0 0.0
        %521 = vmatprep.subr.mxu0 0.0
        %522 = vmatpush1.msra.mxu0 0.0
        %523 = vmatprep.subr.mxu0 0.0
        %524 = vmatpush1.msra.mxu0 0.0
        %525 = vmatprep.subr.mxu0 0.0
        %526 = vmatpush1.msra.mxu0 0.0
        %527 = vmatprep.subr.mxu0 0.0
        %528 = vmatpush1.msra.mxu0 0.0
        %529 = vmatprep.subr.mxu0 0.0
        %530 = vmatpush1.msra.mxu0 0.0
        %531 = vmatprep.subr.mxu0 %v487
        %532 = vmatpush1.msra.mxu0 %v484
        %533 = vmatprep.subr.mxu0 %v460
        %534 = vmatpush1.msra.mxu0 %v459
        %535 = vmatprep.subr.mxu0 %v452
        %536 = vmatpush1.msra.mxu0 %v451
        %537 = vmatprep.subr.mxu0 %v444
        %538 = vmatpush1.msra.mxu0 %v443
        %539 = vmatprep.subr.mxu0 0.0
        %540 = vmatpush2.msra.mxu0 0.0
        %541 = vmatprep.subr.mxu0 0.0
        %542 = vmatpush2.msra.mxu0 0.0
        %543 = vmatprep.subr.mxu0 0.0
        %544 = vmatpush2.msra.mxu0 0.0
        %545 = vmatprep.subr.mxu0 0.0
        %546 = vmatpush2.msra.mxu0 0.0
        %547 = vmatprep.subr.mxu0 0.0
        %548 = vmatpush2.msra.mxu0 0.0
        %549 = vmatprep.subr.mxu0 0.0
        %550 = vmatpush2.msra.mxu0 0.0
        %551 = vmatprep.subr.mxu0 0.0
        %552 = vmatpush2.msra.mxu0 0.0
        %553 = vmatprep.subr.mxu0 0.0
        %554 = vmatpush2.msra.mxu0 0.0
        %555 = vmatprep.subr.mxu0 0.0
        %556 = vmatpush2.msra.mxu0 0.0
        %557 = vmatprep.subr.mxu0 0.0
        %558 = vmatpush2.msra.mxu0 0.0
        %559 = vmatprep.subr.mxu0 0.0
        %560 = vmatpush2.msra.mxu0 0.0
        %561 = vmatprep.subr.mxu0 0.0
        %562 = vmatpush2.msra.mxu0 0.0
        %563 = vmatprep.subr.mxu0 0.0
        %564 = vmatpush2.msra.mxu0 0.0
        %565 = vmatprep.subr.mxu0 0.0
        %566 = vmatpush2.msra.mxu0 0.0
        %567 = vmatprep.subr.mxu0 0.0
        %568 = vmatpush2.msra.mxu0 0.0
        %569 = vmatprep.subr.mxu0 0.0
        %570 = vmatpush2.msra.mxu0 0.0
        %571 = vmatprep.mubr.f32.mxu0 0.0
        %572 = vmatmul.mubr.f32.gmra.mxu0 %v477
        %v573 = vpop.f32.mrf.mxu0
        %v574 = vadd.f32 0.0, %v573
        %v575 = vpop.f32.mrf.mxu0
        %v576 = vadd.f32 0.0, %v575
        %577 = vmatprep.mubr.f32.mxu0 0.0
        %578 = vmatmul.mubr.f32.gmra.mxu0 %v480
        %v579 = vpop.f32.mrf.mxu0
        %v580 = vadd.f32 0.0, %v579
        %v581 = vpop.f32.mrf.mxu0
        %v582 = vadd.f32 0.0, %v581
        %583 = vdwg.mxu0
        %584 = vmatprep.subr.mxu0 0.0
        %585 = vmatpush1.msra.mxu0 0.0
        %586 = vmatprep.subr.mxu0 0.0
        %587 = vmatpush1.msra.mxu0 0.0
        %588 = vmatprep.subr.mxu0 0.0
        %589 = vmatpush1.msra.mxu0 0.0
        %590 = vmatprep.subr.mxu0 0.0
        %591 = vmatpush1.msra.mxu0 0.0
        %592 = vmatprep.subr.mxu0 0.0
        %593 = vmatpush1.msra.mxu0 0.0
        %594 = vmatprep.subr.mxu0 0.0
        %595 = vmatpush1.msra.mxu0 0.0
        %596 = vmatprep.subr.mxu0 0.0
        %597 = vmatpush1.msra.mxu0 0.0
        %598 = vmatprep.subr.mxu0 0.0
        %599 = vmatpush1.msra.mxu0 0.0
        %600 = vmatprep.subr.mxu0 0.0
        %601 = vmatpush1.msra.mxu0 0.0
        %602 = vmatprep.subr.mxu0 0.0
        %603 = vmatpush1.msra.mxu0 0.0
        %604 = vmatprep.subr.mxu0 0.0
        %605 = vmatpush1.msra.mxu0 0.0
        %606 = vmatprep.subr.mxu0 0.0
        %607 = vmatpush1.msra.mxu0 0.0
        %608 = vmatprep.subr.mxu0 %v493
        %609 = vmatpush1.msra.mxu0 %v490
        %610 = vmatprep.subr.mxu0 %v462
        %611 = vmatpush1.msra.mxu0 %v461
        %612 = vmatprep.subr.mxu0 %v454
        %613 = vmatpush1.msra.mxu0 %v453
        %614 = vmatprep.subr.mxu0 %v446
        %615 = vmatpush1.msra.mxu0 %v445
        %616 = vmatprep.subr.mxu0 0.0
        %617 = vmatpush2.msra.mxu0 0.0
        %618 = vmatprep.subr.mxu0 0.0
        %619 = vmatpush2.msra.mxu0 0.0
        %620 = vmatprep.subr.mxu0 0.0
        %621 = vmatpush2.msra.mxu0 0.0
        %622 = vmatprep.subr.mxu0 0.0
        %623 = vmatpush2.msra.mxu0 0.0
        %624 = vmatprep.subr.mxu0 0.0
        %625 = vmatpush2.msra.mxu0 0.0
        %626 = vmatprep.subr.mxu0 0.0
        %627 = vmatpush2.msra.mxu0 0.0
        %628 = vmatprep.subr.mxu0 0.0
        %629 = vmatpush2.msra.mxu0 0.0
        %630 = vmatprep.subr.mxu0 0.0
        %631 = vmatpush2.msra.mxu0 0.0
        %632 = vmatprep.subr.mxu0 0.0
        %633 = vmatpush2.msra.mxu0 0.0
        %634 = vmatprep.subr.mxu0 0.0
        %635 = vmatpush2.msra.mxu0 0.0
        %636 = vmatprep.subr.mxu0 0.0
        %637 = vmatpush2.msra.mxu0 0.0
        %638 = vmatprep.subr.mxu0 0.0
        %639 = vmatpush2.msra.mxu0 0.0
        %640 = vmatprep.subr.mxu0 0.0
        %641 = vmatpush2.msra.mxu0 0.0
        %642 = vmatprep.subr.mxu0 0.0
        %643 = vmatpush2.msra.mxu0 0.0
        %644 = vmatprep.subr.mxu0 0.0
        %645 = vmatpush2.msra.mxu0 0.0
        %646 = vmatprep.subr.mxu0 0.0
        %647 = vmatpush2.msra.mxu0 0.0
        %648 = vmatprep.mubr.f32.mxu0 0.0
        %649 = vmatmul.mubr.f32.gmra.mxu0 %v477
        %v650 = vpop.f32.mrf.mxu0
        %v651 = vadd.f32 0.0, %v650
        %v652 = vpop.f32.mrf.mxu0
        %v653 = vadd.f32 0.0, %v652
        %654 = vmatprep.mubr.f32.mxu0 0.0
        %655 = vmatmul.mubr.f32.gmra.mxu0 %v480
        %v656 = vpop.f32.mrf.mxu0
        %v657 = vadd.f32 0.0, %v656
        %v658 = vpop.f32.mrf.mxu0
        %v659 = vadd.f32 0.0, %v658
        %660 = vdwg.mxu0
        %661 = vmatprep.subr.mxu0 0.0
        %662 = vmatpush1.msra.mxu0 0.0
        %663 = vmatprep.subr.mxu0 0.0
        %664 = vmatpush1.msra.mxu0 0.0
        %665 = vmatprep.subr.mxu0 0.0
        %666 = vmatpush1.msra.mxu0 0.0
        %667 = vmatprep.subr.mxu0 0.0
        %668 = vmatpush1.msra.mxu0 0.0
        %669 = vmatprep.subr.mxu0 0.0
        %670 = vmatpush1.msra.mxu0 0.0
        %671 = vmatprep.subr.mxu0 0.0
        %672 = vmatpush1.msra.mxu0 0.0
        %673 = vmatprep.subr.mxu0 0.0
        %674 = vmatpush1.msra.mxu0 0.0
        %675 = vmatprep.subr.mxu0 0.0
        %676 = vmatpush1.msra.mxu0 0.0
        %677 = vmatprep.subr.mxu0 0.0
        %678 = vmatpush1.msra.mxu0 0.0
        %679 = vmatprep.subr.mxu0 0.0
        %680 = vmatpush1.msra.mxu0 0.0
        %681 = vmatprep.subr.mxu0 0.0
        %682 = vmatpush1.msra.mxu0 0.0
        %683 = vmatprep.subr.mxu0 0.0
        %684 = vmatpush1.msra.mxu0 0.0
        %685 = vmatprep.subr.mxu0 %v499
        %686 = vmatpush1.msra.mxu0 %v496
        %687 = vmatprep.subr.mxu0 %v464
        %688 = vmatpush1.msra.mxu0 %v463
        %689 = vmatprep.subr.mxu0 %v456
        %690 = vmatpush1.msra.mxu0 %v455
        %691 = vmatprep.subr.mxu0 %v448
        %692 = vmatpush1.msra.mxu0 %v447
        %693 = vmatprep.subr.mxu0 0.0
        %694 = vmatpush2.msra.mxu0 0.0
        %695 = vmatprep.subr.mxu0 0.0
        %696 = vmatpush2.msra.mxu0 0.0
        %697 = vmatprep.subr.mxu0 0.0
        %698 = vmatpush2.msra.mxu0 0.0
        %699 = vmatprep.subr.mxu0 0.0
        %700 = vmatpush2.msra.mxu0 0.0
        %701 = vmatprep.subr.mxu0 0.0
        %702 = vmatpush2.msra.mxu0 0.0
        %703 = vmatprep.subr.mxu0 0.0
        %704 = vmatpush2.msra.mxu0 0.0
        %705 = vmatprep.subr.mxu0 0.0
        %706 = vmatpush2.msra.mxu0 0.0
        %707 = vmatprep.subr.mxu0 0.0
        %708 = vmatpush2.msra.mxu0 0.0
        %709 = vmatprep.subr.mxu0 0.0
        %710 = vmatpush2.msra.mxu0 0.0
        %711 = vmatprep.subr.mxu0 0.0
        %712 = vmatpush2.msra.mxu0 0.0
        %713 = vmatprep.subr.mxu0 0.0
        %714 = vmatpush2.msra.mxu0 0.0
        %715 = vmatprep.subr.mxu0 0.0
        %716 = vmatpush2.msra.mxu0 0.0
        %717 = vmatprep.subr.mxu0 0.0
        %718 = vmatpush2.msra.mxu0 0.0
        %719 = vmatprep.subr.mxu0 0.0
        %720 = vmatpush2.msra.mxu0 0.0
        %721 = vmatprep.subr.mxu0 0.0
        %722 = vmatpush2.msra.mxu0 0.0
        %723 = vmatprep.subr.mxu0 0.0
        %724 = vmatpush2.msra.mxu0 0.0
        %725 = vmatprep.mubr.f32.mxu0 0.0
        %726 = vmatmul.mubr.f32.gmra.mxu0 %v477
        %v727 = vpop.f32.mrf.mxu0
        %v728 = vadd.f32 0.0, %v727
        %v729 = vpop.f32.mrf.mxu0
        %v730 = vadd.f32 0.0, %v729
        %731 = vmatprep.mubr.f32.mxu0 0.0
        %732 = vmatmul.mubr.f32.gmra.mxu0 %v480
        %v733 = vpop.f32.mrf.mxu0
        %v734 = vadd.f32 0.0, %v733
        %v735 = vpop.f32.mrf.mxu0
        %v736 = vadd.f32 0.0, %v735
        %737 = vdwg.mxu0
        %738 = vmatprep.subr.mxu0 0.0
        %739 = vmatpush1.msra.mxu0 0.0
        %740 = vmatprep.subr.mxu0 0.0
        %741 = vmatpush1.msra.mxu0 0.0
        %742 = vmatprep.subr.mxu0 0.0
        %743 = vmatpush1.msra.mxu0 0.0
        %744 = vmatprep.subr.mxu0 0.0
        %745 = vmatpush1.msra.mxu0 0.0
        %746 = vmatprep.subr.mxu0 0.0
        %747 = vmatpush1.msra.mxu0 0.0
        %748 = vmatprep.subr.mxu0 0.0
        %749 = vmatpush1.msra.mxu0 0.0
        %750 = vmatprep.subr.mxu0 0.0
        %751 = vmatpush1.msra.mxu0 0.0
        %752 = vmatprep.subr.mxu0 0.0
        %753 = vmatpush1.msra.mxu0 0.0
        %754 = vmatprep.subr.mxu0 0.0
        %755 = vmatpush1.msra.mxu0 0.0
        %756 = vmatprep.subr.mxu0 0.0
        %757 = vmatpush1.msra.mxu0 0.0
        %758 = vmatprep.subr.mxu0 0.0
        %759 = vmatpush1.msra.mxu0 0.0
        %760 = vmatprep.subr.mxu0 0.0
        %761 = vmatpush1.msra.mxu0 0.0
        %762 = vmatprep.subr.mxu0 %v505
        %763 = vmatpush1.msra.mxu0 %v502
        %764 = vmatprep.subr.mxu0 %v466
        %765 = vmatpush1.msra.mxu0 %v465
        %766 = vmatprep.subr.mxu0 %v458
        %767 = vmatpush1.msra.mxu0 %v457
        %768 = vmatprep.subr.mxu0 %v450
        %769 = vmatpush1.msra.mxu0 %v449
        %770 = vmatprep.subr.mxu0 0.0
        %771 = vmatpush2.msra.mxu0 0.0
        %772 = vmatprep.subr.mxu0 0.0
        %773 = vmatpush2.msra.mxu0 0.0
        %774 = vmatprep.subr.mxu0 0.0
        %775 = vmatpush2.msra.mxu0 0.0
        %776 = vmatprep.subr.mxu0 0.0
        %777 = vmatpush2.msra.mxu0 0.0
        %778 = vmatprep.subr.mxu0 0.0
        %779 = vmatpush2.msra.mxu0 0.0
        %780 = vmatprep.subr.mxu0 0.0
        %781 = vmatpush2.msra.mxu0 0.0
        %782 = vmatprep.subr.mxu0 0.0
        %783 = vmatpush2.msra.mxu0 0.0
        %784 = vmatprep.subr.mxu0 0.0
        %785 = vmatpush2.msra.mxu0 0.0
        %786 = vmatprep.subr.mxu0 0.0
        %787 = vmatpush2.msra.mxu0 0.0
        %788 = vmatprep.subr.mxu0 0.0
        %789 = vmatpush2.msra.mxu0 0.0
        %790 = vmatprep.subr.mxu0 0.0
        %791 = vmatpush2.msra.mxu0 0.0
        %792 = vmatprep.subr.mxu0 0.0
        %793 = vmatpush2.msra.mxu0 0.0
        %794 = vmatprep.subr.mxu0 0.0
        %795 = vmatpush2.msra.mxu0 0.0
        %796 = vmatprep.subr.mxu0 0.0
        %797 = vmatpush2.msra.mxu0 0.0
        %798 = vmatprep.subr.mxu0 0.0
        %799 = vmatpush2.msra.mxu0 0.0
        %800 = vmatprep.subr.mxu0 0.0
        %801 = vmatpush2.msra.mxu0 0.0
        %802 = vmatprep.mubr.f32.mxu0 0.0
        %803 = vmatmul.mubr.f32.gmra.mxu0 %v477
        %v804 = vpop.f32.mrf.mxu0
        %v805 = vadd.f32 0.0, %v804
        %v806 = vpop.f32.mrf.mxu0
        %v807 = vadd.f32 0.0, %v806
        %808 = vmatprep.mubr.f32.mxu0 0.0
        %809 = vmatmul.mubr.f32.gmra.mxu0 %v480
        %v810 = vpop.f32.mrf.mxu0
        %v811 = vadd.f32 0.0, %v810
        %v812 = vpop.f32.mrf.mxu0
        %v813 = vadd.f32 0.0, %v812
        %814 = vdwg.mxu0
        %s815 = scalar_lea.vmem %s419, 256 [#allocation2]
        %v816 = vld [vmem:[%s815] sm:$0xff]
        %v817 = vld [vmem:[%s815 + $0x8] sm:$0xff]
        %v818 = vld [vmem:[%s815 + $0x10] sm:$0xff]
        %v819 = vld [vmem:[%s815 + $0x18] sm:$0xff]
        %v820 = vld [vmem:[%s815 + $0x20] sm:$0xff]
        %v821 = vld [vmem:[%s815 + $0x28] sm:$0xff]
        %v822 = vld [vmem:[%s815 + $0x30] sm:$0xff]
        %v823 = vld [vmem:[%s815 + $0x38] sm:$0xff]
        %v824 = vld [vmem:[%s815 + $0x40] sm:$0xff]
        %v825 = vld [vmem:[%s815 + $0x48] sm:$0xff]
        %v826 = vld [vmem:[%s815 + $0x50] sm:$0xff]
        %v827 = vld [vmem:[%s815 + $0x58] sm:$0xff]
        %v828 = vld [vmem:[%s815 + $0x60] sm:$0xff]
        %v829 = vld [vmem:[%s815 + $0x68] sm:$0xff]
        %v830 = vld [vmem:[%s815 + $0x70] sm:$0xff]
        %v831 = vld [vmem:[%s815 + $0x78] sm:$0xff]
        %v832 = vld [vmem:[%s815 + $0x80] sm:$0xff]
        %v833 = vld [vmem:[%s815 + $0x88] sm:$0xff]
        %v834 = vld [vmem:[%s815 + $0x90] sm:$0xff]
        %v835 = vld [vmem:[%s815 + $0x98] sm:$0xff]
        %v836 = vld [vmem:[%s815 + $0xa0] sm:$0xff]
        %v837 = vld [vmem:[%s815 + $0xa8] sm:$0xff]
        %v838 = vld [vmem:[%s815 + $0xb0] sm:$0xff]
        %v839 = vld [vmem:[%s815 + $0xb8] sm:$0xff]
        %v840 = vld [vmem:[%s815 + $0xc0] sm:$0x7]
        %v841 = vld [vmem:[%s815 + $0xc8] sm:$0x7]
        %v842 = vld [vmem:[%s815 + $0xd0] sm:$0x7]
        %v843 = vld [vmem:[%s815 + $0xd8] sm:$0x7]
        %v844 = vld [vmem:[%s815 + $0xe0] sm:$0x7]
        %v845 = vld [vmem:[%s815 + $0xe8] sm:$0x7]
        %v846 = vld [vmem:[%s815 + $0xf0] sm:$0x7]
        %v847 = vld [vmem:[%s815 + $0xf8] sm:$0x7]
        %v849 = vsel %vm482, %v840, 0
        %v852 = vsel %vm482, %v841, 0
        %v855 = vsel %vm482, %v842, 0
        %v858 = vsel %vm482, %v843, 0
        %v861 = vsel %vm482, %v844, 0
        %v864 = vsel %vm482, %v845, 0
        %v867 = vsel %vm482, %v846, 0
        %v870 = vsel %vm482, %v847, 0
        %872 = vmatprep.subr.mxu0 0.0
        %873 = vmatpush1.msra.mxu0 0.0
        %874 = vmatprep.subr.mxu0 0.0
        %875 = vmatpush1.msra.mxu0 0.0
        %876 = vmatprep.subr.mxu0 0.0
        %877 = vmatpush1.msra.mxu0 0.0
        %878 = vmatprep.subr.mxu0 0.0
        %879 = vmatpush1.msra.mxu0 0.0
        %880 = vmatprep.subr.mxu0 0.0
        %881 = vmatpush1.msra.mxu0 0.0
        %882 = vmatprep.subr.mxu0 0.0
        %883 = vmatpush1.msra.mxu0 0.0
        %884 = vmatprep.subr.mxu0 0.0
        %885 = vmatpush1.msra.mxu0 0.0
        %886 = vmatprep.subr.mxu0 0.0
        %887 = vmatpush1.msra.mxu0 0.0
        %888 = vmatprep.subr.mxu0 0.0
        %889 = vmatpush1.msra.mxu0 0.0
        %890 = vmatprep.subr.mxu0 0.0
        %891 = vmatpush1.msra.mxu0 0.0
        %892 = vmatprep.subr.mxu0 0.0
        %893 = vmatpush1.msra.mxu0 0.0
        %894 = vmatprep.subr.mxu0 0.0
        %895 = vmatpush1.msra.mxu0 0.0
        %896 = vmatprep.subr.mxu0 %v852
        %897 = vmatpush1.msra.mxu0 %v849
        %898 = vmatprep.subr.mxu0 %v833
        %899 = vmatpush1.msra.mxu0 %v832
        %900 = vmatprep.subr.mxu0 %v825
        %901 = vmatpush1.msra.mxu0 %v824
        %902 = vmatprep.subr.mxu0 %v817
        %903 = vmatpush1.msra.mxu0 %v816
        %904 = vmatprep.subr.mxu0 0.0
        %905 = vmatpush2.msra.mxu0 0.0
        %906 = vmatprep.subr.mxu0 0.0
        %907 = vmatpush2.msra.mxu0 0.0
        %908 = vmatprep.subr.mxu0 0.0
        %909 = vmatpush2.msra.mxu0 0.0
        %910 = vmatprep.subr.mxu0 0.0
        %911 = vmatpush2.msra.mxu0 0.0
        %912 = vmatprep.subr.mxu0 0.0
        %913 = vmatpush2.msra.mxu0 0.0
        %914 = vmatprep.subr.mxu0 0.0
        %915 = vmatpush2.msra.mxu0 0.0
        %916 = vmatprep.subr.mxu0 0.0
        %917 = vmatpush2.msra.mxu0 0.0
        %918 = vmatprep.subr.mxu0 0.0
        %919 = vmatpush2.msra.mxu0 0.0
        %920 = vmatprep.subr.mxu0 0.0
        %921 = vmatpush2.msra.mxu0 0.0
        %922 = vmatprep.subr.mxu0 0.0
        %923 = vmatpush2.msra.mxu0 0.0
        %924 = vmatprep.subr.mxu0 0.0
        %925 = vmatpush2.msra.mxu0 0.0
        %926 = vmatprep.subr.mxu0 0.0
        %927 = vmatpush2.msra.mxu0 0.0
        %928 = vmatprep.subr.mxu0 0.0
        %929 = vmatpush2.msra.mxu0 0.0
        %930 = vmatprep.subr.mxu0 0.0
        %931 = vmatpush2.msra.mxu0 0.0
        %932 = vmatprep.subr.mxu0 0.0
        %933 = vmatpush2.msra.mxu0 0.0
        %934 = vmatprep.subr.mxu0 0.0
        %935 = vmatpush2.msra.mxu0 0.0
        %936 = vmatprep.mubr.f32.mxu0 0.0
        %937 = vmatmul.mubr.f32.gmra.mxu0 %v477
        %v938 = vpop.f32.mrf.mxu0
        %v939 = vadd.f32 0.0, %v938
        %v940 = vpop.f32.mrf.mxu0
        %v941 = vadd.f32 0.0, %v940
        %942 = vmatprep.mubr.f32.mxu0 0.0
        %943 = vmatmul.mubr.f32.gmra.mxu0 %v480
        %v944 = vpop.f32.mrf.mxu0
        %v945 = vadd.f32 0.0, %v944
        %v946 = vpop.f32.mrf.mxu0
        %v947 = vadd.f32 0.0, %v946
        %948 = vdwg.mxu0
        %949 = vmatprep.subr.mxu0 0.0
        %950 = vmatpush1.msra.mxu0 0.0
        %951 = vmatprep.subr.mxu0 0.0
        %952 = vmatpush1.msra.mxu0 0.0
        %953 = vmatprep.subr.mxu0 0.0
        %954 = vmatpush1.msra.mxu0 0.0
        %955 = vmatprep.subr.mxu0 0.0
        %956 = vmatpush1.msra.mxu0 0.0
        %957 = vmatprep.subr.mxu0 0.0
        %958 = vmatpush1.msra.mxu0 0.0
        %959 = vmatprep.subr.mxu0 0.0
        %960 = vmatpush1.msra.mxu0 0.0
        %961 = vmatprep.subr.mxu0 0.0
        %962 = vmatpush1.msra.mxu0 0.0
        %963 = vmatprep.subr.mxu0 0.0
        %964 = vmatpush1.msra.mxu0 0.0
        %965 = vmatprep.subr.mxu0 0.0
        %966 = vmatpush1.msra.mxu0 0.0
        %967 = vmatprep.subr.mxu0 0.0
        %968 = vmatpush1.msra.mxu0 0.0
        %969 = vmatprep.subr.mxu0 0.0
        %970 = vmatpush1.msra.mxu0 0.0
        %971 = vmatprep.subr.mxu0 0.0
        %972 = vmatpush1.msra.mxu0 0.0
        %973 = vmatprep.subr.mxu0 %v858
        %974 = vmatpush1.msra.mxu0 %v855
        %975 = vmatprep.subr.mxu0 %v835
        %976 = vmatpush1.msra.mxu0 %v834
        %977 = vmatprep.subr.mxu0 %v827
        %978 = vmatpush1.msra.mxu0 %v826
        %979 = vmatprep.subr.mxu0 %v819
        %980 = vmatpush1.msra.mxu0 %v818
        %981 = vmatprep.subr.mxu0 0.0
        %982 = vmatpush2.msra.mxu0 0.0
        %983 = vmatprep.subr.mxu0 0.0
        %984 = vmatpush2.msra.mxu0 0.0
        %985 = vmatprep.subr.mxu0 0.0
        %986 = vmatpush2.msra.mxu0 0.0
        %987 = vmatprep.subr.mxu0 0.0
        %988 = vmatpush2.msra.mxu0 0.0
        %989 = vmatprep.subr.mxu0 0.0
        %990 = vmatpush2.msra.mxu0 0.0
        %991 = vmatprep.subr.mxu0 0.0
        %992 = vmatpush2.msra.mxu0 0.0
        %993 = vmatprep.subr.mxu0 0.0
        %994 = vmatpush2.msra.mxu0 0.0
        %995 = vmatprep.subr.mxu0 0.0
        %996 = vmatpush2.msra.mxu0 0.0
        %997 = vmatprep.subr.mxu0 0.0
        %998 = vmatpush2.msra.mxu0 0.0
        %999 = vmatprep.subr.mxu0 0.0
        %1000 = vmatpush2.msra.mxu0 0.0
        %1001 = vmatprep.subr.mxu0 0.0
        %1002 = vmatpush2.msra.mxu0 0.0
        %1003 = vmatprep.subr.mxu0 0.0
        %1004 = vmatpush2.msra.mxu0 0.0
        %1005 = vmatprep.subr.mxu0 0.0
        %1006 = vmatpush2.msra.mxu0 0.0
        %1007 = vmatprep.subr.mxu0 0.0
        %1008 = vmatpush2.msra.mxu0 0.0
        %1009 = vmatprep.subr.mxu0 0.0
        %1010 = vmatpush2.msra.mxu0 0.0
        %1011 = vmatprep.subr.mxu0 0.0
        %1012 = vmatpush2.msra.mxu0 0.0
        %1013 = vmatprep.mubr.f32.mxu0 0.0
        %1014 = vmatmul.mubr.f32.gmra.mxu0 %v477
        %v1015 = vpop.f32.mrf.mxu0
        %v1016 = vadd.f32 0.0, %v1015
        %v1017 = vpop.f32.mrf.mxu0
        %v1018 = vadd.f32 0.0, %v1017
        %1019 = vmatprep.mubr.f32.mxu0 0.0
        %1020 = vmatmul.mubr.f32.gmra.mxu0 %v480
        %v1021 = vpop.f32.mrf.mxu0
        %v1022 = vadd.f32 0.0, %v1021
        %v1023 = vpop.f32.mrf.mxu0
        %v1024 = vadd.f32 0.0, %v1023
        %1025 = vdwg.mxu0
        %1026 = vmatprep.subr.mxu0 0.0
        %1027 = vmatpush1.msra.mxu0 0.0
        %1028 = vmatprep.subr.mxu0 0.0
        %1029 = vmatpush1.msra.mxu0 0.0
        %1030 = vmatprep.subr.mxu0 0.0
        %1031 = vmatpush1.msra.mxu0 0.0
        %1032 = vmatprep.subr.mxu0 0.0
        %1033 = vmatpush1.msra.mxu0 0.0
        %1034 = vmatprep.subr.mxu0 0.0
        %1035 = vmatpush1.msra.mxu0 0.0
        %1036 = vmatprep.subr.mxu0 0.0
        %1037 = vmatpush1.msra.mxu0 0.0
        %1038 = vmatprep.subr.mxu0 0.0
        %1039 = vmatpush1.msra.mxu0 0.0
        %1040 = vmatprep.subr.mxu0 0.0
        %1041 = vmatpush1.msra.mxu0 0.0
        %1042 = vmatprep.subr.mxu0 0.0
        %1043 = vmatpush1.msra.mxu0 0.0
        %1044 = vmatprep.subr.mxu0 0.0
        %1045 = vmatpush1.msra.mxu0 0.0
        %1046 = vmatprep.subr.mxu0 0.0
        %1047 = vmatpush1.msra.mxu0 0.0
        %1048 = vmatprep.subr.mxu0 0.0
        %1049 = vmatpush1.msra.mxu0 0.0
        %1050 = vmatprep.subr.mxu0 %v864
        %1051 = vmatpush1.msra.mxu0 %v861
        %1052 = vmatprep.subr.mxu0 %v837
        %1053 = vmatpush1.msra.mxu0 %v836
        %1054 = vmatprep.subr.mxu0 %v829
        %1055 = vmatpush1.msra.mxu0 %v828
        %1056 = vmatprep.subr.mxu0 %v821
        %1057 = vmatpush1.msra.mxu0 %v820
        %1058 = vmatprep.subr.mxu0 0.0
        %1059 = vmatpush2.msra.mxu0 0.0
        %1060 = vmatprep.subr.mxu0 0.0
        %1061 = vmatpush2.msra.mxu0 0.0
        %1062 = vmatprep.subr.mxu0 0.0
        %1063 = vmatpush2.msra.mxu0 0.0
        %1064 = vmatprep.subr.mxu0 0.0
        %1065 = vmatpush2.msra.mxu0 0.0
        %1066 = vmatprep.subr.mxu0 0.0
        %1067 = vmatpush2.msra.mxu0 0.0
        %1068 = vmatprep.subr.mxu0 0.0
        %1069 = vmatpush2.msra.mxu0 0.0
        %1070 = vmatprep.subr.mxu0 0.0
        %1071 = vmatpush2.msra.mxu0 0.0
        %1072 = vmatprep.subr.mxu0 0.0
        %1073 = vmatpush2.msra.mxu0 0.0
        %1074 = vmatprep.subr.mxu0 0.0
        %1075 = vmatpush2.msra.mxu0 0.0
        %1076 = vmatprep.subr.mxu0 0.0
        %1077 = vmatpush2.msra.mxu0 0.0
        %1078 = vmatprep.subr.mxu0 0.0
        %1079 = vmatpush2.msra.mxu0 0.0
        %1080 = vmatprep.subr.mxu0 0.0
        %1081 = vmatpush2.msra.mxu0 0.0
        %1082 = vmatprep.subr.mxu0 0.0
        %1083 = vmatpush2.msra.mxu0 0.0
        %1084 = vmatprep.subr.mxu0 0.0
        %1085 = vmatpush2.msra.mxu0 0.0
        %1086 = vmatprep.subr.mxu0 0.0
        %1087 = vmatpush2.msra.mxu0 0.0
        %1088 = vmatprep.subr.mxu0 0.0
        %1089 = vmatpush2.msra.mxu0 0.0
        %1090 = vmatprep.mubr.f32.mxu0 0.0
        %1091 = vmatmul.mubr.f32.gmra.mxu0 %v477
        %v1092 = vpop.f32.mrf.mxu0
        %v1093 = vadd.f32 0.0, %v1092
        %v1094 = vpop.f32.mrf.mxu0
        %v1095 = vadd.f32 0.0, %v1094
        %1096 = vmatprep.mubr.f32.mxu0 0.0
        %1097 = vmatmul.mubr.f32.gmra.mxu0 %v480
        %v1098 = vpop.f32.mrf.mxu0
        %v1099 = vadd.f32 0.0, %v1098
        %v1100 = vpop.f32.mrf.mxu0
        %v1101 = vadd.f32 0.0, %v1100
        %1102 = vdwg.mxu0
        %1103 = vmatprep.subr.mxu0 0.0
        %1104 = vmatpush1.msra.mxu0 0.0
        %1105 = vmatprep.subr.mxu0 0.0
        %1106 = vmatpush1.msra.mxu0 0.0
        %1107 = vmatprep.subr.mxu0 0.0
        %1108 = vmatpush1.msra.mxu0 0.0
        %1109 = vmatprep.subr.mxu0 0.0
        %1110 = vmatpush1.msra.mxu0 0.0
        %1111 = vmatprep.subr.mxu0 0.0
        %1112 = vmatpush1.msra.mxu0 0.0
        %1113 = vmatprep.subr.mxu0 0.0
        %1114 = vmatpush1.msra.mxu0 0.0
        %1115 = vmatprep.subr.mxu0 0.0
        %1116 = vmatpush1.msra.mxu0 0.0
        %1117 = vmatprep.subr.mxu0 0.0
        %1118 = vmatpush1.msra.mxu0 0.0
        %1119 = vmatprep.subr.mxu0 0.0
        %1120 = vmatpush1.msra.mxu0 0.0
        %1121 = vmatprep.subr.mxu0 0.0
        %1122 = vmatpush1.msra.mxu0 0.0
        %1123 = vmatprep.subr.mxu0 0.0
        %1124 = vmatpush1.msra.mxu0 0.0
        %1125 = vmatprep.subr.mxu0 0.0
        %1126 = vmatpush1.msra.mxu0 0.0
        %1127 = vmatprep.subr.mxu0 %v870
        %1128 = vmatpush1.msra.mxu0 %v867
        %1129 = vmatprep.subr.mxu0 %v839
        %1130 = vmatpush1.msra.mxu0 %v838
        %1131 = vmatprep.subr.mxu0 %v831
        %1132 = vmatpush1.msra.mxu0 %v830
        %1133 = vmatprep.subr.mxu0 %v823
        %1134 = vmatpush1.msra.mxu0 %v822
        %1135 = vmatprep.subr.mxu0 0.0
        %1136 = vmatpush2.msra.mxu0 0.0
        %1137 = vmatprep.subr.mxu0 0.0
        %1138 = vmatpush2.msra.mxu0 0.0
        %1139 = vmatprep.subr.mxu0 0.0
        %1140 = vmatpush2.msra.mxu0 0.0
        %1141 = vmatprep.subr.mxu0 0.0
        %1142 = vmatpush2.msra.mxu0 0.0
        %1143 = vmatprep.subr.mxu0 0.0
        %1144 = vmatpush2.msra.mxu0 0.0
        %1145 = vmatprep.subr.mxu0 0.0
        %1146 = vmatpush2.msra.mxu0 0.0
        %1147 = vmatprep.subr.mxu0 0.0
        %1148 = vmatpush2.msra.mxu0 0.0
        %1149 = vmatprep.subr.mxu0 0.0
        %1150 = vmatpush2.msra.mxu0 0.0
        %1151 = vmatprep.subr.mxu0 0.0
        %1152 = vmatpush2.msra.mxu0 0.0
        %1153 = vmatprep.subr.mxu0 0.0
        %1154 = vmatpush2.msra.mxu0 0.0
        %1155 = vmatprep.subr.mxu0 0.0
        %1156 = vmatpush2.msra.mxu0 0.0
        %1157 = vmatprep.subr.mxu0 0.0
        %1158 = vmatpush2.msra.mxu0 0.0
        %1159 = vmatprep.subr.mxu0 0.0
        %1160 = vmatpush2.msra.mxu0 0.0
        %1161 = vmatprep.subr.mxu0 0.0
        %1162 = vmatpush2.msra.mxu0 0.0
        %1163 = vmatprep.subr.mxu0 0.0
        %1164 = vmatpush2.msra.mxu0 0.0
        %1165 = vmatprep.subr.mxu0 0.0
        %1166 = vmatpush2.msra.mxu0 0.0
        %1167 = vmatprep.mubr.f32.mxu0 0.0
        %1168 = vmatmul.mubr.f32.gmra.mxu0 %v477
        %v1169 = vpop.f32.mrf.mxu0
        %v1170 = vadd.f32 0.0, %v1169
        %v1171 = vpop.f32.mrf.mxu0
        %v1172 = vadd.f32 0.0, %v1171
        %1173 = vmatprep.mubr.f32.mxu0 0.0
        %1174 = vmatmul.mubr.f32.gmra.mxu0 %v480
        %v1175 = vpop.f32.mrf.mxu0
        %v1176 = vadd.f32 0.0, %v1175
        %v1177 = vpop.f32.mrf.mxu0
        %v1178 = vadd.f32 0.0, %v1177
        %1179 = vdwg.mxu0
        %v1180 = vmax.f32 %v574, %v939
        %v1181 = vmax.f32 %v576, %v941
        %v1182 = vmax.f32 %v651, %v1016
        %v1183 = vmax.f32 %v653, %v1018
        %v1184 = vmax.f32 %v728, %v1093
        %v1185 = vmax.f32 %v730, %v1095
        %v1186 = vmax.f32 %v805, %v1170
        %v1187 = vmax.f32 %v807, %v1172
        %v1188 = vmax.f32 %v580, %v945
        %v1189 = vmax.f32 %v582, %v947
        %v1190 = vmax.f32 %v657, %v1022
        %v1191 = vmax.f32 %v659, %v1024
        %v1192 = vmax.f32 %v734, %v1099
        %v1193 = vmax.f32 %v736, %v1101
        %v1194 = vmax.f32 %v811, %v1176
        %v1195 = vmax.f32 %v813, %v1178
        %s1196 = scalar_lea.vmem %s419, 512 [#allocation2]
        %v1197 = vld [vmem:[%s1196] sm:$0xff]
        %v1198 = vld [vmem:[%s1196 + $0x8] sm:$0xff]
        %v1199 = vld [vmem:[%s1196 + $0x10] sm:$0xff]
        %v1200 = vld [vmem:[%s1196 + $0x18] sm:$0xff]
        %v1201 = vld [vmem:[%s1196 + $0x20] sm:$0xff]
        %v1202 = vld [vmem:[%s1196 + $0x28] sm:$0xff]
        %v1203 = vld [vmem:[%s1196 + $0x30] sm:$0xff]
        %v1204 = vld [vmem:[%s1196 + $0x38] sm:$0xff]
        %v1205 = vld [vmem:[%s1196 + $0x40] sm:$0xff]
        %v1206 = vld [vmem:[%s1196 + $0x48] sm:$0xff]
        %v1207 = vld [vmem:[%s1196 + $0x50] sm:$0xff]
        %v1208 = vld [vmem:[%s1196 + $0x58] sm:$0xff]
        %v1209 = vld [vmem:[%s1196 + $0x60] sm:$0xff]
        %v1210 = vld [vmem:[%s1196 + $0x68] sm:$0xff]
        %v1211 = vld [vmem:[%s1196 + $0x70] sm:$0xff]
        %v1212 = vld [vmem:[%s1196 + $0x78] sm:$0xff]
        %v1213 = vld [vmem:[%s1196 + $0x80] sm:$0xff]
        %v1214 = vld [vmem:[%s1196 + $0x88] sm:$0xff]
        %v1215 = vld [vmem:[%s1196 + $0x90] sm:$0xff]
        %v1216 = vld [vmem:[%s1196 + $0x98] sm:$0xff]
        %v1217 = vld [vmem:[%s1196 + $0xa0] sm:$0xff]
        %v1218 = vld [vmem:[%s1196 + $0xa8] sm:$0xff]
        %v1219 = vld [vmem:[%s1196 + $0xb0] sm:$0xff]
        %v1220 = vld [vmem:[%s1196 + $0xb8] sm:$0xff]
        %v1221 = vld [vmem:[%s1196 + $0xc0] sm:$0x7]
        %v1222 = vld [vmem:[%s1196 + $0xc8] sm:$0x7]
        %v1223 = vld [vmem:[%s1196 + $0xd0] sm:$0x7]
        %v1224 = vld [vmem:[%s1196 + $0xd8] sm:$0x7]
        %v1225 = vld [vmem:[%s1196 + $0xe0] sm:$0x7]
        %v1226 = vld [vmem:[%s1196 + $0xe8] sm:$0x7]
        %v1227 = vld [vmem:[%s1196 + $0xf0] sm:$0x7]
        %v1228 = vld [vmem:[%s1196 + $0xf8] sm:$0x7]
        %v1230 = vsel %vm482, %v1221, 0
        %v1233 = vsel %vm482, %v1222, 0
        %v1236 = vsel %vm482, %v1223, 0
        %v1239 = vsel %vm482, %v1224, 0
        %v1242 = vsel %vm482, %v1225, 0
        %v1245 = vsel %vm482, %v1226, 0
        %v1248 = vsel %vm482, %v1227, 0
        %v1251 = vsel %vm482, %v1228, 0
        %1253 = vmatprep.subr.mxu0 0.0
        %1254 = vmatpush1.msra.mxu0 0.0
        %1255 = vmatprep.subr.mxu0 0.0
        %1256 = vmatpush1.msra.mxu0 0.0
        %1257 = vmatprep.subr.mxu0 0.0
        %1258 = vmatpush1.msra.mxu0 0.0
        %1259 = vmatprep.subr.mxu0 0.0
        %1260 = vmatpush1.msra.mxu0 0.0
        %1261 = vmatprep.subr.mxu0 0.0
        %1262 = vmatpush1.msra.mxu0 0.0
        %1263 = vmatprep.subr.mxu0 0.0
        %1264 = vmatpush1.msra.mxu0 0.0
        %1265 = vmatprep.subr.mxu0 0.0
        %1266 = vmatpush1.msra.mxu0 0.0
        %1267 = vmatprep.subr.mxu0 0.0
        %1268 = vmatpush1.msra.mxu0 0.0
        %1269 = vmatprep.subr.mxu0 0.0
        %1270 = vmatpush1.msra.mxu0 0.0
        %1271 = vmatprep.subr.mxu0 0.0
        %1272 = vmatpush1.msra.mxu0 0.0
        %1273 = vmatprep.subr.mxu0 0.0
        %1274 = vmatpush1.msra.mxu0 0.0
        %1275 = vmatprep.subr.mxu0 0.0
        %1276 = vmatpush1.msra.mxu0 0.0
        %1277 = vmatprep.subr.mxu0 %v1233
        %1278 = vmatpush1.msra.mxu0 %v1230
        %1279 = vmatprep.subr.mxu0 %v1214
        %1280 = vmatpush1.msra.mxu0 %v1213
        %1281 = vmatprep.subr.mxu0 %v1206
        %1282 = vmatpush1.msra.mxu0 %v1205
        %1283 = vmatprep.subr.mxu0 %v1198
        %1284 = vmatpush1.msra.mxu0 %v1197
        %1285 = vmatprep.subr.mxu0 0.0
        %1286 = vmatpush2.msra.mxu0 0.0
        %1287 = vmatprep.subr.mxu0 0.0
        %1288 = vmatpush2.msra.mxu0 0.0
        %1289 = vmatprep.subr.mxu0 0.0
        %1290 = vmatpush2.msra.mxu0 0.0
        %1291 = vmatprep.subr.mxu0 0.0
        %1292 = vmatpush2.msra.mxu0 0.0
        %1293 = vmatprep.subr.mxu0 0.0
        %1294 = vmatpush2.msra.mxu0 0.0
        %1295 = vmatprep.subr.mxu0 0.0
        %1296 = vmatpush2.msra.mxu0 0.0
        %1297 = vmatprep.subr.mxu0 0.0
        %1298 = vmatpush2.msra.mxu0 0.0
        %1299 = vmatprep.subr.mxu0 0.0
        %1300 = vmatpush2.msra.mxu0 0.0
        %1301 = vmatprep.subr.mxu0 0.0
        %1302 = vmatpush2.msra.mxu0 0.0
        %1303 = vmatprep.subr.mxu0 0.0
        %1304 = vmatpush2.msra.mxu0 0.0
        %1305 = vmatprep.subr.mxu0 0.0
        %1306 = vmatpush2.msra.mxu0 0.0
        %1307 = vmatprep.subr.mxu0 0.0
        %1308 = vmatpush2.msra.mxu0 0.0
        %1309 = vmatprep.subr.mxu0 0.0
        %1310 = vmatpush2.msra.mxu0 0.0
        %1311 = vmatprep.subr.mxu0 0.0
        %1312 = vmatpush2.msra.mxu0 0.0
        %1313 = vmatprep.subr.mxu0 0.0
        %1314 = vmatpush2.msra.mxu0 0.0
        %1315 = vmatprep.subr.mxu0 0.0
        %1316 = vmatpush2.msra.mxu0 0.0
        %1317 = vmatprep.mubr.f32.mxu0 0.0
        %1318 = vmatmul.mubr.f32.gmra.mxu0 %v477
        %v1319 = vpop.f32.mrf.mxu0
        %v1320 = vadd.f32 0.0, %v1319
        %v1321 = vpop.f32.mrf.mxu0
        %v1322 = vadd.f32 0.0, %v1321
        %1323 = vmatprep.mubr.f32.mxu0 0.0
        %1324 = vmatmul.mubr.f32.gmra.mxu0 %v480
        %v1325 = vpop.f32.mrf.mxu0
        %v1326 = vadd.f32 0.0, %v1325
        %v1327 = vpop.f32.mrf.mxu0
        %v1328 = vadd.f32 0.0, %v1327
        %1329 = vdwg.mxu0
        %1330 = vmatprep.subr.mxu0 0.0
        %1331 = vmatpush1.msra.mxu0 0.0
        %1332 = vmatprep.subr.mxu0 0.0
        %1333 = vmatpush1.msra.mxu0 0.0
        %1334 = vmatprep.subr.mxu0 0.0
        %1335 = vmatpush1.msra.mxu0 0.0
        %1336 = vmatprep.subr.mxu0 0.0
        %1337 = vmatpush1.msra.mxu0 0.0
        %1338 = vmatprep.subr.mxu0 0.0
        %1339 = vmatpush1.msra.mxu0 0.0
        %1340 = vmatprep.subr.mxu0 0.0
        %1341 = vmatpush1.msra.mxu0 0.0
        %1342 = vmatprep.subr.mxu0 0.0
        %1343 = vmatpush1.msra.mxu0 0.0
        %1344 = vmatprep.subr.mxu0 0.0
        %1345 = vmatpush1.msra.mxu0 0.0
        %1346 = vmatprep.subr.mxu0 0.0
        %1347 = vmatpush1.msra.mxu0 0.0
        %1348 = vmatprep.subr.mxu0 0.0
        %1349 = vmatpush1.msra.mxu0 0.0
        %1350 = vmatprep.subr.mxu0 0.0
        %1351 = vmatpush1.msra.mxu0 0.0
        %1352 = vmatprep.subr.mxu0 0.0
        %1353 = vmatpush1.msra.mxu0 0.0
        %1354 = vmatprep.subr.mxu0 %v1239
        %1355 = vmatpush1.msra.mxu0 %v1236
        %1356 = vmatprep.subr.mxu0 %v1216
        %1357 = vmatpush1.msra.mxu0 %v1215
        %1358 = vmatprep.subr.mxu0 %v1208
        %1359 = vmatpush1.msra.mxu0 %v1207
        %1360 = vmatprep.subr.mxu0 %v1200
        %1361 = vmatpush1.msra.mxu0 %v1199
        %1362 = vmatprep.subr.mxu0 0.0
        %1363 = vmatpush2.msra.mxu0 0.0
        %1364 = vmatprep.subr.mxu0 0.0
        %1365 = vmatpush2.msra.mxu0 0.0
        %1366 = vmatprep.subr.mxu0 0.0
        %1367 = vmatpush2.msra.mxu0 0.0
        %1368 = vmatprep.subr.mxu0 0.0
        %1369 = vmatpush2.msra.mxu0 0.0
        %1370 = vmatprep.subr.mxu0 0.0
        %1371 = vmatpush2.msra.mxu0 0.0
        %1372 = vmatprep.subr.mxu0 0.0
        %1373 = vmatpush2.msra.mxu0 0.0
        %1374 = vmatprep.subr.mxu0 0.0
        %1375 = vmatpush2.msra.mxu0 0.0
        %1376 = vmatprep.subr.mxu0 0.0
        %1377 = vmatpush2.msra.mxu0 0.0
        %1378 = vmatprep.subr.mxu0 0.0
        %1379 = vmatpush2.msra.mxu0 0.0
        %1380 = vmatprep.subr.mxu0 0.0
        %1381 = vmatpush2.msra.mxu0 0.0
        %1382 = vmatprep.subr.mxu0 0.0
        %1383 = vmatpush2.msra.mxu0 0.0
        %1384 = vmatprep.subr.mxu0 0.0
        %1385 = vmatpush2.msra.mxu0 0.0
        %1386 = vmatprep.subr.mxu0 0.0
        %1387 = vmatpush2.msra.mxu0 0.0
        %1388 = vmatprep.subr.mxu0 0.0
        %1389 = vmatpush2.msra.mxu0 0.0
        %1390 = vmatprep.subr.mxu0 0.0
        %1391 = vmatpush2.msra.mxu0 0.0
        %1392 = vmatprep.subr.mxu0 0.0
        %1393 = vmatpush2.msra.mxu0 0.0
        %1394 = vmatprep.mubr.f32.mxu0 0.0
        %1395 = vmatmul.mubr.f32.gmra.mxu0 %v477
        %v1396 = vpop.f32.mrf.mxu0
        %v1397 = vadd.f32 0.0, %v1396
        %v1398 = vpop.f32.mrf.mxu0
        %v1399 = vadd.f32 0.0, %v1398
        %1400 = vmatprep.mubr.f32.mxu0 0.0
        %1401 = vmatmul.mubr.f32.gmra.mxu0 %v480
        %v1402 = vpop.f32.mrf.mxu0
        %v1403 = vadd.f32 0.0, %v1402
        %v1404 = vpop.f32.mrf.mxu0
        %v1405 = vadd.f32 0.0, %v1404
        %1406 = vdwg.mxu0
        %1407 = vmatprep.subr.mxu0 0.0
        %1408 = vmatpush1.msra.mxu0 0.0
        %1409 = vmatprep.subr.mxu0 0.0
        %1410 = vmatpush1.msra.mxu0 0.0
        %1411 = vmatprep.subr.mxu0 0.0
        %1412 = vmatpush1.msra.mxu0 0.0
        %1413 = vmatprep.subr.mxu0 0.0
        %1414 = vmatpush1.msra.mxu0 0.0
        %1415 = vmatprep.subr.mxu0 0.0
        %1416 = vmatpush1.msra.mxu0 0.0
        %1417 = vmatprep.subr.mxu0 0.0
        %1418 = vmatpush1.msra.mxu0 0.0
        %1419 = vmatprep.subr.mxu0 0.0
        %1420 = vmatpush1.msra.mxu0 0.0
        %1421 = vmatprep.subr.mxu0 0.0
        %1422 = vmatpush1.msra.mxu0 0.0
        %1423 = vmatprep.subr.mxu0 0.0
        %1424 = vmatpush1.msra.mxu0 0.0
        %1425 = vmatprep.subr.mxu0 0.0
        %1426 = vmatpush1.msra.mxu0 0.0
        %1427 = vmatprep.subr.mxu0 0.0
        %1428 = vmatpush1.msra.mxu0 0.0
        %1429 = vmatprep.subr.mxu0 0.0
        %1430 = vmatpush1.msra.mxu0 0.0
        %1431 = vmatprep.subr.mxu0 %v1245
        %1432 = vmatpush1.msra.mxu0 %v1242
        %1433 = vmatprep.subr.mxu0 %v1218
        %1434 = vmatpush1.msra.mxu0 %v1217
        %1435 = vmatprep.subr.mxu0 %v1210
        %1436 = vmatpush1.msra.mxu0 %v1209
        %1437 = vmatprep.subr.mxu0 %v1202
        %1438 = vmatpush1.msra.mxu0 %v1201
        %1439 = vmatprep.subr.mxu0 0.0
        %1440 = vmatpush2.msra.mxu0 0.0
        %1441 = vmatprep.subr.mxu0 0.0
        %1442 = vmatpush2.msra.mxu0 0.0
        %1443 = vmatprep.subr.mxu0 0.0
        %1444 = vmatpush2.msra.mxu0 0.0
        %1445 = vmatprep.subr.mxu0 0.0
        %1446 = vmatpush2.msra.mxu0 0.0
        %1447 = vmatprep.subr.mxu0 0.0
        %1448 = vmatpush2.msra.mxu0 0.0
        %1449 = vmatprep.subr.mxu0 0.0
        %1450 = vmatpush2.msra.mxu0 0.0
        %1451 = vmatprep.subr.mxu0 0.0
        %1452 = vmatpush2.msra.mxu0 0.0
        %1453 = vmatprep.subr.mxu0 0.0
        %1454 = vmatpush2.msra.mxu0 0.0
        %1455 = vmatprep.subr.mxu0 0.0
        %1456 = vmatpush2.msra.mxu0 0.0
        %1457 = vmatprep.subr.mxu0 0.0
        %1458 = vmatpush2.msra.mxu0 0.0
        %1459 = vmatprep.subr.mxu0 0.0
        %1460 = vmatpush2.msra.mxu0 0.0
        %1461 = vmatprep.subr.mxu0 0.0
        %1462 = vmatpush2.msra.mxu0 0.0
        %1463 = vmatprep.subr.mxu0 0.0
        %1464 = vmatpush2.msra.mxu0 0.0
        %1465 = vmatprep.subr.mxu0 0.0
        %1466 = vmatpush2.msra.mxu0 0.0
        %1467 = vmatprep.subr.mxu0 0.0
        %1468 = vmatpush2.msra.mxu0 0.0
        %1469 = vmatprep.subr.mxu0 0.0
        %1470 = vmatpush2.msra.mxu0 0.0
        %1471 = vmatprep.mubr.f32.mxu0 0.0
        %1472 = vmatmul.mubr.f32.gmra.mxu0 %v477
        %v1473 = vpop.f32.mrf.mxu0
        %v1474 = vadd.f32 0.0, %v1473
        %v1475 = vpop.f32.mrf.mxu0
        %v1476 = vadd.f32 0.0, %v1475
        %1477 = vmatprep.mubr.f32.mxu0 0.0
        %1478 = vmatmul.mubr.f32.gmra.mxu0 %v480
        %v1479 = vpop.f32.mrf.mxu0
        %v1480 = vadd.f32 0.0, %v1479
        %v1481 = vpop.f32.mrf.mxu0
        %v1482 = vadd.f32 0.0, %v1481
        %1483 = vdwg.mxu0
        %1484 = vmatprep.subr.mxu0 0.0
        %1485 = vmatpush1.msra.mxu0 0.0
        %1486 = vmatprep.subr.mxu0 0.0
        %1487 = vmatpush1.msra.mxu0 0.0
        %1488 = vmatprep.subr.mxu0 0.0
        %1489 = vmatpush1.msra.mxu0 0.0
        %1490 = vmatprep.subr.mxu0 0.0
        %1491 = vmatpush1.msra.mxu0 0.0
        %1492 = vmatprep.subr.mxu0 0.0
        %1493 = vmatpush1.msra.mxu0 0.0
        %1494 = vmatprep.subr.mxu0 0.0
        %1495 = vmatpush1.msra.mxu0 0.0
        %1496 = vmatprep.subr.mxu0 0.0
        %1497 = vmatpush1.msra.mxu0 0.0
        %1498 = vmatprep.subr.mxu0 0.0
        %1499 = vmatpush1.msra.mxu0 0.0
        %1500 = vmatprep.subr.mxu0 0.0
        %1501 = vmatpush1.msra.mxu0 0.0
        %1502 = vmatprep.subr.mxu0 0.0
        %1503 = vmatpush1.msra.mxu0 0.0
        %1504 = vmatprep.subr.mxu0 0.0
        %1505 = vmatpush1.msra.mxu0 0.0
        %1506 = vmatprep.subr.mxu0 0.0
        %1507 = vmatpush1.msra.mxu0 0.0
        %1508 = vmatprep.subr.mxu0 %v1251
        %1509 = vmatpush1.msra.mxu0 %v1248
        %1510 = vmatprep.subr.mxu0 %v1220
        %1511 = vmatpush1.msra.mxu0 %v1219
        %1512 = vmatprep.subr.mxu0 %v1212
        %1513 = vmatpush1.msra.mxu0 %v1211
        %1514 = vmatprep.subr.mxu0 %v1204
        %1515 = vmatpush1.msra.mxu0 %v1203
        %1516 = vmatprep.subr.mxu0 0.0
        %1517 = vmatpush2.msra.mxu0 0.0
        %1518 = vmatprep.subr.mxu0 0.0
        %1519 = vmatpush2.msra.mxu0 0.0
        %1520 = vmatprep.subr.mxu0 0.0
        %1521 = vmatpush2.msra.mxu0 0.0
        %1522 = vmatprep.subr.mxu0 0.0
        %1523 = vmatpush2.msra.mxu0 0.0
        %1524 = vmatprep.subr.mxu0 0.0
        %1525 = vmatpush2.msra.mxu0 0.0
        %1526 = vmatprep.subr.mxu0 0.0
        %1527 = vmatpush2.msra.mxu0 0.0
        %1528 = vmatprep.subr.mxu0 0.0
        %1529 = vmatpush2.msra.mxu0 0.0
        %1530 = vmatprep.subr.mxu0 0.0
        %1531 = vmatpush2.msra.mxu0 0.0
        %1532 = vmatprep.subr.mxu0 0.0
        %1533 = vmatpush2.msra.mxu0 0.0
        %1534 = vmatprep.subr.mxu0 0.0
        %1535 = vmatpush2.msra.mxu0 0.0
        %1536 = vmatprep.subr.mxu0 0.0
        %1537 = vmatpush2.msra.mxu0 0.0
        %1538 = vmatprep.subr.mxu0 0.0
        %1539 = vmatpush2.msra.mxu0 0.0
        %1540 = vmatprep.subr.mxu0 0.0
        %1541 = vmatpush2.msra.mxu0 0.0
        %1542 = vmatprep.subr.mxu0 0.0
        %1543 = vmatpush2.msra.mxu0 0.0
        %1544 = vmatprep.subr.mxu0 0.0
        %1545 = vmatpush2.msra.mxu0 0.0
        %1546 = vmatprep.subr.mxu0 0.0
        %1547 = vmatpush2.msra.mxu0 0.0
        %1548 = vmatprep.mubr.f32.mxu0 0.0
        %1549 = vmatmul.mubr.f32.gmra.mxu0 %v477
        %v1550 = vpop.f32.mrf.mxu0
        %v1551 = vadd.f32 0.0, %v1550
        %v1552 = vpop.f32.mrf.mxu0
        %v1553 = vadd.f32 0.0, %v1552
        %1554 = vmatprep.mubr.f32.mxu0 0.0
        %1555 = vmatmul.mubr.f32.gmra.mxu0 %v480
        %v1556 = vpop.f32.mrf.mxu0
        %v1557 = vadd.f32 0.0, %v1556
        %v1558 = vpop.f32.mrf.mxu0
        %v1559 = vadd.f32 0.0, %v1558
        %1560 = vdwg.mxu0
        %v1561 = vmax.f32 %v1180, %v1320
        %v1562 = vmax.f32 %v1181, %v1322
        %v1563 = vmax.f32 %v1182, %v1397
        %v1564 = vmax.f32 %v1183, %v1399
        %v1565 = vmax.f32 %v1184, %v1474
        %v1566 = vmax.f32 %v1185, %v1476
        %v1567 = vmax.f32 %v1186, %v1551
        %v1568 = vmax.f32 %v1187, %v1553
        %v1569 = vmax.f32 %v1188, %v1326
        %v1570 = vmax.f32 %v1189, %v1328
        %v1571 = vmax.f32 %v1190, %v1403
        %v1572 = vmax.f32 %v1191, %v1405
        %v1573 = vmax.f32 %v1192, %v1480
        %v1574 = vmax.f32 %v1193, %v1482
        %v1575 = vmax.f32 %v1194, %v1557
        %v1576 = vmax.f32 %v1195, %v1559
        %s1577 = scalar_lea.vmem %s419, 768 [#allocation2]
        %v1578 = vld [vmem:[%s1577] sm:$0xff]
        %v1579 = vld [vmem:[%s1577 + $0x8] sm:$0xff]
        %v1580 = vld [vmem:[%s1577 + $0x10] sm:$0xff]
        %v1581 = vld [vmem:[%s1577 + $0x18] sm:$0xff]
        %v1582 = vld [vmem:[%s1577 + $0x20] sm:$0xff]
        %v1583 = vld [vmem:[%s1577 + $0x28] sm:$0xff]
        %v1584 = vld [vmem:[%s1577 + $0x30] sm:$0xff]
        %v1585 = vld [vmem:[%s1577 + $0x38] sm:$0xff]
        %v1586 = vld [vmem:[%s1577 + $0x40] sm:$0xff]
        %v1587 = vld [vmem:[%s1577 + $0x48] sm:$0xff]
        %v1588 = vld [vmem:[%s1577 + $0x50] sm:$0xff]
        %v1589 = vld [vmem:[%s1577 + $0x58] sm:$0xff]
        %v1590 = vld [vmem:[%s1577 + $0x60] sm:$0xff]
        %v1591 = vld [vmem:[%s1577 + $0x68] sm:$0xff]
        %v1592 = vld [vmem:[%s1577 + $0x70] sm:$0xff]
        %v1593 = vld [vmem:[%s1577 + $0x78] sm:$0xff]
        %v1594 = vld [vmem:[%s1577 + $0x80] sm:$0xff]
        %v1595 = vld [vmem:[%s1577 + $0x88] sm:$0xff]
        %v1596 = vld [vmem:[%s1577 + $0x90] sm:$0xff]
        %v1597 = vld [vmem:[%s1577 + $0x98] sm:$0xff]
        %v1598 = vld [vmem:[%s1577 + $0xa0] sm:$0xff]
        %v1599 = vld [vmem:[%s1577 + $0xa8] sm:$0xff]
        %v1600 = vld [vmem:[%s1577 + $0xb0] sm:$0xff]
        %v1601 = vld [vmem:[%s1577 + $0xb8] sm:$0xff]
        %v1602 = vld [vmem:[%s1577 + $0xc0] sm:$0x7]
        %v1603 = vld [vmem:[%s1577 + $0xc8] sm:$0x7]
        %v1604 = vld [vmem:[%s1577 + $0xd0] sm:$0x7]
        %v1605 = vld [vmem:[%s1577 + $0xd8] sm:$0x7]
        %v1606 = vld [vmem:[%s1577 + $0xe0] sm:$0x7]
        %v1607 = vld [vmem:[%s1577 + $0xe8] sm:$0x7]
        %v1608 = vld [vmem:[%s1577 + $0xf0] sm:$0x7]
        %v1609 = vld [vmem:[%s1577 + $0xf8] sm:$0x7]
        %v1611 = vsel %vm482, %v1602, 0
        %v1614 = vsel %vm482, %v1603, 0
        %v1617 = vsel %vm482, %v1604, 0
        %v1620 = vsel %vm482, %v1605, 0
        %v1623 = vsel %vm482, %v1606, 0
        %v1626 = vsel %vm482, %v1607, 0
        %v1629 = vsel %vm482, %v1608, 0
        %v1632 = vsel %vm482, %v1609, 0
        %1634 = vmatprep.subr.mxu0 0.0
        %1635 = vmatpush1.msra.mxu0 0.0
        %1636 = vmatprep.subr.mxu0 0.0
        %1637 = vmatpush1.msra.mxu0 0.0
        %1638 = vmatprep.subr.mxu0 0.0
        %1639 = vmatpush1.msra.mxu0 0.0
        %1640 = vmatprep.subr.mxu0 0.0
        %1641 = vmatpush1.msra.mxu0 0.0
        %1642 = vmatprep.subr.mxu0 0.0
        %1643 = vmatpush1.msra.mxu0 0.0
        %1644 = vmatprep.subr.mxu0 0.0
        %1645 = vmatpush1.msra.mxu0 0.0
        %1646 = vmatprep.subr.mxu0 0.0
        %1647 = vmatpush1.msra.mxu0 0.0
        %1648 = vmatprep.subr.mxu0 0.0
        %1649 = vmatpush1.msra.mxu0 0.0
        %1650 = vmatprep.subr.mxu0 0.0
        %1651 = vmatpush1.msra.mxu0 0.0
        %1652 = vmatprep.subr.mxu0 0.0
        %1653 = vmatpush1.msra.mxu0 0.0
        %1654 = vmatprep.subr.mxu0 0.0
        %1655 = vmatpush1.msra.mxu0 0.0
        %1656 = vmatprep.subr.mxu0 0.0
        %1657 = vmatpush1.msra.mxu0 0.0
        %1658 = vmatprep.subr.mxu0 %v1614
        %1659 = vmatpush1.msra.mxu0 %v1611
        %1660 = vmatprep.subr.mxu0 %v1595
        %1661 = vmatpush1.msra.mxu0 %v1594
        %1662 = vmatprep.subr.mxu0 %v1587
        %1663 = vmatpush1.msra.mxu0 %v1586
        %1664 = vmatprep.subr.mxu0 %v1579
        %1665 = vmatpush1.msra.mxu0 %v1578
        %1666 = vmatprep.subr.mxu0 0.0
        %1667 = vmatpush2.msra.mxu0 0.0
        %1668 = vmatprep.subr.mxu0 0.0
        %1669 = vmatpush2.msra.mxu0 0.0
        %1670 = vmatprep.subr.mxu0 0.0
        %1671 = vmatpush2.msra.mxu0 0.0
        %1672 = vmatprep.subr.mxu0 0.0
        %1673 = vmatpush2.msra.mxu0 0.0
        %1674 = vmatprep.subr.mxu0 0.0
        %1675 = vmatpush2.msra.mxu0 0.0
        %1676 = vmatprep.subr.mxu0 0.0
        %1677 = vmatpush2.msra.mxu0 0.0
        %1678 = vmatprep.subr.mxu0 0.0
        %1679 = vmatpush2.msra.mxu0 0.0
        %1680 = vmatprep.subr.mxu0 0.0
        %1681 = vmatpush2.msra.mxu0 0.0
        %1682 = vmatprep.subr.mxu0 0.0
        %1683 = vmatpush2.msra.mxu0 0.0
        %1684 = vmatprep.subr.mxu0 0.0
        %1685 = vmatpush2.msra.mxu0 0.0
        %1686 = vmatprep.subr.mxu0 0.0
        %1687 = vmatpush2.msra.mxu0 0.0
        %1688 = vmatprep.subr.mxu0 0.0
        %1689 = vmatpush2.msra.mxu0 0.0
        %1690 = vmatprep.subr.mxu0 0.0
        %1691 = vmatpush2.msra.mxu0 0.0
        %1692 = vmatprep.subr.mxu0 0.0
        %1693 = vmatpush2.msra.mxu0 0.0
        %1694 = vmatprep.subr.mxu0 0.0
        %1695 = vmatpush2.msra.mxu0 0.0
        %1696 = vmatprep.subr.mxu0 0.0
        %1697 = vmatpush2.msra.mxu0 0.0
        %1698 = vmatprep.mubr.f32.mxu0 0.0
        %1699 = vmatmul.mubr.f32.gmra.mxu0 %v477
        %v1700 = vpop.f32.mrf.mxu0
        %v1701 = vadd.f32 0.0, %v1700
        %v1702 = vpop.f32.mrf.mxu0
        %v1703 = vadd.f32 0.0, %v1702
        %1704 = vmatprep.mubr.f32.mxu0 0.0
        %1705 = vmatmul.mubr.f32.gmra.mxu0 %v480
        %v1706 = vpop.f32.mrf.mxu0
        %v1707 = vadd.f32 0.0, %v1706
        %v1708 = vpop.f32.mrf.mxu0
        %v1709 = vadd.f32 0.0, %v1708
        %1710 = vdwg.mxu0
        %1711 = vmatprep.subr.mxu0 0.0
        %1712 = vmatpush1.msra.mxu0 0.0
        %1713 = vmatprep.subr.mxu0 0.0
        %1714 = vmatpush1.msra.mxu0 0.0
        %1715 = vmatprep.subr.mxu0 0.0
        %1716 = vmatpush1.msra.mxu0 0.0
        %1717 = vmatprep.subr.mxu0 0.0
        %1718 = vmatpush1.msra.mxu0 0.0
        %1719 = vmatprep.subr.mxu0 0.0
        %1720 = vmatpush1.msra.mxu0 0.0
        %1721 = vmatprep.subr.mxu0 0.0
        %1722 = vmatpush1.msra.mxu0 0.0
        %1723 = vmatprep.subr.mxu0 0.0
        %1724 = vmatpush1.msra.mxu0 0.0
        %1725 = vmatprep.subr.mxu0 0.0
        %1726 = vmatpush1.msra.mxu0 0.0
        %1727 = vmatprep.subr.mxu0 0.0
        %1728 = vmatpush1.msra.mxu0 0.0
        %1729 = vmatprep.subr.mxu0 0.0
        %1730 = vmatpush1.msra.mxu0 0.0
        %1731 = vmatprep.subr.mxu0 0.0
        %1732 = vmatpush1.msra.mxu0 0.0
        %1733 = vmatprep.subr.mxu0 0.0
        %1734 = vmatpush1.msra.mxu0 0.0
        %1735 = vmatprep.subr.mxu0 %v1620
        %1736 = vmatpush1.msra.mxu0 %v1617
        %1737 = vmatprep.subr.mxu0 %v1597
        %1738 = vmatpush1.msra.mxu0 %v1596
        %1739 = vmatprep.subr.mxu0 %v1589
        %1740 = vmatpush1.msra.mxu0 %v1588
        %1741 = vmatprep.subr.mxu0 %v1581
        %1742 = vmatpush1.msra.mxu0 %v1580
        %1743 = vmatprep.subr.mxu0 0.0
        %1744 = vmatpush2.msra.mxu0 0.0
        %1745 = vmatprep.subr.mxu0 0.0
        %1746 = vmatpush2.msra.mxu0 0.0
        %1747 = vmatprep.subr.mxu0 0.0
        %1748 = vmatpush2.msra.mxu0 0.0
        %1749 = vmatprep.subr.mxu0 0.0
        %1750 = vmatpush2.msra.mxu0 0.0
        %1751 = vmatprep.subr.mxu0 0.0
        %1752 = vmatpush2.msra.mxu0 0.0
        %1753 = vmatprep.subr.mxu0 0.0
        %1754 = vmatpush2.msra.mxu0 0.0
        %1755 = vmatprep.subr.mxu0 0.0
        %1756 = vmatpush2.msra.mxu0 0.0
        %1757 = vmatprep.subr.mxu0 0.0
        %1758 = vmatpush2.msra.mxu0 0.0
        %1759 = vmatprep.subr.mxu0 0.0
        %1760 = vmatpush2.msra.mxu0 0.0
        %1761 = vmatprep.subr.mxu0 0.0
        %1762 = vmatpush2.msra.mxu0 0.0
        %1763 = vmatprep.subr.mxu0 0.0
        %1764 = vmatpush2.msra.mxu0 0.0
        %1765 = vmatprep.subr.mxu0 0.0
        %1766 = vmatpush2.msra.mxu0 0.0
        %1767 = vmatprep.subr.mxu0 0.0
        %1768 = vmatpush2.msra.mxu0 0.0
        %1769 = vmatprep.subr.mxu0 0.0
        %1770 = vmatpush2.msra.mxu0 0.0
        %1771 = vmatprep.subr.mxu0 0.0
        %1772 = vmatpush2.msra.mxu0 0.0
        %1773 = vmatprep.subr.mxu0 0.0
        %1774 = vmatpush2.msra.mxu0 0.0
        %1775 = vmatprep.mubr.f32.mxu0 0.0
        %1776 = vmatmul.mubr.f32.gmra.mxu0 %v477
        %v1777 = vpop.f32.mrf.mxu0
        %v1778 = vadd.f32 0.0, %v1777
        %v1779 = vpop.f32.mrf.mxu0
        %v1780 = vadd.f32 0.0, %v1779
        %1781 = vmatprep.mubr.f32.mxu0 0.0
        %1782 = vmatmul.mubr.f32.gmra.mxu0 %v480
        %v1783 = vpop.f32.mrf.mxu0
        %v1784 = vadd.f32 0.0, %v1783
        %v1785 = vpop.f32.mrf.mxu0
        %v1786 = vadd.f32 0.0, %v1785
        %1787 = vdwg.mxu0
        %1788 = vmatprep.subr.mxu0 0.0
        %1789 = vmatpush1.msra.mxu0 0.0
        %1790 = vmatprep.subr.mxu0 0.0
        %1791 = vmatpush1.msra.mxu0 0.0
        %1792 = vmatprep.subr.mxu0 0.0
        %1793 = vmatpush1.msra.mxu0 0.0
        %1794 = vmatprep.subr.mxu0 0.0
        %1795 = vmatpush1.msra.mxu0 0.0
        %1796 = vmatprep.subr.mxu0 0.0
        %1797 = vmatpush1.msra.mxu0 0.0
        %1798 = vmatprep.subr.mxu0 0.0
        %1799 = vmatpush1.msra.mxu0 0.0
        %1800 = vmatprep.subr.mxu0 0.0
        %1801 = vmatpush1.msra.mxu0 0.0
        %1802 = vmatprep.subr.mxu0 0.0
        %1803 = vmatpush1.msra.mxu0 0.0
        %1804 = vmatprep.subr.mxu0 0.0
        %1805 = vmatpush1.msra.mxu0 0.0
        %1806 = vmatprep.subr.mxu0 0.0
        %1807 = vmatpush1.msra.mxu0 0.0
        %1808 = vmatprep.subr.mxu0 0.0
        %1809 = vmatpush1.msra.mxu0 0.0
        %1810 = vmatprep.subr.mxu0 0.0
        %1811 = vmatpush1.msra.mxu0 0.0
        %1812 = vmatprep.subr.mxu0 %v1626
        %1813 = vmatpush1.msra.mxu0 %v1623
        %1814 = vmatprep.subr.mxu0 %v1599
        %1815 = vmatpush1.msra.mxu0 %v1598
        %1816 = vmatprep.subr.mxu0 %v1591
        %1817 = vmatpush1.msra.mxu0 %v1590
        %1818 = vmatprep.subr.mxu0 %v1583
        %1819 = vmatpush1.msra.mxu0 %v1582
        %1820 = vmatprep.subr.mxu0 0.0
        %1821 = vmatpush2.msra.mxu0 0.0
        %1822 = vmatprep.subr.mxu0 0.0
        %1823 = vmatpush2.msra.mxu0 0.0
        %1824 = vmatprep.subr.mxu0 0.0
        %1825 = vmatpush2.msra.mxu0 0.0
        %1826 = vmatprep.subr.mxu0 0.0
        %1827 = vmatpush2.msra.mxu0 0.0
        %1828 = vmatprep.subr.mxu0 0.0
        %1829 = vmatpush2.msra.mxu0 0.0
        %1830 = vmatprep.subr.mxu0 0.0
        %1831 = vmatpush2.msra.mxu0 0.0
        %1832 = vmatprep.subr.mxu0 0.0
        %1833 = vmatpush2.msra.mxu0 0.0
        %1834 = vmatprep.subr.mxu0 0.0
        %1835 = vmatpush2.msra.mxu0 0.0
        %1836 = vmatprep.subr.mxu0 0.0
        %1837 = vmatpush2.msra.mxu0 0.0
        %1838 = vmatprep.subr.mxu0 0.0
        %1839 = vmatpush2.msra.mxu0 0.0
        %1840 = vmatprep.subr.mxu0 0.0
        %1841 = vmatpush2.msra.mxu0 0.0
        %1842 = vmatprep.subr.mxu0 0.0
        %1843 = vmatpush2.msra.mxu0 0.0
        %1844 = vmatprep.subr.mxu0 0.0
        %1845 = vmatpush2.msra.mxu0 0.0
        %1846 = vmatprep.subr.mxu0 0.0
        %1847 = vmatpush2.msra.mxu0 0.0
        %1848 = vmatprep.subr.mxu0 0.0
        %1849 = vmatpush2.msra.mxu0 0.0
        %1850 = vmatprep.subr.mxu0 0.0
        %1851 = vmatpush2.msra.mxu0 0.0
        %1852 = vmatprep.mubr.f32.mxu0 0.0
        %1853 = vmatmul.mubr.f32.gmra.mxu0 %v477
        %v1854 = vpop.f32.mrf.mxu0
        %v1855 = vadd.f32 0.0, %v1854
        %v1856 = vpop.f32.mrf.mxu0
        %v1857 = vadd.f32 0.0, %v1856
        %1858 = vmatprep.mubr.f32.mxu0 0.0
        %1859 = vmatmul.mubr.f32.gmra.mxu0 %v480
        %v1860 = vpop.f32.mrf.mxu0
        %v1861 = vadd.f32 0.0, %v1860
        %v1862 = vpop.f32.mrf.mxu0
        %v1863 = vadd.f32 0.0, %v1862
        %1864 = vdwg.mxu0
        %1865 = vmatprep.subr.mxu0 0.0
        %1866 = vmatpush1.msra.mxu0 0.0
        %1867 = vmatprep.subr.mxu0 0.0
        %1868 = vmatpush1.msra.mxu0 0.0
        %1869 = vmatprep.subr.mxu0 0.0
        %1870 = vmatpush1.msra.mxu0 0.0
        %1871 = vmatprep.subr.mxu0 0.0
        %1872 = vmatpush1.msra.mxu0 0.0
        %1873 = vmatprep.subr.mxu0 0.0
        %1874 = vmatpush1.msra.mxu0 0.0
        %1875 = vmatprep.subr.mxu0 0.0
        %1876 = vmatpush1.msra.mxu0 0.0
        %1877 = vmatprep.subr.mxu0 0.0
        %1878 = vmatpush1.msra.mxu0 0.0
        %1879 = vmatprep.subr.mxu0 0.0
        %1880 = vmatpush1.msra.mxu0 0.0
        %1881 = vmatprep.subr.mxu0 0.0
        %1882 = vmatpush1.msra.mxu0 0.0
        %1883 = vmatprep.subr.mxu0 0.0
        %1884 = vmatpush1.msra.mxu0 0.0
        %1885 = vmatprep.subr.mxu0 0.0
        %1886 = vmatpush1.msra.mxu0 0.0
        %1887 = vmatprep.subr.mxu0 0.0
        %1888 = vmatpush1.msra.mxu0 0.0
        %1889 = vmatprep.subr.mxu0 %v1632
        %1890 = vmatpush1.msra.mxu0 %v1629
        %1891 = vmatprep.subr.mxu0 %v1601
        %1892 = vmatpush1.msra.mxu0 %v1600
        %1893 = vmatprep.subr.mxu0 %v1593
        %1894 = vmatpush1.msra.mxu0 %v1592
        %1895 = vmatprep.subr.mxu0 %v1585
        %1896 = vmatpush1.msra.mxu0 %v1584
        %1897 = vmatprep.subr.mxu0 0.0
        %1898 = vmatpush2.msra.mxu0 0.0
        %1899 = vmatprep.subr.mxu0 0.0
        %1900 = vmatpush2.msra.mxu0 0.0
        %1901 = vmatprep.subr.mxu0 0.0
        %1902 = vmatpush2.msra.mxu0 0.0
        %1903 = vmatprep.subr.mxu0 0.0
        %1904 = vmatpush2.msra.mxu0 0.0
        %1905 = vmatprep.subr.mxu0 0.0
        %1906 = vmatpush2.msra.mxu0 0.0
        %1907 = vmatprep.subr.mxu0 0.0
        %1908 = vmatpush2.msra.mxu0 0.0
        %1909 = vmatprep.subr.mxu0 0.0
        %1910 = vmatpush2.msra.mxu0 0.0
        %1911 = vmatprep.subr.mxu0 0.0
        %1912 = vmatpush2.msra.mxu0 0.0
        %1913 = vmatprep.subr.mxu0 0.0
        %1914 = vmatpush2.msra.mxu0 0.0
        %1915 = vmatprep.subr.mxu0 0.0
        %1916 = vmatpush2.msra.mxu0 0.0
        %1917 = vmatprep.subr.mxu0 0.0
        %1918 = vmatpush2.msra.mxu0 0.0
        %1919 = vmatprep.subr.mxu0 0.0
        %1920 = vmatpush2.msra.mxu0 0.0
        %1921 = vmatprep.subr.mxu0 0.0
        %1922 = vmatpush2.msra.mxu0 0.0
        %1923 = vmatprep.subr.mxu0 0.0
        %1924 = vmatpush2.msra.mxu0 0.0
        %1925 = vmatprep.subr.mxu0 0.0
        %1926 = vmatpush2.msra.mxu0 0.0
        %1927 = vmatprep.subr.mxu0 0.0
        %1928 = vmatpush2.msra.mxu0 0.0
        %1929 = vmatprep.mubr.f32.mxu0 0.0
        %1930 = vmatmul.mubr.f32.gmra.mxu0 %v477
        %v1931 = vpop.f32.mrf.mxu0
        %v1932 = vadd.f32 0.0, %v1931
        %v1933 = vpop.f32.mrf.mxu0
        %v1934 = vadd.f32 0.0, %v1933
        %1935 = vmatprep.mubr.f32.mxu0 0.0
        %1936 = vmatmul.mubr.f32.gmra.mxu0 %v480
        %v1937 = vpop.f32.mrf.mxu0
        %v1938 = vadd.f32 0.0, %v1937
        %v1939 = vpop.f32.mrf.mxu0
        %v1940 = vadd.f32 0.0, %v1939
        %1941 = vdwg.mxu0
        %v1942 = vmax.f32 %v1561, %v1701
        %v1943 = vmax.f32 %v1562, %v1703
        %v1944 = vmax.f32 %v1563, %v1778
        %v1945 = vmax.f32 %v1564, %v1780
        %v1946 = vmax.f32 %v1565, %v1855
        %v1947 = vmax.f32 %v1566, %v1857
        %v1948 = vmax.f32 %v1567, %v1932
        %v1949 = vmax.f32 %v1568, %v1934
        %v1950 = vmax.f32 %v1569, %v1707
        %v1951 = vmax.f32 %v1570, %v1709
        %v1952 = vmax.f32 %v1571, %v1784
        %v1953 = vmax.f32 %v1572, %v1786
        %v1954 = vmax.f32 %v1573, %v1861
        %v1955 = vmax.f32 %v1574, %v1863
        %v1956 = vmax.f32 %v1575, %v1938
        %v1957 = vmax.f32 %v1576, %v1940
        %v1958 = vld [vmem:[%s2] sm:$0xff]
        %v1959 = vld [vmem:[%s2 + $0x8] sm:$0xff]
        %1961 = vset.pattern.permute.xlu0 0
        %1962 = vperm.xlu0 %1961, %v1958
        %v1963 = vpop.permute.xlu0 %1962
        %1966 = vset.pattern.permute.xlu0 0
        %1967 = vperm.xlu0 %1966, %v1959
        %v1968 = vpop.permute.xlu0 %1967
        %v1970 = vadd.f32 %v1942, %v1963
        %v1971 = vadd.f32 %v1943, %v1963
        %v1972 = vadd.f32 %v1944, %v1963
        %v1973 = vadd.f32 %v1945, %v1963
        %v1974 = vadd.f32 %v1946, %v1963
        %v1975 = vadd.f32 %v1947, %v1963
        %v1976 = vadd.f32 %v1948, %v1963
        %v1977 = vadd.f32 %v1949, %v1963
        %v1978 = vadd.f32 %v1950, %v1968
        %v1979 = vadd.f32 %v1951, %v1968
        %v1980 = vadd.f32 %v1952, %v1968
        %v1981 = vadd.f32 %v1953, %v1968
        %v1982 = vadd.f32 %v1954, %v1968
        %v1983 = vadd.f32 %v1955, %v1968
        %v1984 = vadd.f32 %v1956, %v1968
        %v1985 = vadd.f32 %v1957, %v1968
        %v1986 = vmax.f32 %v1970, 0.0
        %v1987 = vmax.f32 %v1971, 0.0
        %v1988 = vmax.f32 %v1972, 0.0
        %v1989 = vmax.f32 %v1973, 0.0
        %v1990 = vmax.f32 %v1974, 0.0
        %v1991 = vmax.f32 %v1975, 0.0
        %v1992 = vmax.f32 %v1976, 0.0
        %v1993 = vmax.f32 %v1977, 0.0
        %v1994 = vmax.f32 %v1978, 0.0
        %v1995 = vmax.f32 %v1979, 0.0
        %v1996 = vmax.f32 %v1980, 0.0
        %v1997 = vmax.f32 %v1981, 0.0
        %v1998 = vmax.f32 %v1982, 0.0
        %v1999 = vmax.f32 %v1983, 0.0
        %v2000 = vmax.f32 %v1984, 0.0
        %v2001 = vmax.f32 %v1985, 0.0
        %2002 = vst [vmem:[%s438] sm:$0xff] %v1986
        %2003 = vst [vmem:[%s438 + $0x8] sm:$0xff] %v1987
        %2004 = vst [vmem:[%s438 + $0x10] sm:$0xff] %v1988
        %2005 = vst [vmem:[%s438 + $0x18] sm:$0xff] %v1989
        %2006 = vst [vmem:[%s438 + $0x20] sm:$0xff] %v1990
        %2007 = vst [vmem:[%s438 + $0x28] sm:$0xff] %v1991
        %2008 = vst [vmem:[%s438 + $0x30] sm:$0xff] %v1992
        %2009 = vst [vmem:[%s438 + $0x38] sm:$0xff] %v1993
        %2010 = vst [vmem:[%s438 + $0x40] sm:$0xff] %v1994
        %2011 = vst [vmem:[%s438 + $0x48] sm:$0xff] %v1995
        %2012 = vst [vmem:[%s438 + $0x50] sm:$0xff] %v1996
        %2013 = vst [vmem:[%s438 + $0x58] sm:$0xff] %v1997
        %2014 = vst [vmem:[%s438 + $0x60] sm:$0xff] %v1998
        %2015 = vst [vmem:[%s438 + $0x68] sm:$0xff] %v1999
        %2016 = vst [vmem:[%s438 + $0x70] sm:$0xff] %v2000
        %2017 = vst [vmem:[%s438 + $0x78] sm:$0xff] %v2001
        %s2018 = sand.u32 %s90, 1
        %s2019 = sand.u32 %s90, 1
        %s2020 = smul.addr %s2019, 128
        %s2021 = scalar_lea.vmem [#allocation3], %s2020
        // Predicated region
        $region56: #{forward.2} parent=50 // pred_check
          %p2022 = pneg %p100
        $region57: #{forward.2} parent=50 // pred_check_branch
          %2024 = sbr.rel (%p2022) target = $region59
        $region58: #{forward.2} parent=50 // pred_region
          %s2025 = smul.u32 8, %s14
          %s2026 = smul.addr %s2025, 8
          %s2027 = scalar_lea.vmem %s3, %s2026
          // Predicated region
          $region60: #{forward.2} parent=58 // pred_check
            _
          $region61: #{forward.2} parent=58 // pred_check_branch
            %2029 = sbr.rel (0) target = $region63
          $region62: #{forward.2} parent=58 // pred_region
            // Predicated region
            $region64: #{forward.2} parent=62 // pred_check
              _
            $region65: #{forward.2} parent=62 // pred_check_branch
              %2031 = sbr.rel (0) target = $region67
            $region66: #{forward.2} parent=62 // pred_region
              loop: start=0, step=1, limit=1
              $region68: #{forward.2} parent=66 // loop_pre_header
                _
              $region69: #{forward.2} parent=66 // loop_header
                %s2033 = sphi 0, %s2037
                %p2034 = scmp.ge.s32.totalorder %s2033, 1
                %s2038 = sphi %s2021, %s2021
                %s2039 = sphi %s2027, %s2027
              $region70: #{forward.2} parent=66 // loop_header_branch
                %2036 = sbr.rel (%p2034) target = $region74
              $region71: #{forward.2} parent=66 // loop_body
                %v2040 = vld [vmem:[%s2038] sm:$0xff]
                %2041 = vst [vmem:[%s2039] sm:$0xff] %v2040
                %v2042 = vld [vmem:[%s2038 + $0x8] sm:$0xff]
                %2043 = vst [vmem:[%s2039 + $0x8] sm:$0xff] %v2042
                %v2044 = vld [vmem:[%s2038 + $0x10] sm:$0xff]
                %2045 = vst [vmem:[%s2039 + $0x10] sm:$0xff] %v2044
                %v2046 = vld [vmem:[%s2038 + $0x18] sm:$0xff]
                %2047 = vst [vmem:[%s2039 + $0x18] sm:$0xff] %v2046
                %v2048 = vld [vmem:[%s2038 + $0x20] sm:$0xff]
                %2049 = vst [vmem:[%s2039 + $0x20] sm:$0xff] %v2048
                %v2050 = vld [vmem:[%s2038 + $0x28] sm:$0xff]
                %2051 = vst [vmem:[%s2039 + $0x28] sm:$0xff] %v2050
                %v2052 = vld [vmem:[%s2038 + $0x30] sm:$0xff]
                %2053 = vst [vmem:[%s2039 + $0x30] sm:$0xff] %v2052
                %v2054 = vld [vmem:[%s2038 + $0x38] sm:$0xff]
                %2055 = vst [vmem:[%s2039 + $0x38] sm:$0xff] %v2054
                %v2056 = vld [vmem:[%s2038 + $0x40] sm:$0xff]
                %2057 = vst [vmem:[%s2039 + $0x100] sm:$0xff] %v2056
                %v2058 = vld [vmem:[%s2038 + $0x48] sm:$0xff]
                %2059 = vst [vmem:[%s2039 + $0x108] sm:$0xff] %v2058
                %v2060 = vld [vmem:[%s2038 + $0x50] sm:$0xff]
                %2061 = vst [vmem:[%s2039 + $0x110] sm:$0xff] %v2060
                %v2062 = vld [vmem:[%s2038 + $0x58] sm:$0xff]
                %2063 = vst [vmem:[%s2039 + $0x118] sm:$0xff] %v2062
                %v2064 = vld [vmem:[%s2038 + $0x60] sm:$0xff]
                %2065 = vst [vmem:[%s2039 + $0x120] sm:$0xff] %v2064
                %v2066 = vld [vmem:[%s2038 + $0x68] sm:$0xff]
                %2067 = vst [vmem:[%s2039 + $0x128] sm:$0xff] %v2066
                %v2068 = vld [vmem:[%s2038 + $0x70] sm:$0xff]
                %2069 = vst [vmem:[%s2039 + $0x130] sm:$0xff] %v2068
                %v2070 = vld [vmem:[%s2038 + $0x78] sm:$0xff]
                %2071 = vst [vmem:[%s2039 + $0x138] sm:$0xff] %v2070
              $region72: #{forward.2} parent=66 // loop_footer
                %s2037 = sadd.s32 1, %s2033
              $region73: #{forward.2} parent=66 // loop_footer_branch
                %2032 = sbr.rel target = $region69
              $region74: #{forward.2} parent=66 // loop_exit
                _
            $region67: #{forward.2} parent=62 // pred_fallthru
              _
            // Predicated region
            $region75: #{forward.2} parent=62 // pred_check
              _
            $region76: #{forward.2} parent=62 // pred_check_branch
              %2073 = sbr.rel target = $region78
            $region77: #{forward.2} parent=62 // pred_region
              _
            $region78: #{forward.2} parent=62 // pred_fallthru
              _
          $region63: #{forward.2} parent=58 // pred_fallthru
            _
          %2074 = vnop
        $region59: #{forward.2} parent=50 // pred_fallthru
          _
      $region51: #{forward.2} parent=5 // pred_fallthru
        _
      %p2075 = scmp.le.s32.totalorder 2, %s9
      // Predicated region
      $region79: #{forward.2} parent=5 // pred_check
        %p2076 = pneg %p2075
      $region80: #{forward.2} parent=5 // pred_check_branch
        %2078 = sbr.rel (%p2076) target = $region82
      $region81: #{forward.2} parent=5 // pred_region
        %s2079 = ssub.s32 %s9, 2
        // Predicated region
        $region83: #{forward.2} parent=81 // pred_check
          %p2080 = pneg %p106
        $region84: #{forward.2} parent=81 // pred_check_branch
          %2082 = sbr.rel (%p2080) target = $region86
        $region85: #{forward.2} parent=81 // pred_region
          %s2083 = sand.u32 %s91, 1
          %s2084 = sand.u32 %s91, 1
          %s2085 = smul.addr %s2084, 128
          %s2086 = scalar_lea.vmem [#allocation3], %s2085
        $region86: #{forward.2} parent=81 // pred_fallthru
          _
      $region82: #{forward.2} parent=5 // pred_fallthru
        _
    $region6: #{forward.2} parent=1 // loop_footer
      %s13 = sadd.s32 1, %s9
    $region7: #{forward.2} parent=1 // loop_footer_branch
      %8 = sbr.rel target = $region3
    $region8: #{forward.2} parent=1 // loop_exit
      _

// kernel: tile.13
$region0: #{tile.13}
  #allocation0 [shape = 's32[1]{0}', space=sflag, size = 0x4, scoped, tag = 'scoped memory for tile.13']
  %s0 = inlined_call_operand.vmem [shape: f32[16], index: 0, kind: input, shape index: {}]
  %s1 = inlined_call_operand.vmem [shape: f32[4,16], index: 1, kind: output, shape index: {}]
  // Predicated region
  $region2: #{tile.13} parent=0 // pred_check
    _
  $region3: #{tile.13} parent=0 // pred_check_branch
    %3 = sbr.rel (0) target = $region5
  $region4: #{tile.13} parent=0 // pred_region
    _
  $region5: #{tile.13} parent=0 // pred_fallthru
    _
  %v4 = vld [vmem:[%s0] ss:$0 sm:$0xff]
  %5 = vst [vmem:[%s1] sm:$0xf] %v4

// kernel: tile.0
$region0: #{tile.0}
  %s0 = inlined_call_operand.vmem [shape: f32[4,16], index: 0, kind: input, shape index: {}]
  %s1 = inlined_call_operand.vmem [shape: f32[64,1], index: 1, kind: output, shape index: {}]
  $region1: #{tile.0} parent=0
    #allocation0 [shape = 'u8[4096]{0}', space=vmem, size = 0x1000, scoped, tag = 'scoped mem for input reshape']
    %s3 = sshll.u32 1, 4
    %s4 = ssub.s32 %s3, 1
    %v5 = vld [vmem:[%s0] sm:%s4]
    %6 = vst [vmem:[#allocation0] sm:%s4] %v5
    %v7 = vld [vmem:[#allocation0] sm:$0xf]
    %vm8 = vcmask 7168
    %9 = vst.msk [vmem:[%s1] ss:$16 sm:$0x3] %vm8, %v7
    %10 = vst.msk [vmem:[%s1] ss:$16 sm:$0xc] %vm8, %v7
    %v11 = vld [vmem:[#allocation0] sm:$0xf]
    %12 = vrot.lane.b32.xlu0 %v11, 127
    %v13 = vpop.permute.xlu0 %12
    %vm14 = vcmask 7168
    %s15 = scalar_lea.vmem %s1, 1
    %16 = vst.msk [vmem:[%s15] ss:$16 sm:$0x3] %vm14, %v13
    %s17 = scalar_lea.vmem %s1, 1
    %18 = vst.msk [vmem:[%s17] ss:$16 sm:$0xc] %vm14, %v13
    %v19 = vld [vmem:[#allocation0] sm:$0xf]
    %20 = vrot.lane.b32.xlu0 %v19, 126
    %v21 = vpop.permute.xlu0 %20
    %vm22 = vcmask 7168
    %s23 = scalar_lea.vmem %s1, 2
    %24 = vst.msk [vmem:[%s23] ss:$16 sm:$0x3] %vm22, %v21
    %s25 = scalar_lea.vmem %s1, 2
    %26 = vst.msk [vmem:[%s25] ss:$16 sm:$0xc] %vm22, %v21
    %v27 = vld [vmem:[#allocation0] sm:$0xf]
    %28 = vrot.lane.b32.xlu0 %v27, 125
    %v29 = vpop.permute.xlu0 %28
    %vm30 = vcmask 7168
    %s31 = scalar_lea.vmem %s1, 3
    %32 = vst.msk [vmem:[%s31] ss:$16 sm:$0x3] %vm30, %v29
    %s33 = scalar_lea.vmem %s1, 3
    %34 = vst.msk [vmem:[%s33] ss:$16 sm:$0xc] %vm30, %v29
    %v35 = vld [vmem:[#allocation0] sm:$0xf]
    %36 = vrot.lane.b32.xlu0 %v35, 124
    %v37 = vpop.permute.xlu0 %36
    %vm38 = vcmask 7168
    %s39 = scalar_lea.vmem %s1, 4
    %40 = vst.msk [vmem:[%s39] ss:$16 sm:$0x3] %vm38, %v37
    %s41 = scalar_lea.vmem %s1, 4
    %42 = vst.msk [vmem:[%s41] ss:$16 sm:$0xc] %vm38, %v37
    %v43 = vld [vmem:[#allocation0] sm:$0xf]
    %44 = vrot.lane.b32.xlu0 %v43, 123
    %v45 = vpop.permute.xlu0 %44
    %vm46 = vcmask 7168
    %s47 = scalar_lea.vmem %s1, 5
    %48 = vst.msk [vmem:[%s47] ss:$16 sm:$0x3] %vm46, %v45
    %s49 = scalar_lea.vmem %s1, 5
    %50 = vst.msk [vmem:[%s49] ss:$16 sm:$0xc] %vm46, %v45
    %v51 = vld [vmem:[#allocation0] sm:$0xf]
    %52 = vrot.lane.b32.xlu0 %v51, 122
    %v53 = vpop.permute.xlu0 %52
    %vm54 = vcmask 7168
    %s55 = scalar_lea.vmem %s1, 6
    %56 = vst.msk [vmem:[%s55] ss:$16 sm:$0x3] %vm54, %v53
    %s57 = scalar_lea.vmem %s1, 6
    %58 = vst.msk [vmem:[%s57] ss:$16 sm:$0xc] %vm54, %v53
    %v59 = vld [vmem:[#allocation0] sm:$0xf]
    %60 = vrot.lane.b32.xlu0 %v59, 121
    %v61 = vpop.permute.xlu0 %60
    %vm62 = vcmask 7168
    %s63 = scalar_lea.vmem %s1, 7
    %64 = vst.msk [vmem:[%s63] ss:$16 sm:$0x3] %vm62, %v61
    %s65 = scalar_lea.vmem %s1, 7
    %66 = vst.msk [vmem:[%s65] ss:$16 sm:$0xc] %vm62, %v61
    %v67 = vld [vmem:[#allocation0] sm:$0xf]
    %68 = vrot.lane.b32.xlu0 %v67, 120
    %v69 = vpop.permute.xlu0 %68
    %vm70 = vcmask 7168
    %s71 = scalar_lea.vmem %s1, 8
    %72 = vst.msk [vmem:[%s71] ss:$16 sm:$0x3] %vm70, %v69
    %s73 = scalar_lea.vmem %s1, 8
    %74 = vst.msk [vmem:[%s73] ss:$16 sm:$0xc] %vm70, %v69
    %v75 = vld [vmem:[#allocation0] sm:$0xf]
    %76 = vrot.lane.b32.xlu0 %v75, 119
    %v77 = vpop.permute.xlu0 %76
    %vm78 = vcmask 7168
    %s79 = scalar_lea.vmem %s1, 9
    %80 = vst.msk [vmem:[%s79] ss:$16 sm:$0x3] %vm78, %v77
    %s81 = scalar_lea.vmem %s1, 9
    %82 = vst.msk [vmem:[%s81] ss:$16 sm:$0xc] %vm78, %v77
    %v83 = vld [vmem:[#allocation0] sm:$0xf]
    %84 = vrot.lane.b32.xlu0 %v83, 118
    %v85 = vpop.permute.xlu0 %84
    %vm86 = vcmask 7168
    %s87 = scalar_lea.vmem %s1, 10
    %88 = vst.msk [vmem:[%s87] ss:$16 sm:$0x3] %vm86, %v85
    %s89 = scalar_lea.vmem %s1, 10
    %90 = vst.msk [vmem:[%s89] ss:$16 sm:$0xc] %vm86, %v85
    %v91 = vld [vmem:[#allocation0] sm:$0xf]
    %92 = vrot.lane.b32.xlu0 %v91, 117
    %v93 = vpop.permute.xlu0 %92
    %vm94 = vcmask 7168
    %s95 = scalar_lea.vmem %s1, 11
    %96 = vst.msk [vmem:[%s95] ss:$16 sm:$0x3] %vm94, %v93
    %s97 = scalar_lea.vmem %s1, 11
    %98 = vst.msk [vmem:[%s97] ss:$16 sm:$0xc] %vm94, %v93
    %v99 = vld [vmem:[#allocation0] sm:$0xf]
    %100 = vrot.lane.b32.xlu0 %v99, 116
    %v101 = vpop.permute.xlu0 %100
    %vm102 = vcmask 7168
    %s103 = scalar_lea.vmem %s1, 12
    %104 = vst.msk [vmem:[%s103] ss:$16 sm:$0x3] %vm102, %v101
    %s105 = scalar_lea.vmem %s1, 12
    %106 = vst.msk [vmem:[%s105] ss:$16 sm:$0xc] %vm102, %v101
    %v107 = vld [vmem:[#allocation0] sm:$0xf]
    %108 = vrot.lane.b32.xlu0 %v107, 115
    %v109 = vpop.permute.xlu0 %108
    %vm110 = vcmask 7168
    %s111 = scalar_lea.vmem %s1, 13
    %112 = vst.msk [vmem:[%s111] ss:$16 sm:$0x3] %vm110, %v109
    %s113 = scalar_lea.vmem %s1, 13
    %114 = vst.msk [vmem:[%s113] ss:$16 sm:$0xc] %vm110, %v109
    %v115 = vld [vmem:[#allocation0] sm:$0xf]
    %116 = vrot.lane.b32.xlu0 %v115, 114
    %v117 = vpop.permute.xlu0 %116
    %vm118 = vcmask 7168
    %s119 = scalar_lea.vmem %s1, 14
    %120 = vst.msk [vmem:[%s119] ss:$16 sm:$0x3] %vm118, %v117
    %s121 = scalar_lea.vmem %s1, 14
    %122 = vst.msk [vmem:[%s121] ss:$16 sm:$0xc] %vm118, %v117
    %v123 = vld [vmem:[#allocation0] sm:$0xf]
    %124 = vrot.lane.b32.xlu0 %v123, 113
    %v125 = vpop.permute.xlu0 %124
    %vm126 = vcmask 7168
    %s127 = scalar_lea.vmem %s1, 15
    %128 = vst.msk [vmem:[%s127] ss:$16 sm:$0x3] %vm126, %v125
    %s129 = scalar_lea.vmem %s1, 15
    %130 = vst.msk [vmem:[%s129] ss:$16 sm:$0xc] %vm126, %v125

// kernel: mul.4
$region0: #{mul.4}
  %s0 = inlined_call_operand.vmem [shape: f32[2,2,3,16], index: 0, kind: input, shape index: {}]
  %s1 = inlined_call_operand.vmem [shape: f32[12,16], index: 1, kind: output, shape index: {}]
  $region1: #{mul.4} parent=0
    #allocation0 [shape = 'u8[16384]{0}', space=vmem, size = 0x4000, scoped, tag = 'scoped mem for input reshape']
    %s3 = sshll.u32 1, 4
    %s4 = ssub.s32 %s3, 1
    %s5 = smul.addr 4, 3
    %s6 = scalar_lea.vmem %s0, %s5
    %v7 = vld [vmem:[%s6] sm:%s4]
    %s8 = scalar_lea.vmem [#allocation0], 24
    %9 = vst [vmem:[%s8] sm:%s4] %v7
    %s10 = smul.addr 4, 2
    %s11 = scalar_lea.vmem %s0, %s10
    %v12 = vld [vmem:[%s11] sm:%s4]
    %s13 = scalar_lea.vmem [#allocation0], 16
    %14 = vst [vmem:[%s13] sm:%s4] %v12
    %s15 = scalar_lea.vmem %s0, 4
    %v16 = vld [vmem:[%s15] sm:%s4]
    %s17 = scalar_lea.vmem [#allocation0], 8
    %18 = vst [vmem:[%s17] sm:%s4] %v16
    %v19 = vld [vmem:[%s0] sm:%s4]
    %20 = vst [vmem:[#allocation0] sm:%s4] %v19
    %v21 = vld [vmem:[#allocation0] sm:$0x7]
    %vm22 = vcmask 130048
    %23 = vst.msk [vmem:[%s1] sm:$0x7] %vm22, %v21
    %s24 = scalar_lea.vmem [#allocation0], 8
    %v25 = vld [vmem:[%s24] sm:$0x7]
    %vm26 = vcmask 130048
    %s27 = scalar_lea.vmem %s1, 3
    %28 = vst.msk [vmem:[%s27] sm:$0x7] %vm26, %v25
    %s29 = scalar_lea.vmem [#allocation0], 16
    %v30 = vld [vmem:[%s29] sm:$0x7]
    %vm31 = vcmask 130048
    %s32 = scalar_lea.vmem %s1, 6
    %33 = vst.msk [vmem:[%s32] sm:$0x7] %vm31, %v30
    %s34 = scalar_lea.vmem [#allocation0], 24
    %v35 = vld [vmem:[%s34] sm:$0x7]
    %vm36 = vcmask 130048
    %s37 = scalar_lea.vmem %s1, 9
    %38 = vst.msk [vmem:[%s37] sm:$0x7] %vm36, %v35

// kernel: tile.18
$region0: #{tile.18}
  #allocation0 [shape = 's32[1]{0}', space=sflag, size = 0x4, scoped, tag = 'scoped memory for tile.18']
  %s0 = inlined_call_operand.vmem [shape: f32[3], index: 0, kind: input, shape index: {}]
  %s1 = inlined_call_operand.vmem [shape: f32[16,3], index: 1, kind: output, shape index: {}]
  // Predicated region
  $region2: #{tile.18} parent=0 // pred_check
    _
  $region3: #{tile.18} parent=0 // pred_check_branch
    %3 = sbr.rel (0) target = $region5
  $region4: #{tile.18} parent=0 // pred_region
    _
  $region5: #{tile.18} parent=0 // pred_fallthru
    _
  %v4 = vld [vmem:[%s0] ss:$0 sm:$0xff]
  %5 = vst [vmem:[%s1] sm:$0xff] %v4
  %s6 = scalar_lea.vmem %s1, 8
  %7 = vst [vmem:[%s6] sm:$0xff] %v4

// kernel: tile.1
$region0: #{tile.1}
  %s0 = inlined_call_operand.vmem [shape: f32[16,3], index: 0, kind: input, shape index: {}]
  %s1 = inlined_call_operand.vmem [shape: f32[48,1], index: 1, kind: output, shape index: {}]
  %v2 = vld [vmem:[%s0] sm:$0xff]
  %vm3 = vcmask 7168
  %4 = vst.msk [vmem:[%s1] ss:$3 sm:$0xff] %vm3, %v2
  %s5 = scalar_lea.vmem %s0, 8
  %v6 = vld [vmem:[%s5] sm:$0xff]
  %vm7 = vcmask 7168
  %s8 = scalar_lea.vmem %s1, 24
  %9 = vst.msk [vmem:[%s8] ss:$3 sm:$0xff] %vm7, %v6
  %v10 = vld.sshfl [vmem:[%s0] sm:$0xff pattern:$0xe3d2c1b0]
  %11 = vrot.lane.b32.xlu0 %v10, 127
  %v12 = vpop.permute.xlu0 %11
  %vm13 = vcmask 7168
  %s14 = scalar_lea.vmem %s1, 1
  %15 = vst.msk [vmem:[%s14] ss:$33 sm:$0x3] %vm13, %v12
  %s16 = scalar_lea.vmem %s1, 4294967234
  %17 = vst.msk [vmem:[%s16] ss:$33 sm:$0xc] %vm13, %v12
  %s18 = scalar_lea.vmem %s1, 4294967171
  %19 = vst.msk [vmem:[%s18] ss:$33 sm:$0x30] %vm13, %v12
  %s20 = scalar_lea.vmem %s1, 4294967108
  %21 = vst.msk [vmem:[%s20] ss:$33 sm:$0xc0] %vm13, %v12
  %s22 = scalar_lea.vmem %s0, 4
  %v23 = vld.sshfl [vmem:[%s22] sm:$0xff pattern:$0x654321b0]
  %24 = vrot.lane.b32.xlu0 %v23, 127
  %v25 = vpop.permute.xlu0 %24
  %vm26 = vcmask 7168
  %s27 = scalar_lea.vmem %s1, 13
  %28 = vst.msk [vmem:[%s27] ss:$33 sm:$0x3] %vm26, %v25
  %s29 = scalar_lea.vmem %s1, 10
  %30 = vst.msk [vmem:[%s29] ss:$3 sm:$0xfc] %vm26, %v25
  %v31 = vld.sshfl [vmem:[%s0] sm:$0xff pattern:$0x3d2c1b0a]
  %32 = vrot.lane.b32.xlu0 %v31, 126
  %v33 = vpop.permute.xlu0 %32
  %vm34 = vcmask 7168
  %s35 = scalar_lea.vmem %s1, 32
  %36 = vst.msk [vmem:[%s35] ss:$-30 sm:$0x3] %vm34, %v33
  %s37 = scalar_lea.vmem %s1, 95
  %38 = vst.msk [vmem:[%s37] ss:$-30 sm:$0xc] %vm34, %v33
  %s39 = scalar_lea.vmem %s1, 158
  %40 = vst.msk [vmem:[%s39] ss:$-30 sm:$0x30] %vm34, %v33
  %s41 = scalar_lea.vmem %s1, 221
  %42 = vst.msk [vmem:[%s41] ss:$-30 sm:$0xc0] %vm34, %v33
  %s43 = scalar_lea.vmem %s0, 4
  %v44 = vld.sshfl [vmem:[%s43] sm:$0xff pattern:$0x54321b0a]
  %45 = vrot.lane.b32.xlu0 %v44, 126
  %v46 = vpop.permute.xlu0 %45
  %vm47 = vcmask 7168
  %s48 = scalar_lea.vmem %s1, 44
  %49 = vst.msk [vmem:[%s48] ss:$-30 sm:$0x3] %vm47, %v46
  %s50 = scalar_lea.vmem %s1, 107
  %51 = vst.msk [vmem:[%s50] ss:$-30 sm:$0xc] %vm47, %v46
  %s52 = scalar_lea.vmem %s1, 8
  %53 = vst.msk [vmem:[%s52] ss:$3 sm:$0xf0] %vm47, %v46

// kernel: forward.3
$region0: #{forward.3}
  #allocation0 [shape = 'u32[]', space=smem, size = 0x4, offset = 0x4, fixed_abs, tag = 'smem constant byte address 0x4 - core index']
  #allocation1 [shape = 'u32[144,128]{1,0:T(1,128)}', space=vmem, size = 0x12000, scoped, tag = 'internal scratch']
  %s0 = inlined_call_operand.vmem [shape: f32[4,144,1024], index: 0, kind: input, shape index: {}]
  %s1 = inlined_call_operand.vmem [shape: f32[4,144], index: 1, kind: input, shape index: {}]
  %s2 = inlined_call_operand.vmem [shape: f32[4,1], index: 2, kind: input, shape index: {}]
  %s3 = inlined_call_operand.vmem [shape: f32[4,1024,128], index: 3, kind: input, shape index: {}]
  %s4 = inlined_call_operand.vmem [shape: f32[1,128], index: 4, kind: input, shape index: {}]
  %s5 = inlined_call_operand.vmem [shape: f32[128,4], index: 5, kind: input, shape index: {}]
  %s6 = inlined_call_operand.vmem [shape: f32[1,4], index: 6, kind: input, shape index: {}]
  %s7 = inlined_call_operand.vmem [shape: f32[4,4], index: 7, kind: input, shape index: {}]
  %s8 = inlined_call_operand.vmem [shape: f32[4,128], index: 8, kind: input, shape index: {}]
  %s9 = inlined_call_operand.vmem [shape: f32[1,128], index: 9, kind: input, shape index: {}]
  %s10 = inlined_call_operand.vmem [shape: f32[4,128,1024], index: 10, kind: input, shape index: {}]
  %s11 = inlined_call_operand.vmem [shape: f32[4,1024], index: 11, kind: input, shape index: {}]
  %s12 = inlined_call_operand.vmem [shape: f32[64,4], index: 12, kind: input, shape index: {}]
  %s13 = inlined_call_operand.vmem [shape: f32[64,1], index: 13, kind: input, shape index: {}]
  %s14 = inlined_call_operand.vmem [shape: f32[48,64], index: 14, kind: input, shape index: {}]
  %s15 = inlined_call_operand.vmem [shape: f32[48,1], index: 15, kind: input, shape index: {}]
  %s16 = inlined_call_operand.vmem [shape: f32[2,4], index: 16, kind: output, shape index: {0}]
  %s17 = inlined_call_operand.vmem [shape: f32[2,48,1024], index: 17, kind: output, shape index: {1}]
  %18 = xla_tuple %s16, %s17
  %s19 = sld [smem:[#allocation0]]
  $region82: #{forward.3} parent=0
    _
  %s21 = ssub.s32 1, %s19
  %s22 = scalar_select 0, %s21, %s19
  // Predicated region
  $region2: #{forward.3} parent=0 // pred_check
    _
  $region3: #{forward.3} parent=0 // pred_check_branch
    %24 = sbr.rel (0) target = $region5
  $region4: #{forward.3} parent=0 // pred_region
    _
  $region5: #{forward.3} parent=0 // pred_fallthru
    _
  // Predicated region
  $region6: #{forward.3} parent=0 // pred_check
    _
  $region7: #{forward.3} parent=0 // pred_check_branch
    %26 = sbr.rel (0) target = $region9
  $region8: #{forward.3} parent=0 // pred_region
    _
  $region9: #{forward.3} parent=0 // pred_fallthru
    _
  // Predicated region
  $region10: #{forward.3} parent=0 // pred_check
    _
  $region11: #{forward.3} parent=0 // pred_check_branch
    %28 = sbr.rel (0) target = $region13
  $region12: #{forward.3} parent=0 // pred_region
    _
  $region13: #{forward.3} parent=0 // pred_fallthru
    _
  // Predicated region
  $region14: #{forward.3} parent=0 // pred_check
    _
  $region15: #{forward.3} parent=0 // pred_check_branch
    %30 = sbr.rel (0) target = $region17
  $region16: #{forward.3} parent=0 // pred_region
    _
  $region17: #{forward.3} parent=0 // pred_fallthru
    _
  // Predicated region
  $region18: #{forward.3} parent=0 // pred_check
    _
  $region19: #{forward.3} parent=0 // pred_check_branch
    %32 = sbr.rel (0) target = $region21
  $region20: #{forward.3} parent=0 // pred_region
    _
  $region21: #{forward.3} parent=0 // pred_fallthru
    _
  // Predicated region
  $region22: #{forward.3} parent=0 // pred_check
    _
  $region23: #{forward.3} parent=0 // pred_check_branch
    %34 = sbr.rel (0) target = $region25
  $region24: #{forward.3} parent=0 // pred_region
    _
  $region25: #{forward.3} parent=0 // pred_fallthru
    _
  // Predicated region
  $region26: #{forward.3} parent=0 // pred_check
    _
  $region27: #{forward.3} parent=0 // pred_check_branch
    %36 = sbr.rel (0) target = $region29
  $region28: #{forward.3} parent=0 // pred_region
    _
  $region29: #{forward.3} parent=0 // pred_fallthru
    _
  // Predicated region
  $region30: #{forward.3} parent=0 // pred_check
    _
  $region31: #{forward.3} parent=0 // pred_check_branch
    %38 = sbr.rel (0) target = $region33
  $region32: #{forward.3} parent=0 // pred_region
    _
  $region33: #{forward.3} parent=0 // pred_fallthru
    _
  // Predicated region
  $region34: #{forward.3} parent=0 // pred_check
    _
  $region35: #{forward.3} parent=0 // pred_check_branch
    %40 = sbr.rel (0) target = $region37
  $region36: #{forward.3} parent=0 // pred_region
    _
  $region37: #{forward.3} parent=0 // pred_fallthru
    _
  // Predicated region
  $region38: #{forward.3} parent=0 // pred_check
    _
  $region39: #{forward.3} parent=0 // pred_check_branch
    %42 = sbr.rel (0) target = $region41
  $region40: #{forward.3} parent=0 // pred_region
    _
  $region41: #{forward.3} parent=0 // pred_fallthru
    _
  // Predicated region
  $region42: #{forward.3} parent=0 // pred_check
    _
  $region43: #{forward.3} parent=0 // pred_check_branch
    %44 = sbr.rel (0) target = $region45
  $region44: #{forward.3} parent=0 // pred_region
    _
  $region45: #{forward.3} parent=0 // pred_fallthru
    _
  // Predicated region
  $region46: #{forward.3} parent=0 // pred_check
    _
  $region47: #{forward.3} parent=0 // pred_check_branch
    %46 = sbr.rel (0) target = $region49
  $region48: #{forward.3} parent=0 // pred_region
    _
  $region49: #{forward.3} parent=0 // pred_fallthru
    _
  // Predicated region
  $region50: #{forward.3} parent=0 // pred_check
    _
  $region51: #{forward.3} parent=0 // pred_check_branch
    %48 = sbr.rel (0) target = $region53
  $region52: #{forward.3} parent=0 // pred_region
    _
  $region53: #{forward.3} parent=0 // pred_fallthru
    _
  // Predicated region
  $region54: #{forward.3} parent=0 // pred_check
    _
  $region55: #{forward.3} parent=0 // pred_check_branch
    %50 = sbr.rel (0) target = $region57
  $region56: #{forward.3} parent=0 // pred_region
    _
  $region57: #{forward.3} parent=0 // pred_fallthru
    _
  // Predicated region
  $region58: #{forward.3} parent=0 // pred_check
    _
  $region59: #{forward.3} parent=0 // pred_check_branch
    %52 = sbr.rel (0) target = $region61
  $region60: #{forward.3} parent=0 // pred_region
    _
  $region61: #{forward.3} parent=0 // pred_fallthru
    _
  // Predicated region
  $region62: #{forward.3} parent=0 // pred_check
    _
  $region63: #{forward.3} parent=0 // pred_check_branch
    %54 = sbr.rel (0) target = $region65
  $region64: #{forward.3} parent=0 // pred_region
    _
  $region65: #{forward.3} parent=0 // pred_fallthru
    _
  %v55 = vld [vmem:[%s1] sm:$0xff]
  %v56 = vld [vmem:[%s0] sm:$0xff]
  %v57 = vld [vmem:[%s0 + $0x8] sm:$0xff]
  %v58 = vld [vmem:[%s0 + $0x10] sm:$0xff]
  %v59 = vld [vmem:[%s0 + $0x18] sm:$0xff]
  %v60 = vld [vmem:[%s0 + $0x20] sm:$0xff]
  %v61 = vld [vmem:[%s0 + $0x28] sm:$0xff]
  %v62 = vld [vmem:[%s0 + $0x30] sm:$0xff]
  %v63 = vld [vmem:[%s0 + $0x38] sm:$0xff]
  %v64 = vld [vmem:[%s0 + $0x40] sm:$0xff]
  %v65 = vld [vmem:[%s0 + $0x48] sm:$0xff]
  %v66 = vld [vmem:[%s0 + $0x50] sm:$0xff]
  %v67 = vld [vmem:[%s0 + $0x58] sm:$0xff]
  %v68 = vld [vmem:[%s0 + $0x60] sm:$0xff]
  %v69 = vld [vmem:[%s0 + $0x68] sm:$0xff]
  %v70 = vld [vmem:[%s0 + $0x70] sm:$0xff]
  %v71 = vld [vmem:[%s0 + $0x78] sm:$0xff]
  %v72 = vld [vmem:[%s0 + $0x80] sm:$0xff]
  %v73 = vld [vmem:[%s0 + $0x88] sm:$0xff]
  %v74 = vld [vmem:[%s0 + $0x90] sm:$0xff]
  %v75 = vld [vmem:[%s0 + $0x98] sm:$0xff]
  %v76 = vld [vmem:[%s0 + $0xa0] sm:$0xff]
  %v77 = vld [vmem:[%s0 + $0xa8] sm:$0xff]
  %v78 = vld [vmem:[%s0 + $0xb0] sm:$0xff]
  %v79 = vld [vmem:[%s0 + $0xb8] sm:$0xff]
  %v80 = vld [vmem:[%s0 + $0xc0] sm:$0xff]
  %v81 = vld [vmem:[%s0 + $0xc8] sm:$0xff]
  %v82 = vld [vmem:[%s0 + $0xd0] sm:$0xff]
  %v83 = vld [vmem:[%s0 + $0xd8] sm:$0xff]
  %v84 = vld [vmem:[%s0 + $0xe0] sm:$0xff]
  %v85 = vld [vmem:[%s0 + $0xe8] sm:$0xff]
  %v86 = vld [vmem:[%s0 + $0xf0] sm:$0xff]
  %v87 = vld [vmem:[%s0 + $0xf8] sm:$0xff]
  %v88 = vld [vmem:[%s0 + $0x100] sm:$0xff]
  %v89 = vld [vmem:[%s0 + $0x108] sm:$0xff]
  %v90 = vld [vmem:[%s0 + $0x110] sm:$0xff]
  %v91 = vld [vmem:[%s0 + $0x118] sm:$0xff]
  %v92 = vld [vmem:[%s0 + $0x120] sm:$0xff]
  %v93 = vld [vmem:[%s0 + $0x128] sm:$0xff]
  %v94 = vld [vmem:[%s0 + $0x130] sm:$0xff]
  %v95 = vld [vmem:[%s0 + $0x138] sm:$0xff]
  %v96 = vld [vmem:[%s0 + $0x140] sm:$0xff]
  %v97 = vld [vmem:[%s0 + $0x148] sm:$0xff]
  %v98 = vld [vmem:[%s0 + $0x150] sm:$0xff]
  %v99 = vld [vmem:[%s0 + $0x158] sm:$0xff]
  %v100 = vld [vmem:[%s0 + $0x160] sm:$0xff]
  %v101 = vld [vmem:[%s0 + $0x168] sm:$0xff]
  %v102 = vld [vmem:[%s0 + $0x170] sm:$0xff]
  %v103 = vld [vmem:[%s0 + $0x178] sm:$0xff]
  %v104 = vld [vmem:[%s0 + $0x180] sm:$0xff]
  %v105 = vld [vmem:[%s0 + $0x188] sm:$0xff]
  %v106 = vld [vmem:[%s0 + $0x190] sm:$0xff]
  %v107 = vld [vmem:[%s0 + $0x198] sm:$0xff]
  %v108 = vld [vmem:[%s0 + $0x1a0] sm:$0xff]
  %v109 = vld [vmem:[%s0 + $0x1a8] sm:$0xff]
  %v110 = vld [vmem:[%s0 + $0x1b0] sm:$0xff]
  %v111 = vld [vmem:[%s0 + $0x1b8] sm:$0xff]
  %v112 = vld [vmem:[%s0 + $0x1c0] sm:$0xff]
  %v113 = vld [vmem:[%s0 + $0x1c8] sm:$0xff]
  %v114 = vld [vmem:[%s0 + $0x1d0] sm:$0xff]
  %v115 = vld [vmem:[%s0 + $0x1d8] sm:$0xff]
  %v116 = vld [vmem:[%s0 + $0x1e0] sm:$0xff]
  %v117 = vld [vmem:[%s0 + $0x1e8] sm:$0xff]
  %v118 = vld [vmem:[%s0 + $0x1f0] sm:$0xff]
  %v119 = vld [vmem:[%s0 + $0x1f8] sm:$0xff]
  %v120 = vld [vmem:[%s0 + $0x200] sm:$0xff]
  %v121 = vld [vmem:[%s0 + $0x208] sm:$0xff]
  %v122 = vld [vmem:[%s0 + $0x210] sm:$0xff]
  %v123 = vld [vmem:[%s0 + $0x218] sm:$0xff]
  %v124 = vld [vmem:[%s0 + $0x220] sm:$0xff]
  %v125 = vld [vmem:[%s0 + $0x228] sm:$0xff]
  %v126 = vld [vmem:[%s0 + $0x230] sm:$0xff]
  %v127 = vld [vmem:[%s0 + $0x238] sm:$0xff]
  %v128 = vld [vmem:[%s0 + $0x240] sm:$0xff]
  %v129 = vld [vmem:[%s0 + $0x248] sm:$0xff]
  %v130 = vld [vmem:[%s0 + $0x250] sm:$0xff]
  %v131 = vld [vmem:[%s0 + $0x258] sm:$0xff]
  %v132 = vld [vmem:[%s0 + $0x260] sm:$0xff]
  %v133 = vld [vmem:[%s0 + $0x268] sm:$0xff]
  %v134 = vld [vmem:[%s0 + $0x270] sm:$0xff]
  %v135 = vld [vmem:[%s0 + $0x278] sm:$0xff]
  %v136 = vld [vmem:[%s0 + $0x280] sm:$0xff]
  %v137 = vld [vmem:[%s0 + $0x288] sm:$0xff]
  %v138 = vld [vmem:[%s0 + $0x290] sm:$0xff]
  %v139 = vld [vmem:[%s0 + $0x298] sm:$0xff]
  %v140 = vld [vmem:[%s0 + $0x2a0] sm:$0xff]
  %v141 = vld [vmem:[%s0 + $0x2a8] sm:$0xff]
  %v142 = vld [vmem:[%s0 + $0x2b0] sm:$0xff]
  %v143 = vld [vmem:[%s0 + $0x2b8] sm:$0xff]
  %v144 = vld [vmem:[%s0 + $0x2c0] sm:$0xff]
  %v145 = vld [vmem:[%s0 + $0x2c8] sm:$0xff]
  %v146 = vld [vmem:[%s0 + $0x2d0] sm:$0xff]
  %v147 = vld [vmem:[%s0 + $0x2d8] sm:$0xff]
  %v148 = vld [vmem:[%s0 + $0x2e0] sm:$0xff]
  %v149 = vld [vmem:[%s0 + $0x2e8] sm:$0xff]
  %v150 = vld [vmem:[%s0 + $0x2f0] sm:$0xff]
  %v151 = vld [vmem:[%s0 + $0x2f8] sm:$0xff]
  %v152 = vld [vmem:[%s0 + $0x300] sm:$0xff]
  %v153 = vld [vmem:[%s0 + $0x308] sm:$0xff]
  %v154 = vld [vmem:[%s0 + $0x310] sm:$0xff]
  %v155 = vld [vmem:[%s0 + $0x318] sm:$0xff]
  %v156 = vld [vmem:[%s0 + $0x320] sm:$0xff]
  %v157 = vld [vmem:[%s0 + $0x328] sm:$0xff]
  %v158 = vld [vmem:[%s0 + $0x330] sm:$0xff]
  %v159 = vld [vmem:[%s0 + $0x338] sm:$0xff]
  %v160 = vld [vmem:[%s0 + $0x340] sm:$0xff]
  %v161 = vld [vmem:[%s0 + $0x348] sm:$0xff]
  %v162 = vld [vmem:[%s0 + $0x350] sm:$0xff]
  %v163 = vld [vmem:[%s0 + $0x358] sm:$0xff]
  %v164 = vld [vmem:[%s0 + $0x360] sm:$0xff]
  %v165 = vld [vmem:[%s0 + $0x368] sm:$0xff]
  %v166 = vld [vmem:[%s0 + $0x370] sm:$0xff]
  %v167 = vld [vmem:[%s0 + $0x378] sm:$0xff]
  %v168 = vld [vmem:[%s0 + $0x380] sm:$0xff]
  %v169 = vld [vmem:[%s0 + $0x388] sm:$0xff]
  %v170 = vld [vmem:[%s0 + $0x390] sm:$0xff]
  %v171 = vld [vmem:[%s0 + $0x398] sm:$0xff]
  %v172 = vld [vmem:[%s0 + $0x3a0] sm:$0xff]
  %v173 = vld [vmem:[%s0 + $0x3a8] sm:$0xff]
  %v174 = vld [vmem:[%s0 + $0x3b0] sm:$0xff]
  %v175 = vld [vmem:[%s0 + $0x3b8] sm:$0xff]
  %v176 = vld [vmem:[%s0 + $0x3c0] sm:$0xff]
  %v177 = vld [vmem:[%s0 + $0x3c8] sm:$0xff]
  %v178 = vld [vmem:[%s0 + $0x3d0] sm:$0xff]
  %v179 = vld [vmem:[%s0 + $0x3d8] sm:$0xff]
  %v180 = vld [vmem:[%s0 + $0x3e0] sm:$0xff]
  %v181 = vld [vmem:[%s0 + $0x3e8] sm:$0xff]
  %v182 = vld [vmem:[%s0 + $0x3f0] sm:$0xff]
  %v183 = vld [vmem:[%s0 + $0x3f8] sm:$0xff]
  %v184 = vld [vmem:[%s0 + $0x400] sm:$0xff]
  %v185 = vld [vmem:[%s0 + $0x408] sm:$0xff]
  %v186 = vld [vmem:[%s0 + $0x410] sm:$0xff]
  %v187 = vld [vmem:[%s0 + $0x418] sm:$0xff]
  %v188 = vld [vmem:[%s0 + $0x420] sm:$0xff]
  %v189 = vld [vmem:[%s0 + $0x428] sm:$0xff]
  %v190 = vld [vmem:[%s0 + $0x430] sm:$0xff]
  %v191 = vld [vmem:[%s0 + $0x438] sm:$0xff]
  %v192 = vld [vmem:[%s0 + $0x440] sm:$0xff]
  %v193 = vld [vmem:[%s0 + $0x448] sm:$0xff]
  %v194 = vld [vmem:[%s0 + $0x450] sm:$0xff]
  %v195 = vld [vmem:[%s0 + $0x458] sm:$0xff]
  %v196 = vld [vmem:[%s0 + $0x460] sm:$0xff]
  %v197 = vld [vmem:[%s0 + $0x468] sm:$0xff]
  %v198 = vld [vmem:[%s0 + $0x470] sm:$0xff]
  %v199 = vld [vmem:[%s0 + $0x478] sm:$0xff]
  %v201 = vcombine.high %v55, %v55
  %vm202 = vcmask 130048
  %v203 = vsel %vm202, %v201, 0
  %205 = vmatprep.subr.mxu0 %v177
  %206 = vmatpush1.msra.mxu0 %v176
  %207 = vmatprep.subr.mxu0 %v169
  %208 = vmatpush1.msra.mxu0 %v168
  %209 = vmatprep.subr.mxu0 %v161
  %210 = vmatpush1.msra.mxu0 %v160
  %211 = vmatprep.subr.mxu0 %v153
  %212 = vmatpush1.msra.mxu0 %v152
  %213 = vmatprep.subr.mxu0 %v145
  %214 = vmatpush1.msra.mxu0 %v144
  %215 = vmatprep.subr.mxu0 %v137
  %216 = vmatpush1.msra.mxu0 %v136
  %217 = vmatprep.subr.mxu0 %v129
  %218 = vmatpush1.msra.mxu0 %v128
  %219 = vmatprep.subr.mxu0 %v121
  %220 = vmatpush1.msra.mxu0 %v120
  %221 = vmatprep.subr.mxu0 %v113
  %222 = vmatpush1.msra.mxu0 %v112
  %223 = vmatprep.subr.mxu0 %v105
  %224 = vmatpush1.msra.mxu0 %v104
  %225 = vmatprep.subr.mxu0 %v97
  %226 = vmatpush1.msra.mxu0 %v96
  %227 = vmatprep.subr.mxu0 %v89
  %228 = vmatpush1.msra.mxu0 %v88
  %229 = vmatprep.subr.mxu0 %v81
  %230 = vmatpush1.msra.mxu0 %v80
  %231 = vmatprep.subr.mxu0 %v73
  %232 = vmatpush1.msra.mxu0 %v72
  %233 = vmatprep.subr.mxu0 %v65
  %234 = vmatpush1.msra.mxu0 %v64
  %235 = vmatprep.subr.mxu0 %v57
  %236 = vmatpush1.msra.mxu0 %v56
  %237 = vmatprep.subr.mxu0 0.0
  %238 = vmatpush2.msra.mxu0 0.0
  %239 = vmatprep.subr.mxu0 0.0
  %240 = vmatpush2.msra.mxu0 0.0
  %241 = vmatprep.subr.mxu0 0.0
  %242 = vmatpush2.msra.mxu0 0.0
  %243 = vmatprep.subr.mxu0 0.0
  %244 = vmatpush2.msra.mxu0 0.0
  %245 = vmatprep.subr.mxu0 0.0
  %246 = vmatpush2.msra.mxu0 0.0
  %247 = vmatprep.subr.mxu0 0.0
  %248 = vmatpush2.msra.mxu0 0.0
  %249 = vmatprep.subr.mxu0 0.0
  %250 = vmatpush2.msra.mxu0 0.0
  %251 = vmatprep.subr.mxu0 0.0
  %252 = vmatpush2.msra.mxu0 0.0
  %253 = vmatprep.subr.mxu0 0.0
  %254 = vmatpush2.msra.mxu0 0.0
  %255 = vmatprep.subr.mxu0 0.0
  %256 = vmatpush2.msra.mxu0 0.0
  %257 = vmatprep.subr.mxu0 0.0
  %258 = vmatpush2.msra.mxu0 0.0
  %259 = vmatprep.subr.mxu0 0.0
  %260 = vmatpush2.msra.mxu0 0.0
  %261 = vmatprep.subr.mxu0 0.0
  %262 = vmatpush2.msra.mxu0 0.0
  %263 = vmatprep.subr.mxu0 0.0
  %264 = vmatpush2.msra.mxu0 0.0
  %265 = vmatprep.subr.mxu0 %v193
  %266 = vmatpush2.msra.mxu0 %v192
  %267 = vmatprep.subr.mxu0 %v185
  %268 = vmatpush2.msra.mxu0 %v184
  %269 = vmatprep.mubr.f32.mxu0 %v203
  %270 = vmatmul.mubr.f32.gmra.mxu0 %v55
  %v271 = vpop.f32.mrf.mxu0
  %v272 = vadd.f32 0.0, %v271
  %v273 = vpop.f32.mrf.mxu0
  %v274 = vadd.f32 0.0, %v273
  %275 = vdwg.mxu0
  %276 = vmatprep.subr.mxu0 %v179
  %277 = vmatpush1.msra.mxu0 %v178
  %278 = vmatprep.subr.mxu0 %v171
  %279 = vmatpush1.msra.mxu0 %v170
  %280 = vmatprep.subr.mxu0 %v163
  %281 = vmatpush1.msra.mxu0 %v162
  %282 = vmatprep.subr.mxu0 %v155
  %283 = vmatpush1.msra.mxu0 %v154
  %284 = vmatprep.subr.mxu0 %v147
  %285 = vmatpush1.msra.mxu0 %v146
  %286 = vmatprep.subr.mxu0 %v139
  %287 = vmatpush1.msra.mxu0 %v138
  %288 = vmatprep.subr.mxu0 %v131
  %289 = vmatpush1.msra.mxu0 %v130
  %290 = vmatprep.subr.mxu0 %v123
  %291 = vmatpush1.msra.mxu0 %v122
  %292 = vmatprep.subr.mxu0 %v115
  %293 = vmatpush1.msra.mxu0 %v114
  %294 = vmatprep.subr.mxu0 %v107
  %295 = vmatpush1.msra.mxu0 %v106
  %296 = vmatprep.subr.mxu0 %v99
  %297 = vmatpush1.msra.mxu0 %v98
  %298 = vmatprep.subr.mxu0 %v91
  %299 = vmatpush1.msra.mxu0 %v90
  %300 = vmatprep.subr.mxu0 %v83
  %301 = vmatpush1.msra.mxu0 %v82
  %302 = vmatprep.subr.mxu0 %v75
  %303 = vmatpush1.msra.mxu0 %v74
  %304 = vmatprep.subr.mxu0 %v67
  %305 = vmatpush1.msra.mxu0 %v66
  %306 = vmatprep.subr.mxu0 %v59
  %307 = vmatpush1.msra.mxu0 %v58
  %308 = vmatprep.subr.mxu0 0.0
  %309 = vmatpush2.msra.mxu0 0.0
  %310 = vmatprep.subr.mxu0 0.0
  %311 = vmatpush2.msra.mxu0 0.0
  %312 = vmatprep.subr.mxu0 0.0
  %313 = vmatpush2.msra.mxu0 0.0
  %314 = vmatprep.subr.mxu0 0.0
  %315 = vmatpush2.msra.mxu0 0.0
  %316 = vmatprep.subr.mxu0 0.0
  %317 = vmatpush2.msra.mxu0 0.0
  %318 = vmatprep.subr.mxu0 0.0
  %319 = vmatpush2.msra.mxu0 0.0
  %320 = vmatprep.subr.mxu0 0.0
  %321 = vmatpush2.msra.mxu0 0.0
  %322 = vmatprep.subr.mxu0 0.0
  %323 = vmatpush2.msra.mxu0 0.0
  %324 = vmatprep.subr.mxu0 0.0
  %325 = vmatpush2.msra.mxu0 0.0
  %326 = vmatprep.subr.mxu0 0.0
  %327 = vmatpush2.msra.mxu0 0.0
  %328 = vmatprep.subr.mxu0 0.0
  %329 = vmatpush2.msra.mxu0 0.0
  %330 = vmatprep.subr.mxu0 0.0
  %331 = vmatpush2.msra.mxu0 0.0
  %332 = vmatprep.subr.mxu0 0.0
  %333 = vmatpush2.msra.mxu0 0.0
  %334 = vmatprep.subr.mxu0 0.0
  %335 = vmatpush2.msra.mxu0 0.0
  %336 = vmatprep.subr.mxu0 %v195
  %337 = vmatpush2.msra.mxu0 %v194
  %338 = vmatprep.subr.mxu0 %v187
  %339 = vmatpush2.msra.mxu0 %v186
  %340 = vmatprep.mubr.f32.mxu0 %v203
  %341 = vmatmul.mubr.f32.gmra.mxu0 %v55
  %v342 = vpop.f32.mrf.mxu0
  %v343 = vadd.f32 0.0, %v342
  %v344 = vpop.f32.mrf.mxu0
  %v345 = vadd.f32 0.0, %v344
  %346 = vdwg.mxu0
  %347 = vmatprep.subr.mxu0 %v181
  %348 = vmatpush1.msra.mxu0 %v180
  %349 = vmatprep.subr.mxu0 %v173
  %350 = vmatpush1.msra.mxu0 %v172
  %351 = vmatprep.subr.mxu0 %v165
  %352 = vmatpush1.msra.mxu0 %v164
  %353 = vmatprep.subr.mxu0 %v157
  %354 = vmatpush1.msra.mxu0 %v156
  %355 = vmatprep.subr.mxu0 %v149
  %356 = vmatpush1.msra.mxu0 %v148
  %357 = vmatprep.subr.mxu0 %v141
  %358 = vmatpush1.msra.mxu0 %v140
  %359 = vmatprep.subr.mxu0 %v133
  %360 = vmatpush1.msra.mxu0 %v132
  %361 = vmatprep.subr.mxu0 %v125
  %362 = vmatpush1.msra.mxu0 %v124
  %363 = vmatprep.subr.mxu0 %v117
  %364 = vmatpush1.msra.mxu0 %v116
  %365 = vmatprep.subr.mxu0 %v109
  %366 = vmatpush1.msra.mxu0 %v108
  %367 = vmatprep.subr.mxu0 %v101
  %368 = vmatpush1.msra.mxu0 %v100
  %369 = vmatprep.subr.mxu0 %v93
  %370 = vmatpush1.msra.mxu0 %v92
  %371 = vmatprep.subr.mxu0 %v85
  %372 = vmatpush1.msra.mxu0 %v84
  %373 = vmatprep.subr.mxu0 %v77
  %374 = vmatpush1.msra.mxu0 %v76
  %375 = vmatprep.subr.mxu0 %v69
  %376 = vmatpush1.msra.mxu0 %v68
  %377 = vmatprep.subr.mxu0 %v61
  %378 = vmatpush1.msra.mxu0 %v60
  %379 = vmatprep.subr.mxu0 0.0
  %380 = vmatpush2.msra.mxu0 0.0
  %381 = vmatprep.subr.mxu0 0.0
  %382 = vmatpush2.msra.mxu0 0.0
  %383 = vmatprep.subr.mxu0 0.0
  %384 = vmatpush2.msra.mxu0 0.0
  %385 = vmatprep.subr.mxu0 0.0
  %386 = vmatpush2.msra.mxu0 0.0
  %387 = vmatprep.subr.mxu0 0.0
  %388 = vmatpush2.msra.mxu0 0.0
  %389 = vmatprep.subr.mxu0 0.0
  %390 = vmatpush2.msra.mxu0 0.0
  %391 = vmatprep.subr.mxu0 0.0
  %392 = vmatpush2.msra.mxu0 0.0
  %393 = vmatprep.subr.mxu0 0.0
  %394 = vmatpush2.msra.mxu0 0.0
  %395 = vmatprep.subr.mxu0 0.0
  %396 = vmatpush2.msra.mxu0 0.0
  %397 = vmatprep.subr.mxu0 0.0
  %398 = vmatpush2.msra.mxu0 0.0
  %399 = vmatprep.subr.mxu0 0.0
  %400 = vmatpush2.msra.mxu0 0.0
  %401 = vmatprep.subr.mxu0 0.0
  %402 = vmatpush2.msra.mxu0 0.0
  %403 = vmatprep.subr.mxu0 0.0
  %404 = vmatpush2.msra.mxu0 0.0
  %405 = vmatprep.subr.mxu0 0.0
  %406 = vmatpush2.msra.mxu0 0.0
  %407 = vmatprep.subr.mxu0 %v197
  %408 = vmatpush2.msra.mxu0 %v196
  %409 = vmatprep.subr.mxu0 %v189
  %410 = vmatpush2.msra.mxu0 %v188
  %411 = vmatprep.mubr.f32.mxu0 %v203
  %412 = vmatmul.mubr.f32.gmra.mxu0 %v55
  %v413 = vpop.f32.mrf.mxu0
  %v414 = vadd.f32 0.0, %v413
  %v415 = vpop.f32.mrf.mxu0
  %v416 = vadd.f32 0.0, %v415
  %417 = vdwg.mxu0
  %418 = vmatprep.subr.mxu0 %v183
  %419 = vmatpush1.msra.mxu0 %v182
  %420 = vmatprep.subr.mxu0 %v175
  %421 = vmatpush1.msra.mxu0 %v174
  %422 = vmatprep.subr.mxu0 %v167
  %423 = vmatpush1.msra.mxu0 %v166
  %424 = vmatprep.subr.mxu0 %v159
  %425 = vmatpush1.msra.mxu0 %v158
  %426 = vmatprep.subr.mxu0 %v151
  %427 = vmatpush1.msra.mxu0 %v150
  %428 = vmatprep.subr.mxu0 %v143
  %429 = vmatpush1.msra.mxu0 %v142
  %430 = vmatprep.subr.mxu0 %v135
  %431 = vmatpush1.msra.mxu0 %v134
  %432 = vmatprep.subr.mxu0 %v127
  %433 = vmatpush1.msra.mxu0 %v126
  %434 = vmatprep.subr.mxu0 %v119
  %435 = vmatpush1.msra.mxu0 %v118
  %436 = vmatprep.subr.mxu0 %v111
  %437 = vmatpush1.msra.mxu0 %v110
  %438 = vmatprep.subr.mxu0 %v103
  %439 = vmatpush1.msra.mxu0 %v102
  %440 = vmatprep.subr.mxu0 %v95
  %441 = vmatpush1.msra.mxu0 %v94
  %442 = vmatprep.subr.mxu0 %v87
  %443 = vmatpush1.msra.mxu0 %v86
  %444 = vmatprep.subr.mxu0 %v79
  %445 = vmatpush1.msra.mxu0 %v78
  %446 = vmatprep.subr.mxu0 %v71
  %447 = vmatpush1.msra.mxu0 %v70
  %448 = vmatprep.subr.mxu0 %v63
  %449 = vmatpush1.msra.mxu0 %v62
  %450 = vmatprep.subr.mxu0 0.0
  %451 = vmatpush2.msra.mxu0 0.0
  %452 = vmatprep.subr.mxu0 0.0
  %453 = vmatpush2.msra.mxu0 0.0
  %454 = vmatprep.subr.mxu0 0.0
  %455 = vmatpush2.msra.mxu0 0.0
  %456 = vmatprep.subr.mxu0 0.0
  %457 = vmatpush2.msra.mxu0 0.0
  %458 = vmatprep.subr.mxu0 0.0
  %459 = vmatpush2.msra.mxu0 0.0
  %460 = vmatprep.subr.mxu0 0.0
  %461 = vmatpush2.msra.mxu0 0.0
  %462 = vmatprep.subr.mxu0 0.0
  %463 = vmatpush2.msra.mxu0 0.0
  %464 = vmatprep.subr.mxu0 0.0
  %465 = vmatpush2.msra.mxu0 0.0
  %466 = vmatprep.subr.mxu0 0.0
  %467 = vmatpush2.msra.mxu0 0.0
  %468 = vmatprep.subr.mxu0 0.0
  %469 = vmatpush2.msra.mxu0 0.0
  %470 = vmatprep.subr.mxu0 0.0
  %471 = vmatpush2.msra.mxu0 0.0
  %472 = vmatprep.subr.mxu0 0.0
  %473 = vmatpush2.msra.mxu0 0.0
  %474 = vmatprep.subr.mxu0 0.0
  %475 = vmatpush2.msra.mxu0 0.0
  %476 = vmatprep.subr.mxu0 0.0
  %477 = vmatpush2.msra.mxu0 0.0
  %478 = vmatprep.subr.mxu0 %v199
  %479 = vmatpush2.msra.mxu0 %v198
  %480 = vmatprep.subr.mxu0 %v191
  %481 = vmatpush2.msra.mxu0 %v190
  %482 = vmatprep.mubr.f32.mxu0 %v203
  %483 = vmatmul.mubr.f32.gmra.mxu0 %v55
  %v484 = vpop.f32.mrf.mxu0
  %v485 = vadd.f32 0.0, %v484
  %v486 = vpop.f32.mrf.mxu0
  %v487 = vadd.f32 0.0, %v486
  %488 = vdwg.mxu0
  %s489 = scalar_lea.vmem %s0, 1152
  %v490 = vld [vmem:[%s489] sm:$0xff]
  %v491 = vld [vmem:[%s489 + $0x8] sm:$0xff]
  %v492 = vld [vmem:[%s489 + $0x10] sm:$0xff]
  %v493 = vld [vmem:[%s489 + $0x18] sm:$0xff]
  %v494 = vld [vmem:[%s489 + $0x20] sm:$0xff]
  %v495 = vld [vmem:[%s489 + $0x28] sm:$0xff]
  %v496 = vld [vmem:[%s489 + $0x30] sm:$0xff]
  %v497 = vld [vmem:[%s489 + $0x38] sm:$0xff]
  %v498 = vld [vmem:[%s489 + $0x40] sm:$0xff]
  %v499 = vld [vmem:[%s489 + $0x48] sm:$0xff]
  %v500 = vld [vmem:[%s489 + $0x50] sm:$0xff]
  %v501 = vld [vmem:[%s489 + $0x58] sm:$0xff]
  %v502 = vld [vmem:[%s489 + $0x60] sm:$0xff]
  %v503 = vld [vmem:[%s489 + $0x68] sm:$0xff]
  %v504 = vld [vmem:[%s489 + $0x70] sm:$0xff]
  %v505 = vld [vmem:[%s489 + $0x78] sm:$0xff]
  %v506 = vld [vmem:[%s489 + $0x80] sm:$0xff]
  %v507 = vld [vmem:[%s489 + $0x88] sm:$0xff]
  %v508 = vld [vmem:[%s489 + $0x90] sm:$0xff]
  %v509 = vld [vmem:[%s489 + $0x98] sm:$0xff]
  %v510 = vld [vmem:[%s489 + $0xa0] sm:$0xff]
  %v511 = vld [vmem:[%s489 + $0xa8] sm:$0xff]
  %v512 = vld [vmem:[%s489 + $0xb0] sm:$0xff]
  %v513 = vld [vmem:[%s489 + $0xb8] sm:$0xff]
  %v514 = vld [vmem:[%s489 + $0xc0] sm:$0xff]
  %v515 = vld [vmem:[%s489 + $0xc8] sm:$0xff]
  %v516 = vld [vmem:[%s489 + $0xd0] sm:$0xff]
  %v517 = vld [vmem:[%s489 + $0xd8] sm:$0xff]
  %v518 = vld [vmem:[%s489 + $0xe0] sm:$0xff]
  %v519 = vld [vmem:[%s489 + $0xe8] sm:$0xff]
  %v520 = vld [vmem:[%s489 + $0xf0] sm:$0xff]
  %v521 = vld [vmem:[%s489 + $0xf8] sm:$0xff]
  %v522 = vld [vmem:[%s489 + $0x100] sm:$0xff]
  %v523 = vld [vmem:[%s489 + $0x108] sm:$0xff]
  %v524 = vld [vmem:[%s489 + $0x110] sm:$0xff]
  %v525 = vld [vmem:[%s489 + $0x118] sm:$0xff]
  %v526 = vld [vmem:[%s489 + $0x120] sm:$0xff]
  %v527 = vld [vmem:[%s489 + $0x128] sm:$0xff]
  %v528 = vld [vmem:[%s489 + $0x130] sm:$0xff]
  %v529 = vld [vmem:[%s489 + $0x138] sm:$0xff]
  %v530 = vld [vmem:[%s489 + $0x140] sm:$0xff]
  %v531 = vld [vmem:[%s489 + $0x148] sm:$0xff]
  %v532 = vld [vmem:[%s489 + $0x150] sm:$0xff]
  %v533 = vld [vmem:[%s489 + $0x158] sm:$0xff]
  %v534 = vld [vmem:[%s489 + $0x160] sm:$0xff]
  %v535 = vld [vmem:[%s489 + $0x168] sm:$0xff]
  %v536 = vld [vmem:[%s489 + $0x170] sm:$0xff]
  %v537 = vld [vmem:[%s489 + $0x178] sm:$0xff]
  %v538 = vld [vmem:[%s489 + $0x180] sm:$0xff]
  %v539 = vld [vmem:[%s489 + $0x188] sm:$0xff]
  %v540 = vld [vmem:[%s489 + $0x190] sm:$0xff]
  %v541 = vld [vmem:[%s489 + $0x198] sm:$0xff]
  %v542 = vld [vmem:[%s489 + $0x1a0] sm:$0xff]
  %v543 = vld [vmem:[%s489 + $0x1a8] sm:$0xff]
  %v544 = vld [vmem:[%s489 + $0x1b0] sm:$0xff]
  %v545 = vld [vmem:[%s489 + $0x1b8] sm:$0xff]
  %v546 = vld [vmem:[%s489 + $0x1c0] sm:$0xff]
  %v547 = vld [vmem:[%s489 + $0x1c8] sm:$0xff]
  %v548 = vld [vmem:[%s489 + $0x1d0] sm:$0xff]
  %v549 = vld [vmem:[%s489 + $0x1d8] sm:$0xff]
  %v550 = vld [vmem:[%s489 + $0x1e0] sm:$0xff]
  %v551 = vld [vmem:[%s489 + $0x1e8] sm:$0xff]
  %v552 = vld [vmem:[%s489 + $0x1f0] sm:$0xff]
  %v553 = vld [vmem:[%s489 + $0x1f8] sm:$0xff]
  %v554 = vld [vmem:[%s489 + $0x200] sm:$0xff]
  %v555 = vld [vmem:[%s489 + $0x208] sm:$0xff]
  %v556 = vld [vmem:[%s489 + $0x210] sm:$0xff]
  %v557 = vld [vmem:[%s489 + $0x218] sm:$0xff]
  %v558 = vld [vmem:[%s489 + $0x220] sm:$0xff]
  %v559 = vld [vmem:[%s489 + $0x228] sm:$0xff]
  %v560 = vld [vmem:[%s489 + $0x230] sm:$0xff]
  %v561 = vld [vmem:[%s489 + $0x238] sm:$0xff]
  %v562 = vld [vmem:[%s489 + $0x240] sm:$0xff]
  %v563 = vld [vmem:[%s489 + $0x248] sm:$0xff]
  %v564 = vld [vmem:[%s489 + $0x250] sm:$0xff]
  %v565 = vld [vmem:[%s489 + $0x258] sm:$0xff]
  %v566 = vld [vmem:[%s489 + $0x260] sm:$0xff]
  %v567 = vld [vmem:[%s489 + $0x268] sm:$0xff]
  %v568 = vld [vmem:[%s489 + $0x270] sm:$0xff]
  %v569 = vld [vmem:[%s489 + $0x278] sm:$0xff]
  %v570 = vld [vmem:[%s489 + $0x280] sm:$0xff]
  %v571 = vld [vmem:[%s489 + $0x288] sm:$0xff]
  %v572 = vld [vmem:[%s489 + $0x290] sm:$0xff]
  %v573 = vld [vmem:[%s489 + $0x298] sm:$0xff]
  %v574 = vld [vmem:[%s489 + $0x2a0] sm:$0xff]
  %v575 = vld [vmem:[%s489 + $0x2a8] sm:$0xff]
  %v576 = vld [vmem:[%s489 + $0x2b0] sm:$0xff]
  %v577 = vld [vmem:[%s489 + $0x2b8] sm:$0xff]
  %v578 = vld [vmem:[%s489 + $0x2c0] sm:$0xff]
  %v579 = vld [vmem:[%s489 + $0x2c8] sm:$0xff]
  %v580 = vld [vmem:[%s489 + $0x2d0] sm:$0xff]
  %v581 = vld [vmem:[%s489 + $0x2d8] sm:$0xff]
  %v582 = vld [vmem:[%s489 + $0x2e0] sm:$0xff]
  %v583 = vld [vmem:[%s489 + $0x2e8] sm:$0xff]
  %v584 = vld [vmem:[%s489 + $0x2f0] sm:$0xff]
  %v585 = vld [vmem:[%s489 + $0x2f8] sm:$0xff]
  %v586 = vld [vmem:[%s489 + $0x300] sm:$0xff]
  %v587 = vld [vmem:[%s489 + $0x308] sm:$0xff]
  %v588 = vld [vmem:[%s489 + $0x310] sm:$0xff]
  %v589 = vld [vmem:[%s489 + $0x318] sm:$0xff]
  %v590 = vld [vmem:[%s489 + $0x320] sm:$0xff]
  %v591 = vld [vmem:[%s489 + $0x328] sm:$0xff]
  %v592 = vld [vmem:[%s489 + $0x330] sm:$0xff]
  %v593 = vld [vmem:[%s489 + $0x338] sm:$0xff]
  %v594 = vld [vmem:[%s489 + $0x340] sm:$0xff]
  %v595 = vld [vmem:[%s489 + $0x348] sm:$0xff]
  %v596 = vld [vmem:[%s489 + $0x350] sm:$0xff]
  %v597 = vld [vmem:[%s489 + $0x358] sm:$0xff]
  %v598 = vld [vmem:[%s489 + $0x360] sm:$0xff]
  %v599 = vld [vmem:[%s489 + $0x368] sm:$0xff]
  %v600 = vld [vmem:[%s489 + $0x370] sm:$0xff]
  %v601 = vld [vmem:[%s489 + $0x378] sm:$0xff]
  %v602 = vld [vmem:[%s489 + $0x380] sm:$0xff]
  %v603 = vld [vmem:[%s489 + $0x388] sm:$0xff]
  %v604 = vld [vmem:[%s489 + $0x390] sm:$0xff]
  %v605 = vld [vmem:[%s489 + $0x398] sm:$0xff]
  %v606 = vld [vmem:[%s489 + $0x3a0] sm:$0xff]
  %v607 = vld [vmem:[%s489 + $0x3a8] sm:$0xff]
  %v608 = vld [vmem:[%s489 + $0x3b0] sm:$0xff]
  %v609 = vld [vmem:[%s489 + $0x3b8] sm:$0xff]
  %v610 = vld [vmem:[%s489 + $0x3c0] sm:$0xff]
  %v611 = vld [vmem:[%s489 + $0x3c8] sm:$0xff]
  %v612 = vld [vmem:[%s489 + $0x3d0] sm:$0xff]
  %v613 = vld [vmem:[%s489 + $0x3d8] sm:$0xff]
  %v614 = vld [vmem:[%s489 + $0x3e0] sm:$0xff]
  %v615 = vld [vmem:[%s489 + $0x3e8] sm:$0xff]
  %v616 = vld [vmem:[%s489 + $0x3f0] sm:$0xff]
  %v617 = vld [vmem:[%s489 + $0x3f8] sm:$0xff]
  %v618 = vld [vmem:[%s489 + $0x400] sm:$0xff]
  %v619 = vld [vmem:[%s489 + $0x408] sm:$0xff]
  %v620 = vld [vmem:[%s489 + $0x410] sm:$0xff]
  %v621 = vld [vmem:[%s489 + $0x418] sm:$0xff]
  %v622 = vld [vmem:[%s489 + $0x420] sm:$0xff]
  %v623 = vld [vmem:[%s489 + $0x428] sm:$0xff]
  %v624 = vld [vmem:[%s489 + $0x430] sm:$0xff]
  %v625 = vld [vmem:[%s489 + $0x438] sm:$0xff]
  %v626 = vld [vmem:[%s489 + $0x440] sm:$0xff]
  %v627 = vld [vmem:[%s489 + $0x448] sm:$0xff]
  %v628 = vld [vmem:[%s489 + $0x450] sm:$0xff]
  %v629 = vld [vmem:[%s489 + $0x458] sm:$0xff]
  %v630 = vld [vmem:[%s489 + $0x460] sm:$0xff]
  %v631 = vld [vmem:[%s489 + $0x468] sm:$0xff]
  %v632 = vld [vmem:[%s489 + $0x470] sm:$0xff]
  %v633 = vld [vmem:[%s489 + $0x478] sm:$0xff]
  %634 = vmatprep.subr.mxu0 %v611
  %635 = vmatpush1.msra.mxu0 %v610
  %636 = vmatprep.subr.mxu0 %v603
  %637 = vmatpush1.msra.mxu0 %v602
  %638 = vmatprep.subr.mxu0 %v595
  %639 = vmatpush1.msra.mxu0 %v594
  %640 = vmatprep.subr.mxu0 %v587
  %641 = vmatpush1.msra.mxu0 %v586
  %642 = vmatprep.subr.mxu0 %v579
  %643 = vmatpush1.msra.mxu0 %v578
  %644 = vmatprep.subr.mxu0 %v571
  %645 = vmatpush1.msra.mxu0 %v570
  %646 = vmatprep.subr.mxu0 %v563
  %647 = vmatpush1.msra.mxu0 %v562
  %648 = vmatprep.subr.mxu0 %v555
  %649 = vmatpush1.msra.mxu0 %v554
  %650 = vmatprep.subr.mxu0 %v547
  %651 = vmatpush1.msra.mxu0 %v546
  %652 = vmatprep.subr.mxu0 %v539
  %653 = vmatpush1.msra.mxu0 %v538
  %654 = vmatprep.subr.mxu0 %v531
  %655 = vmatpush1.msra.mxu0 %v530
  %656 = vmatprep.subr.mxu0 %v523
  %657 = vmatpush1.msra.mxu0 %v522
  %658 = vmatprep.subr.mxu0 %v515
  %659 = vmatpush1.msra.mxu0 %v514
  %660 = vmatprep.subr.mxu0 %v507
  %661 = vmatpush1.msra.mxu0 %v506
  %662 = vmatprep.subr.mxu0 %v499
  %663 = vmatpush1.msra.mxu0 %v498
  %664 = vmatprep.subr.mxu0 %v491
  %665 = vmatpush1.msra.mxu0 %v490
  %666 = vmatprep.subr.mxu0 0.0
  %667 = vmatpush2.msra.mxu0 0.0
  %668 = vmatprep.subr.mxu0 0.0
  %669 = vmatpush2.msra.mxu0 0.0
  %670 = vmatprep.subr.mxu0 0.0
  %671 = vmatpush2.msra.mxu0 0.0
  %672 = vmatprep.subr.mxu0 0.0
  %673 = vmatpush2.msra.mxu0 0.0
  %674 = vmatprep.subr.mxu0 0.0
  %675 = vmatpush2.msra.mxu0 0.0
  %676 = vmatprep.subr.mxu0 0.0
  %677 = vmatpush2.msra.mxu0 0.0
  %678 = vmatprep.subr.mxu0 0.0
  %679 = vmatpush2.msra.mxu0 0.0
  %680 = vmatprep.subr.mxu0 0.0
  %681 = vmatpush2.msra.mxu0 0.0
  %682 = vmatprep.subr.mxu0 0.0
  %683 = vmatpush2.msra.mxu0 0.0
  %684 = vmatprep.subr.mxu0 0.0
  %685 = vmatpush2.msra.mxu0 0.0
  %686 = vmatprep.subr.mxu0 0.0
  %687 = vmatpush2.msra.mxu0 0.0
  %688 = vmatprep.subr.mxu0 0.0
  %689 = vmatpush2.msra.mxu0 0.0
  %690 = vmatprep.subr.mxu0 0.0
  %691 = vmatpush2.msra.mxu0 0.0
  %692 = vmatprep.subr.mxu0 0.0
  %693 = vmatpush2.msra.mxu0 0.0
  %694 = vmatprep.subr.mxu0 %v627
  %695 = vmatpush2.msra.mxu0 %v626
  %696 = vmatprep.subr.mxu0 %v619
  %697 = vmatpush2.msra.mxu0 %v618
  %698 = vmatprep.mubr.f32.mxu0 %v203
  %699 = vmatmul.mubr.f32.gmra.mxu0 %v55
  %v700 = vpop.f32.mrf.mxu0
  %v701 = vadd.f32 0.0, %v700
  %v702 = vpop.f32.mrf.mxu0
  %v703 = vadd.f32 0.0, %v702
  %704 = vdwg.mxu0
  %705 = vmatprep.subr.mxu0 %v613
  %706 = vmatpush1.msra.mxu0 %v612
  %707 = vmatprep.subr.mxu0 %v605
  %708 = vmatpush1.msra.mxu0 %v604
  %709 = vmatprep.subr.mxu0 %v597
  %710 = vmatpush1.msra.mxu0 %v596
  %711 = vmatprep.subr.mxu0 %v589
  %712 = vmatpush1.msra.mxu0 %v588
  %713 = vmatprep.subr.mxu0 %v581
  %714 = vmatpush1.msra.mxu0 %v580
  %715 = vmatprep.subr.mxu0 %v573
  %716 = vmatpush1.msra.mxu0 %v572
  %717 = vmatprep.subr.mxu0 %v565
  %718 = vmatpush1.msra.mxu0 %v564
  %719 = vmatprep.subr.mxu0 %v557
  %720 = vmatpush1.msra.mxu0 %v556
  %721 = vmatprep.subr.mxu0 %v549
  %722 = vmatpush1.msra.mxu0 %v548
  %723 = vmatprep.subr.mxu0 %v541
  %724 = vmatpush1.msra.mxu0 %v540
  %725 = vmatprep.subr.mxu0 %v533
  %726 = vmatpush1.msra.mxu0 %v532
  %727 = vmatprep.subr.mxu0 %v525
  %728 = vmatpush1.msra.mxu0 %v524
  %729 = vmatprep.subr.mxu0 %v517
  %730 = vmatpush1.msra.mxu0 %v516
  %731 = vmatprep.subr.mxu0 %v509
  %732 = vmatpush1.msra.mxu0 %v508
  %733 = vmatprep.subr.mxu0 %v501
  %734 = vmatpush1.msra.mxu0 %v500
  %735 = vmatprep.subr.mxu0 %v493
  %736 = vmatpush1.msra.mxu0 %v492
  %737 = vmatprep.subr.mxu0 0.0
  %738 = vmatpush2.msra.mxu0 0.0
  %739 = vmatprep.subr.mxu0 0.0
  %740 = vmatpush2.msra.mxu0 0.0
  %741 = vmatprep.subr.mxu0 0.0
  %742 = vmatpush2.msra.mxu0 0.0
  %743 = vmatprep.subr.mxu0 0.0
  %744 = vmatpush2.msra.mxu0 0.0
  %745 = vmatprep.subr.mxu0 0.0
  %746 = vmatpush2.msra.mxu0 0.0
  %747 = vmatprep.subr.mxu0 0.0
  %748 = vmatpush2.msra.mxu0 0.0
  %749 = vmatprep.subr.mxu0 0.0
  %750 = vmatpush2.msra.mxu0 0.0
  %751 = vmatprep.subr.mxu0 0.0
  %752 = vmatpush2.msra.mxu0 0.0
  %753 = vmatprep.subr.mxu0 0.0
  %754 = vmatpush2.msra.mxu0 0.0
  %755 = vmatprep.subr.mxu0 0.0
  %756 = vmatpush2.msra.mxu0 0.0
  %757 = vmatprep.subr.mxu0 0.0
  %758 = vmatpush2.msra.mxu0 0.0
  %759 = vmatprep.subr.mxu0 0.0
  %760 = vmatpush2.msra.mxu0 0.0
  %761 = vmatprep.subr.mxu0 0.0
  %762 = vmatpush2.msra.mxu0 0.0
  %763 = vmatprep.subr.mxu0 0.0
  %764 = vmatpush2.msra.mxu0 0.0
  %765 = vmatprep.subr.mxu0 %v629
  %766 = vmatpush2.msra.mxu0 %v628
  %767 = vmatprep.subr.mxu0 %v621
  %768 = vmatpush2.msra.mxu0 %v620
  %769 = vmatprep.mubr.f32.mxu0 %v203
  %770 = vmatmul.mubr.f32.gmra.mxu0 %v55
  %v771 = vpop.f32.mrf.mxu0
  %v772 = vadd.f32 0.0, %v771
  %v773 = vpop.f32.mrf.mxu0
  %v774 = vadd.f32 0.0, %v773
  %775 = vdwg.mxu0
  %776 = vmatprep.subr.mxu0 %v615
  %777 = vmatpush1.msra.mxu0 %v614
  %778 = vmatprep.subr.mxu0 %v607
  %779 = vmatpush1.msra.mxu0 %v606
  %780 = vmatprep.subr.mxu0 %v599
  %781 = vmatpush1.msra.mxu0 %v598
  %782 = vmatprep.subr.mxu0 %v591
  %783 = vmatpush1.msra.mxu0 %v590
  %784 = vmatprep.subr.mxu0 %v583
  %785 = vmatpush1.msra.mxu0 %v582
  %786 = vmatprep.subr.mxu0 %v575
  %787 = vmatpush1.msra.mxu0 %v574
  %788 = vmatprep.subr.mxu0 %v567
  %789 = vmatpush1.msra.mxu0 %v566
  %790 = vmatprep.subr.mxu0 %v559
  %791 = vmatpush1.msra.mxu0 %v558
  %792 = vmatprep.subr.mxu0 %v551
  %793 = vmatpush1.msra.mxu0 %v550
  %794 = vmatprep.subr.mxu0 %v543
  %795 = vmatpush1.msra.mxu0 %v542
  %796 = vmatprep.subr.mxu0 %v535
  %797 = vmatpush1.msra.mxu0 %v534
  %798 = vmatprep.subr.mxu0 %v527
  %799 = vmatpush1.msra.mxu0 %v526
  %800 = vmatprep.subr.mxu0 %v519
  %801 = vmatpush1.msra.mxu0 %v518
  %802 = vmatprep.subr.mxu0 %v511
  %803 = vmatpush1.msra.mxu0 %v510
  %804 = vmatprep.subr.mxu0 %v503
  %805 = vmatpush1.msra.mxu0 %v502
  %806 = vmatprep.subr.mxu0 %v495
  %807 = vmatpush1.msra.mxu0 %v494
  %808 = vmatprep.subr.mxu0 0.0
  %809 = vmatpush2.msra.mxu0 0.0
  %810 = vmatprep.subr.mxu0 0.0
  %811 = vmatpush2.msra.mxu0 0.0
  %812 = vmatprep.subr.mxu0 0.0
  %813 = vmatpush2.msra.mxu0 0.0
  %814 = vmatprep.subr.mxu0 0.0
  %815 = vmatpush2.msra.mxu0 0.0
  %816 = vmatprep.subr.mxu0 0.0
  %817 = vmatpush2.msra.mxu0 0.0
  %818 = vmatprep.subr.mxu0 0.0
  %819 = vmatpush2.msra.mxu0 0.0
  %820 = vmatprep.subr.mxu0 0.0
  %821 = vmatpush2.msra.mxu0 0.0
  %822 = vmatprep.subr.mxu0 0.0
  %823 = vmatpush2.msra.mxu0 0.0
  %824 = vmatprep.subr.mxu0 0.0
  %825 = vmatpush2.msra.mxu0 0.0
  %826 = vmatprep.subr.mxu0 0.0
  %827 = vmatpush2.msra.mxu0 0.0
  %828 = vmatprep.subr.mxu0 0.0
  %829 = vmatpush2.msra.mxu0 0.0
  %830 = vmatprep.subr.mxu0 0.0
  %831 = vmatpush2.msra.mxu0 0.0
  %832 = vmatprep.subr.mxu0 0.0
  %833 = vmatpush2.msra.mxu0 0.0
  %834 = vmatprep.subr.mxu0 0.0
  %835 = vmatpush2.msra.mxu0 0.0
  %836 = vmatprep.subr.mxu0 %v631
  %837 = vmatpush2.msra.mxu0 %v630
  %838 = vmatprep.subr.mxu0 %v623
  %839 = vmatpush2.msra.mxu0 %v622
  %840 = vmatprep.mubr.f32.mxu0 %v203
  %841 = vmatmul.mubr.f32.gmra.mxu0 %v55
  %v842 = vpop.f32.mrf.mxu0
  %v843 = vadd.f32 0.0, %v842
  %v844 = vpop.f32.mrf.mxu0
  %v845 = vadd.f32 0.0, %v844
  %846 = vdwg.mxu0
  %847 = vmatprep.subr.mxu0 %v617
  %848 = vmatpush1.msra.mxu0 %v616
  %849 = vmatprep.subr.mxu0 %v609
  %850 = vmatpush1.msra.mxu0 %v608
  %851 = vmatprep.subr.mxu0 %v601
  %852 = vmatpush1.msra.mxu0 %v600
  %853 = vmatprep.subr.mxu0 %v593
  %854 = vmatpush1.msra.mxu0 %v592
  %855 = vmatprep.subr.mxu0 %v585
  %856 = vmatpush1.msra.mxu0 %v584
  %857 = vmatprep.subr.mxu0 %v577
  %858 = vmatpush1.msra.mxu0 %v576
  %859 = vmatprep.subr.mxu0 %v569
  %860 = vmatpush1.msra.mxu0 %v568
  %861 = vmatprep.subr.mxu0 %v561
  %862 = vmatpush1.msra.mxu0 %v560
  %863 = vmatprep.subr.mxu0 %v553
  %864 = vmatpush1.msra.mxu0 %v552
  %865 = vmatprep.subr.mxu0 %v545
  %866 = vmatpush1.msra.mxu0 %v544
  %867 = vmatprep.subr.mxu0 %v537
  %868 = vmatpush1.msra.mxu0 %v536
  %869 = vmatprep.subr.mxu0 %v529
  %870 = vmatpush1.msra.mxu0 %v528
  %871 = vmatprep.subr.mxu0 %v521
  %872 = vmatpush1.msra.mxu0 %v520
  %873 = vmatprep.subr.mxu0 %v513
  %874 = vmatpush1.msra.mxu0 %v512
  %875 = vmatprep.subr.mxu0 %v505
  %876 = vmatpush1.msra.mxu0 %v504
  %877 = vmatprep.subr.mxu0 %v497
  %878 = vmatpush1.msra.mxu0 %v496
  %879 = vmatprep.subr.mxu0 0.0
  %880 = vmatpush2.msra.mxu0 0.0
  %881 = vmatprep.subr.mxu0 0.0
  %882 = vmatpush2.msra.mxu0 0.0
  %883 = vmatprep.subr.mxu0 0.0
  %884 = vmatpush2.msra.mxu0 0.0
  %885 = vmatprep.subr.mxu0 0.0
  %886 = vmatpush2.msra.mxu0 0.0
  %887 = vmatprep.subr.mxu0 0.0
  %888 = vmatpush2.msra.mxu0 0.0
  %889 = vmatprep.subr.mxu0 0.0
  %890 = vmatpush2.msra.mxu0 0.0
  %891 = vmatprep.subr.mxu0 0.0
  %892 = vmatpush2.msra.mxu0 0.0
  %893 = vmatprep.subr.mxu0 0.0
  %894 = vmatpush2.msra.mxu0 0.0
  %895 = vmatprep.subr.mxu0 0.0
  %896 = vmatpush2.msra.mxu0 0.0
  %897 = vmatprep.subr.mxu0 0.0
  %898 = vmatpush2.msra.mxu0 0.0
  %899 = vmatprep.subr.mxu0 0.0
  %900 = vmatpush2.msra.mxu0 0.0
  %901 = vmatprep.subr.mxu0 0.0
  %902 = vmatpush2.msra.mxu0 0.0
  %903 = vmatprep.subr.mxu0 0.0
  %904 = vmatpush2.msra.mxu0 0.0
  %905 = vmatprep.subr.mxu0 0.0
  %906 = vmatpush2.msra.mxu0 0.0
  %907 = vmatprep.subr.mxu0 %v633
  %908 = vmatpush2.msra.mxu0 %v632
  %909 = vmatprep.subr.mxu0 %v625
  %910 = vmatpush2.msra.mxu0 %v624
  %911 = vmatprep.mubr.f32.mxu0 %v203
  %912 = vmatmul.mubr.f32.gmra.mxu0 %v55
  %v913 = vpop.f32.mrf.mxu0
  %v914 = vadd.f32 0.0, %v913
  %v915 = vpop.f32.mrf.mxu0
  %v916 = vadd.f32 0.0, %v915
  %917 = vdwg.mxu0
  %v918 = vmax.f32 %v272, %v701
  %v919 = vmax.f32 %v274, %v703
  %v920 = vmax.f32 %v343, %v772
  %v921 = vmax.f32 %v345, %v774
  %v922 = vmax.f32 %v414, %v843
  %v923 = vmax.f32 %v416, %v845
  %v924 = vmax.f32 %v485, %v914
  %v925 = vmax.f32 %v487, %v916
  %s926 = scalar_lea.vmem %s0, 2304
  %v927 = vld [vmem:[%s926] sm:$0xff]
  %v928 = vld [vmem:[%s926 + $0x8] sm:$0xff]
  %v929 = vld [vmem:[%s926 + $0x10] sm:$0xff]
  %v930 = vld [vmem:[%s926 + $0x18] sm:$0xff]
  %v931 = vld [vmem:[%s926 + $0x20] sm:$0xff]
  %v932 = vld [vmem:[%s926 + $0x28] sm:$0xff]
  %v933 = vld [vmem:[%s926 + $0x30] sm:$0xff]
  %v934 = vld [vmem:[%s926 + $0x38] sm:$0xff]
  %v935 = vld [vmem:[%s926 + $0x40] sm:$0xff]
  %v936 = vld [vmem:[%s926 + $0x48] sm:$0xff]
  %v937 = vld [vmem:[%s926 + $0x50] sm:$0xff]
  %v938 = vld [vmem:[%s926 + $0x58] sm:$0xff]
  %v939 = vld [vmem:[%s926 + $0x60] sm:$0xff]
  %v940 = vld [vmem:[%s926 + $0x68] sm:$0xff]
  %v941 = vld [vmem:[%s926 + $0x70] sm:$0xff]
  %v942 = vld [vmem:[%s926 + $0x78] sm:$0xff]
  %v943 = vld [vmem:[%s926 + $0x80] sm:$0xff]
  %v944 = vld [vmem:[%s926 + $0x88] sm:$0xff]
  %v945 = vld [vmem:[%s926 + $0x90] sm:$0xff]
  %v946 = vld [vmem:[%s926 + $0x98] sm:$0xff]
  %v947 = vld [vmem:[%s926 + $0xa0] sm:$0xff]
  %v948 = vld [vmem:[%s926 + $0xa8] sm:$0xff]
  %v949 = vld [vmem:[%s926 + $0xb0] sm:$0xff]
  %v950 = vld [vmem:[%s926 + $0xb8] sm:$0xff]
  %v951 = vld [vmem:[%s926 + $0xc0] sm:$0xff]
  %v952 = vld [vmem:[%s926 + $0xc8] sm:$0xff]
  %v953 = vld [vmem:[%s926 + $0xd0] sm:$0xff]
  %v954 = vld [vmem:[%s926 + $0xd8] sm:$0xff]
  %v955 = vld [vmem:[%s926 + $0xe0] sm:$0xff]
  %v956 = vld [vmem:[%s926 + $0xe8] sm:$0xff]
  %v957 = vld [vmem:[%s926 + $0xf0] sm:$0xff]
  %v958 = vld [vmem:[%s926 + $0xf8] sm:$0xff]
  %v959 = vld [vmem:[%s926 + $0x100] sm:$0xff]
  %v960 = vld [vmem:[%s926 + $0x108] sm:$0xff]
  %v961 = vld [vmem:[%s926 + $0x110] sm:$0xff]
  %v962 = vld [vmem:[%s926 + $0x118] sm:$0xff]
  %v963 = vld [vmem:[%s926 + $0x120] sm:$0xff]
  %v964 = vld [vmem:[%s926 + $0x128] sm:$0xff]
  %v965 = vld [vmem:[%s926 + $0x130] sm:$0xff]
  %v966 = vld [vmem:[%s926 + $0x138] sm:$0xff]
  %v967 = vld [vmem:[%s926 + $0x140] sm:$0xff]
  %v968 = vld [vmem:[%s926 + $0x148] sm:$0xff]
  %v969 = vld [vmem:[%s926 + $0x150] sm:$0xff]
  %v970 = vld [vmem:[%s926 + $0x158] sm:$0xff]
  %v971 = vld [vmem:[%s926 + $0x160] sm:$0xff]
  %v972 = vld [vmem:[%s926 + $0x168] sm:$0xff]
  %v973 = vld [vmem:[%s926 + $0x170] sm:$0xff]
  %v974 = vld [vmem:[%s926 + $0x178] sm:$0xff]
  %v975 = vld [vmem:[%s926 + $0x180] sm:$0xff]
  %v976 = vld [vmem:[%s926 + $0x188] sm:$0xff]
  %v977 = vld [vmem:[%s926 + $0x190] sm:$0xff]
  %v978 = vld [vmem:[%s926 + $0x198] sm:$0xff]
  %v979 = vld [vmem:[%s926 + $0x1a0] sm:$0xff]
  %v980 = vld [vmem:[%s926 + $0x1a8] sm:$0xff]
  %v981 = vld [vmem:[%s926 + $0x1b0] sm:$0xff]
  %v982 = vld [vmem:[%s926 + $0x1b8] sm:$0xff]
  %v983 = vld [vmem:[%s926 + $0x1c0] sm:$0xff]
  %v984 = vld [vmem:[%s926 + $0x1c8] sm:$0xff]
  %v985 = vld [vmem:[%s926 + $0x1d0] sm:$0xff]
  %v986 = vld [vmem:[%s926 + $0x1d8] sm:$0xff]
  %v987 = vld [vmem:[%s926 + $0x1e0] sm:$0xff]
  %v988 = vld [vmem:[%s926 + $0x1e8] sm:$0xff]
  %v989 = vld [vmem:[%s926 + $0x1f0] sm:$0xff]
  %v990 = vld [vmem:[%s926 + $0x1f8] sm:$0xff]
  %v991 = vld [vmem:[%s926 + $0x200] sm:$0xff]
  %v992 = vld [vmem:[%s926 + $0x208] sm:$0xff]
  %v993 = vld [vmem:[%s926 + $0x210] sm:$0xff]
  %v994 = vld [vmem:[%s926 + $0x218] sm:$0xff]
  %v995 = vld [vmem:[%s926 + $0x220] sm:$0xff]
  %v996 = vld [vmem:[%s926 + $0x228] sm:$0xff]
  %v997 = vld [vmem:[%s926 + $0x230] sm:$0xff]
  %v998 = vld [vmem:[%s926 + $0x238] sm:$0xff]
  %v999 = vld [vmem:[%s926 + $0x240] sm:$0xff]
  %v1000 = vld [vmem:[%s926 + $0x248] sm:$0xff]
  %v1001 = vld [vmem:[%s926 + $0x250] sm:$0xff]
  %v1002 = vld [vmem:[%s926 + $0x258] sm:$0xff]
  %v1003 = vld [vmem:[%s926 + $0x260] sm:$0xff]
  %v1004 = vld [vmem:[%s926 + $0x268] sm:$0xff]
  %v1005 = vld [vmem:[%s926 + $0x270] sm:$0xff]
  %v1006 = vld [vmem:[%s926 + $0x278] sm:$0xff]
  %v1007 = vld [vmem:[%s926 + $0x280] sm:$0xff]
  %v1008 = vld [vmem:[%s926 + $0x288] sm:$0xff]
  %v1009 = vld [vmem:[%s926 + $0x290] sm:$0xff]
  %v1010 = vld [vmem:[%s926 + $0x298] sm:$0xff]
  %v1011 = vld [vmem:[%s926 + $0x2a0] sm:$0xff]
  %v1012 = vld [vmem:[%s926 + $0x2a8] sm:$0xff]
  %v1013 = vld [vmem:[%s926 + $0x2b0] sm:$0xff]
  %v1014 = vld [vmem:[%s926 + $0x2b8] sm:$0xff]
  %v1015 = vld [vmem:[%s926 + $0x2c0] sm:$0xff]
  %v1016 = vld [vmem:[%s926 + $0x2c8] sm:$0xff]
  %v1017 = vld [vmem:[%s926 + $0x2d0] sm:$0xff]
  %v1018 = vld [vmem:[%s926 + $0x2d8] sm:$0xff]
  %v1019 = vld [vmem:[%s926 + $0x2e0] sm:$0xff]
  %v1020 = vld [vmem:[%s926 + $0x2e8] sm:$0xff]
  %v1021 = vld [vmem:[%s926 + $0x2f0] sm:$0xff]
  %v1022 = vld [vmem:[%s926 + $0x2f8] sm:$0xff]
  %v1023 = vld [vmem:[%s926 + $0x300] sm:$0xff]
  %v1024 = vld [vmem:[%s926 + $0x308] sm:$0xff]
  %v1025 = vld [vmem:[%s926 + $0x310] sm:$0xff]
  %v1026 = vld [vmem:[%s926 + $0x318] sm:$0xff]
  %v1027 = vld [vmem:[%s926 + $0x320] sm:$0xff]
  %v1028 = vld [vmem:[%s926 + $0x328] sm:$0xff]
  %v1029 = vld [vmem:[%s926 + $0x330] sm:$0xff]
  %v1030 = vld [vmem:[%s926 + $0x338] sm:$0xff]
  %v1031 = vld [vmem:[%s926 + $0x340] sm:$0xff]
  %v1032 = vld [vmem:[%s926 + $0x348] sm:$0xff]
  %v1033 = vld [vmem:[%s926 + $0x350] sm:$0xff]
  %v1034 = vld [vmem:[%s926 + $0x358] sm:$0xff]
  %v1035 = vld [vmem:[%s926 + $0x360] sm:$0xff]
  %v1036 = vld [vmem:[%s926 + $0x368] sm:$0xff]
  %v1037 = vld [vmem:[%s926 + $0x370] sm:$0xff]
  %v1038 = vld [vmem:[%s926 + $0x378] sm:$0xff]
  %v1039 = vld [vmem:[%s926 + $0x380] sm:$0xff]
  %v1040 = vld [vmem:[%s926 + $0x388] sm:$0xff]
  %v1041 = vld [vmem:[%s926 + $0x390] sm:$0xff]
  %v1042 = vld [vmem:[%s926 + $0x398] sm:$0xff]
  %v1043 = vld [vmem:[%s926 + $0x3a0] sm:$0xff]
  %v1044 = vld [vmem:[%s926 + $0x3a8] sm:$0xff]
  %v1045 = vld [vmem:[%s926 + $0x3b0] sm:$0xff]
  %v1046 = vld [vmem:[%s926 + $0x3b8] sm:$0xff]
  %v1047 = vld [vmem:[%s926 + $0x3c0] sm:$0xff]
  %v1048 = vld [vmem:[%s926 + $0x3c8] sm:$0xff]
  %v1049 = vld [vmem:[%s926 + $0x3d0] sm:$0xff]
  %v1050 = vld [vmem:[%s926 + $0x3d8] sm:$0xff]
  %v1051 = vld [vmem:[%s926 + $0x3e0] sm:$0xff]
  %v1052 = vld [vmem:[%s926 + $0x3e8] sm:$0xff]
  %v1053 = vld [vmem:[%s926 + $0x3f0] sm:$0xff]
  %v1054 = vld [vmem:[%s926 + $0x3f8] sm:$0xff]
  %v1055 = vld [vmem:[%s926 + $0x400] sm:$0xff]
  %v1056 = vld [vmem:[%s926 + $0x408] sm:$0xff]
  %v1057 = vld [vmem:[%s926 + $0x410] sm:$0xff]
  %v1058 = vld [vmem:[%s926 + $0x418] sm:$0xff]
  %v1059 = vld [vmem:[%s926 + $0x420] sm:$0xff]
  %v1060 = vld [vmem:[%s926 + $0x428] sm:$0xff]
  %v1061 = vld [vmem:[%s926 + $0x430] sm:$0xff]
  %v1062 = vld [vmem:[%s926 + $0x438] sm:$0xff]
  %v1063 = vld [vmem:[%s926 + $0x440] sm:$0xff]
  %v1064 = vld [vmem:[%s926 + $0x448] sm:$0xff]
  %v1065 = vld [vmem:[%s926 + $0x450] sm:$0xff]
  %v1066 = vld [vmem:[%s926 + $0x458] sm:$0xff]
  %v1067 = vld [vmem:[%s926 + $0x460] sm:$0xff]
  %v1068 = vld [vmem:[%s926 + $0x468] sm:$0xff]
  %v1069 = vld [vmem:[%s926 + $0x470] sm:$0xff]
  %v1070 = vld [vmem:[%s926 + $0x478] sm:$0xff]
  %1071 = vmatprep.subr.mxu0 %v1048
  %1072 = vmatpush1.msra.mxu0 %v1047
  %1073 = vmatprep.subr.mxu0 %v1040
  %1074 = vmatpush1.msra.mxu0 %v1039
  %1075 = vmatprep.subr.mxu0 %v1032
  %1076 = vmatpush1.msra.mxu0 %v1031
  %1077 = vmatprep.subr.mxu0 %v1024
  %1078 = vmatpush1.msra.mxu0 %v1023
  %1079 = vmatprep.subr.mxu0 %v1016
  %1080 = vmatpush1.msra.mxu0 %v1015
  %1081 = vmatprep.subr.mxu0 %v1008
  %1082 = vmatpush1.msra.mxu0 %v1007
  %1083 = vmatprep.subr.mxu0 %v1000
  %1084 = vmatpush1.msra.mxu0 %v999
  %1085 = vmatprep.subr.mxu0 %v992
  %1086 = vmatpush1.msra.mxu0 %v991
  %1087 = vmatprep.subr.mxu0 %v984
  %1088 = vmatpush1.msra.mxu0 %v983
  %1089 = vmatprep.subr.mxu0 %v976
  %1090 = vmatpush1.msra.mxu0 %v975
  %1091 = vmatprep.subr.mxu0 %v968
  %1092 = vmatpush1.msra.mxu0 %v967
  %1093 = vmatprep.subr.mxu0 %v960
  %1094 = vmatpush1.msra.mxu0 %v959
  %1095 = vmatprep.subr.mxu0 %v952
  %1096 = vmatpush1.msra.mxu0 %v951
  %1097 = vmatprep.subr.mxu0 %v944
  %1098 = vmatpush1.msra.mxu0 %v943
  %1099 = vmatprep.subr.mxu0 %v936
  %1100 = vmatpush1.msra.mxu0 %v935
  %1101 = vmatprep.subr.mxu0 %v928
  %1102 = vmatpush1.msra.mxu0 %v927
  %1103 = vmatprep.subr.mxu0 0.0
  %1104 = vmatpush2.msra.mxu0 0.0
  %1105 = vmatprep.subr.mxu0 0.0
  %1106 = vmatpush2.msra.mxu0 0.0
  %1107 = vmatprep.subr.mxu0 0.0
  %1108 = vmatpush2.msra.mxu0 0.0
  %1109 = vmatprep.subr.mxu0 0.0
  %1110 = vmatpush2.msra.mxu0 0.0
  %1111 = vmatprep.subr.mxu0 0.0
  %1112 = vmatpush2.msra.mxu0 0.0
  %1113 = vmatprep.subr.mxu0 0.0
  %1114 = vmatpush2.msra.mxu0 0.0
  %1115 = vmatprep.subr.mxu0 0.0
  %1116 = vmatpush2.msra.mxu0 0.0
  %1117 = vmatprep.subr.mxu0 0.0
  %1118 = vmatpush2.msra.mxu0 0.0
  %1119 = vmatprep.subr.mxu0 0.0
  %1120 = vmatpush2.msra.mxu0 0.0
  %1121 = vmatprep.subr.mxu0 0.0
  %1122 = vmatpush2.msra.mxu0 0.0
  %1123 = vmatprep.subr.mxu0 0.0
  %1124 = vmatpush2.msra.mxu0 0.0
  %1125 = vmatprep.subr.mxu0 0.0
  %1126 = vmatpush2.msra.mxu0 0.0
  %1127 = vmatprep.subr.mxu0 0.0
  %1128 = vmatpush2.msra.mxu0 0.0
  %1129 = vmatprep.subr.mxu0 0.0
  %1130 = vmatpush2.msra.mxu0 0.0
  %1131 = vmatprep.subr.mxu0 %v1064
  %1132 = vmatpush2.msra.mxu0 %v1063
  %1133 = vmatprep.subr.mxu0 %v1056
  %1134 = vmatpush2.msra.mxu0 %v1055
  %1135 = vmatprep.mubr.f32.mxu0 %v203
  %1136 = vmatmul.mubr.f32.gmra.mxu0 %v55
  %v1137 = vpop.f32.mrf.mxu0
  %v1138 = vadd.f32 0.0, %v1137
  %v1139 = vpop.f32.mrf.mxu0
  %v1140 = vadd.f32 0.0, %v1139
  %1141 = vdwg.mxu0
  %1142 = vmatprep.subr.mxu0 %v1050
  %1143 = vmatpush1.msra.mxu0 %v1049
  %1144 = vmatprep.subr.mxu0 %v1042
  %1145 = vmatpush1.msra.mxu0 %v1041
  %1146 = vmatprep.subr.mxu0 %v1034
  %1147 = vmatpush1.msra.mxu0 %v1033
  %1148 = vmatprep.subr.mxu0 %v1026
  %1149 = vmatpush1.msra.mxu0 %v1025
  %1150 = vmatprep.subr.mxu0 %v1018
  %1151 = vmatpush1.msra.mxu0 %v1017
  %1152 = vmatprep.subr.mxu0 %v1010
  %1153 = vmatpush1.msra.mxu0 %v1009
  %1154 = vmatprep.subr.mxu0 %v1002
  %1155 = vmatpush1.msra.mxu0 %v1001
  %1156 = vmatprep.subr.mxu0 %v994
  %1157 = vmatpush1.msra.mxu0 %v993
  %1158 = vmatprep.subr.mxu0 %v986
  %1159 = vmatpush1.msra.mxu0 %v985
  %1160 = vmatprep.subr.mxu0 %v978
  %1161 = vmatpush1.msra.mxu0 %v977
  %1162 = vmatprep.subr.mxu0 %v970
  %1163 = vmatpush1.msra.mxu0 %v969
  %1164 = vmatprep.subr.mxu0 %v962
  %1165 = vmatpush1.msra.mxu0 %v961
  %1166 = vmatprep.subr.mxu0 %v954
  %1167 = vmatpush1.msra.mxu0 %v953
  %1168 = vmatprep.subr.mxu0 %v946
  %1169 = vmatpush1.msra.mxu0 %v945
  %1170 = vmatprep.subr.mxu0 %v938
  %1171 = vmatpush1.msra.mxu0 %v937
  %1172 = vmatprep.subr.mxu0 %v930
  %1173 = vmatpush1.msra.mxu0 %v929
  %1174 = vmatprep.subr.mxu0 0.0
  %1175 = vmatpush2.msra.mxu0 0.0
  %1176 = vmatprep.subr.mxu0 0.0
  %1177 = vmatpush2.msra.mxu0 0.0
  %1178 = vmatprep.subr.mxu0 0.0
  %1179 = vmatpush2.msra.mxu0 0.0
  %1180 = vmatprep.subr.mxu0 0.0
  %1181 = vmatpush2.msra.mxu0 0.0
  %1182 = vmatprep.subr.mxu0 0.0
  %1183 = vmatpush2.msra.mxu0 0.0
  %1184 = vmatprep.subr.mxu0 0.0
  %1185 = vmatpush2.msra.mxu0 0.0
  %1186 = vmatprep.subr.mxu0 0.0
  %1187 = vmatpush2.msra.mxu0 0.0
  %1188 = vmatprep.subr.mxu0 0.0
  %1189 = vmatpush2.msra.mxu0 0.0
  %1190 = vmatprep.subr.mxu0 0.0
  %1191 = vmatpush2.msra.mxu0 0.0
  %1192 = vmatprep.subr.mxu0 0.0
  %1193 = vmatpush2.msra.mxu0 0.0
  %1194 = vmatprep.subr.mxu0 0.0
  %1195 = vmatpush2.msra.mxu0 0.0
  %1196 = vmatprep.subr.mxu0 0.0
  %1197 = vmatpush2.msra.mxu0 0.0
  %1198 = vmatprep.subr.mxu0 0.0
  %1199 = vmatpush2.msra.mxu0 0.0
  %1200 = vmatprep.subr.mxu0 0.0
  %1201 = vmatpush2.msra.mxu0 0.0
  %1202 = vmatprep.subr.mxu0 %v1066
  %1203 = vmatpush2.msra.mxu0 %v1065
  %1204 = vmatprep.subr.mxu0 %v1058
  %1205 = vmatpush2.msra.mxu0 %v1057
  %1206 = vmatprep.mubr.f32.mxu0 %v203
  %1207 = vmatmul.mubr.f32.gmra.mxu0 %v55
  %v1208 = vpop.f32.mrf.mxu0
  %v1209 = vadd.f32 0.0, %v1208
  %v1210 = vpop.f32.mrf.mxu0
  %v1211 = vadd.f32 0.0, %v1210
  %1212 = vdwg.mxu0
  %1213 = vmatprep.subr.mxu0 %v1052
  %1214 = vmatpush1.msra.mxu0 %v1051
  %1215 = vmatprep.subr.mxu0 %v1044
  %1216 = vmatpush1.msra.mxu0 %v1043
  %1217 = vmatprep.subr.mxu0 %v1036
  %1218 = vmatpush1.msra.mxu0 %v1035
  %1219 = vmatprep.subr.mxu0 %v1028
  %1220 = vmatpush1.msra.mxu0 %v1027
  %1221 = vmatprep.subr.mxu0 %v1020
  %1222 = vmatpush1.msra.mxu0 %v1019
  %1223 = vmatprep.subr.mxu0 %v1012
  %1224 = vmatpush1.msra.mxu0 %v1011
  %1225 = vmatprep.subr.mxu0 %v1004
  %1226 = vmatpush1.msra.mxu0 %v1003
  %1227 = vmatprep.subr.mxu0 %v996
  %1228 = vmatpush1.msra.mxu0 %v995
  %1229 = vmatprep.subr.mxu0 %v988
  %1230 = vmatpush1.msra.mxu0 %v987
  %1231 = vmatprep.subr.mxu0 %v980
  %1232 = vmatpush1.msra.mxu0 %v979
  %1233 = vmatprep.subr.mxu0 %v972
  %1234 = vmatpush1.msra.mxu0 %v971
  %1235 = vmatprep.subr.mxu0 %v964
  %1236 = vmatpush1.msra.mxu0 %v963
  %1237 = vmatprep.subr.mxu0 %v956
  %1238 = vmatpush1.msra.mxu0 %v955
  %1239 = vmatprep.subr.mxu0 %v948
  %1240 = vmatpush1.msra.mxu0 %v947
  %1241 = vmatprep.subr.mxu0 %v940
  %1242 = vmatpush1.msra.mxu0 %v939
  %1243 = vmatprep.subr.mxu0 %v932
  %1244 = vmatpush1.msra.mxu0 %v931
  %1245 = vmatprep.subr.mxu0 0.0
  %1246 = vmatpush2.msra.mxu0 0.0
  %1247 = vmatprep.subr.mxu0 0.0
  %1248 = vmatpush2.msra.mxu0 0.0
  %1249 = vmatprep.subr.mxu0 0.0
  %1250 = vmatpush2.msra.mxu0 0.0
  %1251 = vmatprep.subr.mxu0 0.0
  %1252 = vmatpush2.msra.mxu0 0.0
  %1253 = vmatprep.subr.mxu0 0.0
  %1254 = vmatpush2.msra.mxu0 0.0
  %1255 = vmatprep.subr.mxu0 0.0
  %1256 = vmatpush2.msra.mxu0 0.0
  %1257 = vmatprep.subr.mxu0 0.0
  %1258 = vmatpush2.msra.mxu0 0.0
  %1259 = vmatprep.subr.mxu0 0.0
  %1260 = vmatpush2.msra.mxu0 0.0
  %1261 = vmatprep.subr.mxu0 0.0
  %1262 = vmatpush2.msra.mxu0 0.0
  %1263 = vmatprep.subr.mxu0 0.0
  %1264 = vmatpush2.msra.mxu0 0.0
  %1265 = vmatprep.subr.mxu0 0.0
  %1266 = vmatpush2.msra.mxu0 0.0
  %1267 = vmatprep.subr.mxu0 0.0
  %1268 = vmatpush2.msra.mxu0 0.0
  %1269 = vmatprep.subr.mxu0 0.0
  %1270 = vmatpush2.msra.mxu0 0.0
  %1271 = vmatprep.subr.mxu0 0.0
  %1272 = vmatpush2.msra.mxu0 0.0
  %1273 = vmatprep.subr.mxu0 %v1068
  %1274 = vmatpush2.msra.mxu0 %v1067
  %1275 = vmatprep.subr.mxu0 %v1060
  %1276 = vmatpush2.msra.mxu0 %v1059
  %1277 = vmatprep.mubr.f32.mxu0 %v203
  %1278 = vmatmul.mubr.f32.gmra.mxu0 %v55
  %v1279 = vpop.f32.mrf.mxu0
  %v1280 = vadd.f32 0.0, %v1279
  %v1281 = vpop.f32.mrf.mxu0
  %v1282 = vadd.f32 0.0, %v1281
  %1283 = vdwg.mxu0
  %1284 = vmatprep.subr.mxu0 %v1054
  %1285 = vmatpush1.msra.mxu0 %v1053
  %1286 = vmatprep.subr.mxu0 %v1046
  %1287 = vmatpush1.msra.mxu0 %v1045
  %1288 = vmatprep.subr.mxu0 %v1038
  %1289 = vmatpush1.msra.mxu0 %v1037
  %1290 = vmatprep.subr.mxu0 %v1030
  %1291 = vmatpush1.msra.mxu0 %v1029
  %1292 = vmatprep.subr.mxu0 %v1022
  %1293 = vmatpush1.msra.mxu0 %v1021
  %1294 = vmatprep.subr.mxu0 %v1014
  %1295 = vmatpush1.msra.mxu0 %v1013
  %1296 = vmatprep.subr.mxu0 %v1006
  %1297 = vmatpush1.msra.mxu0 %v1005
  %1298 = vmatprep.subr.mxu0 %v998
  %1299 = vmatpush1.msra.mxu0 %v997
  %1300 = vmatprep.subr.mxu0 %v990
  %1301 = vmatpush1.msra.mxu0 %v989
  %1302 = vmatprep.subr.mxu0 %v982
  %1303 = vmatpush1.msra.mxu0 %v981
  %1304 = vmatprep.subr.mxu0 %v974
  %1305 = vmatpush1.msra.mxu0 %v973
  %1306 = vmatprep.subr.mxu0 %v966
  %1307 = vmatpush1.msra.mxu0 %v965
  %1308 = vmatprep.subr.mxu0 %v958
  %1309 = vmatpush1.msra.mxu0 %v957
  %1310 = vmatprep.subr.mxu0 %v950
  %1311 = vmatpush1.msra.mxu0 %v949
  %1312 = vmatprep.subr.mxu0 %v942
  %1313 = vmatpush1.msra.mxu0 %v941
  %1314 = vmatprep.subr.mxu0 %v934
  %1315 = vmatpush1.msra.mxu0 %v933
  %1316 = vmatprep.subr.mxu0 0.0
  %1317 = vmatpush2.msra.mxu0 0.0
  %1318 = vmatprep.subr.mxu0 0.0
  %1319 = vmatpush2.msra.mxu0 0.0
  %1320 = vmatprep.subr.mxu0 0.0
  %1321 = vmatpush2.msra.mxu0 0.0
  %1322 = vmatprep.subr.mxu0 0.0
  %1323 = vmatpush2.msra.mxu0 0.0
  %1324 = vmatprep.subr.mxu0 0.0
  %1325 = vmatpush2.msra.mxu0 0.0
  %1326 = vmatprep.subr.mxu0 0.0
  %1327 = vmatpush2.msra.mxu0 0.0
  %1328 = vmatprep.subr.mxu0 0.0
  %1329 = vmatpush2.msra.mxu0 0.0
  %1330 = vmatprep.subr.mxu0 0.0
  %1331 = vmatpush2.msra.mxu0 0.0
  %1332 = vmatprep.subr.mxu0 0.0
  %1333 = vmatpush2.msra.mxu0 0.0
  %1334 = vmatprep.subr.mxu0 0.0
  %1335 = vmatpush2.msra.mxu0 0.0
  %1336 = vmatprep.subr.mxu0 0.0
  %1337 = vmatpush2.msra.mxu0 0.0
  %1338 = vmatprep.subr.mxu0 0.0
  %1339 = vmatpush2.msra.mxu0 0.0
  %1340 = vmatprep.subr.mxu0 0.0
  %1341 = vmatpush2.msra.mxu0 0.0
  %1342 = vmatprep.subr.mxu0 0.0
  %1343 = vmatpush2.msra.mxu0 0.0
  %1344 = vmatprep.subr.mxu0 %v1070
  %1345 = vmatpush2.msra.mxu0 %v1069
  %1346 = vmatprep.subr.mxu0 %v1062
  %1347 = vmatpush2.msra.mxu0 %v1061
  %1348 = vmatprep.mubr.f32.mxu0 %v203
  %1349 = vmatmul.mubr.f32.gmra.mxu0 %v55
  %v1350 = vpop.f32.mrf.mxu0
  %v1351 = vadd.f32 0.0, %v1350
  %v1352 = vpop.f32.mrf.mxu0
  %v1353 = vadd.f32 0.0, %v1352
  %1354 = vdwg.mxu0
  %v1355 = vmax.f32 %v918, %v1138
  %v1356 = vmax.f32 %v919, %v1140
  %v1357 = vmax.f32 %v920, %v1209
  %v1358 = vmax.f32 %v921, %v1211
  %v1359 = vmax.f32 %v922, %v1280
  %v1360 = vmax.f32 %v923, %v1282
  %v1361 = vmax.f32 %v924, %v1351
  %v1362 = vmax.f32 %v925, %v1353
  %s1363 = scalar_lea.vmem %s0, 3456
  %v1364 = vld [vmem:[%s1363] sm:$0xff]
  %v1365 = vld [vmem:[%s1363 + $0x8] sm:$0xff]
  %v1366 = vld [vmem:[%s1363 + $0x10] sm:$0xff]
  %v1367 = vld [vmem:[%s1363 + $0x18] sm:$0xff]
  %v1368 = vld [vmem:[%s1363 + $0x20] sm:$0xff]
  %v1369 = vld [vmem:[%s1363 + $0x28] sm:$0xff]
  %v1370 = vld [vmem:[%s1363 + $0x30] sm:$0xff]
  %v1371 = vld [vmem:[%s1363 + $0x38] sm:$0xff]
  %v1372 = vld [vmem:[%s1363 + $0x40] sm:$0xff]
  %v1373 = vld [vmem:[%s1363 + $0x48] sm:$0xff]
  %v1374 = vld [vmem:[%s1363 + $0x50] sm:$0xff]
  %v1375 = vld [vmem:[%s1363 + $0x58] sm:$0xff]
  %v1376 = vld [vmem:[%s1363 + $0x60] sm:$0xff]
  %v1377 = vld [vmem:[%s1363 + $0x68] sm:$0xff]
  %v1378 = vld [vmem:[%s1363 + $0x70] sm:$0xff]
  %v1379 = vld [vmem:[%s1363 + $0x78] sm:$0xff]
  %v1380 = vld [vmem:[%s1363 + $0x80] sm:$0xff]
  %v1381 = vld [vmem:[%s1363 + $0x88] sm:$0xff]
  %v1382 = vld [vmem:[%s1363 + $0x90] sm:$0xff]
  %v1383 = vld [vmem:[%s1363 + $0x98] sm:$0xff]
  %v1384 = vld [vmem:[%s1363 + $0xa0] sm:$0xff]
  %v1385 = vld [vmem:[%s1363 + $0xa8] sm:$0xff]
  %v1386 = vld [vmem:[%s1363 + $0xb0] sm:$0xff]
  %v1387 = vld [vmem:[%s1363 + $0xb8] sm:$0xff]
  %v1388 = vld [vmem:[%s1363 + $0xc0] sm:$0xff]
  %v1389 = vld [vmem:[%s1363 + $0xc8] sm:$0xff]
  %v1390 = vld [vmem:[%s1363 + $0xd0] sm:$0xff]
  %v1391 = vld [vmem:[%s1363 + $0xd8] sm:$0xff]
  %v1392 = vld [vmem:[%s1363 + $0xe0] sm:$0xff]
  %v1393 = vld [vmem:[%s1363 + $0xe8] sm:$0xff]
  %v1394 = vld [vmem:[%s1363 + $0xf0] sm:$0xff]
  %v1395 = vld [vmem:[%s1363 + $0xf8] sm:$0xff]
  %v1396 = vld [vmem:[%s1363 + $0x100] sm:$0xff]
  %v1397 = vld [vmem:[%s1363 + $0x108] sm:$0xff]
  %v1398 = vld [vmem:[%s1363 + $0x110] sm:$0xff]
  %v1399 = vld [vmem:[%s1363 + $0x118] sm:$0xff]
  %v1400 = vld [vmem:[%s1363 + $0x120] sm:$0xff]
  %v1401 = vld [vmem:[%s1363 + $0x128] sm:$0xff]
  %v1402 = vld [vmem:[%s1363 + $0x130] sm:$0xff]
  %v1403 = vld [vmem:[%s1363 + $0x138] sm:$0xff]
  %v1404 = vld [vmem:[%s1363 + $0x140] sm:$0xff]
  %v1405 = vld [vmem:[%s1363 + $0x148] sm:$0xff]
  %v1406 = vld [vmem:[%s1363 + $0x150] sm:$0xff]
  %v1407 = vld [vmem:[%s1363 + $0x158] sm:$0xff]
  %v1408 = vld [vmem:[%s1363 + $0x160] sm:$0xff]
  %v1409 = vld [vmem:[%s1363 + $0x168] sm:$0xff]
  %v1410 = vld [vmem:[%s1363 + $0x170] sm:$0xff]
  %v1411 = vld [vmem:[%s1363 + $0x178] sm:$0xff]
  %v1412 = vld [vmem:[%s1363 + $0x180] sm:$0xff]
  %v1413 = vld [vmem:[%s1363 + $0x188] sm:$0xff]
  %v1414 = vld [vmem:[%s1363 + $0x190] sm:$0xff]
  %v1415 = vld [vmem:[%s1363 + $0x198] sm:$0xff]
  %v1416 = vld [vmem:[%s1363 + $0x1a0] sm:$0xff]
  %v1417 = vld [vmem:[%s1363 + $0x1a8] sm:$0xff]
  %v1418 = vld [vmem:[%s1363 + $0x1b0] sm:$0xff]
  %v1419 = vld [vmem:[%s1363 + $0x1b8] sm:$0xff]
  %v1420 = vld [vmem:[%s1363 + $0x1c0] sm:$0xff]
  %v1421 = vld [vmem:[%s1363 + $0x1c8] sm:$0xff]
  %v1422 = vld [vmem:[%s1363 + $0x1d0] sm:$0xff]
  %v1423 = vld [vmem:[%s1363 + $0x1d8] sm:$0xff]
  %v1424 = vld [vmem:[%s1363 + $0x1e0] sm:$0xff]
  %v1425 = vld [vmem:[%s1363 + $0x1e8] sm:$0xff]
  %v1426 = vld [vmem:[%s1363 + $0x1f0] sm:$0xff]
  %v1427 = vld [vmem:[%s1363 + $0x1f8] sm:$0xff]
  %v1428 = vld [vmem:[%s1363 + $0x200] sm:$0xff]
  %v1429 = vld [vmem:[%s1363 + $0x208] sm:$0xff]
  %v1430 = vld [vmem:[%s1363 + $0x210] sm:$0xff]
  %v1431 = vld [vmem:[%s1363 + $0x218] sm:$0xff]
  %v1432 = vld [vmem:[%s1363 + $0x220] sm:$0xff]
  %v1433 = vld [vmem:[%s1363 + $0x228] sm:$0xff]
  %v1434 = vld [vmem:[%s1363 + $0x230] sm:$0xff]
  %v1435 = vld [vmem:[%s1363 + $0x238] sm:$0xff]
  %v1436 = vld [vmem:[%s1363 + $0x240] sm:$0xff]
  %v1437 = vld [vmem:[%s1363 + $0x248] sm:$0xff]
  %v1438 = vld [vmem:[%s1363 + $0x250] sm:$0xff]
  %v1439 = vld [vmem:[%s1363 + $0x258] sm:$0xff]
  %v1440 = vld [vmem:[%s1363 + $0x260] sm:$0xff]
  %v1441 = vld [vmem:[%s1363 + $0x268] sm:$0xff]
  %v1442 = vld [vmem:[%s1363 + $0x270] sm:$0xff]
  %v1443 = vld [vmem:[%s1363 + $0x278] sm:$0xff]
  %v1444 = vld [vmem:[%s1363 + $0x280] sm:$0xff]
  %v1445 = vld [vmem:[%s1363 + $0x288] sm:$0xff]
  %v1446 = vld [vmem:[%s1363 + $0x290] sm:$0xff]
  %v1447 = vld [vmem:[%s1363 + $0x298] sm:$0xff]
  %v1448 = vld [vmem:[%s1363 + $0x2a0] sm:$0xff]
  %v1449 = vld [vmem:[%s1363 + $0x2a8] sm:$0xff]
  %v1450 = vld [vmem:[%s1363 + $0x2b0] sm:$0xff]
  %v1451 = vld [vmem:[%s1363 + $0x2b8] sm:$0xff]
  %v1452 = vld [vmem:[%s1363 + $0x2c0] sm:$0xff]
  %v1453 = vld [vmem:[%s1363 + $0x2c8] sm:$0xff]
  %v1454 = vld [vmem:[%s1363 + $0x2d0] sm:$0xff]
  %v1455 = vld [vmem:[%s1363 + $0x2d8] sm:$0xff]
  %v1456 = vld [vmem:[%s1363 + $0x2e0] sm:$0xff]
  %v1457 = vld [vmem:[%s1363 + $0x2e8] sm:$0xff]
  %v1458 = vld [vmem:[%s1363 + $0x2f0] sm:$0xff]
  %v1459 = vld [vmem:[%s1363 + $0x2f8] sm:$0xff]
  %v1460 = vld [vmem:[%s1363 + $0x300] sm:$0xff]
  %v1461 = vld [vmem:[%s1363 + $0x308] sm:$0xff]
  %v1462 = vld [vmem:[%s1363 + $0x310] sm:$0xff]
  %v1463 = vld [vmem:[%s1363 + $0x318] sm:$0xff]
  %v1464 = vld [vmem:[%s1363 + $0x320] sm:$0xff]
  %v1465 = vld [vmem:[%s1363 + $0x328] sm:$0xff]
  %v1466 = vld [vmem:[%s1363 + $0x330] sm:$0xff]
  %v1467 = vld [vmem:[%s1363 + $0x338] sm:$0xff]
  %v1468 = vld [vmem:[%s1363 + $0x340] sm:$0xff]
  %v1469 = vld [vmem:[%s1363 + $0x348] sm:$0xff]
  %v1470 = vld [vmem:[%s1363 + $0x350] sm:$0xff]
  %v1471 = vld [vmem:[%s1363 + $0x358] sm:$0xff]
  %v1472 = vld [vmem:[%s1363 + $0x360] sm:$0xff]
  %v1473 = vld [vmem:[%s1363 + $0x368] sm:$0xff]
  %v1474 = vld [vmem:[%s1363 + $0x370] sm:$0xff]
  %v1475 = vld [vmem:[%s1363 + $0x378] sm:$0xff]
  %v1476 = vld [vmem:[%s1363 + $0x380] sm:$0xff]
  %v1477 = vld [vmem:[%s1363 + $0x388] sm:$0xff]
  %v1478 = vld [vmem:[%s1363 + $0x390] sm:$0xff]
  %v1479 = vld [vmem:[%s1363 + $0x398] sm:$0xff]
  %v1480 = vld [vmem:[%s1363 + $0x3a0] sm:$0xff]
  %v1481 = vld [vmem:[%s1363 + $0x3a8] sm:$0xff]
  %v1482 = vld [vmem:[%s1363 + $0x3b0] sm:$0xff]
  %v1483 = vld [vmem:[%s1363 + $0x3b8] sm:$0xff]
  %v1484 = vld [vmem:[%s1363 + $0x3c0] sm:$0xff]
  %v1485 = vld [vmem:[%s1363 + $0x3c8] sm:$0xff]
  %v1486 = vld [vmem:[%s1363 + $0x3d0] sm:$0xff]
  %v1487 = vld [vmem:[%s1363 + $0x3d8] sm:$0xff]
  %v1488 = vld [vmem:[%s1363 + $0x3e0] sm:$0xff]
  %v1489 = vld [vmem:[%s1363 + $0x3e8] sm:$0xff]
  %v1490 = vld [vmem:[%s1363 + $0x3f0] sm:$0xff]
  %v1491 = vld [vmem:[%s1363 + $0x3f8] sm:$0xff]
  %v1492 = vld [vmem:[%s1363 + $0x400] sm:$0xff]
  %v1493 = vld [vmem:[%s1363 + $0x408] sm:$0xff]
  %v1494 = vld [vmem:[%s1363 + $0x410] sm:$0xff]
  %v1495 = vld [vmem:[%s1363 + $0x418] sm:$0xff]
  %v1496 = vld [vmem:[%s1363 + $0x420] sm:$0xff]
  %v1497 = vld [vmem:[%s1363 + $0x428] sm:$0xff]
  %v1498 = vld [vmem:[%s1363 + $0x430] sm:$0xff]
  %v1499 = vld [vmem:[%s1363 + $0x438] sm:$0xff]
  %v1500 = vld [vmem:[%s1363 + $0x440] sm:$0xff]
  %v1501 = vld [vmem:[%s1363 + $0x448] sm:$0xff]
  %v1502 = vld [vmem:[%s1363 + $0x450] sm:$0xff]
  %v1503 = vld [vmem:[%s1363 + $0x458] sm:$0xff]
  %v1504 = vld [vmem:[%s1363 + $0x460] sm:$0xff]
  %v1505 = vld [vmem:[%s1363 + $0x468] sm:$0xff]
  %v1506 = vld [vmem:[%s1363 + $0x470] sm:$0xff]
  %v1507 = vld [vmem:[%s1363 + $0x478] sm:$0xff]
  %1508 = vmatprep.subr.mxu0 %v1485
  %1509 = vmatpush1.msra.mxu0 %v1484
  %1510 = vmatprep.subr.mxu0 %v1477
  %1511 = vmatpush1.msra.mxu0 %v1476
  %1512 = vmatprep.subr.mxu0 %v1469
  %1513 = vmatpush1.msra.mxu0 %v1468
  %1514 = vmatprep.subr.mxu0 %v1461
  %1515 = vmatpush1.msra.mxu0 %v1460
  %1516 = vmatprep.subr.mxu0 %v1453
  %1517 = vmatpush1.msra.mxu0 %v1452
  %1518 = vmatprep.subr.mxu0 %v1445
  %1519 = vmatpush1.msra.mxu0 %v1444
  %1520 = vmatprep.subr.mxu0 %v1437
  %1521 = vmatpush1.msra.mxu0 %v1436
  %1522 = vmatprep.subr.mxu0 %v1429
  %1523 = vmatpush1.msra.mxu0 %v1428
  %1524 = vmatprep.subr.mxu0 %v1421
  %1525 = vmatpush1.msra.mxu0 %v1420
  %1526 = vmatprep.subr.mxu0 %v1413
  %1527 = vmatpush1.msra.mxu0 %v1412
  %1528 = vmatprep.subr.mxu0 %v1405
  %1529 = vmatpush1.msra.mxu0 %v1404
  %1530 = vmatprep.subr.mxu0 %v1397
  %1531 = vmatpush1.msra.mxu0 %v1396
  %1532 = vmatprep.subr.mxu0 %v1389
  %1533 = vmatpush1.msra.mxu0 %v1388
  %1534 = vmatprep.subr.mxu0 %v1381
  %1535 = vmatpush1.msra.mxu0 %v1380
  %1536 = vmatprep.subr.mxu0 %v1373
  %1537 = vmatpush1.msra.mxu0 %v1372
  %1538 = vmatprep.subr.mxu0 %v1365
  %1539 = vmatpush1.msra.mxu0 %v1364
  %1540 = vmatprep.subr.mxu0 0.0
  %1541 = vmatpush2.msra.mxu0 0.0
  %1542 = vmatprep.subr.mxu0 0.0
  %1543 = vmatpush2.msra.mxu0 0.0
  %1544 = vmatprep.subr.mxu0 0.0
  %1545 = vmatpush2.msra.mxu0 0.0
  %1546 = vmatprep.subr.mxu0 0.0
  %1547 = vmatpush2.msra.mxu0 0.0
  %1548 = vmatprep.subr.mxu0 0.0
  %1549 = vmatpush2.msra.mxu0 0.0
  %1550 = vmatprep.subr.mxu0 0.0
  %1551 = vmatpush2.msra.mxu0 0.0
  %1552 = vmatprep.subr.mxu0 0.0
  %1553 = vmatpush2.msra.mxu0 0.0
  %1554 = vmatprep.subr.mxu0 0.0
  %1555 = vmatpush2.msra.mxu0 0.0
  %1556 = vmatprep.subr.mxu0 0.0
  %1557 = vmatpush2.msra.mxu0 0.0
  %1558 = vmatprep.subr.mxu0 0.0
  %1559 = vmatpush2.msra.mxu0 0.0
  %1560 = vmatprep.subr.mxu0 0.0
  %1561 = vmatpush2.msra.mxu0 0.0
  %1562 = vmatprep.subr.mxu0 0.0
  %1563 = vmatpush2.msra.mxu0 0.0
  %1564 = vmatprep.subr.mxu0 0.0
  %1565 = vmatpush2.msra.mxu0 0.0
  %1566 = vmatprep.subr.mxu0 0.0
  %1567 = vmatpush2.msra.mxu0 0.0
  %1568 = vmatprep.subr.mxu0 %v1501
  %1569 = vmatpush2.msra.mxu0 %v1500
  %1570 = vmatprep.subr.mxu0 %v1493
  %1571 = vmatpush2.msra.mxu0 %v1492
  %1572 = vmatprep.mubr.f32.mxu0 %v203
  %1573 = vmatmul.mubr.f32.gmra.mxu0 %v55
  %v1574 = vpop.f32.mrf.mxu0
  %v1575 = vadd.f32 0.0, %v1574
  %v1576 = vpop.f32.mrf.mxu0
  %v1577 = vadd.f32 0.0, %v1576
  %1578 = vdwg.mxu0
  %1579 = vmatprep.subr.mxu0 %v1487
  %1580 = vmatpush1.msra.mxu0 %v1486
  %1581 = vmatprep.subr.mxu0 %v1479
  %1582 = vmatpush1.msra.mxu0 %v1478
  %1583 = vmatprep.subr.mxu0 %v1471
  %1584 = vmatpush1.msra.mxu0 %v1470
  %1585 = vmatprep.subr.mxu0 %v1463
  %1586 = vmatpush1.msra.mxu0 %v1462
  %1587 = vmatprep.subr.mxu0 %v1455
  %1588 = vmatpush1.msra.mxu0 %v1454
  %1589 = vmatprep.subr.mxu0 %v1447
  %1590 = vmatpush1.msra.mxu0 %v1446
  %1591 = vmatprep.subr.mxu0 %v1439
  %1592 = vmatpush1.msra.mxu0 %v1438
  %1593 = vmatprep.subr.mxu0 %v1431
  %1594 = vmatpush1.msra.mxu0 %v1430
  %1595 = vmatprep.subr.mxu0 %v1423
  %1596 = vmatpush1.msra.mxu0 %v1422
  %1597 = vmatprep.subr.mxu0 %v1415
  %1598 = vmatpush1.msra.mxu0 %v1414
  %1599 = vmatprep.subr.mxu0 %v1407
  %1600 = vmatpush1.msra.mxu0 %v1406
  %1601 = vmatprep.subr.mxu0 %v1399
  %1602 = vmatpush1.msra.mxu0 %v1398
  %1603 = vmatprep.subr.mxu0 %v1391
  %1604 = vmatpush1.msra.mxu0 %v1390
  %1605 = vmatprep.subr.mxu0 %v1383
  %1606 = vmatpush1.msra.mxu0 %v1382
  %1607 = vmatprep.subr.mxu0 %v1375
  %1608 = vmatpush1.msra.mxu0 %v1374
  %1609 = vmatprep.subr.mxu0 %v1367
  %1610 = vmatpush1.msra.mxu0 %v1366
  %1611 = vmatprep.subr.mxu0 0.0
  %1612 = vmatpush2.msra.mxu0 0.0
  %1613 = vmatprep.subr.mxu0 0.0
  %1614 = vmatpush2.msra.mxu0 0.0
  %1615 = vmatprep.subr.mxu0 0.0
  %1616 = vmatpush2.msra.mxu0 0.0
  %1617 = vmatprep.subr.mxu0 0.0
  %1618 = vmatpush2.msra.mxu0 0.0
  %1619 = vmatprep.subr.mxu0 0.0
  %1620 = vmatpush2.msra.mxu0 0.0
  %1621 = vmatprep.subr.mxu0 0.0
  %1622 = vmatpush2.msra.mxu0 0.0
  %1623 = vmatprep.subr.mxu0 0.0
  %1624 = vmatpush2.msra.mxu0 0.0
  %1625 = vmatprep.subr.mxu0 0.0
  %1626 = vmatpush2.msra.mxu0 0.0
  %1627 = vmatprep.subr.mxu0 0.0
  %1628 = vmatpush2.msra.mxu0 0.0
  %1629 = vmatprep.subr.mxu0 0.0
  %1630 = vmatpush2.msra.mxu0 0.0
  %1631 = vmatprep.subr.mxu0 0.0
  %1632 = vmatpush2.msra.mxu0 0.0
  %1633 = vmatprep.subr.mxu0 0.0
  %1634 = vmatpush2.msra.mxu0 0.0
  %1635 = vmatprep.subr.mxu0 0.0
  %1636 = vmatpush2.msra.mxu0 0.0
  %1637 = vmatprep.subr.mxu0 0.0
  %1638 = vmatpush2.msra.mxu0 0.0
  %1639 = vmatprep.subr.mxu0 %v1503
  %1640 = vmatpush2.msra.mxu0 %v1502
  %1641 = vmatprep.subr.mxu0 %v1495
  %1642 = vmatpush2.msra.mxu0 %v1494
  %1643 = vmatprep.mubr.f32.mxu0 %v203
  %1644 = vmatmul.mubr.f32.gmra.mxu0 %v55
  %v1645 = vpop.f32.mrf.mxu0
  %v1646 = vadd.f32 0.0, %v1645
  %v1647 = vpop.f32.mrf.mxu0
  %v1648 = vadd.f32 0.0, %v1647
  %1649 = vdwg.mxu0
  %1650 = vmatprep.subr.mxu0 %v1489
  %1651 = vmatpush1.msra.mxu0 %v1488
  %1652 = vmatprep.subr.mxu0 %v1481
  %1653 = vmatpush1.msra.mxu0 %v1480
  %1654 = vmatprep.subr.mxu0 %v1473
  %1655 = vmatpush1.msra.mxu0 %v1472
  %1656 = vmatprep.subr.mxu0 %v1465
  %1657 = vmatpush1.msra.mxu0 %v1464
  %1658 = vmatprep.subr.mxu0 %v1457
  %1659 = vmatpush1.msra.mxu0 %v1456
  %1660 = vmatprep.subr.mxu0 %v1449
  %1661 = vmatpush1.msra.mxu0 %v1448
  %1662 = vmatprep.subr.mxu0 %v1441
  %1663 = vmatpush1.msra.mxu0 %v1440
  %1664 = vmatprep.subr.mxu0 %v1433
  %1665 = vmatpush1.msra.mxu0 %v1432
  %1666 = vmatprep.subr.mxu0 %v1425
  %1667 = vmatpush1.msra.mxu0 %v1424
  %1668 = vmatprep.subr.mxu0 %v1417
  %1669 = vmatpush1.msra.mxu0 %v1416
  %1670 = vmatprep.subr.mxu0 %v1409
  %1671 = vmatpush1.msra.mxu0 %v1408
  %1672 = vmatprep.subr.mxu0 %v1401
  %1673 = vmatpush1.msra.mxu0 %v1400
  %1674 = vmatprep.subr.mxu0 %v1393
  %1675 = vmatpush1.msra.mxu0 %v1392
  %1676 = vmatprep.subr.mxu0 %v1385
  %1677 = vmatpush1.msra.mxu0 %v1384
  %1678 = vmatprep.subr.mxu0 %v1377
  %1679 = vmatpush1.msra.mxu0 %v1376
  %1680 = vmatprep.subr.mxu0 %v1369
  %1681 = vmatpush1.msra.mxu0 %v1368
  %1682 = vmatprep.subr.mxu0 0.0
  %1683 = vmatpush2.msra.mxu0 0.0
  %1684 = vmatprep.subr.mxu0 0.0
  %1685 = vmatpush2.msra.mxu0 0.0
  %1686 = vmatprep.subr.mxu0 0.0
  %1687 = vmatpush2.msra.mxu0 0.0
  %1688 = vmatprep.subr.mxu0 0.0
  %1689 = vmatpush2.msra.mxu0 0.0
  %1690 = vmatprep.subr.mxu0 0.0
  %1691 = vmatpush2.msra.mxu0 0.0
  %1692 = vmatprep.subr.mxu0 0.0
  %1693 = vmatpush2.msra.mxu0 0.0
  %1694 = vmatprep.subr.mxu0 0.0
  %1695 = vmatpush2.msra.mxu0 0.0
  %1696 = vmatprep.subr.mxu0 0.0
  %1697 = vmatpush2.msra.mxu0 0.0
  %1698 = vmatprep.subr.mxu0 0.0
  %1699 = vmatpush2.msra.mxu0 0.0
  %1700 = vmatprep.subr.mxu0 0.0
  %1701 = vmatpush2.msra.mxu0 0.0
  %1702 = vmatprep.subr.mxu0 0.0
  %1703 = vmatpush2.msra.mxu0 0.0
  %1704 = vmatprep.subr.mxu0 0.0
  %1705 = vmatpush2.msra.mxu0 0.0
  %1706 = vmatprep.subr.mxu0 0.0
  %1707 = vmatpush2.msra.mxu0 0.0
  %1708 = vmatprep.subr.mxu0 0.0
  %1709 = vmatpush2.msra.mxu0 0.0
  %1710 = vmatprep.subr.mxu0 %v1505
  %1711 = vmatpush2.msra.mxu0 %v1504
  %1712 = vmatprep.subr.mxu0 %v1497
  %1713 = vmatpush2.msra.mxu0 %v1496
  %1714 = vmatprep.mubr.f32.mxu0 %v203
  %1715 = vmatmul.mubr.f32.gmra.mxu0 %v55
  %v1716 = vpop.f32.mrf.mxu0
  %v1717 = vadd.f32 0.0, %v1716
  %v1718 = vpop.f32.mrf.mxu0
  %v1719 = vadd.f32 0.0, %v1718
  %1720 = vdwg.mxu0
  %1721 = vmatprep.subr.mxu0 %v1491
  %1722 = vmatpush1.msra.mxu0 %v1490
  %1723 = vmatprep.subr.mxu0 %v1483
  %1724 = vmatpush1.msra.mxu0 %v1482
  %1725 = vmatprep.subr.mxu0 %v1475
  %1726 = vmatpush1.msra.mxu0 %v1474
  %1727 = vmatprep.subr.mxu0 %v1467
  %1728 = vmatpush1.msra.mxu0 %v1466
  %1729 = vmatprep.subr.mxu0 %v1459
  %1730 = vmatpush1.msra.mxu0 %v1458
  %1731 = vmatprep.subr.mxu0 %v1451
  %1732 = vmatpush1.msra.mxu0 %v1450
  %1733 = vmatprep.subr.mxu0 %v1443
  %1734 = vmatpush1.msra.mxu0 %v1442
  %1735 = vmatprep.subr.mxu0 %v1435
  %1736 = vmatpush1.msra.mxu0 %v1434
  %1737 = vmatprep.subr.mxu0 %v1427
  %1738 = vmatpush1.msra.mxu0 %v1426
  %1739 = vmatprep.subr.mxu0 %v1419
  %1740 = vmatpush1.msra.mxu0 %v1418
  %1741 = vmatprep.subr.mxu0 %v1411
  %1742 = vmatpush1.msra.mxu0 %v1410
  %1743 = vmatprep.subr.mxu0 %v1403
  %1744 = vmatpush1.msra.mxu0 %v1402
  %1745 = vmatprep.subr.mxu0 %v1395
  %1746 = vmatpush1.msra.mxu0 %v1394
  %1747 = vmatprep.subr.mxu0 %v1387
  %1748 = vmatpush1.msra.mxu0 %v1386
  %1749 = vmatprep.subr.mxu0 %v1379
  %1750 = vmatpush1.msra.mxu0 %v1378
  %1751 = vmatprep.subr.mxu0 %v1371
  %1752 = vmatpush1.msra.mxu0 %v1370
  %1753 = vmatprep.subr.mxu0 0.0
  %1754 = vmatpush2.msra.mxu0 0.0
  %1755 = vmatprep.subr.mxu0 0.0
  %1756 = vmatpush2.msra.mxu0 0.0
  %1757 = vmatprep.subr.mxu0 0.0
  %1758 = vmatpush2.msra.mxu0 0.0
  %1759 = vmatprep.subr.mxu0 0.0
  %1760 = vmatpush2.msra.mxu0 0.0
  %1761 = vmatprep.subr.mxu0 0.0
  %1762 = vmatpush2.msra.mxu0 0.0
  %1763 = vmatprep.subr.mxu0 0.0
  %1764 = vmatpush2.msra.mxu0 0.0
  %1765 = vmatprep.subr.mxu0 0.0
  %1766 = vmatpush2.msra.mxu0 0.0
  %1767 = vmatprep.subr.mxu0 0.0
  %1768 = vmatpush2.msra.mxu0 0.0
  %1769 = vmatprep.subr.mxu0 0.0
  %1770 = vmatpush2.msra.mxu0 0.0
  %1771 = vmatprep.subr.mxu0 0.0
  %1772 = vmatpush2.msra.mxu0 0.0
  %1773 = vmatprep.subr.mxu0 0.0
  %1774 = vmatpush2.msra.mxu0 0.0
  %1775 = vmatprep.subr.mxu0 0.0
  %1776 = vmatpush2.msra.mxu0 0.0
  %1777 = vmatprep.subr.mxu0 0.0
  %1778 = vmatpush2.msra.mxu0 0.0
  %1779 = vmatprep.subr.mxu0 0.0
  %1780 = vmatpush2.msra.mxu0 0.0
  %1781 = vmatprep.subr.mxu0 %v1507
  %1782 = vmatpush2.msra.mxu0 %v1506
  %1783 = vmatprep.subr.mxu0 %v1499
  %1784 = vmatpush2.msra.mxu0 %v1498
  %1785 = vmatprep.mubr.f32.mxu0 %v203
  %1786 = vmatmul.mubr.f32.gmra.mxu0 %v55
  %v1787 = vpop.f32.mrf.mxu0
  %v1788 = vadd.f32 0.0, %v1787
  %v1789 = vpop.f32.mrf.mxu0
  %v1790 = vadd.f32 0.0, %v1789
  %1791 = vdwg.mxu0
  %v1792 = vmax.f32 %v1355, %v1575
  %v1793 = vmax.f32 %v1356, %v1577
  %v1794 = vmax.f32 %v1357, %v1646
  %v1795 = vmax.f32 %v1358, %v1648
  %v1796 = vmax.f32 %v1359, %v1717
  %v1797 = vmax.f32 %v1360, %v1719
  %v1798 = vmax.f32 %v1361, %v1788
  %v1799 = vmax.f32 %v1362, %v1790
  %v1800 = vld [vmem:[%s2] sm:$0xf]
  %1802 = vset.pattern.permute.xlu0 0
  %1803 = vperm.xlu0 %1802, %v1800
  %v1804 = vpop.permute.xlu0 %1803
  %v1806 = vadd.f32 %v1792, %v1804
  %v1807 = vadd.f32 %v1793, %v1804
  %v1808 = vadd.f32 %v1794, %v1804
  %v1809 = vadd.f32 %v1795, %v1804
  %v1810 = vadd.f32 %v1796, %v1804
  %v1811 = vadd.f32 %v1797, %v1804
  %v1812 = vadd.f32 %v1798, %v1804
  %v1813 = vadd.f32 %v1799, %v1804
  %v1814 = vmax.f32 %v1806, 0.0
  %v1815 = vmax.f32 %v1807, 0.0
  %v1816 = vmax.f32 %v1808, 0.0
  %v1817 = vmax.f32 %v1809, 0.0
  %v1818 = vmax.f32 %v1810, 0.0
  %v1819 = vmax.f32 %v1811, 0.0
  %v1820 = vmax.f32 %v1812, 0.0
  %v1821 = vmax.f32 %v1813, 0.0
  %v1822 = vld [vmem:[%s4] sm:$0x1]
  %v1823 = vld [vmem:[%s3] sm:$0xff]
  %v1824 = vld [vmem:[%s3 + $0x8] sm:$0xff]
  %v1825 = vld [vmem:[%s3 + $0x10] sm:$0xff]
  %v1826 = vld [vmem:[%s3 + $0x18] sm:$0xff]
  %v1827 = vld [vmem:[%s3 + $0x20] sm:$0xff]
  %v1828 = vld [vmem:[%s3 + $0x28] sm:$0xff]
  %v1829 = vld [vmem:[%s3 + $0x30] sm:$0xff]
  %v1830 = vld [vmem:[%s3 + $0x38] sm:$0xff]
  %v1831 = vld [vmem:[%s3 + $0x40] sm:$0xff]
  %v1832 = vld [vmem:[%s3 + $0x48] sm:$0xff]
  %v1833 = vld [vmem:[%s3 + $0x50] sm:$0xff]
  %v1834 = vld [vmem:[%s3 + $0x58] sm:$0xff]
  %v1835 = vld [vmem:[%s3 + $0x60] sm:$0xff]
  %v1836 = vld [vmem:[%s3 + $0x68] sm:$0xff]
  %v1837 = vld [vmem:[%s3 + $0x70] sm:$0xff]
  %v1838 = vld [vmem:[%s3 + $0x78] sm:$0xff]
  %v1839 = vld [vmem:[%s3 + $0x80] sm:$0xff]
  %v1840 = vld [vmem:[%s3 + $0x88] sm:$0xff]
  %v1841 = vld [vmem:[%s3 + $0x90] sm:$0xff]
  %v1842 = vld [vmem:[%s3 + $0x98] sm:$0xff]
  %v1843 = vld [vmem:[%s3 + $0xa0] sm:$0xff]
  %v1844 = vld [vmem:[%s3 + $0xa8] sm:$0xff]
  %v1845 = vld [vmem:[%s3 + $0xb0] sm:$0xff]
  %v1846 = vld [vmem:[%s3 + $0xb8] sm:$0xff]
  %v1847 = vld [vmem:[%s3 + $0xc0] sm:$0xff]
  %v1848 = vld [vmem:[%s3 + $0xc8] sm:$0xff]
  %v1849 = vld [vmem:[%s3 + $0xd0] sm:$0xff]
  %v1850 = vld [vmem:[%s3 + $0xd8] sm:$0xff]
  %v1851 = vld [vmem:[%s3 + $0xe0] sm:$0xff]
  %v1852 = vld [vmem:[%s3 + $0xe8] sm:$0xff]
  %v1853 = vld [vmem:[%s3 + $0xf0] sm:$0xff]
  %v1854 = vld [vmem:[%s3 + $0xf8] sm:$0xff]
  %v1855 = vld [vmem:[%s3 + $0x100] sm:$0xff]
  %v1856 = vld [vmem:[%s3 + $0x108] sm:$0xff]
  %v1857 = vld [vmem:[%s3 + $0x110] sm:$0xff]
  %v1858 = vld [vmem:[%s3 + $0x118] sm:$0xff]
  %v1859 = vld [vmem:[%s3 + $0x120] sm:$0xff]
  %v1860 = vld [vmem:[%s3 + $0x128] sm:$0xff]
  %v1861 = vld [vmem:[%s3 + $0x130] sm:$0xff]
  %v1862 = vld [vmem:[%s3 + $0x138] sm:$0xff]
  %v1863 = vld [vmem:[%s3 + $0x140] sm:$0xff]
  %v1864 = vld [vmem:[%s3 + $0x148] sm:$0xff]
  %v1865 = vld [vmem:[%s3 + $0x150] sm:$0xff]
  %v1866 = vld [vmem:[%s3 + $0x158] sm:$0xff]
  %v1867 = vld [vmem:[%s3 + $0x160] sm:$0xff]
  %v1868 = vld [vmem:[%s3 + $0x168] sm:$0xff]
  %v1869 = vld [vmem:[%s3 + $0x170] sm:$0xff]
  %v1870 = vld [vmem:[%s3 + $0x178] sm:$0xff]
  %v1871 = vld [vmem:[%s3 + $0x180] sm:$0xff]
  %v1872 = vld [vmem:[%s3 + $0x188] sm:$0xff]
  %v1873 = vld [vmem:[%s3 + $0x190] sm:$0xff]
  %v1874 = vld [vmem:[%s3 + $0x198] sm:$0xff]
  %v1875 = vld [vmem:[%s3 + $0x1a0] sm:$0xff]
  %v1876 = vld [vmem:[%s3 + $0x1a8] sm:$0xff]
  %v1877 = vld [vmem:[%s3 + $0x1b0] sm:$0xff]
  %v1878 = vld [vmem:[%s3 + $0x1b8] sm:$0xff]
  %v1879 = vld [vmem:[%s3 + $0x1c0] sm:$0xff]
  %v1880 = vld [vmem:[%s3 + $0x1c8] sm:$0xff]
  %v1881 = vld [vmem:[%s3 + $0x1d0] sm:$0xff]
  %v1882 = vld [vmem:[%s3 + $0x1d8] sm:$0xff]
  %v1883 = vld [vmem:[%s3 + $0x1e0] sm:$0xff]
  %v1884 = vld [vmem:[%s3 + $0x1e8] sm:$0xff]
  %v1885 = vld [vmem:[%s3 + $0x1f0] sm:$0xff]
  %v1886 = vld [vmem:[%s3 + $0x1f8] sm:$0xff]
  %v1887 = vld [vmem:[%s3 + $0x200] sm:$0xff]
  %v1888 = vld [vmem:[%s3 + $0x208] sm:$0xff]
  %v1889 = vld [vmem:[%s3 + $0x210] sm:$0xff]
  %v1890 = vld [vmem:[%s3 + $0x218] sm:$0xff]
  %v1891 = vld [vmem:[%s3 + $0x220] sm:$0xff]
  %v1892 = vld [vmem:[%s3 + $0x228] sm:$0xff]
  %v1893 = vld [vmem:[%s3 + $0x230] sm:$0xff]
  %v1894 = vld [vmem:[%s3 + $0x238] sm:$0xff]
  %v1895 = vld [vmem:[%s3 + $0x240] sm:$0xff]
  %v1896 = vld [vmem:[%s3 + $0x248] sm:$0xff]
  %v1897 = vld [vmem:[%s3 + $0x250] sm:$0xff]
  %v1898 = vld [vmem:[%s3 + $0x258] sm:$0xff]
  %v1899 = vld [vmem:[%s3 + $0x260] sm:$0xff]
  %v1900 = vld [vmem:[%s3 + $0x268] sm:$0xff]
  %v1901 = vld [vmem:[%s3 + $0x270] sm:$0xff]
  %v1902 = vld [vmem:[%s3 + $0x278] sm:$0xff]
  %v1903 = vld [vmem:[%s3 + $0x280] sm:$0xff]
  %v1904 = vld [vmem:[%s3 + $0x288] sm:$0xff]
  %v1905 = vld [vmem:[%s3 + $0x290] sm:$0xff]
  %v1906 = vld [vmem:[%s3 + $0x298] sm:$0xff]
  %v1907 = vld [vmem:[%s3 + $0x2a0] sm:$0xff]
  %v1908 = vld [vmem:[%s3 + $0x2a8] sm:$0xff]
  %v1909 = vld [vmem:[%s3 + $0x2b0] sm:$0xff]
  %v1910 = vld [vmem:[%s3 + $0x2b8] sm:$0xff]
  %v1911 = vld [vmem:[%s3 + $0x2c0] sm:$0xff]
  %v1912 = vld [vmem:[%s3 + $0x2c8] sm:$0xff]
  %v1913 = vld [vmem:[%s3 + $0x2d0] sm:$0xff]
  %v1914 = vld [vmem:[%s3 + $0x2d8] sm:$0xff]
  %v1915 = vld [vmem:[%s3 + $0x2e0] sm:$0xff]
  %v1916 = vld [vmem:[%s3 + $0x2e8] sm:$0xff]
  %v1917 = vld [vmem:[%s3 + $0x2f0] sm:$0xff]
  %v1918 = vld [vmem:[%s3 + $0x2f8] sm:$0xff]
  %v1919 = vld [vmem:[%s3 + $0x300] sm:$0xff]
  %v1920 = vld [vmem:[%s3 + $0x308] sm:$0xff]
  %v1921 = vld [vmem:[%s3 + $0x310] sm:$0xff]
  %v1922 = vld [vmem:[%s3 + $0x318] sm:$0xff]
  %v1923 = vld [vmem:[%s3 + $0x320] sm:$0xff]
  %v1924 = vld [vmem:[%s3 + $0x328] sm:$0xff]
  %v1925 = vld [vmem:[%s3 + $0x330] sm:$0xff]
  %v1926 = vld [vmem:[%s3 + $0x338] sm:$0xff]
  %v1927 = vld [vmem:[%s3 + $0x340] sm:$0xff]
  %v1928 = vld [vmem:[%s3 + $0x348] sm:$0xff]
  %v1929 = vld [vmem:[%s3 + $0x350] sm:$0xff]
  %v1930 = vld [vmem:[%s3 + $0x358] sm:$0xff]
  %v1931 = vld [vmem:[%s3 + $0x360] sm:$0xff]
  %v1932 = vld [vmem:[%s3 + $0x368] sm:$0xff]
  %v1933 = vld [vmem:[%s3 + $0x370] sm:$0xff]
  %v1934 = vld [vmem:[%s3 + $0x378] sm:$0xff]
  %v1935 = vld [vmem:[%s3 + $0x380] sm:$0xff]
  %v1936 = vld [vmem:[%s3 + $0x388] sm:$0xff]
  %v1937 = vld [vmem:[%s3 + $0x390] sm:$0xff]
  %v1938 = vld [vmem:[%s3 + $0x398] sm:$0xff]
  %v1939 = vld [vmem:[%s3 + $0x3a0] sm:$0xff]
  %v1940 = vld [vmem:[%s3 + $0x3a8] sm:$0xff]
  %v1941 = vld [vmem:[%s3 + $0x3b0] sm:$0xff]
  %v1942 = vld [vmem:[%s3 + $0x3b8] sm:$0xff]
  %v1943 = vld [vmem:[%s3 + $0x3c0] sm:$0xff]
  %v1944 = vld [vmem:[%s3 + $0x3c8] sm:$0xff]
  %v1945 = vld [vmem:[%s3 + $0x3d0] sm:$0xff]
  %v1946 = vld [vmem:[%s3 + $0x3d8] sm:$0xff]
  %v1947 = vld [vmem:[%s3 + $0x3e0] sm:$0xff]
  %v1948 = vld [vmem:[%s3 + $0x3e8] sm:$0xff]
  %v1949 = vld [vmem:[%s3 + $0x3f0] sm:$0xff]
  %v1950 = vld [vmem:[%s3 + $0x3f8] sm:$0xff]
  %1951 = vmatprep.subr.mxu0 0.0
  %1952 = vmatpush1.msra.mxu0 %v1838
  %1953 = vmatprep.subr.mxu0 0.0
  %1954 = vmatpush1.msra.mxu0 %v1837
  %1955 = vmatprep.subr.mxu0 0.0
  %1956 = vmatpush1.msra.mxu0 %v1836
  %1957 = vmatprep.subr.mxu0 0.0
  %1958 = vmatpush1.msra.mxu0 %v1835
  %1959 = vmatprep.subr.mxu0 0.0
  %1960 = vmatpush1.msra.mxu0 %v1834
  %1961 = vmatprep.subr.mxu0 0.0
  %1962 = vmatpush1.msra.mxu0 %v1833
  %1963 = vmatprep.subr.mxu0 0.0
  %1964 = vmatpush1.msra.mxu0 %v1832
  %1965 = vmatprep.subr.mxu0 0.0
  %1966 = vmatpush1.msra.mxu0 %v1831
  %1967 = vmatprep.subr.mxu0 0.0
  %1968 = vmatpush1.msra.mxu0 %v1830
  %1969 = vmatprep.subr.mxu0 0.0
  %1970 = vmatpush1.msra.mxu0 %v1829
  %1971 = vmatprep.subr.mxu0 0.0
  %1972 = vmatpush1.msra.mxu0 %v1828
  %1973 = vmatprep.subr.mxu0 0.0
  %1974 = vmatpush1.msra.mxu0 %v1827
  %1975 = vmatprep.subr.mxu0 0.0
  %1976 = vmatpush1.msra.mxu0 %v1826
  %1977 = vmatprep.subr.mxu0 0.0
  %1978 = vmatpush1.msra.mxu0 %v1825
  %1979 = vmatprep.subr.mxu0 0.0
  %1980 = vmatpush1.msra.mxu0 %v1824
  %1981 = vmatprep.subr.mxu0 0.0
  %1982 = vmatpush1.msra.mxu0 %v1823
  %1983 = vmatprep.subr.mxu0 0.0
  %1984 = vmatpush2.msra.mxu0 %v1854
  %1985 = vmatprep.subr.mxu0 0.0
  %1986 = vmatpush2.msra.mxu0 %v1853
  %1987 = vmatprep.subr.mxu0 0.0
  %1988 = vmatpush2.msra.mxu0 %v1852
  %1989 = vmatprep.subr.mxu0 0.0
  %1990 = vmatpush2.msra.mxu0 %v1851
  %1991 = vmatprep.subr.mxu0 0.0
  %1992 = vmatpush2.msra.mxu0 %v1850
  %1993 = vmatprep.subr.mxu0 0.0
  %1994 = vmatpush2.msra.mxu0 %v1849
  %1995 = vmatprep.subr.mxu0 0.0
  %1996 = vmatpush2.msra.mxu0 %v1848
  %1997 = vmatprep.subr.mxu0 0.0
  %1998 = vmatpush2.msra.mxu0 %v1847
  %1999 = vmatprep.subr.mxu0 0.0
  %2000 = vmatpush2.msra.mxu0 %v1846
  %2001 = vmatprep.subr.mxu0 0.0
  %2002 = vmatpush2.msra.mxu0 %v1845
  %2003 = vmatprep.subr.mxu0 0.0
  %2004 = vmatpush2.msra.mxu0 %v1844
  %2005 = vmatprep.subr.mxu0 0.0
  %2006 = vmatpush2.msra.mxu0 %v1843
  %2007 = vmatprep.subr.mxu0 0.0
  %2008 = vmatpush2.msra.mxu0 %v1842
  %2009 = vmatprep.subr.mxu0 0.0
  %2010 = vmatpush2.msra.mxu0 %v1841
  %2011 = vmatprep.subr.mxu0 0.0
  %2012 = vmatpush2.msra.mxu0 %v1840
  %2013 = vmatprep.subr.mxu0 0.0
  %2014 = vmatpush2.msra.mxu0 %v1839
  %2015 = vmatprep.mubr.f32.mxu0 %v1815
  %2016 = vmatmul.mubr.f32.gmra.mxu0 %v1814
  %v2017 = vpop.f32.mrf.mxu0
  %v2018 = vadd.f32 0.0, %v2017
  %v2019 = vpop.f32.mrf.mxu0
  %2020 = vdwg.mxu0
  %2021 = vmatprep.subr.mxu0 0.0
  %2022 = vmatpush1.msra.mxu0 %v1870
  %2023 = vmatprep.subr.mxu0 0.0
  %2024 = vmatpush1.msra.mxu0 %v1869
  %2025 = vmatprep.subr.mxu0 0.0
  %2026 = vmatpush1.msra.mxu0 %v1868
  %2027 = vmatprep.subr.mxu0 0.0
  %2028 = vmatpush1.msra.mxu0 %v1867
  %2029 = vmatprep.subr.mxu0 0.0
  %2030 = vmatpush1.msra.mxu0 %v1866
  %2031 = vmatprep.subr.mxu0 0.0
  %2032 = vmatpush1.msra.mxu0 %v1865
  %2033 = vmatprep.subr.mxu0 0.0
  %2034 = vmatpush1.msra.mxu0 %v1864
  %2035 = vmatprep.subr.mxu0 0.0
  %2036 = vmatpush1.msra.mxu0 %v1863
  %2037 = vmatprep.subr.mxu0 0.0
  %2038 = vmatpush1.msra.mxu0 %v1862
  %2039 = vmatprep.subr.mxu0 0.0
  %2040 = vmatpush1.msra.mxu0 %v1861
  %2041 = vmatprep.subr.mxu0 0.0
  %2042 = vmatpush1.msra.mxu0 %v1860
  %2043 = vmatprep.subr.mxu0 0.0
  %2044 = vmatpush1.msra.mxu0 %v1859
  %2045 = vmatprep.subr.mxu0 0.0
  %2046 = vmatpush1.msra.mxu0 %v1858
  %2047 = vmatprep.subr.mxu0 0.0
  %2048 = vmatpush1.msra.mxu0 %v1857
  %2049 = vmatprep.subr.mxu0 0.0
  %2050 = vmatpush1.msra.mxu0 %v1856
  %2051 = vmatprep.subr.mxu0 0.0
  %2052 = vmatpush1.msra.mxu0 %v1855
  %2053 = vmatprep.subr.mxu0 0.0
  %2054 = vmatpush2.msra.mxu0 %v1886
  %2055 = vmatprep.subr.mxu0 0.0
  %2056 = vmatpush2.msra.mxu0 %v1885
  %2057 = vmatprep.subr.mxu0 0.0
  %2058 = vmatpush2.msra.mxu0 %v1884
  %2059 = vmatprep.subr.mxu0 0.0
  %2060 = vmatpush2.msra.mxu0 %v1883
  %2061 = vmatprep.subr.mxu0 0.0
  %2062 = vmatpush2.msra.mxu0 %v1882
  %2063 = vmatprep.subr.mxu0 0.0
  %2064 = vmatpush2.msra.mxu0 %v1881
  %2065 = vmatprep.subr.mxu0 0.0
  %2066 = vmatpush2.msra.mxu0 %v1880
  %2067 = vmatprep.subr.mxu0 0.0
  %2068 = vmatpush2.msra.mxu0 %v1879
  %2069 = vmatprep.subr.mxu0 0.0
  %2070 = vmatpush2.msra.mxu0 %v1878
  %2071 = vmatprep.subr.mxu0 0.0
  %2072 = vmatpush2.msra.mxu0 %v1877
  %2073 = vmatprep.subr.mxu0 0.0
  %2074 = vmatpush2.msra.mxu0 %v1876
  %2075 = vmatprep.subr.mxu0 0.0
  %2076 = vmatpush2.msra.mxu0 %v1875
  %2077 = vmatprep.subr.mxu0 0.0
  %2078 = vmatpush2.msra.mxu0 %v1874
  %2079 = vmatprep.subr.mxu0 0.0
  %2080 = vmatpush2.msra.mxu0 %v1873
  %2081 = vmatprep.subr.mxu0 0.0
  %2082 = vmatpush2.msra.mxu0 %v1872
  %2083 = vmatprep.subr.mxu0 0.0
  %2084 = vmatpush2.msra.mxu0 %v1871
  %2085 = vmatprep.mubr.f32.mxu0 %v1817
  %2086 = vmatmul.mubr.f32.gmra.mxu0 %v1816
  %v2087 = vpop.f32.mrf.mxu0
  %v2088 = vadd.f32 %v2018, %v2087
  %v2089 = vpop.f32.mrf.mxu0
  %2090 = vdwg.mxu0
  %2091 = vmatprep.subr.mxu0 0.0
  %2092 = vmatpush1.msra.mxu0 %v1902
  %2093 = vmatprep.subr.mxu0 0.0
  %2094 = vmatpush1.msra.mxu0 %v1901
  %2095 = vmatprep.subr.mxu0 0.0
  %2096 = vmatpush1.msra.mxu0 %v1900
  %2097 = vmatprep.subr.mxu0 0.0
  %2098 = vmatpush1.msra.mxu0 %v1899
  %2099 = vmatprep.subr.mxu0 0.0
  %2100 = vmatpush1.msra.mxu0 %v1898
  %2101 = vmatprep.subr.mxu0 0.0
  %2102 = vmatpush1.msra.mxu0 %v1897
  %2103 = vmatprep.subr.mxu0 0.0
  %2104 = vmatpush1.msra.mxu0 %v1896
  %2105 = vmatprep.subr.mxu0 0.0
  %2106 = vmatpush1.msra.mxu0 %v1895
  %2107 = vmatprep.subr.mxu0 0.0
  %2108 = vmatpush1.msra.mxu0 %v1894
  %2109 = vmatprep.subr.mxu0 0.0
  %2110 = vmatpush1.msra.mxu0 %v1893
  %2111 = vmatprep.subr.mxu0 0.0
  %2112 = vmatpush1.msra.mxu0 %v1892
  %2113 = vmatprep.subr.mxu0 0.0
  %2114 = vmatpush1.msra.mxu0 %v1891
  %2115 = vmatprep.subr.mxu0 0.0
  %2116 = vmatpush1.msra.mxu0 %v1890
  %2117 = vmatprep.subr.mxu0 0.0
  %2118 = vmatpush1.msra.mxu0 %v1889
  %2119 = vmatprep.subr.mxu0 0.0
  %2120 = vmatpush1.msra.mxu0 %v1888
  %2121 = vmatprep.subr.mxu0 0.0
  %2122 = vmatpush1.msra.mxu0 %v1887
  %2123 = vmatprep.subr.mxu0 0.0
  %2124 = vmatpush2.msra.mxu0 %v1918
  %2125 = vmatprep.subr.mxu0 0.0
  %2126 = vmatpush2.msra.mxu0 %v1917
  %2127 = vmatprep.subr.mxu0 0.0
  %2128 = vmatpush2.msra.mxu0 %v1916
  %2129 = vmatprep.subr.mxu0 0.0
  %2130 = vmatpush2.msra.mxu0 %v1915
  %2131 = vmatprep.subr.mxu0 0.0
  %2132 = vmatpush2.msra.mxu0 %v1914
  %2133 = vmatprep.subr.mxu0 0.0
  %2134 = vmatpush2.msra.mxu0 %v1913
  %2135 = vmatprep.subr.mxu0 0.0
  %2136 = vmatpush2.msra.mxu0 %v1912
  %2137 = vmatprep.subr.mxu0 0.0
  %2138 = vmatpush2.msra.mxu0 %v1911
  %2139 = vmatprep.subr.mxu0 0.0
  %2140 = vmatpush2.msra.mxu0 %v1910
  %2141 = vmatprep.subr.mxu0 0.0
  %2142 = vmatpush2.msra.mxu0 %v1909
  %2143 = vmatprep.subr.mxu0 0.0
  %2144 = vmatpush2.msra.mxu0 %v1908
  %2145 = vmatprep.subr.mxu0 0.0
  %2146 = vmatpush2.msra.mxu0 %v1907
  %2147 = vmatprep.subr.mxu0 0.0
  %2148 = vmatpush2.msra.mxu0 %v1906
  %2149 = vmatprep.subr.mxu0 0.0
  %2150 = vmatpush2.msra.mxu0 %v1905
  %2151 = vmatprep.subr.mxu0 0.0
  %2152 = vmatpush2.msra.mxu0 %v1904
  %2153 = vmatprep.subr.mxu0 0.0
  %2154 = vmatpush2.msra.mxu0 %v1903
  %2155 = vmatprep.mubr.f32.mxu0 %v1819
  %2156 = vmatmul.mubr.f32.gmra.mxu0 %v1818
  %v2157 = vpop.f32.mrf.mxu0
  %v2158 = vadd.f32 %v2088, %v2157
  %v2159 = vpop.f32.mrf.mxu0
  %2160 = vdwg.mxu0
  %2161 = vmatprep.subr.mxu0 0.0
  %2162 = vmatpush1.msra.mxu0 %v1934
  %2163 = vmatprep.subr.mxu0 0.0
  %2164 = vmatpush1.msra.mxu0 %v1933
  %2165 = vmatprep.subr.mxu0 0.0
  %2166 = vmatpush1.msra.mxu0 %v1932
  %2167 = vmatprep.subr.mxu0 0.0
  %2168 = vmatpush1.msra.mxu0 %v1931
  %2169 = vmatprep.subr.mxu0 0.0
  %2170 = vmatpush1.msra.mxu0 %v1930
  %2171 = vmatprep.subr.mxu0 0.0
  %2172 = vmatpush1.msra.mxu0 %v1929
  %2173 = vmatprep.subr.mxu0 0.0
  %2174 = vmatpush1.msra.mxu0 %v1928
  %2175 = vmatprep.subr.mxu0 0.0
  %2176 = vmatpush1.msra.mxu0 %v1927
  %2177 = vmatprep.subr.mxu0 0.0
  %2178 = vmatpush1.msra.mxu0 %v1926
  %2179 = vmatprep.subr.mxu0 0.0
  %2180 = vmatpush1.msra.mxu0 %v1925
  %2181 = vmatprep.subr.mxu0 0.0
  %2182 = vmatpush1.msra.mxu0 %v1924
  %2183 = vmatprep.subr.mxu0 0.0
  %2184 = vmatpush1.msra.mxu0 %v1923
  %2185 = vmatprep.subr.mxu0 0.0
  %2186 = vmatpush1.msra.mxu0 %v1922
  %2187 = vmatprep.subr.mxu0 0.0
  %2188 = vmatpush1.msra.mxu0 %v1921
  %2189 = vmatprep.subr.mxu0 0.0
  %2190 = vmatpush1.msra.mxu0 %v1920
  %2191 = vmatprep.subr.mxu0 0.0
  %2192 = vmatpush1.msra.mxu0 %v1919
  %2193 = vmatprep.subr.mxu0 0.0
  %2194 = vmatpush2.msra.mxu0 %v1950
  %2195 = vmatprep.subr.mxu0 0.0
  %2196 = vmatpush2.msra.mxu0 %v1949
  %2197 = vmatprep.subr.mxu0 0.0
  %2198 = vmatpush2.msra.mxu0 %v1948
  %2199 = vmatprep.subr.mxu0 0.0
  %2200 = vmatpush2.msra.mxu0 %v1947
  %2201 = vmatprep.subr.mxu0 0.0
  %2202 = vmatpush2.msra.mxu0 %v1946
  %2203 = vmatprep.subr.mxu0 0.0
  %2204 = vmatpush2.msra.mxu0 %v1945
  %2205 = vmatprep.subr.mxu0 0.0
  %2206 = vmatpush2.msra.mxu0 %v1944
  %2207 = vmatprep.subr.mxu0 0.0
  %2208 = vmatpush2.msra.mxu0 %v1943
  %2209 = vmatprep.subr.mxu0 0.0
  %2210 = vmatpush2.msra.mxu0 %v1942
  %2211 = vmatprep.subr.mxu0 0.0
  %2212 = vmatpush2.msra.mxu0 %v1941
  %2213 = vmatprep.subr.mxu0 0.0
  %2214 = vmatpush2.msra.mxu0 %v1940
  %2215 = vmatprep.subr.mxu0 0.0
  %2216 = vmatpush2.msra.mxu0 %v1939
  %2217 = vmatprep.subr.mxu0 0.0
  %2218 = vmatpush2.msra.mxu0 %v1938
  %2219 = vmatprep.subr.mxu0 0.0
  %2220 = vmatpush2.msra.mxu0 %v1937
  %2221 = vmatprep.subr.mxu0 0.0
  %2222 = vmatpush2.msra.mxu0 %v1936
  %2223 = vmatprep.subr.mxu0 0.0
  %2224 = vmatpush2.msra.mxu0 %v1935
  %2225 = vmatprep.mubr.f32.mxu0 %v1821
  %2226 = vmatmul.mubr.f32.gmra.mxu0 %v1820
  %v2227 = vpop.f32.mrf.mxu0
  %v2228 = vadd.f32 %v2158, %v2227
  %v2229 = vpop.f32.mrf.mxu0
  %2230 = vdwg.mxu0
  %v2231 = vadd.f32 %v1822, %v2228
  %s2232 = scalar_lea.vmem %s3, 1024
  %v2233 = vld [vmem:[%s2232] sm:$0xff]
  %v2234 = vld [vmem:[%s2232 + $0x8] sm:$0xff]
  %v2235 = vld [vmem:[%s2232 + $0x10] sm:$0xff]
  %v2236 = vld [vmem:[%s2232 + $0x18] sm:$0xff]
  %v2237 = vld [vmem:[%s2232 + $0x20] sm:$0xff]
  %v2238 = vld [vmem:[%s2232 + $0x28] sm:$0xff]
  %v2239 = vld [vmem:[%s2232 + $0x30] sm:$0xff]
  %v2240 = vld [vmem:[%s2232 + $0x38] sm:$0xff]
  %v2241 = vld [vmem:[%s2232 + $0x40] sm:$0xff]
  %v2242 = vld [vmem:[%s2232 + $0x48] sm:$0xff]
  %v2243 = vld [vmem:[%s2232 + $0x50] sm:$0xff]
  %v2244 = vld [vmem:[%s2232 + $0x58] sm:$0xff]
  %v2245 = vld [vmem:[%s2232 + $0x60] sm:$0xff]
  %v2246 = vld [vmem:[%s2232 + $0x68] sm:$0xff]
  %v2247 = vld [vmem:[%s2232 + $0x70] sm:$0xff]
  %v2248 = vld [vmem:[%s2232 + $0x78] sm:$0xff]
  %v2249 = vld [vmem:[%s2232 + $0x80] sm:$0xff]
  %v2250 = vld [vmem:[%s2232 + $0x88] sm:$0xff]
  %v2251 = vld [vmem:[%s2232 + $0x90] sm:$0xff]
  %v2252 = vld [vmem:[%s2232 + $0x98] sm:$0xff]
  %v2253 = vld [vmem:[%s2232 + $0xa0] sm:$0xff]
  %v2254 = vld [vmem:[%s2232 + $0xa8] sm:$0xff]
  %v2255 = vld [vmem:[%s2232 + $0xb0] sm:$0xff]
  %v2256 = vld [vmem:[%s2232 + $0xb8] sm:$0xff]
  %v2257 = vld [vmem:[%s2232 + $0xc0] sm:$0xff]
  %v2258 = vld [vmem:[%s2232 + $0xc8] sm:$0xff]
  %v2259 = vld [vmem:[%s2232 + $0xd0] sm:$0xff]
  %v2260 = vld [vmem:[%s2232 + $0xd8] sm:$0xff]
  %v2261 = vld [vmem:[%s2232 + $0xe0] sm:$0xff]
  %v2262 = vld [vmem:[%s2232 + $0xe8] sm:$0xff]
  %v2263 = vld [vmem:[%s2232 + $0xf0] sm:$0xff]
  %v2264 = vld [vmem:[%s2232 + $0xf8] sm:$0xff]
  %v2265 = vld [vmem:[%s2232 + $0x100] sm:$0xff]
  %v2266 = vld [vmem:[%s2232 + $0x108] sm:$0xff]
  %v2267 = vld [vmem:[%s2232 + $0x110] sm:$0xff]
  %v2268 = vld [vmem:[%s2232 + $0x118] sm:$0xff]
  %v2269 = vld [vmem:[%s2232 + $0x120] sm:$0xff]
  %v2270 = vld [vmem:[%s2232 + $0x128] sm:$0xff]
  %v2271 = vld [vmem:[%s2232 + $0x130] sm:$0xff]
  %v2272 = vld [vmem:[%s2232 + $0x138] sm:$0xff]
  %v2273 = vld [vmem:[%s2232 + $0x140] sm:$0xff]
  %v2274 = vld [vmem:[%s2232 + $0x148] sm:$0xff]
  %v2275 = vld [vmem:[%s2232 + $0x150] sm:$0xff]
  %v2276 = vld [vmem:[%s2232 + $0x158] sm:$0xff]
  %v2277 = vld [vmem:[%s2232 + $0x160] sm:$0xff]
  %v2278 = vld [vmem:[%s2232 + $0x168] sm:$0xff]
  %v2279 = vld [vmem:[%s2232 + $0x170] sm:$0xff]
  %v2280 = vld [vmem:[%s2232 + $0x178] sm:$0xff]
  %v2281 = vld [vmem:[%s2232 + $0x180] sm:$0xff]
  %v2282 = vld [vmem:[%s2232 + $0x188] sm:$0xff]
  %v2283 = vld [vmem:[%s2232 + $0x190] sm:$0xff]
  %v2284 = vld [vmem:[%s2232 + $0x198] sm:$0xff]
  %v2285 = vld [vmem:[%s2232 + $0x1a0] sm:$0xff]
  %v2286 = vld [vmem:[%s2232 + $0x1a8] sm:$0xff]
  %v2287 = vld [vmem:[%s2232 + $0x1b0] sm:$0xff]
  %v2288 = vld [vmem:[%s2232 + $0x1b8] sm:$0xff]
  %v2289 = vld [vmem:[%s2232 + $0x1c0] sm:$0xff]
  %v2290 = vld [vmem:[%s2232 + $0x1c8] sm:$0xff]
  %v2291 = vld [vmem:[%s2232 + $0x1d0] sm:$0xff]
  %v2292 = vld [vmem:[%s2232 + $0x1d8] sm:$0xff]
  %v2293 = vld [vmem:[%s2232 + $0x1e0] sm:$0xff]
  %v2294 = vld [vmem:[%s2232 + $0x1e8] sm:$0xff]
  %v2295 = vld [vmem:[%s2232 + $0x1f0] sm:$0xff]
  %v2296 = vld [vmem:[%s2232 + $0x1f8] sm:$0xff]
  %v2297 = vld [vmem:[%s2232 + $0x200] sm:$0xff]
  %v2298 = vld [vmem:[%s2232 + $0x208] sm:$0xff]
  %v2299 = vld [vmem:[%s2232 + $0x210] sm:$0xff]
  %v2300 = vld [vmem:[%s2232 + $0x218] sm:$0xff]
  %v2301 = vld [vmem:[%s2232 + $0x220] sm:$0xff]
  %v2302 = vld [vmem:[%s2232 + $0x228] sm:$0xff]
  %v2303 = vld [vmem:[%s2232 + $0x230] sm:$0xff]
  %v2304 = vld [vmem:[%s2232 + $0x238] sm:$0xff]
  %v2305 = vld [vmem:[%s2232 + $0x240] sm:$0xff]
  %v2306 = vld [vmem:[%s2232 + $0x248] sm:$0xff]
  %v2307 = vld [vmem:[%s2232 + $0x250] sm:$0xff]
  %v2308 = vld [vmem:[%s2232 + $0x258] sm:$0xff]
  %v2309 = vld [vmem:[%s2232 + $0x260] sm:$0xff]
  %v2310 = vld [vmem:[%s2232 + $0x268] sm:$0xff]
  %v2311 = vld [vmem:[%s2232 + $0x270] sm:$0xff]
  %v2312 = vld [vmem:[%s2232 + $0x278] sm:$0xff]
  %v2313 = vld [vmem:[%s2232 + $0x280] sm:$0xff]
  %v2314 = vld [vmem:[%s2232 + $0x288] sm:$0xff]
  %v2315 = vld [vmem:[%s2232 + $0x290] sm:$0xff]
  %v2316 = vld [vmem:[%s2232 + $0x298] sm:$0xff]
  %v2317 = vld [vmem:[%s2232 + $0x2a0] sm:$0xff]
  %v2318 = vld [vmem:[%s2232 + $0x2a8] sm:$0xff]
  %v2319 = vld [vmem:[%s2232 + $0x2b0] sm:$0xff]
  %v2320 = vld [vmem:[%s2232 + $0x2b8] sm:$0xff]
  %v2321 = vld [vmem:[%s2232 + $0x2c0] sm:$0xff]
  %v2322 = vld [vmem:[%s2232 + $0x2c8] sm:$0xff]
  %v2323 = vld [vmem:[%s2232 + $0x2d0] sm:$0xff]
  %v2324 = vld [vmem:[%s2232 + $0x2d8] sm:$0xff]
  %v2325 = vld [vmem:[%s2232 + $0x2e0] sm:$0xff]
  %v2326 = vld [vmem:[%s2232 + $0x2e8] sm:$0xff]
  %v2327 = vld [vmem:[%s2232 + $0x2f0] sm:$0xff]
  %v2328 = vld [vmem:[%s2232 + $0x2f8] sm:$0xff]
  %v2329 = vld [vmem:[%s2232 + $0x300] sm:$0xff]
  %v2330 = vld [vmem:[%s2232 + $0x308] sm:$0xff]
  %v2331 = vld [vmem:[%s2232 + $0x310] sm:$0xff]
  %v2332 = vld [vmem:[%s2232 + $0x318] sm:$0xff]
  %v2333 = vld [vmem:[%s2232 + $0x320] sm:$0xff]
  %v2334 = vld [vmem:[%s2232 + $0x328] sm:$0xff]
  %v2335 = vld [vmem:[%s2232 + $0x330] sm:$0xff]
  %v2336 = vld [vmem:[%s2232 + $0x338] sm:$0xff]
  %v2337 = vld [vmem:[%s2232 + $0x340] sm:$0xff]
  %v2338 = vld [vmem:[%s2232 + $0x348] sm:$0xff]
  %v2339 = vld [vmem:[%s2232 + $0x350] sm:$0xff]
  %v2340 = vld [vmem:[%s2232 + $0x358] sm:$0xff]
  %v2341 = vld [vmem:[%s2232 + $0x360] sm:$0xff]
  %v2342 = vld [vmem:[%s2232 + $0x368] sm:$0xff]
  %v2343 = vld [vmem:[%s2232 + $0x370] sm:$0xff]
  %v2344 = vld [vmem:[%s2232 + $0x378] sm:$0xff]
  %v2345 = vld [vmem:[%s2232 + $0x380] sm:$0xff]
  %v2346 = vld [vmem:[%s2232 + $0x388] sm:$0xff]
  %v2347 = vld [vmem:[%s2232 + $0x390] sm:$0xff]
  %v2348 = vld [vmem:[%s2232 + $0x398] sm:$0xff]
  %v2349 = vld [vmem:[%s2232 + $0x3a0] sm:$0xff]
  %v2350 = vld [vmem:[%s2232 + $0x3a8] sm:$0xff]
  %v2351 = vld [vmem:[%s2232 + $0x3b0] sm:$0xff]
  %v2352 = vld [vmem:[%s2232 + $0x3b8] sm:$0xff]
  %v2353 = vld [vmem:[%s2232 + $0x3c0] sm:$0xff]
  %v2354 = vld [vmem:[%s2232 + $0x3c8] sm:$0xff]
  %v2355 = vld [vmem:[%s2232 + $0x3d0] sm:$0xff]
  %v2356 = vld [vmem:[%s2232 + $0x3d8] sm:$0xff]
  %v2357 = vld [vmem:[%s2232 + $0x3e0] sm:$0xff]
  %v2358 = vld [vmem:[%s2232 + $0x3e8] sm:$0xff]
  %v2359 = vld [vmem:[%s2232 + $0x3f0] sm:$0xff]
  %v2360 = vld [vmem:[%s2232 + $0x3f8] sm:$0xff]
  %v2369 = vrot.slane %v1814, 1
  %v2370 = vrot.slane %v1815, 1
  %v2371 = vrot.slane %v1816, 1
  %v2372 = vrot.slane %v1817, 1
  %v2373 = vrot.slane %v1818, 1
  %v2374 = vrot.slane %v1819, 1
  %v2375 = vrot.slane %v1820, 1
  %v2376 = vrot.slane %v1821, 1
  %2385 = vmatprep.subr.mxu0 0.0
  %2386 = vmatpush1.msra.mxu0 %v2248
  %2387 = vmatprep.subr.mxu0 0.0
  %2388 = vmatpush1.msra.mxu0 %v2247
  %2389 = vmatprep.subr.mxu0 0.0
  %2390 = vmatpush1.msra.mxu0 %v2246
  %2391 = vmatprep.subr.mxu0 0.0
  %2392 = vmatpush1.msra.mxu0 %v2245
  %2393 = vmatprep.subr.mxu0 0.0
  %2394 = vmatpush1.msra.mxu0 %v2244
  %2395 = vmatprep.subr.mxu0 0.0
  %2396 = vmatpush1.msra.mxu0 %v2243
  %2397 = vmatprep.subr.mxu0 0.0
  %2398 = vmatpush1.msra.mxu0 %v2242
  %2399 = vmatprep.subr.mxu0 0.0
  %2400 = vmatpush1.msra.mxu0 %v2241
  %2401 = vmatprep.subr.mxu0 0.0
  %2402 = vmatpush1.msra.mxu0 %v2240
  %2403 = vmatprep.subr.mxu0 0.0
  %2404 = vmatpush1.msra.mxu0 %v2239
  %2405 = vmatprep.subr.mxu0 0.0
  %2406 = vmatpush1.msra.mxu0 %v2238
  %2407 = vmatprep.subr.mxu0 0.0
  %2408 = vmatpush1.msra.mxu0 %v2237
  %2409 = vmatprep.subr.mxu0 0.0
  %2410 = vmatpush1.msra.mxu0 %v2236
  %2411 = vmatprep.subr.mxu0 0.0
  %2412 = vmatpush1.msra.mxu0 %v2235
  %2413 = vmatprep.subr.mxu0 0.0
  %2414 = vmatpush1.msra.mxu0 %v2234
  %2415 = vmatprep.subr.mxu0 0.0
  %2416 = vmatpush1.msra.mxu0 %v2233
  %2417 = vmatprep.subr.mxu0 0.0
  %2418 = vmatpush2.msra.mxu0 %v2264
  %2419 = vmatprep.subr.mxu0 0.0
  %2420 = vmatpush2.msra.mxu0 %v2263
  %2421 = vmatprep.subr.mxu0 0.0
  %2422 = vmatpush2.msra.mxu0 %v2262
  %2423 = vmatprep.subr.mxu0 0.0
  %2424 = vmatpush2.msra.mxu0 %v2261
  %2425 = vmatprep.subr.mxu0 0.0
  %2426 = vmatpush2.msra.mxu0 %v2260
  %2427 = vmatprep.subr.mxu0 0.0
  %2428 = vmatpush2.msra.mxu0 %v2259
  %2429 = vmatprep.subr.mxu0 0.0
  %2430 = vmatpush2.msra.mxu0 %v2258
  %2431 = vmatprep.subr.mxu0 0.0
  %2432 = vmatpush2.msra.mxu0 %v2257
  %2433 = vmatprep.subr.mxu0 0.0
  %2434 = vmatpush2.msra.mxu0 %v2256
  %2435 = vmatprep.subr.mxu0 0.0
  %2436 = vmatpush2.msra.mxu0 %v2255
  %2437 = vmatprep.subr.mxu0 0.0
  %2438 = vmatpush2.msra.mxu0 %v2254
  %2439 = vmatprep.subr.mxu0 0.0
  %2440 = vmatpush2.msra.mxu0 %v2253
  %2441 = vmatprep.subr.mxu0 0.0
  %2442 = vmatpush2.msra.mxu0 %v2252
  %2443 = vmatprep.subr.mxu0 0.0
  %2444 = vmatpush2.msra.mxu0 %v2251
  %2445 = vmatprep.subr.mxu0 0.0
  %2446 = vmatpush2.msra.mxu0 %v2250
  %2447 = vmatprep.subr.mxu0 0.0
  %2448 = vmatpush2.msra.mxu0 %v2249
  %2449 = vmatprep.mubr.f32.mxu0 %v2370
  %2450 = vmatmul.mubr.f32.gmra.mxu0 %v2369
  %v2451 = vpop.f32.mrf.mxu0
  %v2452 = vadd.f32 0.0, %v2451
  %v2453 = vpop.f32.mrf.mxu0
  %2454 = vdwg.mxu0
  %2455 = vmatprep.subr.mxu0 0.0
  %2456 = vmatpush1.msra.mxu0 %v2280
  %2457 = vmatprep.subr.mxu0 0.0
  %2458 = vmatpush1.msra.mxu0 %v2279
  %2459 = vmatprep.subr.mxu0 0.0
  %2460 = vmatpush1.msra.mxu0 %v2278
  %2461 = vmatprep.subr.mxu0 0.0
  %2462 = vmatpush1.msra.mxu0 %v2277
  %2463 = vmatprep.subr.mxu0 0.0
  %2464 = vmatpush1.msra.mxu0 %v2276
  %2465 = vmatprep.subr.mxu0 0.0
  %2466 = vmatpush1.msra.mxu0 %v2275
  %2467 = vmatprep.subr.mxu0 0.0
  %2468 = vmatpush1.msra.mxu0 %v2274
  %2469 = vmatprep.subr.mxu0 0.0
  %2470 = vmatpush1.msra.mxu0 %v2273
  %2471 = vmatprep.subr.mxu0 0.0
  %2472 = vmatpush1.msra.mxu0 %v2272
  %2473 = vmatprep.subr.mxu0 0.0
  %2474 = vmatpush1.msra.mxu0 %v2271
  %2475 = vmatprep.subr.mxu0 0.0
  %2476 = vmatpush1.msra.mxu0 %v2270
  %2477 = vmatprep.subr.mxu0 0.0
  %2478 = vmatpush1.msra.mxu0 %v2269
  %2479 = vmatprep.subr.mxu0 0.0
  %2480 = vmatpush1.msra.mxu0 %v2268
  %2481 = vmatprep.subr.mxu0 0.0
  %2482 = vmatpush1.msra.mxu0 %v2267
  %2483 = vmatprep.subr.mxu0 0.0
  %2484 = vmatpush1.msra.mxu0 %v2266
  %2485 = vmatprep.subr.mxu0 0.0
  %2486 = vmatpush1.msra.mxu0 %v2265
  %2487 = vmatprep.subr.mxu0 0.0
  %2488 = vmatpush2.msra.mxu0 %v2296
  %2489 = vmatprep.subr.mxu0 0.0
  %2490 = vmatpush2.msra.mxu0 %v2295
  %2491 = vmatprep.subr.mxu0 0.0
  %2492 = vmatpush2.msra.mxu0 %v2294
  %2493 = vmatprep.subr.mxu0 0.0
  %2494 = vmatpush2.msra.mxu0 %v2293
  %2495 = vmatprep.subr.mxu0 0.0
  %2496 = vmatpush2.msra.mxu0 %v2292
  %2497 = vmatprep.subr.mxu0 0.0
  %2498 = vmatpush2.msra.mxu0 %v2291
  %2499 = vmatprep.subr.mxu0 0.0
  %2500 = vmatpush2.msra.mxu0 %v2290
  %2501 = vmatprep.subr.mxu0 0.0
  %2502 = vmatpush2.msra.mxu0 %v2289
  %2503 = vmatprep.subr.mxu0 0.0
  %2504 = vmatpush2.msra.mxu0 %v2288
  %2505 = vmatprep.subr.mxu0 0.0
  %2506 = vmatpush2.msra.mxu0 %v2287
  %2507 = vmatprep.subr.mxu0 0.0
  %2508 = vmatpush2.msra.mxu0 %v2286
  %2509 = vmatprep.subr.mxu0 0.0
  %2510 = vmatpush2.msra.mxu0 %v2285
  %2511 = vmatprep.subr.mxu0 0.0
  %2512 = vmatpush2.msra.mxu0 %v2284
  %2513 = vmatprep.subr.mxu0 0.0
  %2514 = vmatpush2.msra.mxu0 %v2283
  %2515 = vmatprep.subr.mxu0 0.0
  %2516 = vmatpush2.msra.mxu0 %v2282
  %2517 = vmatprep.subr.mxu0 0.0
  %2518 = vmatpush2.msra.mxu0 %v2281
  %2519 = vmatprep.mubr.f32.mxu0 %v2372
  %2520 = vmatmul.mubr.f32.gmra.mxu0 %v2371
  %v2521 = vpop.f32.mrf.mxu0
  %v2522 = vadd.f32 %v2452, %v2521
  %v2523 = vpop.f32.mrf.mxu0
  %2524 = vdwg.mxu0
  %2525 = vmatprep.subr.mxu0 0.0
  %2526 = vmatpush1.msra.mxu0 %v2312
  %2527 = vmatprep.subr.mxu0 0.0
  %2528 = vmatpush1.msra.mxu0 %v2311
  %2529 = vmatprep.subr.mxu0 0.0
  %2530 = vmatpush1.msra.mxu0 %v2310
  %2531 = vmatprep.subr.mxu0 0.0
  %2532 = vmatpush1.msra.mxu0 %v2309
  %2533 = vmatprep.subr.mxu0 0.0
  %2534 = vmatpush1.msra.mxu0 %v2308
  %2535 = vmatprep.subr.mxu0 0.0
  %2536 = vmatpush1.msra.mxu0 %v2307
  %2537 = vmatprep.subr.mxu0 0.0
  %2538 = vmatpush1.msra.mxu0 %v2306
  %2539 = vmatprep.subr.mxu0 0.0
  %2540 = vmatpush1.msra.mxu0 %v2305
  %2541 = vmatprep.subr.mxu0 0.0
  %2542 = vmatpush1.msra.mxu0 %v2304
  %2543 = vmatprep.subr.mxu0 0.0
  %2544 = vmatpush1.msra.mxu0 %v2303
  %2545 = vmatprep.subr.mxu0 0.0
  %2546 = vmatpush1.msra.mxu0 %v2302
  %2547 = vmatprep.subr.mxu0 0.0
  %2548 = vmatpush1.msra.mxu0 %v2301
  %2549 = vmatprep.subr.mxu0 0.0
  %2550 = vmatpush1.msra.mxu0 %v2300
  %2551 = vmatprep.subr.mxu0 0.0
  %2552 = vmatpush1.msra.mxu0 %v2299
  %2553 = vmatprep.subr.mxu0 0.0
  %2554 = vmatpush1.msra.mxu0 %v2298
  %2555 = vmatprep.subr.mxu0 0.0
  %2556 = vmatpush1.msra.mxu0 %v2297
  %2557 = vmatprep.subr.mxu0 0.0
  %2558 = vmatpush2.msra.mxu0 %v2328
  %2559 = vmatprep.subr.mxu0 0.0
  %2560 = vmatpush2.msra.mxu0 %v2327
  %2561 = vmatprep.subr.mxu0 0.0
  %2562 = vmatpush2.msra.mxu0 %v2326
  %2563 = vmatprep.subr.mxu0 0.0
  %2564 = vmatpush2.msra.mxu0 %v2325
  %2565 = vmatprep.subr.mxu0 0.0
  %2566 = vmatpush2.msra.mxu0 %v2324
  %2567 = vmatprep.subr.mxu0 0.0
  %2568 = vmatpush2.msra.mxu0 %v2323
  %2569 = vmatprep.subr.mxu0 0.0
  %2570 = vmatpush2.msra.mxu0 %v2322
  %2571 = vmatprep.subr.mxu0 0.0
  %2572 = vmatpush2.msra.mxu0 %v2321
  %2573 = vmatprep.subr.mxu0 0.0
  %2574 = vmatpush2.msra.mxu0 %v2320
  %2575 = vmatprep.subr.mxu0 0.0
  %2576 = vmatpush2.msra.mxu0 %v2319
  %2577 = vmatprep.subr.mxu0 0.0
  %2578 = vmatpush2.msra.mxu0 %v2318
  %2579 = vmatprep.subr.mxu0 0.0
  %2580 = vmatpush2.msra.mxu0 %v2317
  %2581 = vmatprep.subr.mxu0 0.0
  %2582 = vmatpush2.msra.mxu0 %v2316
  %2583 = vmatprep.subr.mxu0 0.0
  %2584 = vmatpush2.msra.mxu0 %v2315
  %2585 = vmatprep.subr.mxu0 0.0
  %2586 = vmatpush2.msra.mxu0 %v2314
  %2587 = vmatprep.subr.mxu0 0.0
  %2588 = vmatpush2.msra.mxu0 %v2313
  %2589 = vmatprep.mubr.f32.mxu0 %v2374
  %2590 = vmatmul.mubr.f32.gmra.mxu0 %v2373
  %v2591 = vpop.f32.mrf.mxu0
  %v2592 = vadd.f32 %v2522, %v2591
  %v2593 = vpop.f32.mrf.mxu0
  %2594 = vdwg.mxu0
  %2595 = vmatprep.subr.mxu0 0.0
  %2596 = vmatpush1.msra.mxu0 %v2344
  %2597 = vmatprep.subr.mxu0 0.0
  %2598 = vmatpush1.msra.mxu0 %v2343
  %2599 = vmatprep.subr.mxu0 0.0
  %2600 = vmatpush1.msra.mxu0 %v2342
  %2601 = vmatprep.subr.mxu0 0.0
  %2602 = vmatpush1.msra.mxu0 %v2341
  %2603 = vmatprep.subr.mxu0 0.0
  %2604 = vmatpush1.msra.mxu0 %v2340
  %2605 = vmatprep.subr.mxu0 0.0
  %2606 = vmatpush1.msra.mxu0 %v2339
  %2607 = vmatprep.subr.mxu0 0.0
  %2608 = vmatpush1.msra.mxu0 %v2338
  %2609 = vmatprep.subr.mxu0 0.0
  %2610 = vmatpush1.msra.mxu0 %v2337
  %2611 = vmatprep.subr.mxu0 0.0
  %2612 = vmatpush1.msra.mxu0 %v2336
  %2613 = vmatprep.subr.mxu0 0.0
  %2614 = vmatpush1.msra.mxu0 %v2335
  %2615 = vmatprep.subr.mxu0 0.0
  %2616 = vmatpush1.msra.mxu0 %v2334
  %2617 = vmatprep.subr.mxu0 0.0
  %2618 = vmatpush1.msra.mxu0 %v2333
  %2619 = vmatprep.subr.mxu0 0.0
  %2620 = vmatpush1.msra.mxu0 %v2332
  %2621 = vmatprep.subr.mxu0 0.0
  %2622 = vmatpush1.msra.mxu0 %v2331
  %2623 = vmatprep.subr.mxu0 0.0
  %2624 = vmatpush1.msra.mxu0 %v2330
  %2625 = vmatprep.subr.mxu0 0.0
  %2626 = vmatpush1.msra.mxu0 %v2329
  %2627 = vmatprep.subr.mxu0 0.0
  %2628 = vmatpush2.msra.mxu0 %v2360
  %2629 = vmatprep.subr.mxu0 0.0
  %2630 = vmatpush2.msra.mxu0 %v2359
  %2631 = vmatprep.subr.mxu0 0.0
  %2632 = vmatpush2.msra.mxu0 %v2358
  %2633 = vmatprep.subr.mxu0 0.0
  %2634 = vmatpush2.msra.mxu0 %v2357
  %2635 = vmatprep.subr.mxu0 0.0
  %2636 = vmatpush2.msra.mxu0 %v2356
  %2637 = vmatprep.subr.mxu0 0.0
  %2638 = vmatpush2.msra.mxu0 %v2355
  %2639 = vmatprep.subr.mxu0 0.0
  %2640 = vmatpush2.msra.mxu0 %v2354
  %2641 = vmatprep.subr.mxu0 0.0
  %2642 = vmatpush2.msra.mxu0 %v2353
  %2643 = vmatprep.subr.mxu0 0.0
  %2644 = vmatpush2.msra.mxu0 %v2352
  %2645 = vmatprep.subr.mxu0 0.0
  %2646 = vmatpush2.msra.mxu0 %v2351
  %2647 = vmatprep.subr.mxu0 0.0
  %2648 = vmatpush2.msra.mxu0 %v2350
  %2649 = vmatprep.subr.mxu0 0.0
  %2650 = vmatpush2.msra.mxu0 %v2349
  %2651 = vmatprep.subr.mxu0 0.0
  %2652 = vmatpush2.msra.mxu0 %v2348
  %2653 = vmatprep.subr.mxu0 0.0
  %2654 = vmatpush2.msra.mxu0 %v2347
  %2655 = vmatprep.subr.mxu0 0.0
  %2656 = vmatpush2.msra.mxu0 %v2346
  %2657 = vmatprep.subr.mxu0 0.0
  %2658 = vmatpush2.msra.mxu0 %v2345
  %2659 = vmatprep.mubr.f32.mxu0 %v2376
  %2660 = vmatmul.mubr.f32.gmra.mxu0 %v2375
  %v2661 = vpop.f32.mrf.mxu0
  %v2662 = vadd.f32 %v2592, %v2661
  %v2663 = vpop.f32.mrf.mxu0
  %2664 = vdwg.mxu0
  %v2665 = vadd.f32 %v2231, %v2662
  %s2666 = scalar_lea.vmem %s3, 2048
  %v2667 = vld [vmem:[%s2666] sm:$0xff]
  %v2668 = vld [vmem:[%s2666 + $0x8] sm:$0xff]
  %v2669 = vld [vmem:[%s2666 + $0x10] sm:$0xff]
  %v2670 = vld [vmem:[%s2666 + $0x18] sm:$0xff]
  %v2671 = vld [vmem:[%s2666 + $0x20] sm:$0xff]
  %v2672 = vld [vmem:[%s2666 + $0x28] sm:$0xff]
  %v2673 = vld [vmem:[%s2666 + $0x30] sm:$0xff]
  %v2674 = vld [vmem:[%s2666 + $0x38] sm:$0xff]
  %v2675 = vld [vmem:[%s2666 + $0x40] sm:$0xff]
  %v2676 = vld [vmem:[%s2666 + $0x48] sm:$0xff]
  %v2677 = vld [vmem:[%s2666 + $0x50] sm:$0xff]
  %v2678 = vld [vmem:[%s2666 + $0x58] sm:$0xff]
  %v2679 = vld [vmem:[%s2666 + $0x60] sm:$0xff]
  %v2680 = vld [vmem:[%s2666 + $0x68] sm:$0xff]
  %v2681 = vld [vmem:[%s2666 + $0x70] sm:$0xff]
  %v2682 = vld [vmem:[%s2666 + $0x78] sm:$0xff]
  %v2683 = vld [vmem:[%s2666 + $0x80] sm:$0xff]
  %v2684 = vld [vmem:[%s2666 + $0x88] sm:$0xff]
  %v2685 = vld [vmem:[%s2666 + $0x90] sm:$0xff]
  %v2686 = vld [vmem:[%s2666 + $0x98] sm:$0xff]
  %v2687 = vld [vmem:[%s2666 + $0xa0] sm:$0xff]
  %v2688 = vld [vmem:[%s2666 + $0xa8] sm:$0xff]
  %v2689 = vld [vmem:[%s2666 + $0xb0] sm:$0xff]
  %v2690 = vld [vmem:[%s2666 + $0xb8] sm:$0xff]
  %v2691 = vld [vmem:[%s2666 + $0xc0] sm:$0xff]
  %v2692 = vld [vmem:[%s2666 + $0xc8] sm:$0xff]
  %v2693 = vld [vmem:[%s2666 + $0xd0] sm:$0xff]
  %v2694 = vld [vmem:[%s2666 + $0xd8] sm:$0xff]
  %v2695 = vld [vmem:[%s2666 + $0xe0] sm:$0xff]
  %v2696 = vld [vmem:[%s2666 + $0xe8] sm:$0xff]
  %v2697 = vld [vmem:[%s2666 + $0xf0] sm:$0xff]
  %v2698 = vld [vmem:[%s2666 + $0xf8] sm:$0xff]
  %v2699 = vld [vmem:[%s2666 + $0x100] sm:$0xff]
  %v2700 = vld [vmem:[%s2666 + $0x108] sm:$0xff]
  %v2701 = vld [vmem:[%s2666 + $0x110] sm:$0xff]
  %v2702 = vld [vmem:[%s2666 + $0x118] sm:$0xff]
  %v2703 = vld [vmem:[%s2666 + $0x120] sm:$0xff]
  %v2704 = vld [vmem:[%s2666 + $0x128] sm:$0xff]
  %v2705 = vld [vmem:[%s2666 + $0x130] sm:$0xff]
  %v2706 = vld [vmem:[%s2666 + $0x138] sm:$0xff]
  %v2707 = vld [vmem:[%s2666 + $0x140] sm:$0xff]
  %v2708 = vld [vmem:[%s2666 + $0x148] sm:$0xff]
  %v2709 = vld [vmem:[%s2666 + $0x150] sm:$0xff]
  %v2710 = vld [vmem:[%s2666 + $0x158] sm:$0xff]
  %v2711 = vld [vmem:[%s2666 + $0x160] sm:$0xff]
  %v2712 = vld [vmem:[%s2666 + $0x168] sm:$0xff]
  %v2713 = vld [vmem:[%s2666 + $0x170] sm:$0xff]
  %v2714 = vld [vmem:[%s2666 + $0x178] sm:$0xff]
  %v2715 = vld [vmem:[%s2666 + $0x180] sm:$0xff]
  %v2716 = vld [vmem:[%s2666 + $0x188] sm:$0xff]
  %v2717 = vld [vmem:[%s2666 + $0x190] sm:$0xff]
  %v2718 = vld [vmem:[%s2666 + $0x198] sm:$0xff]
  %v2719 = vld [vmem:[%s2666 + $0x1a0] sm:$0xff]
  %v2720 = vld [vmem:[%s2666 + $0x1a8] sm:$0xff]
  %v2721 = vld [vmem:[%s2666 + $0x1b0] sm:$0xff]
  %v2722 = vld [vmem:[%s2666 + $0x1b8] sm:$0xff]
  %v2723 = vld [vmem:[%s2666 + $0x1c0] sm:$0xff]
  %v2724 = vld [vmem:[%s2666 + $0x1c8] sm:$0xff]
  %v2725 = vld [vmem:[%s2666 + $0x1d0] sm:$0xff]
  %v2726 = vld [vmem:[%s2666 + $0x1d8] sm:$0xff]
  %v2727 = vld [vmem:[%s2666 + $0x1e0] sm:$0xff]
  %v2728 = vld [vmem:[%s2666 + $0x1e8] sm:$0xff]
  %v2729 = vld [vmem:[%s2666 + $0x1f0] sm:$0xff]
  %v2730 = vld [vmem:[%s2666 + $0x1f8] sm:$0xff]
  %v2731 = vld [vmem:[%s2666 + $0x200] sm:$0xff]
  %v2732 = vld [vmem:[%s2666 + $0x208] sm:$0xff]
  %v2733 = vld [vmem:[%s2666 + $0x210] sm:$0xff]
  %v2734 = vld [vmem:[%s2666 + $0x218] sm:$0xff]
  %v2735 = vld [vmem:[%s2666 + $0x220] sm:$0xff]
  %v2736 = vld [vmem:[%s2666 + $0x228] sm:$0xff]
  %v2737 = vld [vmem:[%s2666 + $0x230] sm:$0xff]
  %v2738 = vld [vmem:[%s2666 + $0x238] sm:$0xff]
  %v2739 = vld [vmem:[%s2666 + $0x240] sm:$0xff]
  %v2740 = vld [vmem:[%s2666 + $0x248] sm:$0xff]
  %v2741 = vld [vmem:[%s2666 + $0x250] sm:$0xff]
  %v2742 = vld [vmem:[%s2666 + $0x258] sm:$0xff]
  %v2743 = vld [vmem:[%s2666 + $0x260] sm:$0xff]
  %v2744 = vld [vmem:[%s2666 + $0x268] sm:$0xff]
  %v2745 = vld [vmem:[%s2666 + $0x270] sm:$0xff]
  %v2746 = vld [vmem:[%s2666 + $0x278] sm:$0xff]
  %v2747 = vld [vmem:[%s2666 + $0x280] sm:$0xff]
  %v2748 = vld [vmem:[%s2666 + $0x288] sm:$0xff]
  %v2749 = vld [vmem:[%s2666 + $0x290] sm:$0xff]
  %v2750 = vld [vmem:[%s2666 + $0x298] sm:$0xff]
  %v2751 = vld [vmem:[%s2666 + $0x2a0] sm:$0xff]
  %v2752 = vld [vmem:[%s2666 + $0x2a8] sm:$0xff]
  %v2753 = vld [vmem:[%s2666 + $0x2b0] sm:$0xff]
  %v2754 = vld [vmem:[%s2666 + $0x2b8] sm:$0xff]
  %v2755 = vld [vmem:[%s2666 + $0x2c0] sm:$0xff]
  %v2756 = vld [vmem:[%s2666 + $0x2c8] sm:$0xff]
  %v2757 = vld [vmem:[%s2666 + $0x2d0] sm:$0xff]
  %v2758 = vld [vmem:[%s2666 + $0x2d8] sm:$0xff]
  %v2759 = vld [vmem:[%s2666 + $0x2e0] sm:$0xff]
  %v2760 = vld [vmem:[%s2666 + $0x2e8] sm:$0xff]
  %v2761 = vld [vmem:[%s2666 + $0x2f0] sm:$0xff]
  %v2762 = vld [vmem:[%s2666 + $0x2f8] sm:$0xff]
  %v2763 = vld [vmem:[%s2666 + $0x300] sm:$0xff]
  %v2764 = vld [vmem:[%s2666 + $0x308] sm:$0xff]
  %v2765 = vld [vmem:[%s2666 + $0x310] sm:$0xff]
  %v2766 = vld [vmem:[%s2666 + $0x318] sm:$0xff]
  %v2767 = vld [vmem:[%s2666 + $0x320] sm:$0xff]
  %v2768 = vld [vmem:[%s2666 + $0x328] sm:$0xff]
  %v2769 = vld [vmem:[%s2666 + $0x330] sm:$0xff]
  %v2770 = vld [vmem:[%s2666 + $0x338] sm:$0xff]
  %v2771 = vld [vmem:[%s2666 + $0x340] sm:$0xff]
  %v2772 = vld [vmem:[%s2666 + $0x348] sm:$0xff]
  %v2773 = vld [vmem:[%s2666 + $0x350] sm:$0xff]
  %v2774 = vld [vmem:[%s2666 + $0x358] sm:$0xff]
  %v2775 = vld [vmem:[%s2666 + $0x360] sm:$0xff]
  %v2776 = vld [vmem:[%s2666 + $0x368] sm:$0xff]
  %v2777 = vld [vmem:[%s2666 + $0x370] sm:$0xff]
  %v2778 = vld [vmem:[%s2666 + $0x378] sm:$0xff]
  %v2779 = vld [vmem:[%s2666 + $0x380] sm:$0xff]
  %v2780 = vld [vmem:[%s2666 + $0x388] sm:$0xff]
  %v2781 = vld [vmem:[%s2666 + $0x390] sm:$0xff]
  %v2782 = vld [vmem:[%s2666 + $0x398] sm:$0xff]
  %v2783 = vld [vmem:[%s2666 + $0x3a0] sm:$0xff]
  %v2784 = vld [vmem:[%s2666 + $0x3a8] sm:$0xff]
  %v2785 = vld [vmem:[%s2666 + $0x3b0] sm:$0xff]
  %v2786 = vld [vmem:[%s2666 + $0x3b8] sm:$0xff]
  %v2787 = vld [vmem:[%s2666 + $0x3c0] sm:$0xff]
  %v2788 = vld [vmem:[%s2666 + $0x3c8] sm:$0xff]
  %v2789 = vld [vmem:[%s2666 + $0x3d0] sm:$0xff]
  %v2790 = vld [vmem:[%s2666 + $0x3d8] sm:$0xff]
  %v2791 = vld [vmem:[%s2666 + $0x3e0] sm:$0xff]
  %v2792 = vld [vmem:[%s2666 + $0x3e8] sm:$0xff]
  %v2793 = vld [vmem:[%s2666 + $0x3f0] sm:$0xff]
  %v2794 = vld [vmem:[%s2666 + $0x3f8] sm:$0xff]
  %v2795 = vrot.slane %v1814, 2
  %v2796 = vrot.slane %v1815, 2
  %v2797 = vrot.slane %v1816, 2
  %v2798 = vrot.slane %v1817, 2
  %v2799 = vrot.slane %v1818, 2
  %v2800 = vrot.slane %v1819, 2
  %v2801 = vrot.slane %v1820, 2
  %v2802 = vrot.slane %v1821, 2
  %2811 = vmatprep.subr.mxu0 0.0
  %2812 = vmatpush1.msra.mxu0 %v2682
  %2813 = vmatprep.subr.mxu0 0.0
  %2814 = vmatpush1.msra.mxu0 %v2681
  %2815 = vmatprep.subr.mxu0 0.0
  %2816 = vmatpush1.msra.mxu0 %v2680
  %2817 = vmatprep.subr.mxu0 0.0
  %2818 = vmatpush1.msra.mxu0 %v2679
  %2819 = vmatprep.subr.mxu0 0.0
  %2820 = vmatpush1.msra.mxu0 %v2678
  %2821 = vmatprep.subr.mxu0 0.0
  %2822 = vmatpush1.msra.mxu0 %v2677
  %2823 = vmatprep.subr.mxu0 0.0
  %2824 = vmatpush1.msra.mxu0 %v2676
  %2825 = vmatprep.subr.mxu0 0.0
  %2826 = vmatpush1.msra.mxu0 %v2675
  %2827 = vmatprep.subr.mxu0 0.0
  %2828 = vmatpush1.msra.mxu0 %v2674
  %2829 = vmatprep.subr.mxu0 0.0
  %2830 = vmatpush1.msra.mxu0 %v2673
  %2831 = vmatprep.subr.mxu0 0.0
  %2832 = vmatpush1.msra.mxu0 %v2672
  %2833 = vmatprep.subr.mxu0 0.0
  %2834 = vmatpush1.msra.mxu0 %v2671
  %2835 = vmatprep.subr.mxu0 0.0
  %2836 = vmatpush1.msra.mxu0 %v2670
  %2837 = vmatprep.subr.mxu0 0.0
  %2838 = vmatpush1.msra.mxu0 %v2669
  %2839 = vmatprep.subr.mxu0 0.0
  %2840 = vmatpush1.msra.mxu0 %v2668
  %2841 = vmatprep.subr.mxu0 0.0
  %2842 = vmatpush1.msra.mxu0 %v2667
  %2843 = vmatprep.subr.mxu0 0.0
  %2844 = vmatpush2.msra.mxu0 %v2698
  %2845 = vmatprep.subr.mxu0 0.0
  %2846 = vmatpush2.msra.mxu0 %v2697
  %2847 = vmatprep.subr.mxu0 0.0
  %2848 = vmatpush2.msra.mxu0 %v2696
  %2849 = vmatprep.subr.mxu0 0.0
  %2850 = vmatpush2.msra.mxu0 %v2695
  %2851 = vmatprep.subr.mxu0 0.0
  %2852 = vmatpush2.msra.mxu0 %v2694
  %2853 = vmatprep.subr.mxu0 0.0
  %2854 = vmatpush2.msra.mxu0 %v2693
  %2855 = vmatprep.subr.mxu0 0.0
  %2856 = vmatpush2.msra.mxu0 %v2692
  %2857 = vmatprep.subr.mxu0 0.0
  %2858 = vmatpush2.msra.mxu0 %v2691
  %2859 = vmatprep.subr.mxu0 0.0
  %2860 = vmatpush2.msra.mxu0 %v2690
  %2861 = vmatprep.subr.mxu0 0.0
  %2862 = vmatpush2.msra.mxu0 %v2689
  %2863 = vmatprep.subr.mxu0 0.0
  %2864 = vmatpush2.msra.mxu0 %v2688
  %2865 = vmatprep.subr.mxu0 0.0
  %2866 = vmatpush2.msra.mxu0 %v2687
  %2867 = vmatprep.subr.mxu0 0.0
  %2868 = vmatpush2.msra.mxu0 %v2686
  %2869 = vmatprep.subr.mxu0 0.0
  %2870 = vmatpush2.msra.mxu0 %v2685
  %2871 = vmatprep.subr.mxu0 0.0
  %2872 = vmatpush2.msra.mxu0 %v2684
  %2873 = vmatprep.subr.mxu0 0.0
  %2874 = vmatpush2.msra.mxu0 %v2683
  %2875 = vmatprep.mubr.f32.mxu0 %v2796
  %2876 = vmatmul.mubr.f32.gmra.mxu0 %v2795
  %v2877 = vpop.f32.mrf.mxu0
  %v2878 = vadd.f32 0.0, %v2877
  %v2879 = vpop.f32.mrf.mxu0
  %2880 = vdwg.mxu0
  %2881 = vmatprep.subr.mxu0 0.0
  %2882 = vmatpush1.msra.mxu0 %v2714
  %2883 = vmatprep.subr.mxu0 0.0
  %2884 = vmatpush1.msra.mxu0 %v2713
  %2885 = vmatprep.subr.mxu0 0.0
  %2886 = vmatpush1.msra.mxu0 %v2712
  %2887 = vmatprep.subr.mxu0 0.0
  %2888 = vmatpush1.msra.mxu0 %v2711
  %2889 = vmatprep.subr.mxu0 0.0
  %2890 = vmatpush1.msra.mxu0 %v2710
  %2891 = vmatprep.subr.mxu0 0.0
  %2892 = vmatpush1.msra.mxu0 %v2709
  %2893 = vmatprep.subr.mxu0 0.0
  %2894 = vmatpush1.msra.mxu0 %v2708
  %2895 = vmatprep.subr.mxu0 0.0
  %2896 = vmatpush1.msra.mxu0 %v2707
  %2897 = vmatprep.subr.mxu0 0.0
  %2898 = vmatpush1.msra.mxu0 %v2706
  %2899 = vmatprep.subr.mxu0 0.0
  %2900 = vmatpush1.msra.mxu0 %v2705
  %2901 = vmatprep.subr.mxu0 0.0
  %2902 = vmatpush1.msra.mxu0 %v2704
  %2903 = vmatprep.subr.mxu0 0.0
  %2904 = vmatpush1.msra.mxu0 %v2703
  %2905 = vmatprep.subr.mxu0 0.0
  %2906 = vmatpush1.msra.mxu0 %v2702
  %2907 = vmatprep.subr.mxu0 0.0
  %2908 = vmatpush1.msra.mxu0 %v2701
  %2909 = vmatprep.subr.mxu0 0.0
  %2910 = vmatpush1.msra.mxu0 %v2700
  %2911 = vmatprep.subr.mxu0 0.0
  %2912 = vmatpush1.msra.mxu0 %v2699
  %2913 = vmatprep.subr.mxu0 0.0
  %2914 = vmatpush2.msra.mxu0 %v2730
  %2915 = vmatprep.subr.mxu0 0.0
  %2916 = vmatpush2.msra.mxu0 %v2729
  %2917 = vmatprep.subr.mxu0 0.0
  %2918 = vmatpush2.msra.mxu0 %v2728
  %2919 = vmatprep.subr.mxu0 0.0
  %2920 = vmatpush2.msra.mxu0 %v2727
  %2921 = vmatprep.subr.mxu0 0.0
  %2922 = vmatpush2.msra.mxu0 %v2726
  %2923 = vmatprep.subr.mxu0 0.0
  %2924 = vmatpush2.msra.mxu0 %v2725
  %2925 = vmatprep.subr.mxu0 0.0
  %2926 = vmatpush2.msra.mxu0 %v2724
  %2927 = vmatprep.subr.mxu0 0.0
  %2928 = vmatpush2.msra.mxu0 %v2723
  %2929 = vmatprep.subr.mxu0 0.0
  %2930 = vmatpush2.msra.mxu0 %v2722
  %2931 = vmatprep.subr.mxu0 0.0
  %2932 = vmatpush2.msra.mxu0 %v2721
  %2933 = vmatprep.subr.mxu0 0.0
  %2934 = vmatpush2.msra.mxu0 %v2720
  %2935 = vmatprep.subr.mxu0 0.0
  %2936 = vmatpush2.msra.mxu0 %v2719
  %2937 = vmatprep.subr.mxu0 0.0
  %2938 = vmatpush2.msra.mxu0 %v2718
  %2939 = vmatprep.subr.mxu0 0.0
  %2940 = vmatpush2.msra.mxu0 %v2717
  %2941 = vmatprep.subr.mxu0 0.0
  %2942 = vmatpush2.msra.mxu0 %v2716
  %2943 = vmatprep.subr.mxu0 0.0
  %2944 = vmatpush2.msra.mxu0 %v2715
  %2945 = vmatprep.mubr.f32.mxu0 %v2798
  %2946 = vmatmul.mubr.f32.gmra.mxu0 %v2797
  %v2947 = vpop.f32.mrf.mxu0
  %v2948 = vadd.f32 %v2878, %v2947
  %v2949 = vpop.f32.mrf.mxu0
  %2950 = vdwg.mxu0
  %2951 = vmatprep.subr.mxu0 0.0
  %2952 = vmatpush1.msra.mxu0 %v2746
  %2953 = vmatprep.subr.mxu0 0.0
  %2954 = vmatpush1.msra.mxu0 %v2745
  %2955 = vmatprep.subr.mxu0 0.0
  %2956 = vmatpush1.msra.mxu0 %v2744
  %2957 = vmatprep.subr.mxu0 0.0
  %2958 = vmatpush1.msra.mxu0 %v2743
  %2959 = vmatprep.subr.mxu0 0.0
  %2960 = vmatpush1.msra.mxu0 %v2742
  %2961 = vmatprep.subr.mxu0 0.0
  %2962 = vmatpush1.msra.mxu0 %v2741
  %2963 = vmatprep.subr.mxu0 0.0
  %2964 = vmatpush1.msra.mxu0 %v2740
  %2965 = vmatprep.subr.mxu0 0.0
  %2966 = vmatpush1.msra.mxu0 %v2739
  %2967 = vmatprep.subr.mxu0 0.0
  %2968 = vmatpush1.msra.mxu0 %v2738
  %2969 = vmatprep.subr.mxu0 0.0
  %2970 = vmatpush1.msra.mxu0 %v2737
  %2971 = vmatprep.subr.mxu0 0.0
  %2972 = vmatpush1.msra.mxu0 %v2736
  %2973 = vmatprep.subr.mxu0 0.0
  %2974 = vmatpush1.msra.mxu0 %v2735
  %2975 = vmatprep.subr.mxu0 0.0
  %2976 = vmatpush1.msra.mxu0 %v2734
  %2977 = vmatprep.subr.mxu0 0.0
  %2978 = vmatpush1.msra.mxu0 %v2733
  %2979 = vmatprep.subr.mxu0 0.0
  %2980 = vmatpush1.msra.mxu0 %v2732
  %2981 = vmatprep.subr.mxu0 0.0
  %2982 = vmatpush1.msra.mxu0 %v2731
  %2983 = vmatprep.subr.mxu0 0.0
  %2984 = vmatpush2.msra.mxu0 %v2762
  %2985 = vmatprep.subr.mxu0 0.0
  %2986 = vmatpush2.msra.mxu0 %v2761
  %2987 = vmatprep.subr.mxu0 0.0
  %2988 = vmatpush2.msra.mxu0 %v2760
  %2989 = vmatprep.subr.mxu0 0.0
  %2990 = vmatpush2.msra.mxu0 %v2759
  %2991 = vmatprep.subr.mxu0 0.0
  %2992 = vmatpush2.msra.mxu0 %v2758
  %2993 = vmatprep.subr.mxu0 0.0
  %2994 = vmatpush2.msra.mxu0 %v2757
  %2995 = vmatprep.subr.mxu0 0.0
  %2996 = vmatpush2.msra.mxu0 %v2756
  %2997 = vmatprep.subr.mxu0 0.0
  %2998 = vmatpush2.msra.mxu0 %v2755
  %2999 = vmatprep.subr.mxu0 0.0
  %3000 = vmatpush2.msra.mxu0 %v2754
  %3001 = vmatprep.subr.mxu0 0.0
  %3002 = vmatpush2.msra.mxu0 %v2753
  %3003 = vmatprep.subr.mxu0 0.0
  %3004 = vmatpush2.msra.mxu0 %v2752
  %3005 = vmatprep.subr.mxu0 0.0
  %3006 = vmatpush2.msra.mxu0 %v2751
  %3007 = vmatprep.subr.mxu0 0.0
  %3008 = vmatpush2.msra.mxu0 %v2750
  %3009 = vmatprep.subr.mxu0 0.0
  %3010 = vmatpush2.msra.mxu0 %v2749
  %3011 = vmatprep.subr.mxu0 0.0
  %3012 = vmatpush2.msra.mxu0 %v2748
  %3013 = vmatprep.subr.mxu0 0.0
  %3014 = vmatpush2.msra.mxu0 %v2747
  %3015 = vmatprep.mubr.f32.mxu0 %v2800
  %3016 = vmatmul.mubr.f32.gmra.mxu0 %v2799
  %v3017 = vpop.f32.mrf.mxu0
  %v3018 = vadd.f32 %v2948, %v3017
  %v3019 = vpop.f32.mrf.mxu0
  %3020 = vdwg.mxu0
  %3021 = vmatprep.subr.mxu0 0.0
  %3022 = vmatpush1.msra.mxu0 %v2778
  %3023 = vmatprep.subr.mxu0 0.0
  %3024 = vmatpush1.msra.mxu0 %v2777
  %3025 = vmatprep.subr.mxu0 0.0
  %3026 = vmatpush1.msra.mxu0 %v2776
  %3027 = vmatprep.subr.mxu0 0.0
  %3028 = vmatpush1.msra.mxu0 %v2775
  %3029 = vmatprep.subr.mxu0 0.0
  %3030 = vmatpush1.msra.mxu0 %v2774
  %3031 = vmatprep.subr.mxu0 0.0
  %3032 = vmatpush1.msra.mxu0 %v2773
  %3033 = vmatprep.subr.mxu0 0.0
  %3034 = vmatpush1.msra.mxu0 %v2772
  %3035 = vmatprep.subr.mxu0 0.0
  %3036 = vmatpush1.msra.mxu0 %v2771
  %3037 = vmatprep.subr.mxu0 0.0
  %3038 = vmatpush1.msra.mxu0 %v2770
  %3039 = vmatprep.subr.mxu0 0.0
  %3040 = vmatpush1.msra.mxu0 %v2769
  %3041 = vmatprep.subr.mxu0 0.0
  %3042 = vmatpush1.msra.mxu0 %v2768
  %3043 = vmatprep.subr.mxu0 0.0
  %3044 = vmatpush1.msra.mxu0 %v2767
  %3045 = vmatprep.subr.mxu0 0.0
  %3046 = vmatpush1.msra.mxu0 %v2766
  %3047 = vmatprep.subr.mxu0 0.0
  %3048 = vmatpush1.msra.mxu0 %v2765
  %3049 = vmatprep.subr.mxu0 0.0
  %3050 = vmatpush1.msra.mxu0 %v2764
  %3051 = vmatprep.subr.mxu0 0.0
  %3052 = vmatpush1.msra.mxu0 %v2763
  %3053 = vmatprep.subr.mxu0 0.0
  %3054 = vmatpush2.msra.mxu0 %v2794
  %3055 = vmatprep.subr.mxu0 0.0
  %3056 = vmatpush2.msra.mxu0 %v2793
  %3057 = vmatprep.subr.mxu0 0.0
  %3058 = vmatpush2.msra.mxu0 %v2792
  %3059 = vmatprep.subr.mxu0 0.0
  %3060 = vmatpush2.msra.mxu0 %v2791
  %3061 = vmatprep.subr.mxu0 0.0
  %3062 = vmatpush2.msra.mxu0 %v2790
  %3063 = vmatprep.subr.mxu0 0.0
  %3064 = vmatpush2.msra.mxu0 %v2789
  %3065 = vmatprep.subr.mxu0 0.0
  %3066 = vmatpush2.msra.mxu0 %v2788
  %3067 = vmatprep.subr.mxu0 0.0
  %3068 = vmatpush2.msra.mxu0 %v2787
  %3069 = vmatprep.subr.mxu0 0.0
  %3070 = vmatpush2.msra.mxu0 %v2786
  %3071 = vmatprep.subr.mxu0 0.0
  %3072 = vmatpush2.msra.mxu0 %v2785
  %3073 = vmatprep.subr.mxu0 0.0
  %3074 = vmatpush2.msra.mxu0 %v2784
  %3075 = vmatprep.subr.mxu0 0.0
  %3076 = vmatpush2.msra.mxu0 %v2783
  %3077 = vmatprep.subr.mxu0 0.0
  %3078 = vmatpush2.msra.mxu0 %v2782
  %3079 = vmatprep.subr.mxu0 0.0
  %3080 = vmatpush2.msra.mxu0 %v2781
  %3081 = vmatprep.subr.mxu0 0.0
  %3082 = vmatpush2.msra.mxu0 %v2780
  %3083 = vmatprep.subr.mxu0 0.0
  %3084 = vmatpush2.msra.mxu0 %v2779
  %3085 = vmatprep.mubr.f32.mxu0 %v2802
  %3086 = vmatmul.mubr.f32.gmra.mxu0 %v2801
  %v3087 = vpop.f32.mrf.mxu0
  %v3088 = vadd.f32 %v3018, %v3087
  %v3089 = vpop.f32.mrf.mxu0
  %3090 = vdwg.mxu0
  %v3091 = vadd.f32 %v2665, %v3088
  %s3092 = scalar_lea.vmem %s3, 3072
  %v3093 = vld [vmem:[%s3092] sm:$0xff]
  %v3094 = vld [vmem:[%s3092 + $0x8] sm:$0xff]
  %v3095 = vld [vmem:[%s3092 + $0x10] sm:$0xff]
  %v3096 = vld [vmem:[%s3092 + $0x18] sm:$0xff]
  %v3097 = vld [vmem:[%s3092 + $0x20] sm:$0xff]
  %v3098 = vld [vmem:[%s3092 + $0x28] sm:$0xff]
  %v3099 = vld [vmem:[%s3092 + $0x30] sm:$0xff]
  %v3100 = vld [vmem:[%s3092 + $0x38] sm:$0xff]
  %v3101 = vld [vmem:[%s3092 + $0x40] sm:$0xff]
  %v3102 = vld [vmem:[%s3092 + $0x48] sm:$0xff]
  %v3103 = vld [vmem:[%s3092 + $0x50] sm:$0xff]
  %v3104 = vld [vmem:[%s3092 + $0x58] sm:$0xff]
  %v3105 = vld [vmem:[%s3092 + $0x60] sm:$0xff]
  %v3106 = vld [vmem:[%s3092 + $0x68] sm:$0xff]
  %v3107 = vld [vmem:[%s3092 + $0x70] sm:$0xff]
  %v3108 = vld [vmem:[%s3092 + $0x78] sm:$0xff]
  %v3109 = vld [vmem:[%s3092 + $0x80] sm:$0xff]
  %v3110 = vld [vmem:[%s3092 + $0x88] sm:$0xff]
  %v3111 = vld [vmem:[%s3092 + $0x90] sm:$0xff]
  %v3112 = vld [vmem:[%s3092 + $0x98] sm:$0xff]
  %v3113 = vld [vmem:[%s3092 + $0xa0] sm:$0xff]
  %v3114 = vld [vmem:[%s3092 + $0xa8] sm:$0xff]
  %v3115 = vld [vmem:[%s3092 + $0xb0] sm:$0xff]
  %v3116 = vld [vmem:[%s3092 + $0xb8] sm:$0xff]
  %v3117 = vld [vmem:[%s3092 + $0xc0] sm:$0xff]
  %v3118 = vld [vmem:[%s3092 + $0xc8] sm:$0xff]
  %v3119 = vld [vmem:[%s3092 + $0xd0] sm:$0xff]
  %v3120 = vld [vmem:[%s3092 + $0xd8] sm:$0xff]
  %v3121 = vld [vmem:[%s3092 + $0xe0] sm:$0xff]
  %v3122 = vld [vmem:[%s3092 + $0xe8] sm:$0xff]
  %v3123 = vld [vmem:[%s3092 + $0xf0] sm:$0xff]
  %v3124 = vld [vmem:[%s3092 + $0xf8] sm:$0xff]
  %v3125 = vld [vmem:[%s3092 + $0x100] sm:$0xff]
  %v3126 = vld [vmem:[%s3092 + $0x108] sm:$0xff]
  %v3127 = vld [vmem:[%s3092 + $0x110] sm:$0xff]
  %v3128 = vld [vmem:[%s3092 + $0x118] sm:$0xff]
  %v3129 = vld [vmem:[%s3092 + $0x120] sm:$0xff]
  %v3130 = vld [vmem:[%s3092 + $0x128] sm:$0xff]
  %v3131 = vld [vmem:[%s3092 + $0x130] sm:$0xff]
  %v3132 = vld [vmem:[%s3092 + $0x138] sm:$0xff]
  %v3133 = vld [vmem:[%s3092 + $0x140] sm:$0xff]
  %v3134 = vld [vmem:[%s3092 + $0x148] sm:$0xff]
  %v3135 = vld [vmem:[%s3092 + $0x150] sm:$0xff]
  %v3136 = vld [vmem:[%s3092 + $0x158] sm:$0xff]
  %v3137 = vld [vmem:[%s3092 + $0x160] sm:$0xff]
  %v3138 = vld [vmem:[%s3092 + $0x168] sm:$0xff]
  %v3139 = vld [vmem:[%s3092 + $0x170] sm:$0xff]
  %v3140 = vld [vmem:[%s3092 + $0x178] sm:$0xff]
  %v3141 = vld [vmem:[%s3092 + $0x180] sm:$0xff]
  %v3142 = vld [vmem:[%s3092 + $0x188] sm:$0xff]
  %v3143 = vld [vmem:[%s3092 + $0x190] sm:$0xff]
  %v3144 = vld [vmem:[%s3092 + $0x198] sm:$0xff]
  %v3145 = vld [vmem:[%s3092 + $0x1a0] sm:$0xff]
  %v3146 = vld [vmem:[%s3092 + $0x1a8] sm:$0xff]
  %v3147 = vld [vmem:[%s3092 + $0x1b0] sm:$0xff]
  %v3148 = vld [vmem:[%s3092 + $0x1b8] sm:$0xff]
  %v3149 = vld [vmem:[%s3092 + $0x1c0] sm:$0xff]
  %v3150 = vld [vmem:[%s3092 + $0x1c8] sm:$0xff]
  %v3151 = vld [vmem:[%s3092 + $0x1d0] sm:$0xff]
  %v3152 = vld [vmem:[%s3092 + $0x1d8] sm:$0xff]
  %v3153 = vld [vmem:[%s3092 + $0x1e0] sm:$0xff]
  %v3154 = vld [vmem:[%s3092 + $0x1e8] sm:$0xff]
  %v3155 = vld [vmem:[%s3092 + $0x1f0] sm:$0xff]
  %v3156 = vld [vmem:[%s3092 + $0x1f8] sm:$0xff]
  %v3157 = vld [vmem:[%s3092 + $0x200] sm:$0xff]
  %v3158 = vld [vmem:[%s3092 + $0x208] sm:$0xff]
  %v3159 = vld [vmem:[%s3092 + $0x210] sm:$0xff]
  %v3160 = vld [vmem:[%s3092 + $0x218] sm:$0xff]
  %v3161 = vld [vmem:[%s3092 + $0x220] sm:$0xff]
  %v3162 = vld [vmem:[%s3092 + $0x228] sm:$0xff]
  %v3163 = vld [vmem:[%s3092 + $0x230] sm:$0xff]
  %v3164 = vld [vmem:[%s3092 + $0x238] sm:$0xff]
  %v3165 = vld [vmem:[%s3092 + $0x240] sm:$0xff]
  %v3166 = vld [vmem:[%s3092 + $0x248] sm:$0xff]
  %v3167 = vld [vmem:[%s3092 + $0x250] sm:$0xff]
  %v3168 = vld [vmem:[%s3092 + $0x258] sm:$0xff]
  %v3169 = vld [vmem:[%s3092 + $0x260] sm:$0xff]
  %v3170 = vld [vmem:[%s3092 + $0x268] sm:$0xff]
  %v3171 = vld [vmem:[%s3092 + $0x270] sm:$0xff]
  %v3172 = vld [vmem:[%s3092 + $0x278] sm:$0xff]
  %v3173 = vld [vmem:[%s3092 + $0x280] sm:$0xff]
  %v3174 = vld [vmem:[%s3092 + $0x288] sm:$0xff]
  %v3175 = vld [vmem:[%s3092 + $0x290] sm:$0xff]
  %v3176 = vld [vmem:[%s3092 + $0x298] sm:$0xff]
  %v3177 = vld [vmem:[%s3092 + $0x2a0] sm:$0xff]
  %v3178 = vld [vmem:[%s3092 + $0x2a8] sm:$0xff]
  %v3179 = vld [vmem:[%s3092 + $0x2b0] sm:$0xff]
  %v3180 = vld [vmem:[%s3092 + $0x2b8] sm:$0xff]
  %v3181 = vld [vmem:[%s3092 + $0x2c0] sm:$0xff]
  %v3182 = vld [vmem:[%s3092 + $0x2c8] sm:$0xff]
  %v3183 = vld [vmem:[%s3092 + $0x2d0] sm:$0xff]
  %v3184 = vld [vmem:[%s3092 + $0x2d8] sm:$0xff]
  %v3185 = vld [vmem:[%s3092 + $0x2e0] sm:$0xff]
  %v3186 = vld [vmem:[%s3092 + $0x2e8] sm:$0xff]
  %v3187 = vld [vmem:[%s3092 + $0x2f0] sm:$0xff]
  %v3188 = vld [vmem:[%s3092 + $0x2f8] sm:$0xff]
  %v3189 = vld [vmem:[%s3092 + $0x300] sm:$0xff]
  %v3190 = vld [vmem:[%s3092 + $0x308] sm:$0xff]
  %v3191 = vld [vmem:[%s3092 + $0x310] sm:$0xff]
  %v3192 = vld [vmem:[%s3092 + $0x318] sm:$0xff]
  %v3193 = vld [vmem:[%s3092 + $0x320] sm:$0xff]
  %v3194 = vld [vmem:[%s3092 + $0x328] sm:$0xff]
  %v3195 = vld [vmem:[%s3092 + $0x330] sm:$0xff]
  %v3196 = vld [vmem:[%s3092 + $0x338] sm:$0xff]
  %v3197 = vld [vmem:[%s3092 + $0x340] sm:$0xff]
  %v3198 = vld [vmem:[%s3092 + $0x348] sm:$0xff]
  %v3199 = vld [vmem:[%s3092 + $0x350] sm:$0xff]
  %v3200 = vld [vmem:[%s3092 + $0x358] sm:$0xff]
  %v3201 = vld [vmem:[%s3092 + $0x360] sm:$0xff]
  %v3202 = vld [vmem:[%s3092 + $0x368] sm:$0xff]
  %v3203 = vld [vmem:[%s3092 + $0x370] sm:$0xff]
  %v3204 = vld [vmem:[%s3092 + $0x378] sm:$0xff]
  %v3205 = vld [vmem:[%s3092 + $0x380] sm:$0xff]
  %v3206 = vld [vmem:[%s3092 + $0x388] sm:$0xff]
  %v3207 = vld [vmem:[%s3092 + $0x390] sm:$0xff]
  %v3208 = vld [vmem:[%s3092 + $0x398] sm:$0xff]
  %v3209 = vld [vmem:[%s3092 + $0x3a0] sm:$0xff]
  %v3210 = vld [vmem:[%s3092 + $0x3a8] sm:$0xff]
  %v3211 = vld [vmem:[%s3092 + $0x3b0] sm:$0xff]
  %v3212 = vld [vmem:[%s3092 + $0x3b8] sm:$0xff]
  %v3213 = vld [vmem:[%s3092 + $0x3c0] sm:$0xff]
  %v3214 = vld [vmem:[%s3092 + $0x3c8] sm:$0xff]
  %v3215 = vld [vmem:[%s3092 + $0x3d0] sm:$0xff]
  %v3216 = vld [vmem:[%s3092 + $0x3d8] sm:$0xff]
  %v3217 = vld [vmem:[%s3092 + $0x3e0] sm:$0xff]
  %v3218 = vld [vmem:[%s3092 + $0x3e8] sm:$0xff]
  %v3219 = vld [vmem:[%s3092 + $0x3f0] sm:$0xff]
  %v3220 = vld [vmem:[%s3092 + $0x3f8] sm:$0xff]
  %v3221 = vrot.slane %v1814, 3
  %v3222 = vrot.slane %v1815, 3
  %v3223 = vrot.slane %v1816, 3
  %v3224 = vrot.slane %v1817, 3
  %v3225 = vrot.slane %v1818, 3
  %v3226 = vrot.slane %v1819, 3
  %v3227 = vrot.slane %v1820, 3
  %v3228 = vrot.slane %v1821, 3
  %3237 = vmatprep.subr.mxu0 0.0
  %3238 = vmatpush1.msra.mxu0 %v3108
  %3239 = vmatprep.subr.mxu0 0.0
  %3240 = vmatpush1.msra.mxu0 %v3107
  %3241 = vmatprep.subr.mxu0 0.0
  %3242 = vmatpush1.msra.mxu0 %v3106
  %3243 = vmatprep.subr.mxu0 0.0
  %3244 = vmatpush1.msra.mxu0 %v3105
  %3245 = vmatprep.subr.mxu0 0.0
  %3246 = vmatpush1.msra.mxu0 %v3104
  %3247 = vmatprep.subr.mxu0 0.0
  %3248 = vmatpush1.msra.mxu0 %v3103
  %3249 = vmatprep.subr.mxu0 0.0
  %3250 = vmatpush1.msra.mxu0 %v3102
  %3251 = vmatprep.subr.mxu0 0.0
  %3252 = vmatpush1.msra.mxu0 %v3101
  %3253 = vmatprep.subr.mxu0 0.0
  %3254 = vmatpush1.msra.mxu0 %v3100
  %3255 = vmatprep.subr.mxu0 0.0
  %3256 = vmatpush1.msra.mxu0 %v3099
  %3257 = vmatprep.subr.mxu0 0.0
  %3258 = vmatpush1.msra.mxu0 %v3098
  %3259 = vmatprep.subr.mxu0 0.0
  %3260 = vmatpush1.msra.mxu0 %v3097
  %3261 = vmatprep.subr.mxu0 0.0
  %3262 = vmatpush1.msra.mxu0 %v3096
  %3263 = vmatprep.subr.mxu0 0.0
  %3264 = vmatpush1.msra.mxu0 %v3095
  %3265 = vmatprep.subr.mxu0 0.0
  %3266 = vmatpush1.msra.mxu0 %v3094
  %3267 = vmatprep.subr.mxu0 0.0
  %3268 = vmatpush1.msra.mxu0 %v3093
  %3269 = vmatprep.subr.mxu0 0.0
  %3270 = vmatpush2.msra.mxu0 %v3124
  %3271 = vmatprep.subr.mxu0 0.0
  %3272 = vmatpush2.msra.mxu0 %v3123
  %3273 = vmatprep.subr.mxu0 0.0
  %3274 = vmatpush2.msra.mxu0 %v3122
  %3275 = vmatprep.subr.mxu0 0.0
  %3276 = vmatpush2.msra.mxu0 %v3121
  %3277 = vmatprep.subr.mxu0 0.0
  %3278 = vmatpush2.msra.mxu0 %v3120
  %3279 = vmatprep.subr.mxu0 0.0
  %3280 = vmatpush2.msra.mxu0 %v3119
  %3281 = vmatprep.subr.mxu0 0.0
  %3282 = vmatpush2.msra.mxu0 %v3118
  %3283 = vmatprep.subr.mxu0 0.0
  %3284 = vmatpush2.msra.mxu0 %v3117
  %3285 = vmatprep.subr.mxu0 0.0
  %3286 = vmatpush2.msra.mxu0 %v3116
  %3287 = vmatprep.subr.mxu0 0.0
  %3288 = vmatpush2.msra.mxu0 %v3115
  %3289 = vmatprep.subr.mxu0 0.0
  %3290 = vmatpush2.msra.mxu0 %v3114
  %3291 = vmatprep.subr.mxu0 0.0
  %3292 = vmatpush2.msra.mxu0 %v3113
  %3293 = vmatprep.subr.mxu0 0.0
  %3294 = vmatpush2.msra.mxu0 %v3112
  %3295 = vmatprep.subr.mxu0 0.0
  %3296 = vmatpush2.msra.mxu0 %v3111
  %3297 = vmatprep.subr.mxu0 0.0
  %3298 = vmatpush2.msra.mxu0 %v3110
  %3299 = vmatprep.subr.mxu0 0.0
  %3300 = vmatpush2.msra.mxu0 %v3109
  %3301 = vmatprep.mubr.f32.mxu0 %v3222
  %3302 = vmatmul.mubr.f32.gmra.mxu0 %v3221
  %v3303 = vpop.f32.mrf.mxu0
  %v3304 = vadd.f32 0.0, %v3303
  %v3305 = vpop.f32.mrf.mxu0
  %3306 = vdwg.mxu0
  %3307 = vmatprep.subr.mxu0 0.0
  %3308 = vmatpush1.msra.mxu0 %v3140
  %3309 = vmatprep.subr.mxu0 0.0
  %3310 = vmatpush1.msra.mxu0 %v3139
  %3311 = vmatprep.subr.mxu0 0.0
  %3312 = vmatpush1.msra.mxu0 %v3138
  %3313 = vmatprep.subr.mxu0 0.0
  %3314 = vmatpush1.msra.mxu0 %v3137
  %3315 = vmatprep.subr.mxu0 0.0
  %3316 = vmatpush1.msra.mxu0 %v3136
  %3317 = vmatprep.subr.mxu0 0.0
  %3318 = vmatpush1.msra.mxu0 %v3135
  %3319 = vmatprep.subr.mxu0 0.0
  %3320 = vmatpush1.msra.mxu0 %v3134
  %3321 = vmatprep.subr.mxu0 0.0
  %3322 = vmatpush1.msra.mxu0 %v3133
  %3323 = vmatprep.subr.mxu0 0.0
  %3324 = vmatpush1.msra.mxu0 %v3132
  %3325 = vmatprep.subr.mxu0 0.0
  %3326 = vmatpush1.msra.mxu0 %v3131
  %3327 = vmatprep.subr.mxu0 0.0
  %3328 = vmatpush1.msra.mxu0 %v3130
  %3329 = vmatprep.subr.mxu0 0.0
  %3330 = vmatpush1.msra.mxu0 %v3129
  %3331 = vmatprep.subr.mxu0 0.0
  %3332 = vmatpush1.msra.mxu0 %v3128
  %3333 = vmatprep.subr.mxu0 0.0
  %3334 = vmatpush1.msra.mxu0 %v3127
  %3335 = vmatprep.subr.mxu0 0.0
  %3336 = vmatpush1.msra.mxu0 %v3126
  %3337 = vmatprep.subr.mxu0 0.0
  %3338 = vmatpush1.msra.mxu0 %v3125
  %3339 = vmatprep.subr.mxu0 0.0
  %3340 = vmatpush2.msra.mxu0 %v3156
  %3341 = vmatprep.subr.mxu0 0.0
  %3342 = vmatpush2.msra.mxu0 %v3155
  %3343 = vmatprep.subr.mxu0 0.0
  %3344 = vmatpush2.msra.mxu0 %v3154
  %3345 = vmatprep.subr.mxu0 0.0
  %3346 = vmatpush2.msra.mxu0 %v3153
  %3347 = vmatprep.subr.mxu0 0.0
  %3348 = vmatpush2.msra.mxu0 %v3152
  %3349 = vmatprep.subr.mxu0 0.0
  %3350 = vmatpush2.msra.mxu0 %v3151
  %3351 = vmatprep.subr.mxu0 0.0
  %3352 = vmatpush2.msra.mxu0 %v3150
  %3353 = vmatprep.subr.mxu0 0.0
  %3354 = vmatpush2.msra.mxu0 %v3149
  %3355 = vmatprep.subr.mxu0 0.0
  %3356 = vmatpush2.msra.mxu0 %v3148
  %3357 = vmatprep.subr.mxu0 0.0
  %3358 = vmatpush2.msra.mxu0 %v3147
  %3359 = vmatprep.subr.mxu0 0.0
  %3360 = vmatpush2.msra.mxu0 %v3146
  %3361 = vmatprep.subr.mxu0 0.0
  %3362 = vmatpush2.msra.mxu0 %v3145
  %3363 = vmatprep.subr.mxu0 0.0
  %3364 = vmatpush2.msra.mxu0 %v3144
  %3365 = vmatprep.subr.mxu0 0.0
  %3366 = vmatpush2.msra.mxu0 %v3143
  %3367 = vmatprep.subr.mxu0 0.0
  %3368 = vmatpush2.msra.mxu0 %v3142
  %3369 = vmatprep.subr.mxu0 0.0
  %3370 = vmatpush2.msra.mxu0 %v3141
  %3371 = vmatprep.mubr.f32.mxu0 %v3224
  %3372 = vmatmul.mubr.f32.gmra.mxu0 %v3223
  %v3373 = vpop.f32.mrf.mxu0
  %v3374 = vadd.f32 %v3304, %v3373
  %v3375 = vpop.f32.mrf.mxu0
  %3376 = vdwg.mxu0
  %3377 = vmatprep.subr.mxu0 0.0
  %3378 = vmatpush1.msra.mxu0 %v3172
  %3379 = vmatprep.subr.mxu0 0.0
  %3380 = vmatpush1.msra.mxu0 %v3171
  %3381 = vmatprep.subr.mxu0 0.0
  %3382 = vmatpush1.msra.mxu0 %v3170
  %3383 = vmatprep.subr.mxu0 0.0
  %3384 = vmatpush1.msra.mxu0 %v3169
  %3385 = vmatprep.subr.mxu0 0.0
  %3386 = vmatpush1.msra.mxu0 %v3168
  %3387 = vmatprep.subr.mxu0 0.0
  %3388 = vmatpush1.msra.mxu0 %v3167
  %3389 = vmatprep.subr.mxu0 0.0
  %3390 = vmatpush1.msra.mxu0 %v3166
  %3391 = vmatprep.subr.mxu0 0.0
  %3392 = vmatpush1.msra.mxu0 %v3165
  %3393 = vmatprep.subr.mxu0 0.0
  %3394 = vmatpush1.msra.mxu0 %v3164
  %3395 = vmatprep.subr.mxu0 0.0
  %3396 = vmatpush1.msra.mxu0 %v3163
  %3397 = vmatprep.subr.mxu0 0.0
  %3398 = vmatpush1.msra.mxu0 %v3162
  %3399 = vmatprep.subr.mxu0 0.0
  %3400 = vmatpush1.msra.mxu0 %v3161
  %3401 = vmatprep.subr.mxu0 0.0
  %3402 = vmatpush1.msra.mxu0 %v3160
  %3403 = vmatprep.subr.mxu0 0.0
  %3404 = vmatpush1.msra.mxu0 %v3159
  %3405 = vmatprep.subr.mxu0 0.0
  %3406 = vmatpush1.msra.mxu0 %v3158
  %3407 = vmatprep.subr.mxu0 0.0
  %3408 = vmatpush1.msra.mxu0 %v3157
  %3409 = vmatprep.subr.mxu0 0.0
  %3410 = vmatpush2.msra.mxu0 %v3188
  %3411 = vmatprep.subr.mxu0 0.0
  %3412 = vmatpush2.msra.mxu0 %v3187
  %3413 = vmatprep.subr.mxu0 0.0
  %3414 = vmatpush2.msra.mxu0 %v3186
  %3415 = vmatprep.subr.mxu0 0.0
  %3416 = vmatpush2.msra.mxu0 %v3185
  %3417 = vmatprep.subr.mxu0 0.0
  %3418 = vmatpush2.msra.mxu0 %v3184
  %3419 = vmatprep.subr.mxu0 0.0
  %3420 = vmatpush2.msra.mxu0 %v3183
  %3421 = vmatprep.subr.mxu0 0.0
  %3422 = vmatpush2.msra.mxu0 %v3182
  %3423 = vmatprep.subr.mxu0 0.0
  %3424 = vmatpush2.msra.mxu0 %v3181
  %3425 = vmatprep.subr.mxu0 0.0
  %3426 = vmatpush2.msra.mxu0 %v3180
  %3427 = vmatprep.subr.mxu0 0.0
  %3428 = vmatpush2.msra.mxu0 %v3179
  %3429 = vmatprep.subr.mxu0 0.0
  %3430 = vmatpush2.msra.mxu0 %v3178
  %3431 = vmatprep.subr.mxu0 0.0
  %3432 = vmatpush2.msra.mxu0 %v3177
  %3433 = vmatprep.subr.mxu0 0.0
  %3434 = vmatpush2.msra.mxu0 %v3176
  %3435 = vmatprep.subr.mxu0 0.0
  %3436 = vmatpush2.msra.mxu0 %v3175
  %3437 = vmatprep.subr.mxu0 0.0
  %3438 = vmatpush2.msra.mxu0 %v3174
  %3439 = vmatprep.subr.mxu0 0.0
  %3440 = vmatpush2.msra.mxu0 %v3173
  %3441 = vmatprep.mubr.f32.mxu0 %v3226
  %3442 = vmatmul.mubr.f32.gmra.mxu0 %v3225
  %v3443 = vpop.f32.mrf.mxu0
  %v3444 = vadd.f32 %v3374, %v3443
  %v3445 = vpop.f32.mrf.mxu0
  %3446 = vdwg.mxu0
  %3447 = vmatprep.subr.mxu0 0.0
  %3448 = vmatpush1.msra.mxu0 %v3204
  %3449 = vmatprep.subr.mxu0 0.0
  %3450 = vmatpush1.msra.mxu0 %v3203
  %3451 = vmatprep.subr.mxu0 0.0
  %3452 = vmatpush1.msra.mxu0 %v3202
  %3453 = vmatprep.subr.mxu0 0.0
  %3454 = vmatpush1.msra.mxu0 %v3201
  %3455 = vmatprep.subr.mxu0 0.0
  %3456 = vmatpush1.msra.mxu0 %v3200
  %3457 = vmatprep.subr.mxu0 0.0
  %3458 = vmatpush1.msra.mxu0 %v3199
  %3459 = vmatprep.subr.mxu0 0.0
  %3460 = vmatpush1.msra.mxu0 %v3198
  %3461 = vmatprep.subr.mxu0 0.0
  %3462 = vmatpush1.msra.mxu0 %v3197
  %3463 = vmatprep.subr.mxu0 0.0
  %3464 = vmatpush1.msra.mxu0 %v3196
  %3465 = vmatprep.subr.mxu0 0.0
  %3466 = vmatpush1.msra.mxu0 %v3195
  %3467 = vmatprep.subr.mxu0 0.0
  %3468 = vmatpush1.msra.mxu0 %v3194
  %3469 = vmatprep.subr.mxu0 0.0
  %3470 = vmatpush1.msra.mxu0 %v3193
  %3471 = vmatprep.subr.mxu0 0.0
  %3472 = vmatpush1.msra.mxu0 %v3192
  %3473 = vmatprep.subr.mxu0 0.0
  %3474 = vmatpush1.msra.mxu0 %v3191
  %3475 = vmatprep.subr.mxu0 0.0
  %3476 = vmatpush1.msra.mxu0 %v3190
  %3477 = vmatprep.subr.mxu0 0.0
  %3478 = vmatpush1.msra.mxu0 %v3189
  %3479 = vmatprep.subr.mxu0 0.0
  %3480 = vmatpush2.msra.mxu0 %v3220
  %3481 = vmatprep.subr.mxu0 0.0
  %3482 = vmatpush2.msra.mxu0 %v3219
  %3483 = vmatprep.subr.mxu0 0.0
  %3484 = vmatpush2.msra.mxu0 %v3218
  %3485 = vmatprep.subr.mxu0 0.0
  %3486 = vmatpush2.msra.mxu0 %v3217
  %3487 = vmatprep.subr.mxu0 0.0
  %3488 = vmatpush2.msra.mxu0 %v3216
  %3489 = vmatprep.subr.mxu0 0.0
  %3490 = vmatpush2.msra.mxu0 %v3215
  %3491 = vmatprep.subr.mxu0 0.0
  %3492 = vmatpush2.msra.mxu0 %v3214
  %3493 = vmatprep.subr.mxu0 0.0
  %3494 = vmatpush2.msra.mxu0 %v3213
  %3495 = vmatprep.subr.mxu0 0.0
  %3496 = vmatpush2.msra.mxu0 %v3212
  %3497 = vmatprep.subr.mxu0 0.0
  %3498 = vmatpush2.msra.mxu0 %v3211
  %3499 = vmatprep.subr.mxu0 0.0
  %3500 = vmatpush2.msra.mxu0 %v3210
  %3501 = vmatprep.subr.mxu0 0.0
  %3502 = vmatpush2.msra.mxu0 %v3209
  %3503 = vmatprep.subr.mxu0 0.0
  %3504 = vmatpush2.msra.mxu0 %v3208
  %3505 = vmatprep.subr.mxu0 0.0
  %3506 = vmatpush2.msra.mxu0 %v3207
  %3507 = vmatprep.subr.mxu0 0.0
  %3508 = vmatpush2.msra.mxu0 %v3206
  %3509 = vmatprep.subr.mxu0 0.0
  %3510 = vmatpush2.msra.mxu0 %v3205
  %3511 = vmatprep.mubr.f32.mxu0 %v3228
  %3512 = vmatmul.mubr.f32.gmra.mxu0 %v3227
  %v3513 = vpop.f32.mrf.mxu0
  %v3514 = vadd.f32 %v3444, %v3513
  %v3515 = vpop.f32.mrf.mxu0
  %3516 = vdwg.mxu0
  %v3517 = vadd.f32 %v3091, %v3514
  %v3518 = vmax.f32 %v3517, 0.0
  %v3519 = vld [vmem:[%s5] sm:$0xff]
  %v3520 = vld [vmem:[%s5 + $0x8] sm:$0xff]
  %v3521 = vld [vmem:[%s5 + $0x10] sm:$0xff]
  %v3522 = vld [vmem:[%s5 + $0x18] sm:$0xff]
  %v3523 = vld [vmem:[%s5 + $0x20] sm:$0xff]
  %v3524 = vld [vmem:[%s5 + $0x28] sm:$0xff]
  %v3525 = vld [vmem:[%s5 + $0x30] sm:$0xff]
  %v3526 = vld [vmem:[%s5 + $0x38] sm:$0xff]
  %v3527 = vld [vmem:[%s5 + $0x40] sm:$0xff]
  %v3528 = vld [vmem:[%s5 + $0x48] sm:$0xff]
  %v3529 = vld [vmem:[%s5 + $0x50] sm:$0xff]
  %v3530 = vld [vmem:[%s5 + $0x58] sm:$0xff]
  %v3531 = vld [vmem:[%s5 + $0x60] sm:$0xff]
  %v3532 = vld [vmem:[%s5 + $0x68] sm:$0xff]
  %v3533 = vld [vmem:[%s5 + $0x70] sm:$0xff]
  %v3534 = vld [vmem:[%s5 + $0x78] sm:$0xff]
  %v3535 = vld [vmem:[%s6] sm:$0x1]
  %3536 = vmatprep.subr.mxu0 0.0
  %3537 = vmatpush1.msra.mxu0 %v3534
  %3538 = vmatprep.subr.mxu0 0.0
  %3539 = vmatpush1.msra.mxu0 %v3533
  %3540 = vmatprep.subr.mxu0 0.0
  %3541 = vmatpush1.msra.mxu0 %v3532
  %3542 = vmatprep.subr.mxu0 0.0
  %3543 = vmatpush1.msra.mxu0 %v3531
  %3544 = vmatprep.subr.mxu0 0.0
  %3545 = vmatpush1.msra.mxu0 %v3530
  %3546 = vmatprep.subr.mxu0 0.0
  %3547 = vmatpush1.msra.mxu0 %v3529
  %3548 = vmatprep.subr.mxu0 0.0
  %3549 = vmatpush1.msra.mxu0 %v3528
  %3550 = vmatprep.subr.mxu0 0.0
  %3551 = vmatpush1.msra.mxu0 %v3527
  %3552 = vmatprep.subr.mxu0 0.0
  %3553 = vmatpush1.msra.mxu0 %v3526
  %3554 = vmatprep.subr.mxu0 0.0
  %3555 = vmatpush1.msra.mxu0 %v3525
  %3556 = vmatprep.subr.mxu0 0.0
  %3557 = vmatpush1.msra.mxu0 %v3524
  %3558 = vmatprep.subr.mxu0 0.0
  %3559 = vmatpush1.msra.mxu0 %v3523
  %3560 = vmatprep.subr.mxu0 0.0
  %3561 = vmatpush1.msra.mxu0 %v3522
  %3562 = vmatprep.subr.mxu0 0.0
  %3563 = vmatpush1.msra.mxu0 %v3521
  %3564 = vmatprep.subr.mxu0 0.0
  %3565 = vmatpush1.msra.mxu0 %v3520
  %3566 = vmatprep.subr.mxu0 0.0
  %3567 = vmatpush1.msra.mxu0 %v3519
  %3568 = vmatprep.subr.mxu0 0.0
  %3569 = vmatpush2.msra.mxu0 0.0
  %3570 = vmatprep.subr.mxu0 0.0
  %3571 = vmatpush2.msra.mxu0 0.0
  %3572 = vmatprep.subr.mxu0 0.0
  %3573 = vmatpush2.msra.mxu0 0.0
  %3574 = vmatprep.subr.mxu0 0.0
  %3575 = vmatpush2.msra.mxu0 0.0
  %3576 = vmatprep.subr.mxu0 0.0
  %3577 = vmatpush2.msra.mxu0 0.0
  %3578 = vmatprep.subr.mxu0 0.0
  %3579 = vmatpush2.msra.mxu0 0.0
  %3580 = vmatprep.subr.mxu0 0.0
  %3581 = vmatpush2.msra.mxu0 0.0
  %3582 = vmatprep.subr.mxu0 0.0
  %3583 = vmatpush2.msra.mxu0 0.0
  %3584 = vmatprep.subr.mxu0 0.0
  %3585 = vmatpush2.msra.mxu0 0.0
  %3586 = vmatprep.subr.mxu0 0.0
  %3587 = vmatpush2.msra.mxu0 0.0
  %3588 = vmatprep.subr.mxu0 0.0
  %3589 = vmatpush2.msra.mxu0 0.0
  %3590 = vmatprep.subr.mxu0 0.0
  %3591 = vmatpush2.msra.mxu0 0.0
  %3592 = vmatprep.subr.mxu0 0.0
  %3593 = vmatpush2.msra.mxu0 0.0
  %3594 = vmatprep.subr.mxu0 0.0
  %3595 = vmatpush2.msra.mxu0 0.0
  %3596 = vmatprep.subr.mxu0 0.0
  %3597 = vmatpush2.msra.mxu0 0.0
  %3598 = vmatprep.subr.mxu0 0.0
  %3599 = vmatpush2.msra.mxu0 0.0
  %3600 = vmatprep.mubr.f32.mxu0 0.0
  %3601 = vmatmul.mubr.f32.gmra.mxu0 %v3518
  %v3602 = vpop.f32.mrf.mxu0
  %v3603 = vadd.f32 %v3535, %v3602
  %v3604 = vpop.f32.mrf.mxu0
  %3605 = vdwg.mxu0
  %vm3606 = vcmask 24576
  %v3607 = vsel %vm3606, %v3603, -inf
  %3608 = vmax.xlane.f32.xlu0 %v3607
  %v3609 = vpop.xlane.xlu0 %3608
  %v3610 = vsub.f32 %v3603, %v3609
  %v3611 = vmul.f32 %v3610, 1.442695
  %v3612 = vpow.pop %v3611
  %v3613 = vsel %vm3606, %v3612, 0.0
  %3614 = vadd.xlane.f32.xlu0 %v3613
  %v3615 = vpop.xlane.xlu0 %3614
  %v3616 = vrcp.pop %v3615
  %v3617 = vmul.f32 %v3612, %v3616
  %v3618 = vld [vmem:[%s7] sm:$0xf]
  %v3619 = vlaneseq
  %v3620 = vshrl.u32 %v3619, 7
  %v3621 = vsub.s32 0, %v3620
  %v3622 = vrot.slane %v3617, %v3621
  %v3623 = vmul.f32 %v3618, %v3622
  %vm3624 = vcmask 27648
  %v3625 = vsel %vm3624, %v3623, 0.0
  %3626 = vadd.xlane.f32.xlu0 %v3625
  %v3627 = vpop.xlane.xlu0 %3626
  %v3628 = vmul.f32 %v3627, 0.85
  %v3629 = vmul.f32 %v3628, 0.5
  %v3631 = vlaneseq
  %v3632 = vshrl.u32 %v3631, 7
  %v3633 = vsub.s32 0, %v3632
  %v3634 = vrot.slane %v3617, %v3633
  %3636 = vbcast.lane.b32.xlu0 %v3634, 256
  %v3637 = vpop.permute.xlu0 %3636
  %v3639 = vadd.f32 %v3629, %v3637
  %3641 = vset.pattern.permute.xlu0 0
  %3642 = vperm.xlu0 %3641, %v3639
  %v3643 = vpop.permute.xlu0 %3642
  %v3644 = vlaneseq
  %v3645 = vand.u32 %v3644, 127
  %v3646 = vlaneseq
  %v3647 = vshrl.u32 %v3646, 7
  %v3648 = vsub.s32 %v3645, %v3647
  %v3649 = vrot.slane %v3643, %v3648
  %vm3650 = vcmask 1042434
  %v3651 = vsel %vm3650, %v3649, %v3649
  %vm3652 = vcmask 1043459
  %v3653 = vsel %vm3652, %v3649, %v3651
  %v3655 = vmul.f32 %v3618, %v3653
  %v3656 = vsel %vm3624, %v3655, 0.0
  %3657 = vadd.xlane.f32.xlu0 %v3656
  %v3658 = vpop.xlane.xlu0 %3657
  %v3659 = vmul.f32 %v3658, 0.85
  %v3660 = vmul.f32 %v3659, 0.5
  %v3661 = vadd.f32 %v3660, %v3637
  %3663 = vset.pattern.permute.xlu0 0
  %3664 = vperm.xlu0 %3663, %v3661
  %v3665 = vpop.permute.xlu0 %3664
  %v3666 = vlaneseq
  %v3667 = vshrl.u32 %v3666, 7
  %v3668 = vsub.s32 %v3645, %v3667
  %v3669 = vrot.slane %v3665, %v3668
  %v3670 = vsel %vm3650, %v3669, %v3669
  %v3671 = vsel %vm3652, %v3669, %v3670
  %v3673 = vmul.f32 %v3618, %v3671
  %v3674 = vsel %vm3624, %v3673, 0.0
  %3675 = vadd.xlane.f32.xlu0 %v3674
  %v3676 = vpop.xlane.xlu0 %3675
  %v3677 = vmul.f32 %v3676, 0.85
  %v3678 = vadd.f32 %v3677, %v3637
  %3680 = vset.pattern.permute.xlu0 0
  %3681 = vperm.xlu0 %3680, %v3678
  %v3682 = vpop.permute.xlu0 %3681
  %v3683 = vlaneseq
  %v3684 = vshrl.u32 %v3683, 7
  %v3685 = vsub.s32 %v3645, %v3684
  %v3686 = vrot.slane %v3682, %v3685
  %v3687 = vsel %vm3650, %v3686, %v3686
  %v3688 = vsel %vm3652, %v3686, %v3687
  %v3690 = vmul.f32 %v3618, %v3688
  %v3691 = vsel %vm3624, %v3690, 0.0
  %3692 = vadd.xlane.f32.xlu0 %v3691
  %v3693 = vpop.xlane.xlu0 %3692
  %v3694 = vmul.f32 %v3693, 0.85
  %v3695 = vmul.f32 %v3659, 2.0
  %v3696 = vadd.f32 %v3628, %v3695
  %v3697 = vmul.f32 %v3677, 2.0
  %v3698 = vadd.f32 %v3696, %v3697
  %v3699 = vadd.f32 %v3698, %v3694
  %v3700 = vmul.f32 %v3699, 0.14166667
  %v3702 = vlaneseq
  %v3703 = vshrl.u32 %v3702, 7
  %v3704 = vsub.s32 %v3645, %v3703
  %v3705 = vrot.slane %v3700, %v3704
  %v3707 = vadd.f32 %v3617, %v3705
  %v3709 = vrot.slane %v3707, 7
  %vm3711 = vcmask 1040384
  %v3712 = vsel %vm3711, %v3617, %v3709
  %vm3713 = vcmask 25600
  %3714 = vst.msk [vmem:[%s16] sm:$0x3] %vm3713, %v3712
  %v3715 = vld [vmem:[%s8] sm:$0xf]
  %v3716 = vld [vmem:[%s9] sm:$0x1]
  %v3718 = vlaneseq
  %v3719 = vshrl.u32 %v3718, 7
  %v3720 = vsub.s32 0, %v3719
  %v3721 = vrot.slane %v3716, %v3720
  %vm3723 = vcmask 31744
  %v3725 = vsel %vm3723, %v3712, 0
  %vm3727 = vcmask 1043456
  %v3729 = vsel %vm3727, %v3715, 0
  %3731 = vmatprep.subr.mxu0 0.0
  %3732 = vmatpush1.msra.mxu0 0.0
  %3733 = vmatprep.subr.mxu0 0.0
  %3734 = vmatpush1.msra.mxu0 0.0
  %3735 = vmatprep.subr.mxu0 0.0
  %3736 = vmatpush1.msra.mxu0 0.0
  %3737 = vmatprep.subr.mxu0 0.0
  %3738 = vmatpush1.msra.mxu0 0.0
  %3739 = vmatprep.subr.mxu0 0.0
  %3740 = vmatpush1.msra.mxu0 0.0
  %3741 = vmatprep.subr.mxu0 0.0
  %3742 = vmatpush1.msra.mxu0 0.0
  %3743 = vmatprep.subr.mxu0 0.0
  %3744 = vmatpush1.msra.mxu0 0.0
  %3745 = vmatprep.subr.mxu0 0.0
  %3746 = vmatpush1.msra.mxu0 0.0
  %3747 = vmatprep.subr.mxu0 0.0
  %3748 = vmatpush1.msra.mxu0 0.0
  %3749 = vmatprep.subr.mxu0 0.0
  %3750 = vmatpush1.msra.mxu0 0.0
  %3751 = vmatprep.subr.mxu0 0.0
  %3752 = vmatpush1.msra.mxu0 0.0
  %3753 = vmatprep.subr.mxu0 0.0
  %3754 = vmatpush1.msra.mxu0 0.0
  %3755 = vmatprep.subr.mxu0 0.0
  %3756 = vmatpush1.msra.mxu0 0.0
  %3757 = vmatprep.subr.mxu0 0.0
  %3758 = vmatpush1.msra.mxu0 0.0
  %3759 = vmatprep.subr.mxu0 0.0
  %3760 = vmatpush1.msra.mxu0 0.0
  %3761 = vmatprep.subr.mxu0 0.0
  %3762 = vmatpush1.msra.mxu0 %v3729
  %3763 = vmatprep.subr.mxu0 0.0
  %3764 = vmatpush2.msra.mxu0 0.0
  %3765 = vmatprep.subr.mxu0 0.0
  %3766 = vmatpush2.msra.mxu0 0.0
  %3767 = vmatprep.subr.mxu0 0.0
  %3768 = vmatpush2.msra.mxu0 0.0
  %3769 = vmatprep.subr.mxu0 0.0
  %3770 = vmatpush2.msra.mxu0 0.0
  %3771 = vmatprep.subr.mxu0 0.0
  %3772 = vmatpush2.msra.mxu0 0.0
  %3773 = vmatprep.subr.mxu0 0.0
  %3774 = vmatpush2.msra.mxu0 0.0
  %3775 = vmatprep.subr.mxu0 0.0
  %3776 = vmatpush2.msra.mxu0 0.0
  %3777 = vmatprep.subr.mxu0 0.0
  %3778 = vmatpush2.msra.mxu0 0.0
  %3779 = vmatprep.subr.mxu0 0.0
  %3780 = vmatpush2.msra.mxu0 0.0
  %3781 = vmatprep.subr.mxu0 0.0
  %3782 = vmatpush2.msra.mxu0 0.0
  %3783 = vmatprep.subr.mxu0 0.0
  %3784 = vmatpush2.msra.mxu0 0.0
  %3785 = vmatprep.subr.mxu0 0.0
  %3786 = vmatpush2.msra.mxu0 0.0
  %3787 = vmatprep.subr.mxu0 0.0
  %3788 = vmatpush2.msra.mxu0 0.0
  %3789 = vmatprep.subr.mxu0 0.0
  %3790 = vmatpush2.msra.mxu0 0.0
  %3791 = vmatprep.subr.mxu0 0.0
  %3792 = vmatpush2.msra.mxu0 0.0
  %3793 = vmatprep.subr.mxu0 0.0
  %3794 = vmatpush2.msra.mxu0 0.0
  %3795 = vmatprep.mubr.f32.mxu0 0.0
  %3796 = vmatmul.mubr.f32.gmra.mxu0 %v3725
  %v3797 = vpop.f32.mrf.mxu0
  %v3798 = vadd.f32 %v3721, %v3797
  %v3799 = vpop.f32.mrf.mxu0
  %3800 = vdwg.mxu0
  %v3801 = vmax.f32 %v3798, 0.0
  %v3802 = vld [vmem:[%s10] sm:$0xff]
  %v3803 = vld [vmem:[%s10 + $0x8] sm:$0xff]
  %v3804 = vld [vmem:[%s10 + $0x10] sm:$0xff]
  %v3805 = vld [vmem:[%s10 + $0x18] sm:$0xff]
  %v3806 = vld [vmem:[%s10 + $0x20] sm:$0xff]
  %v3807 = vld [vmem:[%s10 + $0x28] sm:$0xff]
  %v3808 = vld [vmem:[%s10 + $0x30] sm:$0xff]
  %v3809 = vld [vmem:[%s10 + $0x38] sm:$0xff]
  %v3810 = vld [vmem:[%s10 + $0x40] sm:$0xff]
  %v3811 = vld [vmem:[%s10 + $0x48] sm:$0xff]
  %v3812 = vld [vmem:[%s10 + $0x50] sm:$0xff]
  %v3813 = vld [vmem:[%s10 + $0x58] sm:$0xff]
  %v3814 = vld [vmem:[%s10 + $0x60] sm:$0xff]
  %v3815 = vld [vmem:[%s10 + $0x68] sm:$0xff]
  %v3816 = vld [vmem:[%s10 + $0x70] sm:$0xff]
  %v3817 = vld [vmem:[%s10 + $0x78] sm:$0xff]
  %v3818 = vld [vmem:[%s10 + $0x80] sm:$0xff]
  %v3819 = vld [vmem:[%s10 + $0x88] sm:$0xff]
  %v3820 = vld [vmem:[%s10 + $0x90] sm:$0xff]
  %v3821 = vld [vmem:[%s10 + $0x98] sm:$0xff]
  %v3822 = vld [vmem:[%s10 + $0xa0] sm:$0xff]
  %v3823 = vld [vmem:[%s10 + $0xa8] sm:$0xff]
  %v3824 = vld [vmem:[%s10 + $0xb0] sm:$0xff]
  %v3825 = vld [vmem:[%s10 + $0xb8] sm:$0xff]
  %v3826 = vld [vmem:[%s10 + $0xc0] sm:$0xff]
  %v3827 = vld [vmem:[%s10 + $0xc8] sm:$0xff]
  %v3828 = vld [vmem:[%s10 + $0xd0] sm:$0xff]
  %v3829 = vld [vmem:[%s10 + $0xd8] sm:$0xff]
  %v3830 = vld [vmem:[%s10 + $0xe0] sm:$0xff]
  %v3831 = vld [vmem:[%s10 + $0xe8] sm:$0xff]
  %v3832 = vld [vmem:[%s10 + $0xf0] sm:$0xff]
  %v3833 = vld [vmem:[%s10 + $0xf8] sm:$0xff]
  %v3834 = vld [vmem:[%s10 + $0x100] sm:$0xff]
  %v3835 = vld [vmem:[%s10 + $0x108] sm:$0xff]
  %v3836 = vld [vmem:[%s10 + $0x110] sm:$0xff]
  %v3837 = vld [vmem:[%s10 + $0x118] sm:$0xff]
  %v3838 = vld [vmem:[%s10 + $0x120] sm:$0xff]
  %v3839 = vld [vmem:[%s10 + $0x128] sm:$0xff]
  %v3840 = vld [vmem:[%s10 + $0x130] sm:$0xff]
  %v3841 = vld [vmem:[%s10 + $0x138] sm:$0xff]
  %v3842 = vld [vmem:[%s10 + $0x140] sm:$0xff]
  %v3843 = vld [vmem:[%s10 + $0x148] sm:$0xff]
  %v3844 = vld [vmem:[%s10 + $0x150] sm:$0xff]
  %v3845 = vld [vmem:[%s10 + $0x158] sm:$0xff]
  %v3846 = vld [vmem:[%s10 + $0x160] sm:$0xff]
  %v3847 = vld [vmem:[%s10 + $0x168] sm:$0xff]
  %v3848 = vld [vmem:[%s10 + $0x170] sm:$0xff]
  %v3849 = vld [vmem:[%s10 + $0x178] sm:$0xff]
  %v3850 = vld [vmem:[%s10 + $0x180] sm:$0xff]
  %v3851 = vld [vmem:[%s10 + $0x188] sm:$0xff]
  %v3852 = vld [vmem:[%s10 + $0x190] sm:$0xff]
  %v3853 = vld [vmem:[%s10 + $0x198] sm:$0xff]
  %v3854 = vld [vmem:[%s10 + $0x1a0] sm:$0xff]
  %v3855 = vld [vmem:[%s10 + $0x1a8] sm:$0xff]
  %v3856 = vld [vmem:[%s10 + $0x1b0] sm:$0xff]
  %v3857 = vld [vmem:[%s10 + $0x1b8] sm:$0xff]
  %v3858 = vld [vmem:[%s10 + $0x1c0] sm:$0xff]
  %v3859 = vld [vmem:[%s10 + $0x1c8] sm:$0xff]
  %v3860 = vld [vmem:[%s10 + $0x1d0] sm:$0xff]
  %v3861 = vld [vmem:[%s10 + $0x1d8] sm:$0xff]
  %v3862 = vld [vmem:[%s10 + $0x1e0] sm:$0xff]
  %v3863 = vld [vmem:[%s10 + $0x1e8] sm:$0xff]
  %v3864 = vld [vmem:[%s10 + $0x1f0] sm:$0xff]
  %v3865 = vld [vmem:[%s10 + $0x1f8] sm:$0xff]
  %v3866 = vld [vmem:[%s10 + $0x200] sm:$0xff]
  %v3867 = vld [vmem:[%s10 + $0x208] sm:$0xff]
  %v3868 = vld [vmem:[%s10 + $0x210] sm:$0xff]
  %v3869 = vld [vmem:[%s10 + $0x218] sm:$0xff]
  %v3870 = vld [vmem:[%s10 + $0x220] sm:$0xff]
  %v3871 = vld [vmem:[%s10 + $0x228] sm:$0xff]
  %v3872 = vld [vmem:[%s10 + $0x230] sm:$0xff]
  %v3873 = vld [vmem:[%s10 + $0x238] sm:$0xff]
  %v3874 = vld [vmem:[%s10 + $0x240] sm:$0xff]
  %v3875 = vld [vmem:[%s10 + $0x248] sm:$0xff]
  %v3876 = vld [vmem:[%s10 + $0x250] sm:$0xff]
  %v3877 = vld [vmem:[%s10 + $0x258] sm:$0xff]
  %v3878 = vld [vmem:[%s10 + $0x260] sm:$0xff]
  %v3879 = vld [vmem:[%s10 + $0x268] sm:$0xff]
  %v3880 = vld [vmem:[%s10 + $0x270] sm:$0xff]
  %v3881 = vld [vmem:[%s10 + $0x278] sm:$0xff]
  %v3882 = vld [vmem:[%s10 + $0x280] sm:$0xff]
  %v3883 = vld [vmem:[%s10 + $0x288] sm:$0xff]
  %v3884 = vld [vmem:[%s10 + $0x290] sm:$0xff]
  %v3885 = vld [vmem:[%s10 + $0x298] sm:$0xff]
  %v3886 = vld [vmem:[%s10 + $0x2a0] sm:$0xff]
  %v3887 = vld [vmem:[%s10 + $0x2a8] sm:$0xff]
  %v3888 = vld [vmem:[%s10 + $0x2b0] sm:$0xff]
  %v3889 = vld [vmem:[%s10 + $0x2b8] sm:$0xff]
  %v3890 = vld [vmem:[%s10 + $0x2c0] sm:$0xff]
  %v3891 = vld [vmem:[%s10 + $0x2c8] sm:$0xff]
  %v3892 = vld [vmem:[%s10 + $0x2d0] sm:$0xff]
  %v3893 = vld [vmem:[%s10 + $0x2d8] sm:$0xff]
  %v3894 = vld [vmem:[%s10 + $0x2e0] sm:$0xff]
  %v3895 = vld [vmem:[%s10 + $0x2e8] sm:$0xff]
  %v3896 = vld [vmem:[%s10 + $0x2f0] sm:$0xff]
  %v3897 = vld [vmem:[%s10 + $0x2f8] sm:$0xff]
  %v3898 = vld [vmem:[%s10 + $0x300] sm:$0xff]
  %v3899 = vld [vmem:[%s10 + $0x308] sm:$0xff]
  %v3900 = vld [vmem:[%s10 + $0x310] sm:$0xff]
  %v3901 = vld [vmem:[%s10 + $0x318] sm:$0xff]
  %v3902 = vld [vmem:[%s10 + $0x320] sm:$0xff]
  %v3903 = vld [vmem:[%s10 + $0x328] sm:$0xff]
  %v3904 = vld [vmem:[%s10 + $0x330] sm:$0xff]
  %v3905 = vld [vmem:[%s10 + $0x338] sm:$0xff]
  %v3906 = vld [vmem:[%s10 + $0x340] sm:$0xff]
  %v3907 = vld [vmem:[%s10 + $0x348] sm:$0xff]
  %v3908 = vld [vmem:[%s10 + $0x350] sm:$0xff]
  %v3909 = vld [vmem:[%s10 + $0x358] sm:$0xff]
  %v3910 = vld [vmem:[%s10 + $0x360] sm:$0xff]
  %v3911 = vld [vmem:[%s10 + $0x368] sm:$0xff]
  %v3912 = vld [vmem:[%s10 + $0x370] sm:$0xff]
  %v3913 = vld [vmem:[%s10 + $0x378] sm:$0xff]
  %v3914 = vld [vmem:[%s10 + $0x380] sm:$0xff]
  %v3915 = vld [vmem:[%s10 + $0x388] sm:$0xff]
  %v3916 = vld [vmem:[%s10 + $0x390] sm:$0xff]
  %v3917 = vld [vmem:[%s10 + $0x398] sm:$0xff]
  %v3918 = vld [vmem:[%s10 + $0x3a0] sm:$0xff]
  %v3919 = vld [vmem:[%s10 + $0x3a8] sm:$0xff]
  %v3920 = vld [vmem:[%s10 + $0x3b0] sm:$0xff]
  %v3921 = vld [vmem:[%s10 + $0x3b8] sm:$0xff]
  %v3922 = vld [vmem:[%s10 + $0x3c0] sm:$0xff]
  %v3923 = vld [vmem:[%s10 + $0x3c8] sm:$0xff]
  %v3924 = vld [vmem:[%s10 + $0x3d0] sm:$0xff]
  %v3925 = vld [vmem:[%s10 + $0x3d8] sm:$0xff]
  %v3926 = vld [vmem:[%s10 + $0x3e0] sm:$0xff]
  %v3927 = vld [vmem:[%s10 + $0x3e8] sm:$0xff]
  %v3928 = vld [vmem:[%s10 + $0x3f0] sm:$0xff]
  %v3929 = vld [vmem:[%s10 + $0x3f8] sm:$0xff]
  %v3930 = vld [vmem:[%s11] ss:$4 sm:$0xff]
  %v3932 = vlaneseq
  %v3933 = vshrl.u32 %v3932, 7
  %v3934 = vsub.s32 0, %v3933
  %v3935 = vrot.slane %v3930, %v3934
  %v3936 = vlaneseq
  %v3937 = vshrl.u32 %v3936, 7
  %v3938 = vsub.s32 1, %v3937
  %v3939 = vrot.slane %v3930, %v3938
  %v3940 = vlaneseq
  %v3941 = vshrl.u32 %v3940, 7
  %v3942 = vsub.s32 2, %v3941
  %v3943 = vrot.slane %v3930, %v3942
  %v3944 = vlaneseq
  %v3945 = vshrl.u32 %v3944, 7
  %v3946 = vsub.s32 3, %v3945
  %v3947 = vrot.slane %v3930, %v3946
  %v3948 = vlaneseq
  %v3949 = vshrl.u32 %v3948, 7
  %v3950 = vsub.s32 4, %v3949
  %v3951 = vrot.slane %v3930, %v3950
  %v3952 = vlaneseq
  %v3953 = vshrl.u32 %v3952, 7
  %v3954 = vsub.s32 5, %v3953
  %v3955 = vrot.slane %v3930, %v3954
  %v3956 = vlaneseq
  %v3957 = vshrl.u32 %v3956, 7
  %v3958 = vsub.s32 6, %v3957
  %v3959 = vrot.slane %v3930, %v3958
  %v3960 = vlaneseq
  %v3961 = vshrl.u32 %v3960, 7
  %v3962 = vsub.s32 7, %v3961
  %v3963 = vrot.slane %v3930, %v3962
  %3972 = vmatprep.subr.mxu0 %v3923
  %3973 = vmatpush1.msra.mxu0 %v3922
  %3974 = vmatprep.subr.mxu0 %v3915
  %3975 = vmatpush1.msra.mxu0 %v3914
  %3976 = vmatprep.subr.mxu0 %v3907
  %3977 = vmatpush1.msra.mxu0 %v3906
  %3978 = vmatprep.subr.mxu0 %v3899
  %3979 = vmatpush1.msra.mxu0 %v3898
  %3980 = vmatprep.subr.mxu0 %v3891
  %3981 = vmatpush1.msra.mxu0 %v3890
  %3982 = vmatprep.subr.mxu0 %v3883
  %3983 = vmatpush1.msra.mxu0 %v3882
  %3984 = vmatprep.subr.mxu0 %v3875
  %3985 = vmatpush1.msra.mxu0 %v3874
  %3986 = vmatprep.subr.mxu0 %v3867
  %3987 = vmatpush1.msra.mxu0 %v3866
  %3988 = vmatprep.subr.mxu0 %v3859
  %3989 = vmatpush1.msra.mxu0 %v3858
  %3990 = vmatprep.subr.mxu0 %v3851
  %3991 = vmatpush1.msra.mxu0 %v3850
  %3992 = vmatprep.subr.mxu0 %v3843
  %3993 = vmatpush1.msra.mxu0 %v3842
  %3994 = vmatprep.subr.mxu0 %v3835
  %3995 = vmatpush1.msra.mxu0 %v3834
  %3996 = vmatprep.subr.mxu0 %v3827
  %3997 = vmatpush1.msra.mxu0 %v3826
  %3998 = vmatprep.subr.mxu0 %v3819
  %3999 = vmatpush1.msra.mxu0 %v3818
  %4000 = vmatprep.subr.mxu0 %v3811
  %4001 = vmatpush1.msra.mxu0 %v3810
  %4002 = vmatprep.subr.mxu0 %v3803
  %4003 = vmatpush1.msra.mxu0 %v3802
  %4004 = vmatprep.subr.mxu0 0.0
  %4005 = vmatpush2.msra.mxu0 0.0
  %4006 = vmatprep.subr.mxu0 0.0
  %4007 = vmatpush2.msra.mxu0 0.0
  %4008 = vmatprep.subr.mxu0 0.0
  %4009 = vmatpush2.msra.mxu0 0.0
  %4010 = vmatprep.subr.mxu0 0.0
  %4011 = vmatpush2.msra.mxu0 0.0
  %4012 = vmatprep.subr.mxu0 0.0
  %4013 = vmatpush2.msra.mxu0 0.0
  %4014 = vmatprep.subr.mxu0 0.0
  %4015 = vmatpush2.msra.mxu0 0.0
  %4016 = vmatprep.subr.mxu0 0.0
  %4017 = vmatpush2.msra.mxu0 0.0
  %4018 = vmatprep.subr.mxu0 0.0
  %4019 = vmatpush2.msra.mxu0 0.0
  %4020 = vmatprep.subr.mxu0 0.0
  %4021 = vmatpush2.msra.mxu0 0.0
  %4022 = vmatprep.subr.mxu0 0.0
  %4023 = vmatpush2.msra.mxu0 0.0
  %4024 = vmatprep.subr.mxu0 0.0
  %4025 = vmatpush2.msra.mxu0 0.0
  %4026 = vmatprep.subr.mxu0 0.0
  %4027 = vmatpush2.msra.mxu0 0.0
  %4028 = vmatprep.subr.mxu0 0.0
  %4029 = vmatpush2.msra.mxu0 0.0
  %4030 = vmatprep.subr.mxu0 0.0
  %4031 = vmatpush2.msra.mxu0 0.0
  %4032 = vmatprep.subr.mxu0 0.0
  %4033 = vmatpush2.msra.mxu0 0.0
  %4034 = vmatprep.subr.mxu0 0.0
  %4035 = vmatpush2.msra.mxu0 0.0
  %4036 = vmatprep.mubr.f32.mxu0 0.0
  %4037 = vmatmul.mubr.f32.gmra.mxu0 %v3801
  %v4038 = vpop.f32.mrf.mxu0
  %v4039 = vadd.f32 %v3935, %v4038
  %v4040 = vpop.f32.mrf.mxu0
  %v4041 = vadd.f32 %v3939, %v4040
  %4042 = vdwg.mxu0
  %4043 = vmatprep.subr.mxu0 %v3925
  %4044 = vmatpush1.msra.mxu0 %v3924
  %4045 = vmatprep.subr.mxu0 %v3917
  %4046 = vmatpush1.msra.mxu0 %v3916
  %4047 = vmatprep.subr.mxu0 %v3909
  %4048 = vmatpush1.msra.mxu0 %v3908
  %4049 = vmatprep.subr.mxu0 %v3901
  %4050 = vmatpush1.msra.mxu0 %v3900
  %4051 = vmatprep.subr.mxu0 %v3893
  %4052 = vmatpush1.msra.mxu0 %v3892
  %4053 = vmatprep.subr.mxu0 %v3885
  %4054 = vmatpush1.msra.mxu0 %v3884
  %4055 = vmatprep.subr.mxu0 %v3877
  %4056 = vmatpush1.msra.mxu0 %v3876
  %4057 = vmatprep.subr.mxu0 %v3869
  %4058 = vmatpush1.msra.mxu0 %v3868
  %4059 = vmatprep.subr.mxu0 %v3861
  %4060 = vmatpush1.msra.mxu0 %v3860
  %4061 = vmatprep.subr.mxu0 %v3853
  %4062 = vmatpush1.msra.mxu0 %v3852
  %4063 = vmatprep.subr.mxu0 %v3845
  %4064 = vmatpush1.msra.mxu0 %v3844
  %4065 = vmatprep.subr.mxu0 %v3837
  %4066 = vmatpush1.msra.mxu0 %v3836
  %4067 = vmatprep.subr.mxu0 %v3829
  %4068 = vmatpush1.msra.mxu0 %v3828
  %4069 = vmatprep.subr.mxu0 %v3821
  %4070 = vmatpush1.msra.mxu0 %v3820
  %4071 = vmatprep.subr.mxu0 %v3813
  %4072 = vmatpush1.msra.mxu0 %v3812
  %4073 = vmatprep.subr.mxu0 %v3805
  %4074 = vmatpush1.msra.mxu0 %v3804
  %4075 = vmatprep.subr.mxu0 0.0
  %4076 = vmatpush2.msra.mxu0 0.0
  %4077 = vmatprep.subr.mxu0 0.0
  %4078 = vmatpush2.msra.mxu0 0.0
  %4079 = vmatprep.subr.mxu0 0.0
  %4080 = vmatpush2.msra.mxu0 0.0
  %4081 = vmatprep.subr.mxu0 0.0
  %4082 = vmatpush2.msra.mxu0 0.0
  %4083 = vmatprep.subr.mxu0 0.0
  %4084 = vmatpush2.msra.mxu0 0.0
  %4085 = vmatprep.subr.mxu0 0.0
  %4086 = vmatpush2.msra.mxu0 0.0
  %4087 = vmatprep.subr.mxu0 0.0
  %4088 = vmatpush2.msra.mxu0 0.0
  %4089 = vmatprep.subr.mxu0 0.0
  %4090 = vmatpush2.msra.mxu0 0.0
  %4091 = vmatprep.subr.mxu0 0.0
  %4092 = vmatpush2.msra.mxu0 0.0
  %4093 = vmatprep.subr.mxu0 0.0
  %4094 = vmatpush2.msra.mxu0 0.0
  %4095 = vmatprep.subr.mxu0 0.0
  %4096 = vmatpush2.msra.mxu0 0.0
  %4097 = vmatprep.subr.mxu0 0.0
  %4098 = vmatpush2.msra.mxu0 0.0
  %4099 = vmatprep.subr.mxu0 0.0
  %4100 = vmatpush2.msra.mxu0 0.0
  %4101 = vmatprep.subr.mxu0 0.0
  %4102 = vmatpush2.msra.mxu0 0.0
  %4103 = vmatprep.subr.mxu0 0.0
  %4104 = vmatpush2.msra.mxu0 0.0
  %4105 = vmatprep.subr.mxu0 0.0
  %4106 = vmatpush2.msra.mxu0 0.0
  %4107 = vmatprep.mubr.f32.mxu0 0.0
  %4108 = vmatmul.mubr.f32.gmra.mxu0 %v3801
  %v4109 = vpop.f32.mrf.mxu0
  %v4110 = vadd.f32 %v3943, %v4109
  %v4111 = vpop.f32.mrf.mxu0
  %v4112 = vadd.f32 %v3947, %v4111
  %4113 = vdwg.mxu0
  %4114 = vmatprep.subr.mxu0 %v3927
  %4115 = vmatpush1.msra.mxu0 %v3926
  %4116 = vmatprep.subr.mxu0 %v3919
  %4117 = vmatpush1.msra.mxu0 %v3918
  %4118 = vmatprep.subr.mxu0 %v3911
  %4119 = vmatpush1.msra.mxu0 %v3910
  %4120 = vmatprep.subr.mxu0 %v3903
  %4121 = vmatpush1.msra.mxu0 %v3902
  %4122 = vmatprep.subr.mxu0 %v3895
  %4123 = vmatpush1.msra.mxu0 %v3894
  %4124 = vmatprep.subr.mxu0 %v3887
  %4125 = vmatpush1.msra.mxu0 %v3886
  %4126 = vmatprep.subr.mxu0 %v3879
  %4127 = vmatpush1.msra.mxu0 %v3878
  %4128 = vmatprep.subr.mxu0 %v3871
  %4129 = vmatpush1.msra.mxu0 %v3870
  %4130 = vmatprep.subr.mxu0 %v3863
  %4131 = vmatpush1.msra.mxu0 %v3862
  %4132 = vmatprep.subr.mxu0 %v3855
  %4133 = vmatpush1.msra.mxu0 %v3854
  %4134 = vmatprep.subr.mxu0 %v3847
  %4135 = vmatpush1.msra.mxu0 %v3846
  %4136 = vmatprep.subr.mxu0 %v3839
  %4137 = vmatpush1.msra.mxu0 %v3838
  %4138 = vmatprep.subr.mxu0 %v3831
  %4139 = vmatpush1.msra.mxu0 %v3830
  %4140 = vmatprep.subr.mxu0 %v3823
  %4141 = vmatpush1.msra.mxu0 %v3822
  %4142 = vmatprep.subr.mxu0 %v3815
  %4143 = vmatpush1.msra.mxu0 %v3814
  %4144 = vmatprep.subr.mxu0 %v3807
  %4145 = vmatpush1.msra.mxu0 %v3806
  %4146 = vmatprep.subr.mxu0 0.0
  %4147 = vmatpush2.msra.mxu0 0.0
  %4148 = vmatprep.subr.mxu0 0.0
  %4149 = vmatpush2.msra.mxu0 0.0
  %4150 = vmatprep.subr.mxu0 0.0
  %4151 = vmatpush2.msra.mxu0 0.0
  %4152 = vmatprep.subr.mxu0 0.0
  %4153 = vmatpush2.msra.mxu0 0.0
  %4154 = vmatprep.subr.mxu0 0.0
  %4155 = vmatpush2.msra.mxu0 0.0
  %4156 = vmatprep.subr.mxu0 0.0
  %4157 = vmatpush2.msra.mxu0 0.0
  %4158 = vmatprep.subr.mxu0 0.0
  %4159 = vmatpush2.msra.mxu0 0.0
  %4160 = vmatprep.subr.mxu0 0.0
  %4161 = vmatpush2.msra.mxu0 0.0
  %4162 = vmatprep.subr.mxu0 0.0
  %4163 = vmatpush2.msra.mxu0 0.0
  %4164 = vmatprep.subr.mxu0 0.0
  %4165 = vmatpush2.msra.mxu0 0.0
  %4166 = vmatprep.subr.mxu0 0.0
  %4167 = vmatpush2.msra.mxu0 0.0
  %4168 = vmatprep.subr.mxu0 0.0
  %4169 = vmatpush2.msra.mxu0 0.0
  %4170 = vmatprep.subr.mxu0 0.0
  %4171 = vmatpush2.msra.mxu0 0.0
  %4172 = vmatprep.subr.mxu0 0.0
  %4173 = vmatpush2.msra.mxu0 0.0
  %4174 = vmatprep.subr.mxu0 0.0
  %4175 = vmatpush2.msra.mxu0 0.0
  %4176 = vmatprep.subr.mxu0 0.0
  %4177 = vmatpush2.msra.mxu0 0.0
  %4178 = vmatprep.mubr.f32.mxu0 0.0
  %4179 = vmatmul.mubr.f32.gmra.mxu0 %v3801
  %v4180 = vpop.f32.mrf.mxu0
  %v4181 = vadd.f32 %v3951, %v4180
  %v4182 = vpop.f32.mrf.mxu0
  %v4183 = vadd.f32 %v3955, %v4182
  %4184 = vdwg.mxu0
  %4185 = vmatprep.subr.mxu0 %v3929
  %4186 = vmatpush1.msra.mxu0 %v3928
  %4187 = vmatprep.subr.mxu0 %v3921
  %4188 = vmatpush1.msra.mxu0 %v3920
  %4189 = vmatprep.subr.mxu0 %v3913
  %4190 = vmatpush1.msra.mxu0 %v3912
  %4191 = vmatprep.subr.mxu0 %v3905
  %4192 = vmatpush1.msra.mxu0 %v3904
  %4193 = vmatprep.subr.mxu0 %v3897
  %4194 = vmatpush1.msra.mxu0 %v3896
  %4195 = vmatprep.subr.mxu0 %v3889
  %4196 = vmatpush1.msra.mxu0 %v3888
  %4197 = vmatprep.subr.mxu0 %v3881
  %4198 = vmatpush1.msra.mxu0 %v3880
  %4199 = vmatprep.subr.mxu0 %v3873
  %4200 = vmatpush1.msra.mxu0 %v3872
  %4201 = vmatprep.subr.mxu0 %v3865
  %4202 = vmatpush1.msra.mxu0 %v3864
  %4203 = vmatprep.subr.mxu0 %v3857
  %4204 = vmatpush1.msra.mxu0 %v3856
  %4205 = vmatprep.subr.mxu0 %v3849
  %4206 = vmatpush1.msra.mxu0 %v3848
  %4207 = vmatprep.subr.mxu0 %v3841
  %4208 = vmatpush1.msra.mxu0 %v3840
  %4209 = vmatprep.subr.mxu0 %v3833
  %4210 = vmatpush1.msra.mxu0 %v3832
  %4211 = vmatprep.subr.mxu0 %v3825
  %4212 = vmatpush1.msra.mxu0 %v3824
  %4213 = vmatprep.subr.mxu0 %v3817
  %4214 = vmatpush1.msra.mxu0 %v3816
  %4215 = vmatprep.subr.mxu0 %v3809
  %4216 = vmatpush1.msra.mxu0 %v3808
  %4217 = vmatprep.subr.mxu0 0.0
  %4218 = vmatpush2.msra.mxu0 0.0
  %4219 = vmatprep.subr.mxu0 0.0
  %4220 = vmatpush2.msra.mxu0 0.0
  %4221 = vmatprep.subr.mxu0 0.0
  %4222 = vmatpush2.msra.mxu0 0.0
  %4223 = vmatprep.subr.mxu0 0.0
  %4224 = vmatpush2.msra.mxu0 0.0
  %4225 = vmatprep.subr.mxu0 0.0
  %4226 = vmatpush2.msra.mxu0 0.0
  %4227 = vmatprep.subr.mxu0 0.0
  %4228 = vmatpush2.msra.mxu0 0.0
  %4229 = vmatprep.subr.mxu0 0.0
  %4230 = vmatpush2.msra.mxu0 0.0
  %4231 = vmatprep.subr.mxu0 0.0
  %4232 = vmatpush2.msra.mxu0 0.0
  %4233 = vmatprep.subr.mxu0 0.0
  %4234 = vmatpush2.msra.mxu0 0.0
  %4235 = vmatprep.subr.mxu0 0.0
  %4236 = vmatpush2.msra.mxu0 0.0
  %4237 = vmatprep.subr.mxu0 0.0
  %4238 = vmatpush2.msra.mxu0 0.0
  %4239 = vmatprep.subr.mxu0 0.0
  %4240 = vmatpush2.msra.mxu0 0.0
  %4241 = vmatprep.subr.mxu0 0.0
  %4242 = vmatpush2.msra.mxu0 0.0
  %4243 = vmatprep.subr.mxu0 0.0
  %4244 = vmatpush2.msra.mxu0 0.0
  %4245 = vmatprep.subr.mxu0 0.0
  %4246 = vmatpush2.msra.mxu0 0.0
  %4247 = vmatprep.subr.mxu0 0.0
  %4248 = vmatpush2.msra.mxu0 0.0
  %4249 = vmatprep.mubr.f32.mxu0 0.0
  %4250 = vmatmul.mubr.f32.gmra.mxu0 %v3801
  %v4251 = vpop.f32.mrf.mxu0
  %v4252 = vadd.f32 %v3959, %v4251
  %v4253 = vpop.f32.mrf.mxu0
  %v4254 = vadd.f32 %v3963, %v4253
  %4255 = vdwg.mxu0
  %v4256 = vmax.f32 %v4039, 0.0
  %v4257 = vmax.f32 %v4041, 0.0
  %v4258 = vmax.f32 %v4110, 0.0
  %v4259 = vmax.f32 %v4112, 0.0
  %v4260 = vmax.f32 %v4181, 0.0
  %v4261 = vmax.f32 %v4183, 0.0
  %v4262 = vmax.f32 %v4252, 0.0
  %v4263 = vmax.f32 %v4254, 0.0
  %s4264 = scalar_lea.vmem %s10, 1024
  %v4265 = vld [vmem:[%s4264] sm:$0xff]
  %v4266 = vld [vmem:[%s4264 + $0x8] sm:$0xff]
  %v4267 = vld [vmem:[%s4264 + $0x10] sm:$0xff]
  %v4268 = vld [vmem:[%s4264 + $0x18] sm:$0xff]
  %v4269 = vld [vmem:[%s4264 + $0x20] sm:$0xff]
  %v4270 = vld [vmem:[%s4264 + $0x28] sm:$0xff]
  %v4271 = vld [vmem:[%s4264 + $0x30] sm:$0xff]
  %v4272 = vld [vmem:[%s4264 + $0x38] sm:$0xff]
  %v4273 = vld [vmem:[%s4264 + $0x40] sm:$0xff]
  %v4274 = vld [vmem:[%s4264 + $0x48] sm:$0xff]
  %v4275 = vld [vmem:[%s4264 + $0x50] sm:$0xff]
  %v4276 = vld [vmem:[%s4264 + $0x58] sm:$0xff]
  %v4277 = vld [vmem:[%s4264 + $0x60] sm:$0xff]
  %v4278 = vld [vmem:[%s4264 + $0x68] sm:$0xff]
  %v4279 = vld [vmem:[%s4264 + $0x70] sm:$0xff]
  %v4280 = vld [vmem:[%s4264 + $0x78] sm:$0xff]
  %v4281 = vld [vmem:[%s4264 + $0x80] sm:$0xff]
  %v4282 = vld [vmem:[%s4264 + $0x88] sm:$0xff]
  %v4283 = vld [vmem:[%s4264 + $0x90] sm:$0xff]
  %v4284 = vld [vmem:[%s4264 + $0x98] sm:$0xff]
  %v4285 = vld [vmem:[%s4264 + $0xa0] sm:$0xff]
  %v4286 = vld [vmem:[%s4264 + $0xa8] sm:$0xff]
  %v4287 = vld [vmem:[%s4264 + $0xb0] sm:$0xff]
  %v4288 = vld [vmem:[%s4264 + $0xb8] sm:$0xff]
  %v4289 = vld [vmem:[%s4264 + $0xc0] sm:$0xff]
  %v4290 = vld [vmem:[%s4264 + $0xc8] sm:$0xff]
  %v4291 = vld [vmem:[%s4264 + $0xd0] sm:$0xff]
  %v4292 = vld [vmem:[%s4264 + $0xd8] sm:$0xff]
  %v4293 = vld [vmem:[%s4264 + $0xe0] sm:$0xff]
  %v4294 = vld [vmem:[%s4264 + $0xe8] sm:$0xff]
  %v4295 = vld [vmem:[%s4264 + $0xf0] sm:$0xff]
  %v4296 = vld [vmem:[%s4264 + $0xf8] sm:$0xff]
  %v4297 = vld [vmem:[%s4264 + $0x100] sm:$0xff]
  %v4298 = vld [vmem:[%s4264 + $0x108] sm:$0xff]
  %v4299 = vld [vmem:[%s4264 + $0x110] sm:$0xff]
  %v4300 = vld [vmem:[%s4264 + $0x118] sm:$0xff]
  %v4301 = vld [vmem:[%s4264 + $0x120] sm:$0xff]
  %v4302 = vld [vmem:[%s4264 + $0x128] sm:$0xff]
  %v4303 = vld [vmem:[%s4264 + $0x130] sm:$0xff]
  %v4304 = vld [vmem:[%s4264 + $0x138] sm:$0xff]
  %v4305 = vld [vmem:[%s4264 + $0x140] sm:$0xff]
  %v4306 = vld [vmem:[%s4264 + $0x148] sm:$0xff]
  %v4307 = vld [vmem:[%s4264 + $0x150] sm:$0xff]
  %v4308 = vld [vmem:[%s4264 + $0x158] sm:$0xff]
  %v4309 = vld [vmem:[%s4264 + $0x160] sm:$0xff]
  %v4310 = vld [vmem:[%s4264 + $0x168] sm:$0xff]
  %v4311 = vld [vmem:[%s4264 + $0x170] sm:$0xff]
  %v4312 = vld [vmem:[%s4264 + $0x178] sm:$0xff]
  %v4313 = vld [vmem:[%s4264 + $0x180] sm:$0xff]
  %v4314 = vld [vmem:[%s4264 + $0x188] sm:$0xff]
  %v4315 = vld [vmem:[%s4264 + $0x190] sm:$0xff]
  %v4316 = vld [vmem:[%s4264 + $0x198] sm:$0xff]
  %v4317 = vld [vmem:[%s4264 + $0x1a0] sm:$0xff]
  %v4318 = vld [vmem:[%s4264 + $0x1a8] sm:$0xff]
  %v4319 = vld [vmem:[%s4264 + $0x1b0] sm:$0xff]
  %v4320 = vld [vmem:[%s4264 + $0x1b8] sm:$0xff]
  %v4321 = vld [vmem:[%s4264 + $0x1c0] sm:$0xff]
  %v4322 = vld [vmem:[%s4264 + $0x1c8] sm:$0xff]
  %v4323 = vld [vmem:[%s4264 + $0x1d0] sm:$0xff]
  %v4324 = vld [vmem:[%s4264 + $0x1d8] sm:$0xff]
  %v4325 = vld [vmem:[%s4264 + $0x1e0] sm:$0xff]
  %v4326 = vld [vmem:[%s4264 + $0x1e8] sm:$0xff]
  %v4327 = vld [vmem:[%s4264 + $0x1f0] sm:$0xff]
  %v4328 = vld [vmem:[%s4264 + $0x1f8] sm:$0xff]
  %v4329 = vld [vmem:[%s4264 + $0x200] sm:$0xff]
  %v4330 = vld [vmem:[%s4264 + $0x208] sm:$0xff]
  %v4331 = vld [vmem:[%s4264 + $0x210] sm:$0xff]
  %v4332 = vld [vmem:[%s4264 + $0x218] sm:$0xff]
  %v4333 = vld [vmem:[%s4264 + $0x220] sm:$0xff]
  %v4334 = vld [vmem:[%s4264 + $0x228] sm:$0xff]
  %v4335 = vld [vmem:[%s4264 + $0x230] sm:$0xff]
  %v4336 = vld [vmem:[%s4264 + $0x238] sm:$0xff]
  %v4337 = vld [vmem:[%s4264 + $0x240] sm:$0xff]
  %v4338 = vld [vmem:[%s4264 + $0x248] sm:$0xff]
  %v4339 = vld [vmem:[%s4264 + $0x250] sm:$0xff]
  %v4340 = vld [vmem:[%s4264 + $0x258] sm:$0xff]
  %v4341 = vld [vmem:[%s4264 + $0x260] sm:$0xff]
  %v4342 = vld [vmem:[%s4264 + $0x268] sm:$0xff]
  %v4343 = vld [vmem:[%s4264 + $0x270] sm:$0xff]
  %v4344 = vld [vmem:[%s4264 + $0x278] sm:$0xff]
  %v4345 = vld [vmem:[%s4264 + $0x280] sm:$0xff]
  %v4346 = vld [vmem:[%s4264 + $0x288] sm:$0xff]
  %v4347 = vld [vmem:[%s4264 + $0x290] sm:$0xff]
  %v4348 = vld [vmem:[%s4264 + $0x298] sm:$0xff]
  %v4349 = vld [vmem:[%s4264 + $0x2a0] sm:$0xff]
  %v4350 = vld [vmem:[%s4264 + $0x2a8] sm:$0xff]
  %v4351 = vld [vmem:[%s4264 + $0x2b0] sm:$0xff]
  %v4352 = vld [vmem:[%s4264 + $0x2b8] sm:$0xff]
  %v4353 = vld [vmem:[%s4264 + $0x2c0] sm:$0xff]
  %v4354 = vld [vmem:[%s4264 + $0x2c8] sm:$0xff]
  %v4355 = vld [vmem:[%s4264 + $0x2d0] sm:$0xff]
  %v4356 = vld [vmem:[%s4264 + $0x2d8] sm:$0xff]
  %v4357 = vld [vmem:[%s4264 + $0x2e0] sm:$0xff]
  %v4358 = vld [vmem:[%s4264 + $0x2e8] sm:$0xff]
  %v4359 = vld [vmem:[%s4264 + $0x2f0] sm:$0xff]
  %v4360 = vld [vmem:[%s4264 + $0x2f8] sm:$0xff]
  %v4361 = vld [vmem:[%s4264 + $0x300] sm:$0xff]
  %v4362 = vld [vmem:[%s4264 + $0x308] sm:$0xff]
  %v4363 = vld [vmem:[%s4264 + $0x310] sm:$0xff]
  %v4364 = vld [vmem:[%s4264 + $0x318] sm:$0xff]
  %v4365 = vld [vmem:[%s4264 + $0x320] sm:$0xff]
  %v4366 = vld [vmem:[%s4264 + $0x328] sm:$0xff]
  %v4367 = vld [vmem:[%s4264 + $0x330] sm:$0xff]
  %v4368 = vld [vmem:[%s4264 + $0x338] sm:$0xff]
  %v4369 = vld [vmem:[%s4264 + $0x340] sm:$0xff]
  %v4370 = vld [vmem:[%s4264 + $0x348] sm:$0xff]
  %v4371 = vld [vmem:[%s4264 + $0x350] sm:$0xff]
  %v4372 = vld [vmem:[%s4264 + $0x358] sm:$0xff]
  %v4373 = vld [vmem:[%s4264 + $0x360] sm:$0xff]
  %v4374 = vld [vmem:[%s4264 + $0x368] sm:$0xff]
  %v4375 = vld [vmem:[%s4264 + $0x370] sm:$0xff]
  %v4376 = vld [vmem:[%s4264 + $0x378] sm:$0xff]
  %v4377 = vld [vmem:[%s4264 + $0x380] sm:$0xff]
  %v4378 = vld [vmem:[%s4264 + $0x388] sm:$0xff]
  %v4379 = vld [vmem:[%s4264 + $0x390] sm:$0xff]
  %v4380 = vld [vmem:[%s4264 + $0x398] sm:$0xff]
  %v4381 = vld [vmem:[%s4264 + $0x3a0] sm:$0xff]
  %v4382 = vld [vmem:[%s4264 + $0x3a8] sm:$0xff]
  %v4383 = vld [vmem:[%s4264 + $0x3b0] sm:$0xff]
  %v4384 = vld [vmem:[%s4264 + $0x3b8] sm:$0xff]
  %v4385 = vld [vmem:[%s4264 + $0x3c0] sm:$0xff]
  %v4386 = vld [vmem:[%s4264 + $0x3c8] sm:$0xff]
  %v4387 = vld [vmem:[%s4264 + $0x3d0] sm:$0xff]
  %v4388 = vld [vmem:[%s4264 + $0x3d8] sm:$0xff]
  %v4389 = vld [vmem:[%s4264 + $0x3e0] sm:$0xff]
  %v4390 = vld [vmem:[%s4264 + $0x3e8] sm:$0xff]
  %v4391 = vld [vmem:[%s4264 + $0x3f0] sm:$0xff]
  %v4392 = vld [vmem:[%s4264 + $0x3f8] sm:$0xff]
  %s4393 = scalar_lea.vmem %s11, 1
  %v4394 = vld [vmem:[%s4393] ss:$4 sm:$0xff]
  %v4396 = vlaneseq
  %v4397 = vshrl.u32 %v4396, 7
  %v4398 = vsub.s32 0, %v4397
  %v4399 = vrot.slane %v4394, %v4398
  %v4400 = vlaneseq
  %v4401 = vshrl.u32 %v4400, 7
  %v4402 = vsub.s32 1, %v4401
  %v4403 = vrot.slane %v4394, %v4402
  %v4404 = vlaneseq
  %v4405 = vshrl.u32 %v4404, 7
  %v4406 = vsub.s32 2, %v4405
  %v4407 = vrot.slane %v4394, %v4406
  %v4408 = vlaneseq
  %v4409 = vshrl.u32 %v4408, 7
  %v4410 = vsub.s32 3, %v4409
  %v4411 = vrot.slane %v4394, %v4410
  %v4412 = vlaneseq
  %v4413 = vshrl.u32 %v4412, 7
  %v4414 = vsub.s32 4, %v4413
  %v4415 = vrot.slane %v4394, %v4414
  %v4416 = vlaneseq
  %v4417 = vshrl.u32 %v4416, 7
  %v4418 = vsub.s32 5, %v4417
  %v4419 = vrot.slane %v4394, %v4418
  %v4420 = vlaneseq
  %v4421 = vshrl.u32 %v4420, 7
  %v4422 = vsub.s32 6, %v4421
  %v4423 = vrot.slane %v4394, %v4422
  %v4424 = vlaneseq
  %v4425 = vshrl.u32 %v4424, 7
  %v4426 = vsub.s32 7, %v4425
  %v4427 = vrot.slane %v4394, %v4426
  %4436 = vmatprep.subr.mxu0 %v4386
  %4437 = vmatpush1.msra.mxu0 %v4385
  %4438 = vmatprep.subr.mxu0 %v4378
  %4439 = vmatpush1.msra.mxu0 %v4377
  %4440 = vmatprep.subr.mxu0 %v4370
  %4441 = vmatpush1.msra.mxu0 %v4369
  %4442 = vmatprep.subr.mxu0 %v4362
  %4443 = vmatpush1.msra.mxu0 %v4361
  %4444 = vmatprep.subr.mxu0 %v4354
  %4445 = vmatpush1.msra.mxu0 %v4353
  %4446 = vmatprep.subr.mxu0 %v4346
  %4447 = vmatpush1.msra.mxu0 %v4345
  %4448 = vmatprep.subr.mxu0 %v4338
  %4449 = vmatpush1.msra.mxu0 %v4337
  %4450 = vmatprep.subr.mxu0 %v4330
  %4451 = vmatpush1.msra.mxu0 %v4329
  %4452 = vmatprep.subr.mxu0 %v4322
  %4453 = vmatpush1.msra.mxu0 %v4321
  %4454 = vmatprep.subr.mxu0 %v4314
  %4455 = vmatpush1.msra.mxu0 %v4313
  %4456 = vmatprep.subr.mxu0 %v4306
  %4457 = vmatpush1.msra.mxu0 %v4305
  %4458 = vmatprep.subr.mxu0 %v4298
  %4459 = vmatpush1.msra.mxu0 %v4297
  %4460 = vmatprep.subr.mxu0 %v4290
  %4461 = vmatpush1.msra.mxu0 %v4289
  %4462 = vmatprep.subr.mxu0 %v4282
  %4463 = vmatpush1.msra.mxu0 %v4281
  %4464 = vmatprep.subr.mxu0 %v4274
  %4465 = vmatpush1.msra.mxu0 %v4273
  %4466 = vmatprep.subr.mxu0 %v4266
  %4467 = vmatpush1.msra.mxu0 %v4265
  %4468 = vmatprep.subr.mxu0 0.0
  %4469 = vmatpush2.msra.mxu0 0.0
  %4470 = vmatprep.subr.mxu0 0.0
  %4471 = vmatpush2.msra.mxu0 0.0
  %4472 = vmatprep.subr.mxu0 0.0
  %4473 = vmatpush2.msra.mxu0 0.0
  %4474 = vmatprep.subr.mxu0 0.0
  %4475 = vmatpush2.msra.mxu0 0.0
  %4476 = vmatprep.subr.mxu0 0.0
  %4477 = vmatpush2.msra.mxu0 0.0
  %4478 = vmatprep.subr.mxu0 0.0
  %4479 = vmatpush2.msra.mxu0 0.0
  %4480 = vmatprep.subr.mxu0 0.0
  %4481 = vmatpush2.msra.mxu0 0.0
  %4482 = vmatprep.subr.mxu0 0.0
  %4483 = vmatpush2.msra.mxu0 0.0
  %4484 = vmatprep.subr.mxu0 0.0
  %4485 = vmatpush2.msra.mxu0 0.0
  %4486 = vmatprep.subr.mxu0 0.0
  %4487 = vmatpush2.msra.mxu0 0.0
  %4488 = vmatprep.subr.mxu0 0.0
  %4489 = vmatpush2.msra.mxu0 0.0
  %4490 = vmatprep.subr.mxu0 0.0
  %4491 = vmatpush2.msra.mxu0 0.0
  %4492 = vmatprep.subr.mxu0 0.0
  %4493 = vmatpush2.msra.mxu0 0.0
  %4494 = vmatprep.subr.mxu0 0.0
  %4495 = vmatpush2.msra.mxu0 0.0
  %4496 = vmatprep.subr.mxu0 0.0
  %4497 = vmatpush2.msra.mxu0 0.0
  %4498 = vmatprep.subr.mxu0 0.0
  %4499 = vmatpush2.msra.mxu0 0.0
  %4500 = vmatprep.mubr.f32.mxu0 0.0
  %4501 = vmatmul.mubr.f32.gmra.mxu0 %v3801
  %v4502 = vpop.f32.mrf.mxu0
  %v4503 = vadd.f32 %v4399, %v4502
  %v4504 = vpop.f32.mrf.mxu0
  %v4505 = vadd.f32 %v4403, %v4504
  %4506 = vdwg.mxu0
  %4507 = vmatprep.subr.mxu0 %v4388
  %4508 = vmatpush1.msra.mxu0 %v4387
  %4509 = vmatprep.subr.mxu0 %v4380
  %4510 = vmatpush1.msra.mxu0 %v4379
  %4511 = vmatprep.subr.mxu0 %v4372
  %4512 = vmatpush1.msra.mxu0 %v4371
  %4513 = vmatprep.subr.mxu0 %v4364
  %4514 = vmatpush1.msra.mxu0 %v4363
  %4515 = vmatprep.subr.mxu0 %v4356
  %4516 = vmatpush1.msra.mxu0 %v4355
  %4517 = vmatprep.subr.mxu0 %v4348
  %4518 = vmatpush1.msra.mxu0 %v4347
  %4519 = vmatprep.subr.mxu0 %v4340
  %4520 = vmatpush1.msra.mxu0 %v4339
  %4521 = vmatprep.subr.mxu0 %v4332
  %4522 = vmatpush1.msra.mxu0 %v4331
  %4523 = vmatprep.subr.mxu0 %v4324
  %4524 = vmatpush1.msra.mxu0 %v4323
  %4525 = vmatprep.subr.mxu0 %v4316
  %4526 = vmatpush1.msra.mxu0 %v4315
  %4527 = vmatprep.subr.mxu0 %v4308
  %4528 = vmatpush1.msra.mxu0 %v4307
  %4529 = vmatprep.subr.mxu0 %v4300
  %4530 = vmatpush1.msra.mxu0 %v4299
  %4531 = vmatprep.subr.mxu0 %v4292
  %4532 = vmatpush1.msra.mxu0 %v4291
  %4533 = vmatprep.subr.mxu0 %v4284
  %4534 = vmatpush1.msra.mxu0 %v4283
  %4535 = vmatprep.subr.mxu0 %v4276
  %4536 = vmatpush1.msra.mxu0 %v4275
  %4537 = vmatprep.subr.mxu0 %v4268
  %4538 = vmatpush1.msra.mxu0 %v4267
  %4539 = vmatprep.subr.mxu0 0.0
  %4540 = vmatpush2.msra.mxu0 0.0
  %4541 = vmatprep.subr.mxu0 0.0
  %4542 = vmatpush2.msra.mxu0 0.0
  %4543 = vmatprep.subr.mxu0 0.0
  %4544 = vmatpush2.msra.mxu0 0.0
  %4545 = vmatprep.subr.mxu0 0.0
  %4546 = vmatpush2.msra.mxu0 0.0
  %4547 = vmatprep.subr.mxu0 0.0
  %4548 = vmatpush2.msra.mxu0 0.0
  %4549 = vmatprep.subr.mxu0 0.0
  %4550 = vmatpush2.msra.mxu0 0.0
  %4551 = vmatprep.subr.mxu0 0.0
  %4552 = vmatpush2.msra.mxu0 0.0
  %4553 = vmatprep.subr.mxu0 0.0
  %4554 = vmatpush2.msra.mxu0 0.0
  %4555 = vmatprep.subr.mxu0 0.0
  %4556 = vmatpush2.msra.mxu0 0.0
  %4557 = vmatprep.subr.mxu0 0.0
  %4558 = vmatpush2.msra.mxu0 0.0
  %4559 = vmatprep.subr.mxu0 0.0
  %4560 = vmatpush2.msra.mxu0 0.0
  %4561 = vmatprep.subr.mxu0 0.0
  %4562 = vmatpush2.msra.mxu0 0.0
  %4563 = vmatprep.subr.mxu0 0.0
  %4564 = vmatpush2.msra.mxu0 0.0
  %4565 = vmatprep.subr.mxu0 0.0
  %4566 = vmatpush2.msra.mxu0 0.0
  %4567 = vmatprep.subr.mxu0 0.0
  %4568 = vmatpush2.msra.mxu0 0.0
  %4569 = vmatprep.subr.mxu0 0.0
  %4570 = vmatpush2.msra.mxu0 0.0
  %4571 = vmatprep.mubr.f32.mxu0 0.0
  %4572 = vmatmul.mubr.f32.gmra.mxu0 %v3801
  %v4573 = vpop.f32.mrf.mxu0
  %v4574 = vadd.f32 %v4407, %v4573
  %v4575 = vpop.f32.mrf.mxu0
  %v4576 = vadd.f32 %v4411, %v4575
  %4577 = vdwg.mxu0
  %4578 = vmatprep.subr.mxu0 %v4390
  %4579 = vmatpush1.msra.mxu0 %v4389
  %4580 = vmatprep.subr.mxu0 %v4382
  %4581 = vmatpush1.msra.mxu0 %v4381
  %4582 = vmatprep.subr.mxu0 %v4374
  %4583 = vmatpush1.msra.mxu0 %v4373
  %4584 = vmatprep.subr.mxu0 %v4366
  %4585 = vmatpush1.msra.mxu0 %v4365
  %4586 = vmatprep.subr.mxu0 %v4358
  %4587 = vmatpush1.msra.mxu0 %v4357
  %4588 = vmatprep.subr.mxu0 %v4350
  %4589 = vmatpush1.msra.mxu0 %v4349
  %4590 = vmatprep.subr.mxu0 %v4342
  %4591 = vmatpush1.msra.mxu0 %v4341
  %4592 = vmatprep.subr.mxu0 %v4334
  %4593 = vmatpush1.msra.mxu0 %v4333
  %4594 = vmatprep.subr.mxu0 %v4326
  %4595 = vmatpush1.msra.mxu0 %v4325
  %4596 = vmatprep.subr.mxu0 %v4318
  %4597 = vmatpush1.msra.mxu0 %v4317
  %4598 = vmatprep.subr.mxu0 %v4310
  %4599 = vmatpush1.msra.mxu0 %v4309
  %4600 = vmatprep.subr.mxu0 %v4302
  %4601 = vmatpush1.msra.mxu0 %v4301
  %4602 = vmatprep.subr.mxu0 %v4294
  %4603 = vmatpush1.msra.mxu0 %v4293
  %4604 = vmatprep.subr.mxu0 %v4286
  %4605 = vmatpush1.msra.mxu0 %v4285
  %4606 = vmatprep.subr.mxu0 %v4278
  %4607 = vmatpush1.msra.mxu0 %v4277
  %4608 = vmatprep.subr.mxu0 %v4270
  %4609 = vmatpush1.msra.mxu0 %v4269
  %4610 = vmatprep.subr.mxu0 0.0
  %4611 = vmatpush2.msra.mxu0 0.0
  %4612 = vmatprep.subr.mxu0 0.0
  %4613 = vmatpush2.msra.mxu0 0.0
  %4614 = vmatprep.subr.mxu0 0.0
  %4615 = vmatpush2.msra.mxu0 0.0
  %4616 = vmatprep.subr.mxu0 0.0
  %4617 = vmatpush2.msra.mxu0 0.0
  %4618 = vmatprep.subr.mxu0 0.0
  %4619 = vmatpush2.msra.mxu0 0.0
  %4620 = vmatprep.subr.mxu0 0.0
  %4621 = vmatpush2.msra.mxu0 0.0
  %4622 = vmatprep.subr.mxu0 0.0
  %4623 = vmatpush2.msra.mxu0 0.0
  %4624 = vmatprep.subr.mxu0 0.0
  %4625 = vmatpush2.msra.mxu0 0.0
  %4626 = vmatprep.subr.mxu0 0.0
  %4627 = vmatpush2.msra.mxu0 0.0
  %4628 = vmatprep.subr.mxu0 0.0
  %4629 = vmatpush2.msra.mxu0 0.0
  %4630 = vmatprep.subr.mxu0 0.0
  %4631 = vmatpush2.msra.mxu0 0.0
  %4632 = vmatprep.subr.mxu0 0.0
  %4633 = vmatpush2.msra.mxu0 0.0
  %4634 = vmatprep.subr.mxu0 0.0
  %4635 = vmatpush2.msra.mxu0 0.0
  %4636 = vmatprep.subr.mxu0 0.0
  %4637 = vmatpush2.msra.mxu0 0.0
  %4638 = vmatprep.subr.mxu0 0.0
  %4639 = vmatpush2.msra.mxu0 0.0
  %4640 = vmatprep.subr.mxu0 0.0
  %4641 = vmatpush2.msra.mxu0 0.0
  %4642 = vmatprep.mubr.f32.mxu0 0.0
  %4643 = vmatmul.mubr.f32.gmra.mxu0 %v3801
  %v4644 = vpop.f32.mrf.mxu0
  %v4645 = vadd.f32 %v4415, %v4644
  %v4646 = vpop.f32.mrf.mxu0
  %v4647 = vadd.f32 %v4419, %v4646
  %4648 = vdwg.mxu0
  %4649 = vmatprep.subr.mxu0 %v4392
  %4650 = vmatpush1.msra.mxu0 %v4391
  %4651 = vmatprep.subr.mxu0 %v4384
  %4652 = vmatpush1.msra.mxu0 %v4383
  %4653 = vmatprep.subr.mxu0 %v4376
  %4654 = vmatpush1.msra.mxu0 %v4375
  %4655 = vmatprep.subr.mxu0 %v4368
  %4656 = vmatpush1.msra.mxu0 %v4367
  %4657 = vmatprep.subr.mxu0 %v4360
  %4658 = vmatpush1.msra.mxu0 %v4359
  %4659 = vmatprep.subr.mxu0 %v4352
  %4660 = vmatpush1.msra.mxu0 %v4351
  %4661 = vmatprep.subr.mxu0 %v4344
  %4662 = vmatpush1.msra.mxu0 %v4343
  %4663 = vmatprep.subr.mxu0 %v4336
  %4664 = vmatpush1.msra.mxu0 %v4335
  %4665 = vmatprep.subr.mxu0 %v4328
  %4666 = vmatpush1.msra.mxu0 %v4327
  %4667 = vmatprep.subr.mxu0 %v4320
  %4668 = vmatpush1.msra.mxu0 %v4319
  %4669 = vmatprep.subr.mxu0 %v4312
  %4670 = vmatpush1.msra.mxu0 %v4311
  %4671 = vmatprep.subr.mxu0 %v4304
  %4672 = vmatpush1.msra.mxu0 %v4303
  %4673 = vmatprep.subr.mxu0 %v4296
  %4674 = vmatpush1.msra.mxu0 %v4295
  %4675 = vmatprep.subr.mxu0 %v4288
  %4676 = vmatpush1.msra.mxu0 %v4287
  %4677 = vmatprep.subr.mxu0 %v4280
  %4678 = vmatpush1.msra.mxu0 %v4279
  %4679 = vmatprep.subr.mxu0 %v4272
  %4680 = vmatpush1.msra.mxu0 %v4271
  %4681 = vmatprep.subr.mxu0 0.0
  %4682 = vmatpush2.msra.mxu0 0.0
  %4683 = vmatprep.subr.mxu0 0.0
  %4684 = vmatpush2.msra.mxu0 0.0
  %4685 = vmatprep.subr.mxu0 0.0
  %4686 = vmatpush2.msra.mxu0 0.0
  %4687 = vmatprep.subr.mxu0 0.0
  %4688 = vmatpush2.msra.mxu0 0.0
  %4689 = vmatprep.subr.mxu0 0.0
  %4690 = vmatpush2.msra.mxu0 0.0
  %4691 = vmatprep.subr.mxu0 0.0
  %4692 = vmatpush2.msra.mxu0 0.0
  %4693 = vmatprep.subr.mxu0 0.0
  %4694 = vmatpush2.msra.mxu0 0.0
  %4695 = vmatprep.subr.mxu0 0.0
  %4696 = vmatpush2.msra.mxu0 0.0
  %4697 = vmatprep.subr.mxu0 0.0
  %4698 = vmatpush2.msra.mxu0 0.0
  %4699 = vmatprep.subr.mxu0 0.0
  %4700 = vmatpush2.msra.mxu0 0.0
  %4701 = vmatprep.subr.mxu0 0.0
  %4702 = vmatpush2.msra.mxu0 0.0
  %4703 = vmatprep.subr.mxu0 0.0
  %4704 = vmatpush2.msra.mxu0 0.0
  %4705 = vmatprep.subr.mxu0 0.0
  %4706 = vmatpush2.msra.mxu0 0.0
  %4707 = vmatprep.subr.mxu0 0.0
  %4708 = vmatpush2.msra.mxu0 0.0
  %4709 = vmatprep.subr.mxu0 0.0
  %4710 = vmatpush2.msra.mxu0 0.0
  %4711 = vmatprep.subr.mxu0 0.0
  %4712 = vmatpush2.msra.mxu0 0.0
  %4713 = vmatprep.mubr.f32.mxu0 0.0
  %4714 = vmatmul.mubr.f32.gmra.mxu0 %v3801
  %v4715 = vpop.f32.mrf.mxu0
  %v4716 = vadd.f32 %v4423, %v4715
  %v4717 = vpop.f32.mrf.mxu0
  %v4718 = vadd.f32 %v4427, %v4717
  %4719 = vdwg.mxu0
  %v4720 = vmax.f32 %v4503, 0.0
  %v4721 = vmax.f32 %v4505, 0.0
  %v4722 = vmax.f32 %v4574, 0.0
  %v4723 = vmax.f32 %v4576, 0.0
  %v4724 = vmax.f32 %v4645, 0.0
  %v4725 = vmax.f32 %v4647, 0.0
  %v4726 = vmax.f32 %v4716, 0.0
  %v4727 = vmax.f32 %v4718, 0.0
  %s4728 = scalar_lea.vmem %s10, 2048
  %v4729 = vld [vmem:[%s4728] sm:$0xff]
  %v4730 = vld [vmem:[%s4728 + $0x8] sm:$0xff]
  %v4731 = vld [vmem:[%s4728 + $0x10] sm:$0xff]
  %v4732 = vld [vmem:[%s4728 + $0x18] sm:$0xff]
  %v4733 = vld [vmem:[%s4728 + $0x20] sm:$0xff]
  %v4734 = vld [vmem:[%s4728 + $0x28] sm:$0xff]
  %v4735 = vld [vmem:[%s4728 + $0x30] sm:$0xff]
  %v4736 = vld [vmem:[%s4728 + $0x38] sm:$0xff]
  %v4737 = vld [vmem:[%s4728 + $0x40] sm:$0xff]
  %v4738 = vld [vmem:[%s4728 + $0x48] sm:$0xff]
  %v4739 = vld [vmem:[%s4728 + $0x50] sm:$0xff]
  %v4740 = vld [vmem:[%s4728 + $0x58] sm:$0xff]
  %v4741 = vld [vmem:[%s4728 + $0x60] sm:$0xff]
  %v4742 = vld [vmem:[%s4728 + $0x68] sm:$0xff]
  %v4743 = vld [vmem:[%s4728 + $0x70] sm:$0xff]
  %v4744 = vld [vmem:[%s4728 + $0x78] sm:$0xff]
  %v4745 = vld [vmem:[%s4728 + $0x80] sm:$0xff]
  %v4746 = vld [vmem:[%s4728 + $0x88] sm:$0xff]
  %v4747 = vld [vmem:[%s4728 + $0x90] sm:$0xff]
  %v4748 = vld [vmem:[%s4728 + $0x98] sm:$0xff]
  %v4749 = vld [vmem:[%s4728 + $0xa0] sm:$0xff]
  %v4750 = vld [vmem:[%s4728 + $0xa8] sm:$0xff]
  %v4751 = vld [vmem:[%s4728 + $0xb0] sm:$0xff]
  %v4752 = vld [vmem:[%s4728 + $0xb8] sm:$0xff]
  %v4753 = vld [vmem:[%s4728 + $0xc0] sm:$0xff]
  %v4754 = vld [vmem:[%s4728 + $0xc8] sm:$0xff]
  %v4755 = vld [vmem:[%s4728 + $0xd0] sm:$0xff]
  %v4756 = vld [vmem:[%s4728 + $0xd8] sm:$0xff]
  %v4757 = vld [vmem:[%s4728 + $0xe0] sm:$0xff]
  %v4758 = vld [vmem:[%s4728 + $0xe8] sm:$0xff]
  %v4759 = vld [vmem:[%s4728 + $0xf0] sm:$0xff]
  %v4760 = vld [vmem:[%s4728 + $0xf8] sm:$0xff]
  %v4761 = vld [vmem:[%s4728 + $0x100] sm:$0xff]
  %v4762 = vld [vmem:[%s4728 + $0x108] sm:$0xff]
  %v4763 = vld [vmem:[%s4728 + $0x110] sm:$0xff]
  %v4764 = vld [vmem:[%s4728 + $0x118] sm:$0xff]
  %v4765 = vld [vmem:[%s4728 + $0x120] sm:$0xff]
  %v4766 = vld [vmem:[%s4728 + $0x128] sm:$0xff]
  %v4767 = vld [vmem:[%s4728 + $0x130] sm:$0xff]
  %v4768 = vld [vmem:[%s4728 + $0x138] sm:$0xff]
  %v4769 = vld [vmem:[%s4728 + $0x140] sm:$0xff]
  %v4770 = vld [vmem:[%s4728 + $0x148] sm:$0xff]
  %v4771 = vld [vmem:[%s4728 + $0x150] sm:$0xff]
  %v4772 = vld [vmem:[%s4728 + $0x158] sm:$0xff]
  %v4773 = vld [vmem:[%s4728 + $0x160] sm:$0xff]
  %v4774 = vld [vmem:[%s4728 + $0x168] sm:$0xff]
  %v4775 = vld [vmem:[%s4728 + $0x170] sm:$0xff]
  %v4776 = vld [vmem:[%s4728 + $0x178] sm:$0xff]
  %v4777 = vld [vmem:[%s4728 + $0x180] sm:$0xff]
  %v4778 = vld [vmem:[%s4728 + $0x188] sm:$0xff]
  %v4779 = vld [vmem:[%s4728 + $0x190] sm:$0xff]
  %v4780 = vld [vmem:[%s4728 + $0x198] sm:$0xff]
  %v4781 = vld [vmem:[%s4728 + $0x1a0] sm:$0xff]
  %v4782 = vld [vmem:[%s4728 + $0x1a8] sm:$0xff]
  %v4783 = vld [vmem:[%s4728 + $0x1b0] sm:$0xff]
  %v4784 = vld [vmem:[%s4728 + $0x1b8] sm:$0xff]
  %v4785 = vld [vmem:[%s4728 + $0x1c0] sm:$0xff]
  %v4786 = vld [vmem:[%s4728 + $0x1c8] sm:$0xff]
  %v4787 = vld [vmem:[%s4728 + $0x1d0] sm:$0xff]
  %v4788 = vld [vmem:[%s4728 + $0x1d8] sm:$0xff]
  %v4789 = vld [vmem:[%s4728 + $0x1e0] sm:$0xff]
  %v4790 = vld [vmem:[%s4728 + $0x1e8] sm:$0xff]
  %v4791 = vld [vmem:[%s4728 + $0x1f0] sm:$0xff]
  %v4792 = vld [vmem:[%s4728 + $0x1f8] sm:$0xff]
  %v4793 = vld [vmem:[%s4728 + $0x200] sm:$0xff]
  %v4794 = vld [vmem:[%s4728 + $0x208] sm:$0xff]
  %v4795 = vld [vmem:[%s4728 + $0x210] sm:$0xff]
  %v4796 = vld [vmem:[%s4728 + $0x218] sm:$0xff]
  %v4797 = vld [vmem:[%s4728 + $0x220] sm:$0xff]
  %v4798 = vld [vmem:[%s4728 + $0x228] sm:$0xff]
  %v4799 = vld [vmem:[%s4728 + $0x230] sm:$0xff]
  %v4800 = vld [vmem:[%s4728 + $0x238] sm:$0xff]
  %v4801 = vld [vmem:[%s4728 + $0x240] sm:$0xff]
  %v4802 = vld [vmem:[%s4728 + $0x248] sm:$0xff]
  %v4803 = vld [vmem:[%s4728 + $0x250] sm:$0xff]
  %v4804 = vld [vmem:[%s4728 + $0x258] sm:$0xff]
  %v4805 = vld [vmem:[%s4728 + $0x260] sm:$0xff]
  %v4806 = vld [vmem:[%s4728 + $0x268] sm:$0xff]
  %v4807 = vld [vmem:[%s4728 + $0x270] sm:$0xff]
  %v4808 = vld [vmem:[%s4728 + $0x278] sm:$0xff]
  %v4809 = vld [vmem:[%s4728 + $0x280] sm:$0xff]
  %v4810 = vld [vmem:[%s4728 + $0x288] sm:$0xff]
  %v4811 = vld [vmem:[%s4728 + $0x290] sm:$0xff]
  %v4812 = vld [vmem:[%s4728 + $0x298] sm:$0xff]
  %v4813 = vld [vmem:[%s4728 + $0x2a0] sm:$0xff]
  %v4814 = vld [vmem:[%s4728 + $0x2a8] sm:$0xff]
  %v4815 = vld [vmem:[%s4728 + $0x2b0] sm:$0xff]
  %v4816 = vld [vmem:[%s4728 + $0x2b8] sm:$0xff]
  %v4817 = vld [vmem:[%s4728 + $0x2c0] sm:$0xff]
  %v4818 = vld [vmem:[%s4728 + $0x2c8] sm:$0xff]
  %v4819 = vld [vmem:[%s4728 + $0x2d0] sm:$0xff]
  %v4820 = vld [vmem:[%s4728 + $0x2d8] sm:$0xff]
  %v4821 = vld [vmem:[%s4728 + $0x2e0] sm:$0xff]
  %v4822 = vld [vmem:[%s4728 + $0x2e8] sm:$0xff]
  %v4823 = vld [vmem:[%s4728 + $0x2f0] sm:$0xff]
  %v4824 = vld [vmem:[%s4728 + $0x2f8] sm:$0xff]
  %v4825 = vld [vmem:[%s4728 + $0x300] sm:$0xff]
  %v4826 = vld [vmem:[%s4728 + $0x308] sm:$0xff]
  %v4827 = vld [vmem:[%s4728 + $0x310] sm:$0xff]
  %v4828 = vld [vmem:[%s4728 + $0x318] sm:$0xff]
  %v4829 = vld [vmem:[%s4728 + $0x320] sm:$0xff]
  %v4830 = vld [vmem:[%s4728 + $0x328] sm:$0xff]
  %v4831 = vld [vmem:[%s4728 + $0x330] sm:$0xff]
  %v4832 = vld [vmem:[%s4728 + $0x338] sm:$0xff]
  %v4833 = vld [vmem:[%s4728 + $0x340] sm:$0xff]
  %v4834 = vld [vmem:[%s4728 + $0x348] sm:$0xff]
  %v4835 = vld [vmem:[%s4728 + $0x350] sm:$0xff]
  %v4836 = vld [vmem:[%s4728 + $0x358] sm:$0xff]
  %v4837 = vld [vmem:[%s4728 + $0x360] sm:$0xff]
  %v4838 = vld [vmem:[%s4728 + $0x368] sm:$0xff]
  %v4839 = vld [vmem:[%s4728 + $0x370] sm:$0xff]
  %v4840 = vld [vmem:[%s4728 + $0x378] sm:$0xff]
  %v4841 = vld [vmem:[%s4728 + $0x380] sm:$0xff]
  %v4842 = vld [vmem:[%s4728 + $0x388] sm:$0xff]
  %v4843 = vld [vmem:[%s4728 + $0x390] sm:$0xff]
  %v4844 = vld [vmem:[%s4728 + $0x398] sm:$0xff]
  %v4845 = vld [vmem:[%s4728 + $0x3a0] sm:$0xff]
  %v4846 = vld [vmem:[%s4728 + $0x3a8] sm:$0xff]
  %v4847 = vld [vmem:[%s4728 + $0x3b0] sm:$0xff]
  %v4848 = vld [vmem:[%s4728 + $0x3b8] sm:$0xff]
  %v4849 = vld [vmem:[%s4728 + $0x3c0] sm:$0xff]
  %v4850 = vld [vmem:[%s4728 + $0x3c8] sm:$0xff]
  %v4851 = vld [vmem:[%s4728 + $0x3d0] sm:$0xff]
  %v4852 = vld [vmem:[%s4728 + $0x3d8] sm:$0xff]
  %v4853 = vld [vmem:[%s4728 + $0x3e0] sm:$0xff]
  %v4854 = vld [vmem:[%s4728 + $0x3e8] sm:$0xff]
  %v4855 = vld [vmem:[%s4728 + $0x3f0] sm:$0xff]
  %v4856 = vld [vmem:[%s4728 + $0x3f8] sm:$0xff]
  %s4857 = scalar_lea.vmem %s11, 2
  %v4858 = vld [vmem:[%s4857] ss:$4 sm:$0xff]
  %v4860 = vlaneseq
  %v4861 = vshrl.u32 %v4860, 7
  %v4862 = vsub.s32 0, %v4861
  %v4863 = vrot.slane %v4858, %v4862
  %v4864 = vlaneseq
  %v4865 = vshrl.u32 %v4864, 7
  %v4866 = vsub.s32 1, %v4865
  %v4867 = vrot.slane %v4858, %v4866
  %v4868 = vlaneseq
  %v4869 = vshrl.u32 %v4868, 7
  %v4870 = vsub.s32 2, %v4869
  %v4871 = vrot.slane %v4858, %v4870
  %v4872 = vlaneseq
  %v4873 = vshrl.u32 %v4872, 7
  %v4874 = vsub.s32 3, %v4873
  %v4875 = vrot.slane %v4858, %v4874
  %v4876 = vlaneseq
  %v4877 = vshrl.u32 %v4876, 7
  %v4878 = vsub.s32 4, %v4877
  %v4879 = vrot.slane %v4858, %v4878
  %v4880 = vlaneseq
  %v4881 = vshrl.u32 %v4880, 7
  %v4882 = vsub.s32 5, %v4881
  %v4883 = vrot.slane %v4858, %v4882
  %v4884 = vlaneseq
  %v4885 = vshrl.u32 %v4884, 7
  %v4886 = vsub.s32 6, %v4885
  %v4887 = vrot.slane %v4858, %v4886
  %v4888 = vlaneseq
  %v4889 = vshrl.u32 %v4888, 7
  %v4890 = vsub.s32 7, %v4889
  %v4891 = vrot.slane %v4858, %v4890
  %4900 = vmatprep.subr.mxu0 %v4850
  %4901 = vmatpush1.msra.mxu0 %v4849
  %4902 = vmatprep.subr.mxu0 %v4842
  %4903 = vmatpush1.msra.mxu0 %v4841
  %4904 = vmatprep.subr.mxu0 %v4834
  %4905 = vmatpush1.msra.mxu0 %v4833
  %4906 = vmatprep.subr.mxu0 %v4826
  %4907 = vmatpush1.msra.mxu0 %v4825
  %4908 = vmatprep.subr.mxu0 %v4818
  %4909 = vmatpush1.msra.mxu0 %v4817
  %4910 = vmatprep.subr.mxu0 %v4810
  %4911 = vmatpush1.msra.mxu0 %v4809
  %4912 = vmatprep.subr.mxu0 %v4802
  %4913 = vmatpush1.msra.mxu0 %v4801
  %4914 = vmatprep.subr.mxu0 %v4794
  %4915 = vmatpush1.msra.mxu0 %v4793
  %4916 = vmatprep.subr.mxu0 %v4786
  %4917 = vmatpush1.msra.mxu0 %v4785
  %4918 = vmatprep.subr.mxu0 %v4778
  %4919 = vmatpush1.msra.mxu0 %v4777
  %4920 = vmatprep.subr.mxu0 %v4770
  %4921 = vmatpush1.msra.mxu0 %v4769
  %4922 = vmatprep.subr.mxu0 %v4762
  %4923 = vmatpush1.msra.mxu0 %v4761
  %4924 = vmatprep.subr.mxu0 %v4754
  %4925 = vmatpush1.msra.mxu0 %v4753
  %4926 = vmatprep.subr.mxu0 %v4746
  %4927 = vmatpush1.msra.mxu0 %v4745
  %4928 = vmatprep.subr.mxu0 %v4738
  %4929 = vmatpush1.msra.mxu0 %v4737
  %4930 = vmatprep.subr.mxu0 %v4730
  %4931 = vmatpush1.msra.mxu0 %v4729
  %4932 = vmatprep.subr.mxu0 0.0
  %4933 = vmatpush2.msra.mxu0 0.0
  %4934 = vmatprep.subr.mxu0 0.0
  %4935 = vmatpush2.msra.mxu0 0.0
  %4936 = vmatprep.subr.mxu0 0.0
  %4937 = vmatpush2.msra.mxu0 0.0
  %4938 = vmatprep.subr.mxu0 0.0
  %4939 = vmatpush2.msra.mxu0 0.0
  %4940 = vmatprep.subr.mxu0 0.0
  %4941 = vmatpush2.msra.mxu0 0.0
  %4942 = vmatprep.subr.mxu0 0.0
  %4943 = vmatpush2.msra.mxu0 0.0
  %4944 = vmatprep.subr.mxu0 0.0
  %4945 = vmatpush2.msra.mxu0 0.0
  %4946 = vmatprep.subr.mxu0 0.0
  %4947 = vmatpush2.msra.mxu0 0.0
  %4948 = vmatprep.subr.mxu0 0.0
  %4949 = vmatpush2.msra.mxu0 0.0
  %4950 = vmatprep.subr.mxu0 0.0
  %4951 = vmatpush2.msra.mxu0 0.0
  %4952 = vmatprep.subr.mxu0 0.0
  %4953 = vmatpush2.msra.mxu0 0.0
  %4954 = vmatprep.subr.mxu0 0.0
  %4955 = vmatpush2.msra.mxu0 0.0
  %4956 = vmatprep.subr.mxu0 0.0
  %4957 = vmatpush2.msra.mxu0 0.0
  %4958 = vmatprep.subr.mxu0 0.0
  %4959 = vmatpush2.msra.mxu0 0.0
  %4960 = vmatprep.subr.mxu0 0.0
  %4961 = vmatpush2.msra.mxu0 0.0
  %4962 = vmatprep.subr.mxu0 0.0
  %4963 = vmatpush2.msra.mxu0 0.0
  %4964 = vmatprep.mubr.f32.mxu0 0.0
  %4965 = vmatmul.mubr.f32.gmra.mxu0 %v3801
  %v4966 = vpop.f32.mrf.mxu0
  %v4967 = vadd.f32 %v4863, %v4966
  %v4968 = vpop.f32.mrf.mxu0
  %v4969 = vadd.f32 %v4867, %v4968
  %4970 = vdwg.mxu0
  %4971 = vmatprep.subr.mxu0 %v4852
  %4972 = vmatpush1.msra.mxu0 %v4851
  %4973 = vmatprep.subr.mxu0 %v4844
  %4974 = vmatpush1.msra.mxu0 %v4843
  %4975 = vmatprep.subr.mxu0 %v4836
  %4976 = vmatpush1.msra.mxu0 %v4835
  %4977 = vmatprep.subr.mxu0 %v4828
  %4978 = vmatpush1.msra.mxu0 %v4827
  %4979 = vmatprep.subr.mxu0 %v4820
  %4980 = vmatpush1.msra.mxu0 %v4819
  %4981 = vmatprep.subr.mxu0 %v4812
  %4982 = vmatpush1.msra.mxu0 %v4811
  %4983 = vmatprep.subr.mxu0 %v4804
  %4984 = vmatpush1.msra.mxu0 %v4803
  %4985 = vmatprep.subr.mxu0 %v4796
  %4986 = vmatpush1.msra.mxu0 %v4795
  %4987 = vmatprep.subr.mxu0 %v4788
  %4988 = vmatpush1.msra.mxu0 %v4787
  %4989 = vmatprep.subr.mxu0 %v4780
  %4990 = vmatpush1.msra.mxu0 %v4779
  %4991 = vmatprep.subr.mxu0 %v4772
  %4992 = vmatpush1.msra.mxu0 %v4771
  %4993 = vmatprep.subr.mxu0 %v4764
  %4994 = vmatpush1.msra.mxu0 %v4763
  %4995 = vmatprep.subr.mxu0 %v4756
  %4996 = vmatpush1.msra.mxu0 %v4755
  %4997 = vmatprep.subr.mxu0 %v4748
  %4998 = vmatpush1.msra.mxu0 %v4747
  %4999 = vmatprep.subr.mxu0 %v4740
  %5000 = vmatpush1.msra.mxu0 %v4739
  %5001 = vmatprep.subr.mxu0 %v4732
  %5002 = vmatpush1.msra.mxu0 %v4731
  %5003 = vmatprep.subr.mxu0 0.0
  %5004 = vmatpush2.msra.mxu0 0.0
  %5005 = vmatprep.subr.mxu0 0.0
  %5006 = vmatpush2.msra.mxu0 0.0
  %5007 = vmatprep.subr.mxu0 0.0
  %5008 = vmatpush2.msra.mxu0 0.0
  %5009 = vmatprep.subr.mxu0 0.0
  %5010 = vmatpush2.msra.mxu0 0.0
  %5011 = vmatprep.subr.mxu0 0.0
  %5012 = vmatpush2.msra.mxu0 0.0
  %5013 = vmatprep.subr.mxu0 0.0
  %5014 = vmatpush2.msra.mxu0 0.0
  %5015 = vmatprep.subr.mxu0 0.0
  %5016 = vmatpush2.msra.mxu0 0.0
  %5017 = vmatprep.subr.mxu0 0.0
  %5018 = vmatpush2.msra.mxu0 0.0
  %5019 = vmatprep.subr.mxu0 0.0
  %5020 = vmatpush2.msra.mxu0 0.0
  %5021 = vmatprep.subr.mxu0 0.0
  %5022 = vmatpush2.msra.mxu0 0.0
  %5023 = vmatprep.subr.mxu0 0.0
  %5024 = vmatpush2.msra.mxu0 0.0
  %5025 = vmatprep.subr.mxu0 0.0
  %5026 = vmatpush2.msra.mxu0 0.0
  %5027 = vmatprep.subr.mxu0 0.0
  %5028 = vmatpush2.msra.mxu0 0.0
  %5029 = vmatprep.subr.mxu0 0.0
  %5030 = vmatpush2.msra.mxu0 0.0
  %5031 = vmatprep.subr.mxu0 0.0
  %5032 = vmatpush2.msra.mxu0 0.0
  %5033 = vmatprep.subr.mxu0 0.0
  %5034 = vmatpush2.msra.mxu0 0.0
  %5035 = vmatprep.mubr.f32.mxu0 0.0
  %5036 = vmatmul.mubr.f32.gmra.mxu0 %v3801
  %v5037 = vpop.f32.mrf.mxu0
  %v5038 = vadd.f32 %v4871, %v5037
  %v5039 = vpop.f32.mrf.mxu0
  %v5040 = vadd.f32 %v4875, %v5039
  %5041 = vdwg.mxu0
  %5042 = vmatprep.subr.mxu0 %v4854
  %5043 = vmatpush1.msra.mxu0 %v4853
  %5044 = vmatprep.subr.mxu0 %v4846
  %5045 = vmatpush1.msra.mxu0 %v4845
  %5046 = vmatprep.subr.mxu0 %v4838
  %5047 = vmatpush1.msra.mxu0 %v4837
  %5048 = vmatprep.subr.mxu0 %v4830
  %5049 = vmatpush1.msra.mxu0 %v4829
  %5050 = vmatprep.subr.mxu0 %v4822
  %5051 = vmatpush1.msra.mxu0 %v4821
  %5052 = vmatprep.subr.mxu0 %v4814
  %5053 = vmatpush1.msra.mxu0 %v4813
  %5054 = vmatprep.subr.mxu0 %v4806
  %5055 = vmatpush1.msra.mxu0 %v4805
  %5056 = vmatprep.subr.mxu0 %v4798
  %5057 = vmatpush1.msra.mxu0 %v4797
  %5058 = vmatprep.subr.mxu0 %v4790
  %5059 = vmatpush1.msra.mxu0 %v4789
  %5060 = vmatprep.subr.mxu0 %v4782
  %5061 = vmatpush1.msra.mxu0 %v4781
  %5062 = vmatprep.subr.mxu0 %v4774
  %5063 = vmatpush1.msra.mxu0 %v4773
  %5064 = vmatprep.subr.mxu0 %v4766
  %5065 = vmatpush1.msra.mxu0 %v4765
  %5066 = vmatprep.subr.mxu0 %v4758
  %5067 = vmatpush1.msra.mxu0 %v4757
  %5068 = vmatprep.subr.mxu0 %v4750
  %5069 = vmatpush1.msra.mxu0 %v4749
  %5070 = vmatprep.subr.mxu0 %v4742
  %5071 = vmatpush1.msra.mxu0 %v4741
  %5072 = vmatprep.subr.mxu0 %v4734
  %5073 = vmatpush1.msra.mxu0 %v4733
  %5074 = vmatprep.subr.mxu0 0.0
  %5075 = vmatpush2.msra.mxu0 0.0
  %5076 = vmatprep.subr.mxu0 0.0
  %5077 = vmatpush2.msra.mxu0 0.0
  %5078 = vmatprep.subr.mxu0 0.0
  %5079 = vmatpush2.msra.mxu0 0.0
  %5080 = vmatprep.subr.mxu0 0.0
  %5081 = vmatpush2.msra.mxu0 0.0
  %5082 = vmatprep.subr.mxu0 0.0
  %5083 = vmatpush2.msra.mxu0 0.0
  %5084 = vmatprep.subr.mxu0 0.0
  %5085 = vmatpush2.msra.mxu0 0.0
  %5086 = vmatprep.subr.mxu0 0.0
  %5087 = vmatpush2.msra.mxu0 0.0
  %5088 = vmatprep.subr.mxu0 0.0
  %5089 = vmatpush2.msra.mxu0 0.0
  %5090 = vmatprep.subr.mxu0 0.0
  %5091 = vmatpush2.msra.mxu0 0.0
  %5092 = vmatprep.subr.mxu0 0.0
  %5093 = vmatpush2.msra.mxu0 0.0
  %5094 = vmatprep.subr.mxu0 0.0
  %5095 = vmatpush2.msra.mxu0 0.0
  %5096 = vmatprep.subr.mxu0 0.0
  %5097 = vmatpush2.msra.mxu0 0.0
  %5098 = vmatprep.subr.mxu0 0.0
  %5099 = vmatpush2.msra.mxu0 0.0
  %5100 = vmatprep.subr.mxu0 0.0
  %5101 = vmatpush2.msra.mxu0 0.0
  %5102 = vmatprep.subr.mxu0 0.0
  %5103 = vmatpush2.msra.mxu0 0.0
  %5104 = vmatprep.subr.mxu0 0.0
  %5105 = vmatpush2.msra.mxu0 0.0
  %5106 = vmatprep.mubr.f32.mxu0 0.0
  %5107 = vmatmul.mubr.f32.gmra.mxu0 %v3801
  %v5108 = vpop.f32.mrf.mxu0
  %v5109 = vadd.f32 %v4879, %v5108
  %v5110 = vpop.f32.mrf.mxu0
  %v5111 = vadd.f32 %v4883, %v5110
  %5112 = vdwg.mxu0
  %5113 = vmatprep.subr.mxu0 %v4856
  %5114 = vmatpush1.msra.mxu0 %v4855
  %5115 = vmatprep.subr.mxu0 %v4848
  %5116 = vmatpush1.msra.mxu0 %v4847
  %5117 = vmatprep.subr.mxu0 %v4840
  %5118 = vmatpush1.msra.mxu0 %v4839
  %5119 = vmatprep.subr.mxu0 %v4832
  %5120 = vmatpush1.msra.mxu0 %v4831
  %5121 = vmatprep.subr.mxu0 %v4824
  %5122 = vmatpush1.msra.mxu0 %v4823
  %5123 = vmatprep.subr.mxu0 %v4816
  %5124 = vmatpush1.msra.mxu0 %v4815
  %5125 = vmatprep.subr.mxu0 %v4808
  %5126 = vmatpush1.msra.mxu0 %v4807
  %5127 = vmatprep.subr.mxu0 %v4800
  %5128 = vmatpush1.msra.mxu0 %v4799
  %5129 = vmatprep.subr.mxu0 %v4792
  %5130 = vmatpush1.msra.mxu0 %v4791
  %5131 = vmatprep.subr.mxu0 %v4784
  %5132 = vmatpush1.msra.mxu0 %v4783
  %5133 = vmatprep.subr.mxu0 %v4776
  %5134 = vmatpush1.msra.mxu0 %v4775
  %5135 = vmatprep.subr.mxu0 %v4768
  %5136 = vmatpush1.msra.mxu0 %v4767
  %5137 = vmatprep.subr.mxu0 %v4760
  %5138 = vmatpush1.msra.mxu0 %v4759
  %5139 = vmatprep.subr.mxu0 %v4752
  %5140 = vmatpush1.msra.mxu0 %v4751
  %5141 = vmatprep.subr.mxu0 %v4744
  %5142 = vmatpush1.msra.mxu0 %v4743
  %5143 = vmatprep.subr.mxu0 %v4736
  %5144 = vmatpush1.msra.mxu0 %v4735
  %5145 = vmatprep.subr.mxu0 0.0
  %5146 = vmatpush2.msra.mxu0 0.0
  %5147 = vmatprep.subr.mxu0 0.0
  %5148 = vmatpush2.msra.mxu0 0.0
  %5149 = vmatprep.subr.mxu0 0.0
  %5150 = vmatpush2.msra.mxu0 0.0
  %5151 = vmatprep.subr.mxu0 0.0
  %5152 = vmatpush2.msra.mxu0 0.0
  %5153 = vmatprep.subr.mxu0 0.0
  %5154 = vmatpush2.msra.mxu0 0.0
  %5155 = vmatprep.subr.mxu0 0.0
  %5156 = vmatpush2.msra.mxu0 0.0
  %5157 = vmatprep.subr.mxu0 0.0
  %5158 = vmatpush2.msra.mxu0 0.0
  %5159 = vmatprep.subr.mxu0 0.0
  %5160 = vmatpush2.msra.mxu0 0.0
  %5161 = vmatprep.subr.mxu0 0.0
  %5162 = vmatpush2.msra.mxu0 0.0
  %5163 = vmatprep.subr.mxu0 0.0
  %5164 = vmatpush2.msra.mxu0 0.0
  %5165 = vmatprep.subr.mxu0 0.0
  %5166 = vmatpush2.msra.mxu0 0.0
  %5167 = vmatprep.subr.mxu0 0.0
  %5168 = vmatpush2.msra.mxu0 0.0
  %5169 = vmatprep.subr.mxu0 0.0
  %5170 = vmatpush2.msra.mxu0 0.0
  %5171 = vmatprep.subr.mxu0 0.0
  %5172 = vmatpush2.msra.mxu0 0.0
  %5173 = vmatprep.subr.mxu0 0.0
  %5174 = vmatpush2.msra.mxu0 0.0
  %5175 = vmatprep.subr.mxu0 0.0
  %5176 = vmatpush2.msra.mxu0 0.0
  %5177 = vmatprep.mubr.f32.mxu0 0.0
  %5178 = vmatmul.mubr.f32.gmra.mxu0 %v3801
  %v5179 = vpop.f32.mrf.mxu0
  %v5180 = vadd.f32 %v4887, %v5179
  %v5181 = vpop.f32.mrf.mxu0
  %v5182 = vadd.f32 %v4891, %v5181
  %5183 = vdwg.mxu0
  %v5184 = vmax.f32 %v4967, 0.0
  %v5185 = vmax.f32 %v4969, 0.0
  %v5186 = vmax.f32 %v5038, 0.0
  %v5187 = vmax.f32 %v5040, 0.0
  %v5188 = vmax.f32 %v5109, 0.0
  %v5189 = vmax.f32 %v5111, 0.0
  %v5190 = vmax.f32 %v5180, 0.0
  %v5191 = vmax.f32 %v5182, 0.0
  %s5192 = scalar_lea.vmem %s10, 3072
  %v5193 = vld [vmem:[%s5192] sm:$0xff]
  %v5194 = vld [vmem:[%s5192 + $0x8] sm:$0xff]
  %v5195 = vld [vmem:[%s5192 + $0x10] sm:$0xff]
  %v5196 = vld [vmem:[%s5192 + $0x18] sm:$0xff]
  %v5197 = vld [vmem:[%s5192 + $0x20] sm:$0xff]
  %v5198 = vld [vmem:[%s5192 + $0x28] sm:$0xff]
  %v5199 = vld [vmem:[%s5192 + $0x30] sm:$0xff]
  %v5200 = vld [vmem:[%s5192 + $0x38] sm:$0xff]
  %v5201 = vld [vmem:[%s5192 + $0x40] sm:$0xff]
  %v5202 = vld [vmem:[%s5192 + $0x48] sm:$0xff]
  %v5203 = vld [vmem:[%s5192 + $0x50] sm:$0xff]
  %v5204 = vld [vmem:[%s5192 + $0x58] sm:$0xff]
  %v5205 = vld [vmem:[%s5192 + $0x60] sm:$0xff]
  %v5206 = vld [vmem:[%s5192 + $0x68] sm:$0xff]
  %v5207 = vld [vmem:[%s5192 + $0x70] sm:$0xff]
  %v5208 = vld [vmem:[%s5192 + $0x78] sm:$0xff]
  %v5209 = vld [vmem:[%s5192 + $0x80] sm:$0xff]
  %v5210 = vld [vmem:[%s5192 + $0x88] sm:$0xff]
  %v5211 = vld [vmem:[%s5192 + $0x90] sm:$0xff]
  %v5212 = vld [vmem:[%s5192 + $0x98] sm:$0xff]
  %v5213 = vld [vmem:[%s5192 + $0xa0] sm:$0xff]
  %v5214 = vld [vmem:[%s5192 + $0xa8] sm:$0xff]
  %v5215 = vld [vmem:[%s5192 + $0xb0] sm:$0xff]
  %v5216 = vld [vmem:[%s5192 + $0xb8] sm:$0xff]
  %v5217 = vld [vmem:[%s5192 + $0xc0] sm:$0xff]
  %v5218 = vld [vmem:[%s5192 + $0xc8] sm:$0xff]
  %v5219 = vld [vmem:[%s5192 + $0xd0] sm:$0xff]
  %v5220 = vld [vmem:[%s5192 + $0xd8] sm:$0xff]
  %v5221 = vld [vmem:[%s5192 + $0xe0] sm:$0xff]
  %v5222 = vld [vmem:[%s5192 + $0xe8] sm:$0xff]
  %v5223 = vld [vmem:[%s5192 + $0xf0] sm:$0xff]
  %v5224 = vld [vmem:[%s5192 + $0xf8] sm:$0xff]
  %v5225 = vld [vmem:[%s5192 + $0x100] sm:$0xff]
  %v5226 = vld [vmem:[%s5192 + $0x108] sm:$0xff]
  %v5227 = vld [vmem:[%s5192 + $0x110] sm:$0xff]
  %v5228 = vld [vmem:[%s5192 + $0x118] sm:$0xff]
  %v5229 = vld [vmem:[%s5192 + $0x120] sm:$0xff]
  %v5230 = vld [vmem:[%s5192 + $0x128] sm:$0xff]
  %v5231 = vld [vmem:[%s5192 + $0x130] sm:$0xff]
  %v5232 = vld [vmem:[%s5192 + $0x138] sm:$0xff]
  %v5233 = vld [vmem:[%s5192 + $0x140] sm:$0xff]
  %v5234 = vld [vmem:[%s5192 + $0x148] sm:$0xff]
  %v5235 = vld [vmem:[%s5192 + $0x150] sm:$0xff]
  %v5236 = vld [vmem:[%s5192 + $0x158] sm:$0xff]
  %v5237 = vld [vmem:[%s5192 + $0x160] sm:$0xff]
  %v5238 = vld [vmem:[%s5192 + $0x168] sm:$0xff]
  %v5239 = vld [vmem:[%s5192 + $0x170] sm:$0xff]
  %v5240 = vld [vmem:[%s5192 + $0x178] sm:$0xff]
  %v5241 = vld [vmem:[%s5192 + $0x180] sm:$0xff]
  %v5242 = vld [vmem:[%s5192 + $0x188] sm:$0xff]
  %v5243 = vld [vmem:[%s5192 + $0x190] sm:$0xff]
  %v5244 = vld [vmem:[%s5192 + $0x198] sm:$0xff]
  %v5245 = vld [vmem:[%s5192 + $0x1a0] sm:$0xff]
  %v5246 = vld [vmem:[%s5192 + $0x1a8] sm:$0xff]
  %v5247 = vld [vmem:[%s5192 + $0x1b0] sm:$0xff]
  %v5248 = vld [vmem:[%s5192 + $0x1b8] sm:$0xff]
  %v5249 = vld [vmem:[%s5192 + $0x1c0] sm:$0xff]
  %v5250 = vld [vmem:[%s5192 + $0x1c8] sm:$0xff]
  %v5251 = vld [vmem:[%s5192 + $0x1d0] sm:$0xff]
  %v5252 = vld [vmem:[%s5192 + $0x1d8] sm:$0xff]
  %v5253 = vld [vmem:[%s5192 + $0x1e0] sm:$0xff]
  %v5254 = vld [vmem:[%s5192 + $0x1e8] sm:$0xff]
  %v5255 = vld [vmem:[%s5192 + $0x1f0] sm:$0xff]
  %v5256 = vld [vmem:[%s5192 + $0x1f8] sm:$0xff]
  %v5257 = vld [vmem:[%s5192 + $0x200] sm:$0xff]
  %v5258 = vld [vmem:[%s5192 + $0x208] sm:$0xff]
  %v5259 = vld [vmem:[%s5192 + $0x210] sm:$0xff]
  %v5260 = vld [vmem:[%s5192 + $0x218] sm:$0xff]
  %v5261 = vld [vmem:[%s5192 + $0x220] sm:$0xff]
  %v5262 = vld [vmem:[%s5192 + $0x228] sm:$0xff]
  %v5263 = vld [vmem:[%s5192 + $0x230] sm:$0xff]
  %v5264 = vld [vmem:[%s5192 + $0x238] sm:$0xff]
  %v5265 = vld [vmem:[%s5192 + $0x240] sm:$0xff]
  %v5266 = vld [vmem:[%s5192 + $0x248] sm:$0xff]
  %v5267 = vld [vmem:[%s5192 + $0x250] sm:$0xff]
  %v5268 = vld [vmem:[%s5192 + $0x258] sm:$0xff]
  %v5269 = vld [vmem:[%s5192 + $0x260] sm:$0xff]
  %v5270 = vld [vmem:[%s5192 + $0x268] sm:$0xff]
  %v5271 = vld [vmem:[%s5192 + $0x270] sm:$0xff]
  %v5272 = vld [vmem:[%s5192 + $0x278] sm:$0xff]
  %v5273 = vld [vmem:[%s5192 + $0x280] sm:$0xff]
  %v5274 = vld [vmem:[%s5192 + $0x288] sm:$0xff]
  %v5275 = vld [vmem:[%s5192 + $0x290] sm:$0xff]
  %v5276 = vld [vmem:[%s5192 + $0x298] sm:$0xff]
  %v5277 = vld [vmem:[%s5192 + $0x2a0] sm:$0xff]
  %v5278 = vld [vmem:[%s5192 + $0x2a8] sm:$0xff]
  %v5279 = vld [vmem:[%s5192 + $0x2b0] sm:$0xff]
  %v5280 = vld [vmem:[%s5192 + $0x2b8] sm:$0xff]
  %v5281 = vld [vmem:[%s5192 + $0x2c0] sm:$0xff]
  %v5282 = vld [vmem:[%s5192 + $0x2c8] sm:$0xff]
  %v5283 = vld [vmem:[%s5192 + $0x2d0] sm:$0xff]
  %v5284 = vld [vmem:[%s5192 + $0x2d8] sm:$0xff]
  %v5285 = vld [vmem:[%s5192 + $0x2e0] sm:$0xff]
  %v5286 = vld [vmem:[%s5192 + $0x2e8] sm:$0xff]
  %v5287 = vld [vmem:[%s5192 + $0x2f0] sm:$0xff]
  %v5288 = vld [vmem:[%s5192 + $0x2f8] sm:$0xff]
  %v5289 = vld [vmem:[%s5192 + $0x300] sm:$0xff]
  %v5290 = vld [vmem:[%s5192 + $0x308] sm:$0xff]
  %v5291 = vld [vmem:[%s5192 + $0x310] sm:$0xff]
  %v5292 = vld [vmem:[%s5192 + $0x318] sm:$0xff]
  %v5293 = vld [vmem:[%s5192 + $0x320] sm:$0xff]
  %v5294 = vld [vmem:[%s5192 + $0x328] sm:$0xff]
  %v5295 = vld [vmem:[%s5192 + $0x330] sm:$0xff]
  %v5296 = vld [vmem:[%s5192 + $0x338] sm:$0xff]
  %v5297 = vld [vmem:[%s5192 + $0x340] sm:$0xff]
  %v5298 = vld [vmem:[%s5192 + $0x348] sm:$0xff]
  %v5299 = vld [vmem:[%s5192 + $0x350] sm:$0xff]
  %v5300 = vld [vmem:[%s5192 + $0x358] sm:$0xff]
  %v5301 = vld [vmem:[%s5192 + $0x360] sm:$0xff]
  %v5302 = vld [vmem:[%s5192 + $0x368] sm:$0xff]
  %v5303 = vld [vmem:[%s5192 + $0x370] sm:$0xff]
  %v5304 = vld [vmem:[%s5192 + $0x378] sm:$0xff]
  %v5305 = vld [vmem:[%s5192 + $0x380] sm:$0xff]
  %v5306 = vld [vmem:[%s5192 + $0x388] sm:$0xff]
  %v5307 = vld [vmem:[%s5192 + $0x390] sm:$0xff]
  %v5308 = vld [vmem:[%s5192 + $0x398] sm:$0xff]
  %v5309 = vld [vmem:[%s5192 + $0x3a0] sm:$0xff]
  %v5310 = vld [vmem:[%s5192 + $0x3a8] sm:$0xff]
  %v5311 = vld [vmem:[%s5192 + $0x3b0] sm:$0xff]
  %v5312 = vld [vmem:[%s5192 + $0x3b8] sm:$0xff]
  %v5313 = vld [vmem:[%s5192 + $0x3c0] sm:$0xff]
  %v5314 = vld [vmem:[%s5192 + $0x3c8] sm:$0xff]
  %v5315 = vld [vmem:[%s5192 + $0x3d0] sm:$0xff]
  %v5316 = vld [vmem:[%s5192 + $0x3d8] sm:$0xff]
  %v5317 = vld [vmem:[%s5192 + $0x3e0] sm:$0xff]
  %v5318 = vld [vmem:[%s5192 + $0x3e8] sm:$0xff]
  %v5319 = vld [vmem:[%s5192 + $0x3f0] sm:$0xff]
  %v5320 = vld [vmem:[%s5192 + $0x3f8] sm:$0xff]
  %s5321 = scalar_lea.vmem %s11, 3
  %v5322 = vld [vmem:[%s5321] ss:$4 sm:$0xff]
  %v5324 = vlaneseq
  %v5325 = vshrl.u32 %v5324, 7
  %v5326 = vsub.s32 0, %v5325
  %v5327 = vrot.slane %v5322, %v5326
  %v5328 = vlaneseq
  %v5329 = vshrl.u32 %v5328, 7
  %v5330 = vsub.s32 1, %v5329
  %v5331 = vrot.slane %v5322, %v5330
  %v5332 = vlaneseq
  %v5333 = vshrl.u32 %v5332, 7
  %v5334 = vsub.s32 2, %v5333
  %v5335 = vrot.slane %v5322, %v5334
  %v5336 = vlaneseq
  %v5337 = vshrl.u32 %v5336, 7
  %v5338 = vsub.s32 3, %v5337
  %v5339 = vrot.slane %v5322, %v5338
  %v5340 = vlaneseq
  %v5341 = vshrl.u32 %v5340, 7
  %v5342 = vsub.s32 4, %v5341
  %v5343 = vrot.slane %v5322, %v5342
  %v5344 = vlaneseq
  %v5345 = vshrl.u32 %v5344, 7
  %v5346 = vsub.s32 5, %v5345
  %v5347 = vrot.slane %v5322, %v5346
  %v5348 = vlaneseq
  %v5349 = vshrl.u32 %v5348, 7
  %v5350 = vsub.s32 6, %v5349
  %v5351 = vrot.slane %v5322, %v5350
  %v5352 = vlaneseq
  %v5353 = vshrl.u32 %v5352, 7
  %v5354 = vsub.s32 7, %v5353
  %v5355 = vrot.slane %v5322, %v5354
  %5364 = vmatprep.subr.mxu0 %v5314
  %5365 = vmatpush1.msra.mxu0 %v5313
  %5366 = vmatprep.subr.mxu0 %v5306
  %5367 = vmatpush1.msra.mxu0 %v5305
  %5368 = vmatprep.subr.mxu0 %v5298
  %5369 = vmatpush1.msra.mxu0 %v5297
  %5370 = vmatprep.subr.mxu0 %v5290
  %5371 = vmatpush1.msra.mxu0 %v5289
  %5372 = vmatprep.subr.mxu0 %v5282
  %5373 = vmatpush1.msra.mxu0 %v5281
  %5374 = vmatprep.subr.mxu0 %v5274
  %5375 = vmatpush1.msra.mxu0 %v5273
  %5376 = vmatprep.subr.mxu0 %v5266
  %5377 = vmatpush1.msra.mxu0 %v5265
  %5378 = vmatprep.subr.mxu0 %v5258
  %5379 = vmatpush1.msra.mxu0 %v5257
  %5380 = vmatprep.subr.mxu0 %v5250
  %5381 = vmatpush1.msra.mxu0 %v5249
  %5382 = vmatprep.subr.mxu0 %v5242
  %5383 = vmatpush1.msra.mxu0 %v5241
  %5384 = vmatprep.subr.mxu0 %v5234
  %5385 = vmatpush1.msra.mxu0 %v5233
  %5386 = vmatprep.subr.mxu0 %v5226
  %5387 = vmatpush1.msra.mxu0 %v5225
  %5388 = vmatprep.subr.mxu0 %v5218
  %5389 = vmatpush1.msra.mxu0 %v5217
  %5390 = vmatprep.subr.mxu0 %v5210
  %5391 = vmatpush1.msra.mxu0 %v5209
  %5392 = vmatprep.subr.mxu0 %v5202
  %5393 = vmatpush1.msra.mxu0 %v5201
  %5394 = vmatprep.subr.mxu0 %v5194
  %5395 = vmatpush1.msra.mxu0 %v5193
  %5396 = vmatprep.subr.mxu0 0.0
  %5397 = vmatpush2.msra.mxu0 0.0
  %5398 = vmatprep.subr.mxu0 0.0
  %5399 = vmatpush2.msra.mxu0 0.0
  %5400 = vmatprep.subr.mxu0 0.0
  %5401 = vmatpush2.msra.mxu0 0.0
  %5402 = vmatprep.subr.mxu0 0.0
  %5403 = vmatpush2.msra.mxu0 0.0
  %5404 = vmatprep.subr.mxu0 0.0
  %5405 = vmatpush2.msra.mxu0 0.0
  %5406 = vmatprep.subr.mxu0 0.0
  %5407 = vmatpush2.msra.mxu0 0.0
  %5408 = vmatprep.subr.mxu0 0.0
  %5409 = vmatpush2.msra.mxu0 0.0
  %5410 = vmatprep.subr.mxu0 0.0
  %5411 = vmatpush2.msra.mxu0 0.0
  %5412 = vmatprep.subr.mxu0 0.0
  %5413 = vmatpush2.msra.mxu0 0.0
  %5414 = vmatprep.subr.mxu0 0.0
  %5415 = vmatpush2.msra.mxu0 0.0
  %5416 = vmatprep.subr.mxu0 0.0
  %5417 = vmatpush2.msra.mxu0 0.0
  %5418 = vmatprep.subr.mxu0 0.0
  %5419 = vmatpush2.msra.mxu0 0.0
  %5420 = vmatprep.subr.mxu0 0.0
  %5421 = vmatpush2.msra.mxu0 0.0
  %5422 = vmatprep.subr.mxu0 0.0
  %5423 = vmatpush2.msra.mxu0 0.0
  %5424 = vmatprep.subr.mxu0 0.0
  %5425 = vmatpush2.msra.mxu0 0.0
  %5426 = vmatprep.subr.mxu0 0.0
  %5427 = vmatpush2.msra.mxu0 0.0
  %5428 = vmatprep.mubr.f32.mxu0 0.0
  %5429 = vmatmul.mubr.f32.gmra.mxu0 %v3801
  %v5430 = vpop.f32.mrf.mxu0
  %v5431 = vadd.f32 %v5327, %v5430
  %v5432 = vpop.f32.mrf.mxu0
  %v5433 = vadd.f32 %v5331, %v5432
  %5434 = vdwg.mxu0
  %5435 = vmatprep.subr.mxu0 %v5316
  %5436 = vmatpush1.msra.mxu0 %v5315
  %5437 = vmatprep.subr.mxu0 %v5308
  %5438 = vmatpush1.msra.mxu0 %v5307
  %5439 = vmatprep.subr.mxu0 %v5300
  %5440 = vmatpush1.msra.mxu0 %v5299
  %5441 = vmatprep.subr.mxu0 %v5292
  %5442 = vmatpush1.msra.mxu0 %v5291
  %5443 = vmatprep.subr.mxu0 %v5284
  %5444 = vmatpush1.msra.mxu0 %v5283
  %5445 = vmatprep.subr.mxu0 %v5276
  %5446 = vmatpush1.msra.mxu0 %v5275
  %5447 = vmatprep.subr.mxu0 %v5268
  %5448 = vmatpush1.msra.mxu0 %v5267
  %5449 = vmatprep.subr.mxu0 %v5260
  %5450 = vmatpush1.msra.mxu0 %v5259
  %5451 = vmatprep.subr.mxu0 %v5252
  %5452 = vmatpush1.msra.mxu0 %v5251
  %5453 = vmatprep.subr.mxu0 %v5244
  %5454 = vmatpush1.msra.mxu0 %v5243
  %5455 = vmatprep.subr.mxu0 %v5236
  %5456 = vmatpush1.msra.mxu0 %v5235
  %5457 = vmatprep.subr.mxu0 %v5228
  %5458 = vmatpush1.msra.mxu0 %v5227
  %5459 = vmatprep.subr.mxu0 %v5220
  %5460 = vmatpush1.msra.mxu0 %v5219
  %5461 = vmatprep.subr.mxu0 %v5212
  %5462 = vmatpush1.msra.mxu0 %v5211
  %5463 = vmatprep.subr.mxu0 %v5204
  %5464 = vmatpush1.msra.mxu0 %v5203
  %5465 = vmatprep.subr.mxu0 %v5196
  %5466 = vmatpush1.msra.mxu0 %v5195
  %5467 = vmatprep.subr.mxu0 0.0
  %5468 = vmatpush2.msra.mxu0 0.0
  %5469 = vmatprep.subr.mxu0 0.0
  %5470 = vmatpush2.msra.mxu0 0.0
  %5471 = vmatprep.subr.mxu0 0.0
  %5472 = vmatpush2.msra.mxu0 0.0
  %5473 = vmatprep.subr.mxu0 0.0
  %5474 = vmatpush2.msra.mxu0 0.0
  %5475 = vmatprep.subr.mxu0 0.0
  %5476 = vmatpush2.msra.mxu0 0.0
  %5477 = vmatprep.subr.mxu0 0.0
  %5478 = vmatpush2.msra.mxu0 0.0
  %5479 = vmatprep.subr.mxu0 0.0
  %5480 = vmatpush2.msra.mxu0 0.0
  %5481 = vmatprep.subr.mxu0 0.0
  %5482 = vmatpush2.msra.mxu0 0.0
  %5483 = vmatprep.subr.mxu0 0.0
  %5484 = vmatpush2.msra.mxu0 0.0
  %5485 = vmatprep.subr.mxu0 0.0
  %5486 = vmatpush2.msra.mxu0 0.0
  %5487 = vmatprep.subr.mxu0 0.0
  %5488 = vmatpush2.msra.mxu0 0.0
  %5489 = vmatprep.subr.mxu0 0.0
  %5490 = vmatpush2.msra.mxu0 0.0
  %5491 = vmatprep.subr.mxu0 0.0
  %5492 = vmatpush2.msra.mxu0 0.0
  %5493 = vmatprep.subr.mxu0 0.0
  %5494 = vmatpush2.msra.mxu0 0.0
  %5495 = vmatprep.subr.mxu0 0.0
  %5496 = vmatpush2.msra.mxu0 0.0
  %5497 = vmatprep.subr.mxu0 0.0
  %5498 = vmatpush2.msra.mxu0 0.0
  %5499 = vmatprep.mubr.f32.mxu0 0.0
  %5500 = vmatmul.mubr.f32.gmra.mxu0 %v3801
  %v5501 = vpop.f32.mrf.mxu0
  %v5502 = vadd.f32 %v5335, %v5501
  %v5503 = vpop.f32.mrf.mxu0
  %v5504 = vadd.f32 %v5339, %v5503
  %5505 = vdwg.mxu0
  %5506 = vmatprep.subr.mxu0 %v5318
  %5507 = vmatpush1.msra.mxu0 %v5317
  %5508 = vmatprep.subr.mxu0 %v5310
  %5509 = vmatpush1.msra.mxu0 %v5309
  %5510 = vmatprep.subr.mxu0 %v5302
  %5511 = vmatpush1.msra.mxu0 %v5301
  %5512 = vmatprep.subr.mxu0 %v5294
  %5513 = vmatpush1.msra.mxu0 %v5293
  %5514 = vmatprep.subr.mxu0 %v5286
  %5515 = vmatpush1.msra.mxu0 %v5285
  %5516 = vmatprep.subr.mxu0 %v5278
  %5517 = vmatpush1.msra.mxu0 %v5277
  %5518 = vmatprep.subr.mxu0 %v5270
  %5519 = vmatpush1.msra.mxu0 %v5269
  %5520 = vmatprep.subr.mxu0 %v5262
  %5521 = vmatpush1.msra.mxu0 %v5261
  %5522 = vmatprep.subr.mxu0 %v5254
  %5523 = vmatpush1.msra.mxu0 %v5253
  %5524 = vmatprep.subr.mxu0 %v5246
  %5525 = vmatpush1.msra.mxu0 %v5245
  %5526 = vmatprep.subr.mxu0 %v5238
  %5527 = vmatpush1.msra.mxu0 %v5237
  %5528 = vmatprep.subr.mxu0 %v5230
  %5529 = vmatpush1.msra.mxu0 %v5229
  %5530 = vmatprep.subr.mxu0 %v5222
  %5531 = vmatpush1.msra.mxu0 %v5221
  %5532 = vmatprep.subr.mxu0 %v5214
  %5533 = vmatpush1.msra.mxu0 %v5213
  %5534 = vmatprep.subr.mxu0 %v5206
  %5535 = vmatpush1.msra.mxu0 %v5205
  %5536 = vmatprep.subr.mxu0 %v5198
  %5537 = vmatpush1.msra.mxu0 %v5197
  %5538 = vmatprep.subr.mxu0 0.0
  %5539 = vmatpush2.msra.mxu0 0.0
  %5540 = vmatprep.subr.mxu0 0.0
  %5541 = vmatpush2.msra.mxu0 0.0
  %5542 = vmatprep.subr.mxu0 0.0
  %5543 = vmatpush2.msra.mxu0 0.0
  %5544 = vmatprep.subr.mxu0 0.0
  %5545 = vmatpush2.msra.mxu0 0.0
  %5546 = vmatprep.subr.mxu0 0.0
  %5547 = vmatpush2.msra.mxu0 0.0
  %5548 = vmatprep.subr.mxu0 0.0
  %5549 = vmatpush2.msra.mxu0 0.0
  %5550 = vmatprep.subr.mxu0 0.0
  %5551 = vmatpush2.msra.mxu0 0.0
  %5552 = vmatprep.subr.mxu0 0.0
  %5553 = vmatpush2.msra.mxu0 0.0
  %5554 = vmatprep.subr.mxu0 0.0
  %5555 = vmatpush2.msra.mxu0 0.0
  %5556 = vmatprep.subr.mxu0 0.0
  %5557 = vmatpush2.msra.mxu0 0.0
  %5558 = vmatprep.subr.mxu0 0.0
  %5559 = vmatpush2.msra.mxu0 0.0
  %5560 = vmatprep.subr.mxu0 0.0
  %5561 = vmatpush2.msra.mxu0 0.0
  %5562 = vmatprep.subr.mxu0 0.0
  %5563 = vmatpush2.msra.mxu0 0.0
  %5564 = vmatprep.subr.mxu0 0.0
  %5565 = vmatpush2.msra.mxu0 0.0
  %5566 = vmatprep.subr.mxu0 0.0
  %5567 = vmatpush2.msra.mxu0 0.0
  %5568 = vmatprep.subr.mxu0 0.0
  %5569 = vmatpush2.msra.mxu0 0.0
  %5570 = vmatprep.mubr.f32.mxu0 0.0
  %5571 = vmatmul.mubr.f32.gmra.mxu0 %v3801
  %v5572 = vpop.f32.mrf.mxu0
  %v5573 = vadd.f32 %v5343, %v5572
  %v5574 = vpop.f32.mrf.mxu0
  %v5575 = vadd.f32 %v5347, %v5574
  %5576 = vdwg.mxu0
  %5577 = vmatprep.subr.mxu0 %v5320
  %5578 = vmatpush1.msra.mxu0 %v5319
  %5579 = vmatprep.subr.mxu0 %v5312
  %5580 = vmatpush1.msra.mxu0 %v5311
  %5581 = vmatprep.subr.mxu0 %v5304
  %5582 = vmatpush1.msra.mxu0 %v5303
  %5583 = vmatprep.subr.mxu0 %v5296
  %5584 = vmatpush1.msra.mxu0 %v5295
  %5585 = vmatprep.subr.mxu0 %v5288
  %5586 = vmatpush1.msra.mxu0 %v5287
  %5587 = vmatprep.subr.mxu0 %v5280
  %5588 = vmatpush1.msra.mxu0 %v5279
  %5589 = vmatprep.subr.mxu0 %v5272
  %5590 = vmatpush1.msra.mxu0 %v5271
  %5591 = vmatprep.subr.mxu0 %v5264
  %5592 = vmatpush1.msra.mxu0 %v5263
  %5593 = vmatprep.subr.mxu0 %v5256
  %5594 = vmatpush1.msra.mxu0 %v5255
  %5595 = vmatprep.subr.mxu0 %v5248
  %5596 = vmatpush1.msra.mxu0 %v5247
  %5597 = vmatprep.subr.mxu0 %v5240
  %5598 = vmatpush1.msra.mxu0 %v5239
  %5599 = vmatprep.subr.mxu0 %v5232
  %5600 = vmatpush1.msra.mxu0 %v5231
  %5601 = vmatprep.subr.mxu0 %v5224
  %5602 = vmatpush1.msra.mxu0 %v5223
  %5603 = vmatprep.subr.mxu0 %v5216
  %5604 = vmatpush1.msra.mxu0 %v5215
  %5605 = vmatprep.subr.mxu0 %v5208
  %5606 = vmatpush1.msra.mxu0 %v5207
  %5607 = vmatprep.subr.mxu0 %v5200
  %5608 = vmatpush1.msra.mxu0 %v5199
  %5609 = vmatprep.subr.mxu0 0.0
  %5610 = vmatpush2.msra.mxu0 0.0
  %5611 = vmatprep.subr.mxu0 0.0
  %5612 = vmatpush2.msra.mxu0 0.0
  %5613 = vmatprep.subr.mxu0 0.0
  %5614 = vmatpush2.msra.mxu0 0.0
  %5615 = vmatprep.subr.mxu0 0.0
  %5616 = vmatpush2.msra.mxu0 0.0
  %5617 = vmatprep.subr.mxu0 0.0
  %5618 = vmatpush2.msra.mxu0 0.0
  %5619 = vmatprep.subr.mxu0 0.0
  %5620 = vmatpush2.msra.mxu0 0.0
  %5621 = vmatprep.subr.mxu0 0.0
  %5622 = vmatpush2.msra.mxu0 0.0
  %5623 = vmatprep.subr.mxu0 0.0
  %5624 = vmatpush2.msra.mxu0 0.0
  %5625 = vmatprep.subr.mxu0 0.0
  %5626 = vmatpush2.msra.mxu0 0.0
  %5627 = vmatprep.subr.mxu0 0.0
  %5628 = vmatpush2.msra.mxu0 0.0
  %5629 = vmatprep.subr.mxu0 0.0
  %5630 = vmatpush2.msra.mxu0 0.0
  %5631 = vmatprep.subr.mxu0 0.0
  %5632 = vmatpush2.msra.mxu0 0.0
  %5633 = vmatprep.subr.mxu0 0.0
  %5634 = vmatpush2.msra.mxu0 0.0
  %5635 = vmatprep.subr.mxu0 0.0
  %5636 = vmatpush2.msra.mxu0 0.0
  %5637 = vmatprep.subr.mxu0 0.0
  %5638 = vmatpush2.msra.mxu0 0.0
  %5639 = vmatprep.subr.mxu0 0.0
  %5640 = vmatpush2.msra.mxu0 0.0
  %5641 = vmatprep.mubr.f32.mxu0 0.0
  %5642 = vmatmul.mubr.f32.gmra.mxu0 %v3801
  %v5643 = vpop.f32.mrf.mxu0
  %v5644 = vadd.f32 %v5351, %v5643
  %v5645 = vpop.f32.mrf.mxu0
  %v5646 = vadd.f32 %v5355, %v5645
  %5647 = vdwg.mxu0
  %v5648 = vmax.f32 %v5431, 0.0
  %v5649 = vmax.f32 %v5433, 0.0
  %v5650 = vmax.f32 %v5502, 0.0
  %v5651 = vmax.f32 %v5504, 0.0
  %v5652 = vmax.f32 %v5573, 0.0
  %v5653 = vmax.f32 %v5575, 0.0
  %v5654 = vmax.f32 %v5644, 0.0
  %v5655 = vmax.f32 %v5646, 0.0
  %v5656 = vld [vmem:[%s12] sm:$0xff]
  %v5657 = vld [vmem:[%s12 + $0x8] sm:$0xff]
  %v5658 = vld [vmem:[%s12 + $0x10] sm:$0xff]
  %v5659 = vld [vmem:[%s12 + $0x18] sm:$0xff]
  %v5660 = vld [vmem:[%s12 + $0x20] sm:$0xff]
  %v5661 = vld [vmem:[%s12 + $0x28] sm:$0xff]
  %v5662 = vld [vmem:[%s12 + $0x30] sm:$0xff]
  %v5663 = vld [vmem:[%s12 + $0x38] sm:$0xff]
  %v5664 = vld [vmem:[%s13] sm:$0xff]
  %v5665 = vld [vmem:[%s13 + $0x8] sm:$0xff]
  %v5666 = vld [vmem:[%s13 + $0x10] sm:$0xff]
  %v5667 = vld [vmem:[%s13 + $0x18] sm:$0xff]
  %v5668 = vld [vmem:[%s13 + $0x20] sm:$0xff]
  %v5669 = vld [vmem:[%s13 + $0x28] sm:$0xff]
  %v5670 = vld [vmem:[%s13 + $0x30] sm:$0xff]
  %v5671 = vld [vmem:[%s13 + $0x38] sm:$0xff]
  %v5672 = vld [vmem:[%s14] sm:$0xff]
  %v5673 = vld [vmem:[%s14 + $0x8] sm:$0xff]
  %v5674 = vld [vmem:[%s14 + $0x10] sm:$0xff]
  %v5675 = vld [vmem:[%s14 + $0x18] sm:$0xff]
  %v5676 = vld [vmem:[%s14 + $0x20] sm:$0xff]
  %v5677 = vld [vmem:[%s14 + $0x28] sm:$0xff]
  %v5678 = vld [vmem:[%s15] sm:$0xff]
  %v5679 = vld [vmem:[%s15 + $0x8] sm:$0xff]
  %v5680 = vld [vmem:[%s15 + $0x10] sm:$0xff]
  %v5681 = vld [vmem:[%s15 + $0x18] sm:$0xff]
  %v5682 = vld [vmem:[%s15 + $0x20] sm:$0xff]
  %v5683 = vld [vmem:[%s15 + $0x28] sm:$0xff]
  %v5692 = vrot.slane %v4720, 7
  %v5693 = vrot.slane %v4721, 7
  %v5694 = vrot.slane %v4722, 7
  %v5695 = vrot.slane %v4723, 7
  %v5696 = vrot.slane %v4724, 7
  %v5697 = vrot.slane %v4725, 7
  %v5698 = vrot.slane %v4726, 7
  %v5699 = vrot.slane %v4727, 7
  %v5716 = vrot.slane %v5184, 6
  %v5717 = vrot.slane %v5185, 6
  %v5718 = vrot.slane %v5186, 6
  %v5719 = vrot.slane %v5187, 6
  %v5720 = vrot.slane %v5188, 6
  %v5721 = vrot.slane %v5189, 6
  %v5722 = vrot.slane %v5190, 6
  %v5723 = vrot.slane %v5191, 6
  %v5740 = vrot.slane %v5648, 5
  %v5741 = vrot.slane %v5649, 5
  %v5742 = vrot.slane %v5650, 5
  %v5743 = vrot.slane %v5651, 5
  %v5744 = vrot.slane %v5652, 5
  %v5745 = vrot.slane %v5653, 5
  %v5746 = vrot.slane %v5654, 5
  %v5747 = vrot.slane %v5655, 5
  %v5756 = vsel %vm3711, %v4256, %v5692
  %v5757 = vsel %vm3711, %v4257, %v5693
  %v5758 = vsel %vm3711, %v4258, %v5694
  %v5759 = vsel %vm3711, %v4259, %v5695
  %v5760 = vsel %vm3711, %v4260, %v5696
  %v5761 = vsel %vm3711, %v4261, %v5697
  %v5762 = vsel %vm3711, %v4262, %v5698
  %v5763 = vsel %vm3711, %v4263, %v5699
  %vm5764 = vcmask 1041408
  %v5765 = vsel %vm5764, %v5756, %v5716
  %v5766 = vsel %vm5764, %v5757, %v5717
  %v5767 = vsel %vm5764, %v5758, %v5718
  %v5768 = vsel %vm5764, %v5759, %v5719
  %v5769 = vsel %vm5764, %v5760, %v5720
  %v5770 = vsel %vm5764, %v5761, %v5721
  %v5771 = vsel %vm5764, %v5762, %v5722
  %v5772 = vsel %vm5764, %v5763, %v5723
  %vm5773 = vcmask 1042432
  %v5774 = vsel %vm5773, %v5765, %v5740
  %v5775 = vsel %vm5773, %v5766, %v5741
  %v5776 = vsel %vm5773, %v5767, %v5742
  %v5777 = vsel %vm5773, %v5768, %v5743
  %v5778 = vsel %vm5773, %v5769, %v5744
  %v5779 = vsel %vm5773, %v5770, %v5745
  %v5780 = vsel %vm5773, %v5771, %v5746
  %v5781 = vsel %vm5773, %v5772, %v5747
  %5783 = vset.pattern.permute.xlu0 0
  %5784 = vperm.xlu0 %5783, %v5664
  %v5785 = vpop.permute.xlu0 %5784
  %5788 = vset.pattern.permute.xlu0 0
  %5789 = vperm.xlu0 %5788, %v5665
  %v5790 = vpop.permute.xlu0 %5789
  %5793 = vset.pattern.permute.xlu0 0
  %5794 = vperm.xlu0 %5793, %v5666
  %v5795 = vpop.permute.xlu0 %5794
  %5798 = vset.pattern.permute.xlu0 0
  %5799 = vperm.xlu0 %5798, %v5667
  %v5800 = vpop.permute.xlu0 %5799
  %5803 = vset.pattern.permute.xlu0 0
  %5804 = vperm.xlu0 %5803, %v5668
  %v5805 = vpop.permute.xlu0 %5804
  %5808 = vset.pattern.permute.xlu0 0
  %5809 = vperm.xlu0 %5808, %v5669
  %v5810 = vpop.permute.xlu0 %5809
  %5813 = vset.pattern.permute.xlu0 0
  %5814 = vperm.xlu0 %5813, %v5670
  %v5815 = vpop.permute.xlu0 %5814
  %5818 = vset.pattern.permute.xlu0 0
  %5819 = vperm.xlu0 %5818, %v5671
  %v5820 = vpop.permute.xlu0 %5819
  %v5823 = vsel %vm3723, %v5656, 0
  %v5826 = vsel %vm3723, %v5657, 0
  %v5829 = vsel %vm3723, %v5658, 0
  %v5832 = vsel %vm3723, %v5659, 0
  %v5835 = vsel %vm3723, %v5660, 0
  %v5838 = vsel %vm3723, %v5661, 0
  %v5841 = vsel %vm3723, %v5662, 0
  %v5844 = vsel %vm3723, %v5663, 0
  %v5847 = vsel %vm3727, %v5774, 0
  %v5850 = vsel %vm3727, %v5775, 0
  %v5853 = vsel %vm3727, %v5776, 0
  %v5856 = vsel %vm3727, %v5777, 0
  %v5859 = vsel %vm3727, %v5778, 0
  %v5862 = vsel %vm3727, %v5779, 0
  %v5865 = vsel %vm3727, %v5780, 0
  %v5868 = vsel %vm3727, %v5781, 0
  %5870 = vmatprep.subr.mxu0 0.0
  %5871 = vmatpush1.msra.mxu0 0.0
  %5872 = vmatprep.subr.mxu0 0.0
  %5873 = vmatpush1.msra.mxu0 0.0
  %5874 = vmatprep.subr.mxu0 0.0
  %5875 = vmatpush1.msra.mxu0 0.0
  %5876 = vmatprep.subr.mxu0 0.0
  %5877 = vmatpush1.msra.mxu0 0.0
  %5878 = vmatprep.subr.mxu0 0.0
  %5879 = vmatpush1.msra.mxu0 0.0
  %5880 = vmatprep.subr.mxu0 0.0
  %5881 = vmatpush1.msra.mxu0 0.0
  %5882 = vmatprep.subr.mxu0 0.0
  %5883 = vmatpush1.msra.mxu0 0.0
  %5884 = vmatprep.subr.mxu0 0.0
  %5885 = vmatpush1.msra.mxu0 0.0
  %5886 = vmatprep.subr.mxu0 0.0
  %5887 = vmatpush1.msra.mxu0 0.0
  %5888 = vmatprep.subr.mxu0 0.0
  %5889 = vmatpush1.msra.mxu0 0.0
  %5890 = vmatprep.subr.mxu0 0.0
  %5891 = vmatpush1.msra.mxu0 0.0
  %5892 = vmatprep.subr.mxu0 0.0
  %5893 = vmatpush1.msra.mxu0 0.0
  %5894 = vmatprep.subr.mxu0 0.0
  %5895 = vmatpush1.msra.mxu0 0.0
  %5896 = vmatprep.subr.mxu0 0.0
  %5897 = vmatpush1.msra.mxu0 0.0
  %5898 = vmatprep.subr.mxu0 0.0
  %5899 = vmatpush1.msra.mxu0 0.0
  %5900 = vmatprep.subr.mxu0 %v5850
  %5901 = vmatpush1.msra.mxu0 %v5847
  %5902 = vmatprep.subr.mxu0 0.0
  %5903 = vmatpush2.msra.mxu0 0.0
  %5904 = vmatprep.subr.mxu0 0.0
  %5905 = vmatpush2.msra.mxu0 0.0
  %5906 = vmatprep.subr.mxu0 0.0
  %5907 = vmatpush2.msra.mxu0 0.0
  %5908 = vmatprep.subr.mxu0 0.0
  %5909 = vmatpush2.msra.mxu0 0.0
  %5910 = vmatprep.subr.mxu0 0.0
  %5911 = vmatpush2.msra.mxu0 0.0
  %5912 = vmatprep.subr.mxu0 0.0
  %5913 = vmatpush2.msra.mxu0 0.0
  %5914 = vmatprep.subr.mxu0 0.0
  %5915 = vmatpush2.msra.mxu0 0.0
  %5916 = vmatprep.subr.mxu0 0.0
  %5917 = vmatpush2.msra.mxu0 0.0
  %5918 = vmatprep.subr.mxu0 0.0
  %5919 = vmatpush2.msra.mxu0 0.0
  %5920 = vmatprep.subr.mxu0 0.0
  %5921 = vmatpush2.msra.mxu0 0.0
  %5922 = vmatprep.subr.mxu0 0.0
  %5923 = vmatpush2.msra.mxu0 0.0
  %5924 = vmatprep.subr.mxu0 0.0
  %5925 = vmatpush2.msra.mxu0 0.0
  %5926 = vmatprep.subr.mxu0 0.0
  %5927 = vmatpush2.msra.mxu0 0.0
  %5928 = vmatprep.subr.mxu0 0.0
  %5929 = vmatpush2.msra.mxu0 0.0
  %5930 = vmatprep.subr.mxu0 0.0
  %5931 = vmatpush2.msra.mxu0 0.0
  %5932 = vmatprep.subr.mxu0 0.0
  %5933 = vmatpush2.msra.mxu0 0.0
  %5934 = vmatprep.mubr.f32.mxu0 0.0
  %5935 = vmatmul.mubr.f32.gmra.mxu0 %v5823
  %v5936 = vpop.f32.mrf.mxu0
  %v5937 = vadd.f32 %v5785, %v5936
  %v5938 = vpop.f32.mrf.mxu0
  %v5939 = vadd.f32 %v5785, %v5938
  %5940 = vmatprep.mubr.f32.mxu0 0.0
  %5941 = vmatmul.mubr.f32.gmra.mxu0 %v5826
  %v5942 = vpop.f32.mrf.mxu0
  %v5943 = vadd.f32 %v5790, %v5942
  %v5944 = vpop.f32.mrf.mxu0
  %v5945 = vadd.f32 %v5790, %v5944
  %5946 = vmatprep.mubr.f32.mxu0 0.0
  %5947 = vmatmul.mubr.f32.gmra.mxu0 %v5829
  %v5948 = vpop.f32.mrf.mxu0
  %v5949 = vadd.f32 %v5795, %v5948
  %v5950 = vpop.f32.mrf.mxu0
  %v5951 = vadd.f32 %v5795, %v5950
  %5952 = vmatprep.mubr.f32.mxu0 0.0
  %5953 = vmatmul.mubr.f32.gmra.mxu0 %v5832
  %v5954 = vpop.f32.mrf.mxu0
  %v5955 = vadd.f32 %v5800, %v5954
  %v5956 = vpop.f32.mrf.mxu0
  %v5957 = vadd.f32 %v5800, %v5956
  %5958 = vmatprep.mubr.f32.mxu0 0.0
  %5959 = vmatmul.mubr.f32.gmra.mxu0 %v5835
  %v5960 = vpop.f32.mrf.mxu0
  %v5961 = vadd.f32 %v5805, %v5960
  %v5962 = vpop.f32.mrf.mxu0
  %v5963 = vadd.f32 %v5805, %v5962
  %5964 = vmatprep.mubr.f32.mxu0 0.0
  %5965 = vmatmul.mubr.f32.gmra.mxu0 %v5838
  %v5966 = vpop.f32.mrf.mxu0
  %v5967 = vadd.f32 %v5810, %v5966
  %v5968 = vpop.f32.mrf.mxu0
  %v5969 = vadd.f32 %v5810, %v5968
  %5970 = vmatprep.mubr.f32.mxu0 0.0
  %5971 = vmatmul.mubr.f32.gmra.mxu0 %v5841
  %v5972 = vpop.f32.mrf.mxu0
  %v5973 = vadd.f32 %v5815, %v5972
  %v5974 = vpop.f32.mrf.mxu0
  %v5975 = vadd.f32 %v5815, %v5974
  %5976 = vmatprep.mubr.f32.mxu0 0.0
  %5977 = vmatmul.mubr.f32.gmra.mxu0 %v5844
  %v5978 = vpop.f32.mrf.mxu0
  %v5979 = vadd.f32 %v5820, %v5978
  %v5980 = vpop.f32.mrf.mxu0
  %v5981 = vadd.f32 %v5820, %v5980
  %5982 = vdwg.mxu0
  %5983 = vmatprep.subr.mxu0 0.0
  %5984 = vmatpush1.msra.mxu0 0.0
  %5985 = vmatprep.subr.mxu0 0.0
  %5986 = vmatpush1.msra.mxu0 0.0
  %5987 = vmatprep.subr.mxu0 0.0
  %5988 = vmatpush1.msra.mxu0 0.0
  %5989 = vmatprep.subr.mxu0 0.0
  %5990 = vmatpush1.msra.mxu0 0.0
  %5991 = vmatprep.subr.mxu0 0.0
  %5992 = vmatpush1.msra.mxu0 0.0
  %5993 = vmatprep.subr.mxu0 0.0
  %5994 = vmatpush1.msra.mxu0 0.0
  %5995 = vmatprep.subr.mxu0 0.0
  %5996 = vmatpush1.msra.mxu0 0.0
  %5997 = vmatprep.subr.mxu0 0.0
  %5998 = vmatpush1.msra.mxu0 0.0
  %5999 = vmatprep.subr.mxu0 0.0
  %6000 = vmatpush1.msra.mxu0 0.0
  %6001 = vmatprep.subr.mxu0 0.0
  %6002 = vmatpush1.msra.mxu0 0.0
  %6003 = vmatprep.subr.mxu0 0.0
  %6004 = vmatpush1.msra.mxu0 0.0
  %6005 = vmatprep.subr.mxu0 0.0
  %6006 = vmatpush1.msra.mxu0 0.0
  %6007 = vmatprep.subr.mxu0 0.0
  %6008 = vmatpush1.msra.mxu0 0.0
  %6009 = vmatprep.subr.mxu0 0.0
  %6010 = vmatpush1.msra.mxu0 0.0
  %6011 = vmatprep.subr.mxu0 0.0
  %6012 = vmatpush1.msra.mxu0 0.0
  %6013 = vmatprep.subr.mxu0 %v5856
  %6014 = vmatpush1.msra.mxu0 %v5853
  %6015 = vmatprep.subr.mxu0 0.0
  %6016 = vmatpush2.msra.mxu0 0.0
  %6017 = vmatprep.subr.mxu0 0.0
  %6018 = vmatpush2.msra.mxu0 0.0
  %6019 = vmatprep.subr.mxu0 0.0
  %6020 = vmatpush2.msra.mxu0 0.0
  %6021 = vmatprep.subr.mxu0 0.0
  %6022 = vmatpush2.msra.mxu0 0.0
  %6023 = vmatprep.subr.mxu0 0.0
  %6024 = vmatpush2.msra.mxu0 0.0
  %6025 = vmatprep.subr.mxu0 0.0
  %6026 = vmatpush2.msra.mxu0 0.0
  %6027 = vmatprep.subr.mxu0 0.0
  %6028 = vmatpush2.msra.mxu0 0.0
  %6029 = vmatprep.subr.mxu0 0.0
  %6030 = vmatpush2.msra.mxu0 0.0
  %6031 = vmatprep.subr.mxu0 0.0
  %6032 = vmatpush2.msra.mxu0 0.0
  %6033 = vmatprep.subr.mxu0 0.0
  %6034 = vmatpush2.msra.mxu0 0.0
  %6035 = vmatprep.subr.mxu0 0.0
  %6036 = vmatpush2.msra.mxu0 0.0
  %6037 = vmatprep.subr.mxu0 0.0
  %6038 = vmatpush2.msra.mxu0 0.0
  %6039 = vmatprep.subr.mxu0 0.0
  %6040 = vmatpush2.msra.mxu0 0.0
  %6041 = vmatprep.subr.mxu0 0.0
  %6042 = vmatpush2.msra.mxu0 0.0
  %6043 = vmatprep.subr.mxu0 0.0
  %6044 = vmatpush2.msra.mxu0 0.0
  %6045 = vmatprep.subr.mxu0 0.0
  %6046 = vmatpush2.msra.mxu0 0.0
  %6047 = vmatprep.mubr.f32.mxu0 0.0
  %6048 = vmatmul.mubr.f32.gmra.mxu0 %v5823
  %v6049 = vpop.f32.mrf.mxu0
  %v6050 = vadd.f32 %v5785, %v6049
  %v6051 = vpop.f32.mrf.mxu0
  %v6052 = vadd.f32 %v5785, %v6051
  %6053 = vmatprep.mubr.f32.mxu0 0.0
  %6054 = vmatmul.mubr.f32.gmra.mxu0 %v5826
  %v6055 = vpop.f32.mrf.mxu0
  %v6056 = vadd.f32 %v5790, %v6055
  %v6057 = vpop.f32.mrf.mxu0
  %v6058 = vadd.f32 %v5790, %v6057
  %6059 = vmatprep.mubr.f32.mxu0 0.0
  %6060 = vmatmul.mubr.f32.gmra.mxu0 %v5829
  %v6061 = vpop.f32.mrf.mxu0
  %v6062 = vadd.f32 %v5795, %v6061
  %v6063 = vpop.f32.mrf.mxu0
  %v6064 = vadd.f32 %v5795, %v6063
  %6065 = vmatprep.mubr.f32.mxu0 0.0
  %6066 = vmatmul.mubr.f32.gmra.mxu0 %v5832
  %v6067 = vpop.f32.mrf.mxu0
  %v6068 = vadd.f32 %v5800, %v6067
  %v6069 = vpop.f32.mrf.mxu0
  %v6070 = vadd.f32 %v5800, %v6069
  %6071 = vmatprep.mubr.f32.mxu0 0.0
  %6072 = vmatmul.mubr.f32.gmra.mxu0 %v5835
  %v6073 = vpop.f32.mrf.mxu0
  %v6074 = vadd.f32 %v5805, %v6073
  %v6075 = vpop.f32.mrf.mxu0
  %v6076 = vadd.f32 %v5805, %v6075
  %6077 = vmatprep.mubr.f32.mxu0 0.0
  %6078 = vmatmul.mubr.f32.gmra.mxu0 %v5838
  %v6079 = vpop.f32.mrf.mxu0
  %v6080 = vadd.f32 %v5810, %v6079
  %v6081 = vpop.f32.mrf.mxu0
  %v6082 = vadd.f32 %v5810, %v6081
  %6083 = vmatprep.mubr.f32.mxu0 0.0
  %6084 = vmatmul.mubr.f32.gmra.mxu0 %v5841
  %v6085 = vpop.f32.mrf.mxu0
  %v6086 = vadd.f32 %v5815, %v6085
  %v6087 = vpop.f32.mrf.mxu0
  %v6088 = vadd.f32 %v5815, %v6087
  %6089 = vmatprep.mubr.f32.mxu0 0.0
  %6090 = vmatmul.mubr.f32.gmra.mxu0 %v5844
  %v6091 = vpop.f32.mrf.mxu0
  %v6092 = vadd.f32 %v5820, %v6091
  %v6093 = vpop.f32.mrf.mxu0
  %v6094 = vadd.f32 %v5820, %v6093
  %6095 = vdwg.mxu0
  %6096 = vmatprep.subr.mxu0 0.0
  %6097 = vmatpush1.msra.mxu0 0.0
  %6098 = vmatprep.subr.mxu0 0.0
  %6099 = vmatpush1.msra.mxu0 0.0
  %6100 = vmatprep.subr.mxu0 0.0
  %6101 = vmatpush1.msra.mxu0 0.0
  %6102 = vmatprep.subr.mxu0 0.0
  %6103 = vmatpush1.msra.mxu0 0.0
  %6104 = vmatprep.subr.mxu0 0.0
  %6105 = vmatpush1.msra.mxu0 0.0
  %6106 = vmatprep.subr.mxu0 0.0
  %6107 = vmatpush1.msra.mxu0 0.0
  %6108 = vmatprep.subr.mxu0 0.0
  %6109 = vmatpush1.msra.mxu0 0.0
  %6110 = vmatprep.subr.mxu0 0.0
  %6111 = vmatpush1.msra.mxu0 0.0
  %6112 = vmatprep.subr.mxu0 0.0
  %6113 = vmatpush1.msra.mxu0 0.0
  %6114 = vmatprep.subr.mxu0 0.0
  %6115 = vmatpush1.msra.mxu0 0.0
  %6116 = vmatprep.subr.mxu0 0.0
  %6117 = vmatpush1.msra.mxu0 0.0
  %6118 = vmatprep.subr.mxu0 0.0
  %6119 = vmatpush1.msra.mxu0 0.0
  %6120 = vmatprep.subr.mxu0 0.0
  %6121 = vmatpush1.msra.mxu0 0.0
  %6122 = vmatprep.subr.mxu0 0.0
  %6123 = vmatpush1.msra.mxu0 0.0
  %6124 = vmatprep.subr.mxu0 0.0
  %6125 = vmatpush1.msra.mxu0 0.0
  %6126 = vmatprep.subr.mxu0 %v5862
  %6127 = vmatpush1.msra.mxu0 %v5859
  %6128 = vmatprep.subr.mxu0 0.0
  %6129 = vmatpush2.msra.mxu0 0.0
  %6130 = vmatprep.subr.mxu0 0.0
  %6131 = vmatpush2.msra.mxu0 0.0
  %6132 = vmatprep.subr.mxu0 0.0
  %6133 = vmatpush2.msra.mxu0 0.0
  %6134 = vmatprep.subr.mxu0 0.0
  %6135 = vmatpush2.msra.mxu0 0.0
  %6136 = vmatprep.subr.mxu0 0.0
  %6137 = vmatpush2.msra.mxu0 0.0
  %6138 = vmatprep.subr.mxu0 0.0
  %6139 = vmatpush2.msra.mxu0 0.0
  %6140 = vmatprep.subr.mxu0 0.0
  %6141 = vmatpush2.msra.mxu0 0.0
  %6142 = vmatprep.subr.mxu0 0.0
  %6143 = vmatpush2.msra.mxu0 0.0
  %6144 = vmatprep.subr.mxu0 0.0
  %6145 = vmatpush2.msra.mxu0 0.0
  %6146 = vmatprep.subr.mxu0 0.0
  %6147 = vmatpush2.msra.mxu0 0.0
  %6148 = vmatprep.subr.mxu0 0.0
  %6149 = vmatpush2.msra.mxu0 0.0
  %6150 = vmatprep.subr.mxu0 0.0
  %6151 = vmatpush2.msra.mxu0 0.0
  %6152 = vmatprep.subr.mxu0 0.0
  %6153 = vmatpush2.msra.mxu0 0.0
  %6154 = vmatprep.subr.mxu0 0.0
  %6155 = vmatpush2.msra.mxu0 0.0
  %6156 = vmatprep.subr.mxu0 0.0
  %6157 = vmatpush2.msra.mxu0 0.0
  %6158 = vmatprep.subr.mxu0 0.0
  %6159 = vmatpush2.msra.mxu0 0.0
  %6160 = vmatprep.mubr.f32.mxu0 0.0
  %6161 = vmatmul.mubr.f32.gmra.mxu0 %v5823
  %v6162 = vpop.f32.mrf.mxu0
  %v6163 = vadd.f32 %v5785, %v6162
  %v6164 = vpop.f32.mrf.mxu0
  %v6165 = vadd.f32 %v5785, %v6164
  %6166 = vmatprep.mubr.f32.mxu0 0.0
  %6167 = vmatmul.mubr.f32.gmra.mxu0 %v5826
  %v6168 = vpop.f32.mrf.mxu0
  %v6169 = vadd.f32 %v5790, %v6168
  %v6170 = vpop.f32.mrf.mxu0
  %v6171 = vadd.f32 %v5790, %v6170
  %6172 = vmatprep.mubr.f32.mxu0 0.0
  %6173 = vmatmul.mubr.f32.gmra.mxu0 %v5829
  %v6174 = vpop.f32.mrf.mxu0
  %v6175 = vadd.f32 %v5795, %v6174
  %v6176 = vpop.f32.mrf.mxu0
  %v6177 = vadd.f32 %v5795, %v6176
  %6178 = vmatprep.mubr.f32.mxu0 0.0
  %6179 = vmatmul.mubr.f32.gmra.mxu0 %v5832
  %v6180 = vpop.f32.mrf.mxu0
  %v6181 = vadd.f32 %v5800, %v6180
  %v6182 = vpop.f32.mrf.mxu0
  %v6183 = vadd.f32 %v5800, %v6182
  %6184 = vmatprep.mubr.f32.mxu0 0.0
  %6185 = vmatmul.mubr.f32.gmra.mxu0 %v5835
  %v6186 = vpop.f32.mrf.mxu0
  %v6187 = vadd.f32 %v5805, %v6186
  %v6188 = vpop.f32.mrf.mxu0
  %v6189 = vadd.f32 %v5805, %v6188
  %6190 = vmatprep.mubr.f32.mxu0 0.0
  %6191 = vmatmul.mubr.f32.gmra.mxu0 %v5838
  %v6192 = vpop.f32.mrf.mxu0
  %v6193 = vadd.f32 %v5810, %v6192
  %v6194 = vpop.f32.mrf.mxu0
  %v6195 = vadd.f32 %v5810, %v6194
  %6196 = vmatprep.mubr.f32.mxu0 0.0
  %6197 = vmatmul.mubr.f32.gmra.mxu0 %v5841
  %v6198 = vpop.f32.mrf.mxu0
  %v6199 = vadd.f32 %v5815, %v6198
  %v6200 = vpop.f32.mrf.mxu0
  %v6201 = vadd.f32 %v5815, %v6200
  %6202 = vmatprep.mubr.f32.mxu0 0.0
  %6203 = vmatmul.mubr.f32.gmra.mxu0 %v5844
  %v6204 = vpop.f32.mrf.mxu0
  %v6205 = vadd.f32 %v5820, %v6204
  %v6206 = vpop.f32.mrf.mxu0
  %v6207 = vadd.f32 %v5820, %v6206
  %6208 = vdwg.mxu0
  %6209 = vmatprep.subr.mxu0 0.0
  %6210 = vmatpush1.msra.mxu0 0.0
  %6211 = vmatprep.subr.mxu0 0.0
  %6212 = vmatpush1.msra.mxu0 0.0
  %6213 = vmatprep.subr.mxu0 0.0
  %6214 = vmatpush1.msra.mxu0 0.0
  %6215 = vmatprep.subr.mxu0 0.0
  %6216 = vmatpush1.msra.mxu0 0.0
  %6217 = vmatprep.subr.mxu0 0.0
  %6218 = vmatpush1.msra.mxu0 0.0
  %6219 = vmatprep.subr.mxu0 0.0
  %6220 = vmatpush1.msra.mxu0 0.0
  %6221 = vmatprep.subr.mxu0 0.0
  %6222 = vmatpush1.msra.mxu0 0.0
  %6223 = vmatprep.subr.mxu0 0.0
  %6224 = vmatpush1.msra.mxu0 0.0
  %6225 = vmatprep.subr.mxu0 0.0
  %6226 = vmatpush1.msra.mxu0 0.0
  %6227 = vmatprep.subr.mxu0 0.0
  %6228 = vmatpush1.msra.mxu0 0.0
  %6229 = vmatprep.subr.mxu0 0.0
  %6230 = vmatpush1.msra.mxu0 0.0
  %6231 = vmatprep.subr.mxu0 0.0
  %6232 = vmatpush1.msra.mxu0 0.0
  %6233 = vmatprep.subr.mxu0 0.0
  %6234 = vmatpush1.msra.mxu0 0.0
  %6235 = vmatprep.subr.mxu0 0.0
  %6236 = vmatpush1.msra.mxu0 0.0
  %6237 = vmatprep.subr.mxu0 0.0
  %6238 = vmatpush1.msra.mxu0 0.0
  %6239 = vmatprep.subr.mxu0 %v5868
  %6240 = vmatpush1.msra.mxu0 %v5865
  %6241 = vmatprep.subr.mxu0 0.0
  %6242 = vmatpush2.msra.mxu0 0.0
  %6243 = vmatprep.subr.mxu0 0.0
  %6244 = vmatpush2.msra.mxu0 0.0
  %6245 = vmatprep.subr.mxu0 0.0
  %6246 = vmatpush2.msra.mxu0 0.0
  %6247 = vmatprep.subr.mxu0 0.0
  %6248 = vmatpush2.msra.mxu0 0.0
  %6249 = vmatprep.subr.mxu0 0.0
  %6250 = vmatpush2.msra.mxu0 0.0
  %6251 = vmatprep.subr.mxu0 0.0
  %6252 = vmatpush2.msra.mxu0 0.0
  %6253 = vmatprep.subr.mxu0 0.0
  %6254 = vmatpush2.msra.mxu0 0.0
  %6255 = vmatprep.subr.mxu0 0.0
  %6256 = vmatpush2.msra.mxu0 0.0
  %6257 = vmatprep.subr.mxu0 0.0
  %6258 = vmatpush2.msra.mxu0 0.0
  %6259 = vmatprep.subr.mxu0 0.0
  %6260 = vmatpush2.msra.mxu0 0.0
  %6261 = vmatprep.subr.mxu0 0.0
  %6262 = vmatpush2.msra.mxu0 0.0
  %6263 = vmatprep.subr.mxu0 0.0
  %6264 = vmatpush2.msra.mxu0 0.0
  %6265 = vmatprep.subr.mxu0 0.0
  %6266 = vmatpush2.msra.mxu0 0.0
  %6267 = vmatprep.subr.mxu0 0.0
  %6268 = vmatpush2.msra.mxu0 0.0
  %6269 = vmatprep.subr.mxu0 0.0
  %6270 = vmatpush2.msra.mxu0 0.0
  %6271 = vmatprep.subr.mxu0 0.0
  %6272 = vmatpush2.msra.mxu0 0.0
  %6273 = vmatprep.mubr.f32.mxu0 0.0
  %6274 = vmatmul.mubr.f32.gmra.mxu0 %v5823
  %v6275 = vpop.f32.mrf.mxu0
  %v6276 = vadd.f32 %v5785, %v6275
  %v6277 = vpop.f32.mrf.mxu0
  %v6278 = vadd.f32 %v5785, %v6277
  %6279 = vmatprep.mubr.f32.mxu0 0.0
  %6280 = vmatmul.mubr.f32.gmra.mxu0 %v5826
  %v6281 = vpop.f32.mrf.mxu0
  %v6282 = vadd.f32 %v5790, %v6281
  %v6283 = vpop.f32.mrf.mxu0
  %v6284 = vadd.f32 %v5790, %v6283
  %6285 = vmatprep.mubr.f32.mxu0 0.0
  %6286 = vmatmul.mubr.f32.gmra.mxu0 %v5829
  %v6287 = vpop.f32.mrf.mxu0
  %v6288 = vadd.f32 %v5795, %v6287
  %v6289 = vpop.f32.mrf.mxu0
  %v6290 = vadd.f32 %v5795, %v6289
  %6291 = vmatprep.mubr.f32.mxu0 0.0
  %6292 = vmatmul.mubr.f32.gmra.mxu0 %v5832
  %v6293 = vpop.f32.mrf.mxu0
  %v6294 = vadd.f32 %v5800, %v6293
  %v6295 = vpop.f32.mrf.mxu0
  %v6296 = vadd.f32 %v5800, %v6295
  %6297 = vmatprep.mubr.f32.mxu0 0.0
  %6298 = vmatmul.mubr.f32.gmra.mxu0 %v5835
  %v6299 = vpop.f32.mrf.mxu0
  %v6300 = vadd.f32 %v5805, %v6299
  %v6301 = vpop.f32.mrf.mxu0
  %v6302 = vadd.f32 %v5805, %v6301
  %6303 = vmatprep.mubr.f32.mxu0 0.0
  %6304 = vmatmul.mubr.f32.gmra.mxu0 %v5838
  %v6305 = vpop.f32.mrf.mxu0
  %v6306 = vadd.f32 %v5810, %v6305
  %v6307 = vpop.f32.mrf.mxu0
  %v6308 = vadd.f32 %v5810, %v6307
  %6309 = vmatprep.mubr.f32.mxu0 0.0
  %6310 = vmatmul.mubr.f32.gmra.mxu0 %v5841
  %v6311 = vpop.f32.mrf.mxu0
  %v6312 = vadd.f32 %v5815, %v6311
  %v6313 = vpop.f32.mrf.mxu0
  %v6314 = vadd.f32 %v5815, %v6313
  %6315 = vmatprep.mubr.f32.mxu0 0.0
  %6316 = vmatmul.mubr.f32.gmra.mxu0 %v5844
  %v6317 = vpop.f32.mrf.mxu0
  %v6318 = vadd.f32 %v5820, %v6317
  %v6319 = vpop.f32.mrf.mxu0
  %v6320 = vadd.f32 %v5820, %v6319
  %6321 = vdwg.mxu0
  %v6322 = vmax.f32 %v5937, 0.0
  %v6323 = vmax.f32 %v5939, 0.0
  %v6324 = vmax.f32 %v6050, 0.0
  %v6325 = vmax.f32 %v6052, 0.0
  %v6326 = vmax.f32 %v6163, 0.0
  %v6327 = vmax.f32 %v6165, 0.0
  %v6328 = vmax.f32 %v6276, 0.0
  %v6329 = vmax.f32 %v6278, 0.0
  %v6330 = vmax.f32 %v5943, 0.0
  %v6331 = vmax.f32 %v5945, 0.0
  %v6332 = vmax.f32 %v6056, 0.0
  %v6333 = vmax.f32 %v6058, 0.0
  %v6334 = vmax.f32 %v6169, 0.0
  %v6335 = vmax.f32 %v6171, 0.0
  %v6336 = vmax.f32 %v6282, 0.0
  %v6337 = vmax.f32 %v6284, 0.0
  %v6338 = vmax.f32 %v5949, 0.0
  %v6339 = vmax.f32 %v5951, 0.0
  %v6340 = vmax.f32 %v6062, 0.0
  %v6341 = vmax.f32 %v6064, 0.0
  %v6342 = vmax.f32 %v6175, 0.0
  %v6343 = vmax.f32 %v6177, 0.0
  %v6344 = vmax.f32 %v6288, 0.0
  %v6345 = vmax.f32 %v6290, 0.0
  %v6346 = vmax.f32 %v5955, 0.0
  %v6347 = vmax.f32 %v5957, 0.0
  %v6348 = vmax.f32 %v6068, 0.0
  %v6349 = vmax.f32 %v6070, 0.0
  %v6350 = vmax.f32 %v6181, 0.0
  %v6351 = vmax.f32 %v6183, 0.0
  %v6352 = vmax.f32 %v6294, 0.0
  %v6353 = vmax.f32 %v6296, 0.0
  %v6354 = vmax.f32 %v5961, 0.0
  %v6355 = vmax.f32 %v5963, 0.0
  %v6356 = vmax.f32 %v6074, 0.0
  %v6357 = vmax.f32 %v6076, 0.0
  %v6358 = vmax.f32 %v6187, 0.0
  %v6359 = vmax.f32 %v6189, 0.0
  %v6360 = vmax.f32 %v6300, 0.0
  %v6361 = vmax.f32 %v6302, 0.0
  %v6362 = vmax.f32 %v5967, 0.0
  %v6363 = vmax.f32 %v5969, 0.0
  %v6364 = vmax.f32 %v6080, 0.0
  %v6365 = vmax.f32 %v6082, 0.0
  %v6366 = vmax.f32 %v6193, 0.0
  %v6367 = vmax.f32 %v6195, 0.0
  %v6368 = vmax.f32 %v6306, 0.0
  %v6369 = vmax.f32 %v6308, 0.0
  %v6370 = vmax.f32 %v5973, 0.0
  %v6371 = vmax.f32 %v5975, 0.0
  %v6372 = vmax.f32 %v6086, 0.0
  %v6373 = vmax.f32 %v6088, 0.0
  %v6374 = vmax.f32 %v6199, 0.0
  %v6375 = vmax.f32 %v6201, 0.0
  %v6376 = vmax.f32 %v6312, 0.0
  %v6377 = vmax.f32 %v6314, 0.0
  %v6378 = vmax.f32 %v5979, 0.0
  %v6379 = vmax.f32 %v5981, 0.0
  %v6380 = vmax.f32 %v6092, 0.0
  %v6381 = vmax.f32 %v6094, 0.0
  %v6382 = vmax.f32 %v6205, 0.0
  %v6383 = vmax.f32 %v6207, 0.0
  %v6384 = vmax.f32 %v6318, 0.0
  %v6385 = vmax.f32 %v6320, 0.0
  %6387 = vset.pattern.permute.xlu0 0
  %6388 = vperm.xlu0 %6387, %v5678
  %v6389 = vpop.permute.xlu0 %6388
  %6392 = vset.pattern.permute.xlu0 0
  %6393 = vperm.xlu0 %6392, %v5679
  %v6394 = vpop.permute.xlu0 %6393
  %6397 = vset.pattern.permute.xlu0 0
  %6398 = vperm.xlu0 %6397, %v5680
  %v6399 = vpop.permute.xlu0 %6398
  %6402 = vset.pattern.permute.xlu0 0
  %6403 = vperm.xlu0 %6402, %v5681
  %v6404 = vpop.permute.xlu0 %6403
  %6407 = vset.pattern.permute.xlu0 0
  %6408 = vperm.xlu0 %6407, %v5682
  %v6409 = vpop.permute.xlu0 %6408
  %6412 = vset.pattern.permute.xlu0 0
  %6413 = vperm.xlu0 %6412, %v5683
  %v6414 = vpop.permute.xlu0 %6413
  %vm6416 = vcmask 523264
  %v6418 = vsel %vm6416, %v5672, 0
  %v6421 = vsel %vm6416, %v5673, 0
  %v6424 = vsel %vm6416, %v5674, 0
  %v6427 = vsel %vm6416, %v5675, 0
  %v6430 = vsel %vm6416, %v5676, 0
  %v6433 = vsel %vm6416, %v5677, 0
  %6435 = vmatprep.subr.mxu0 0.0
  %6436 = vmatpush1.msra.mxu0 0.0
  %6437 = vmatprep.subr.mxu0 0.0
  %6438 = vmatpush1.msra.mxu0 0.0
  %6439 = vmatprep.subr.mxu0 0.0
  %6440 = vmatpush1.msra.mxu0 0.0
  %6441 = vmatprep.subr.mxu0 0.0
  %6442 = vmatpush1.msra.mxu0 0.0
  %6443 = vmatprep.subr.mxu0 0.0
  %6444 = vmatpush1.msra.mxu0 0.0
  %6445 = vmatprep.subr.mxu0 0.0
  %6446 = vmatpush1.msra.mxu0 0.0
  %6447 = vmatprep.subr.mxu0 0.0
  %6448 = vmatpush1.msra.mxu0 0.0
  %6449 = vmatprep.subr.mxu0 0.0
  %6450 = vmatpush1.msra.mxu0 0.0
  %6451 = vmatprep.subr.mxu0 %v6379
  %6452 = vmatpush1.msra.mxu0 %v6378
  %6453 = vmatprep.subr.mxu0 %v6371
  %6454 = vmatpush1.msra.mxu0 %v6370
  %6455 = vmatprep.subr.mxu0 %v6363
  %6456 = vmatpush1.msra.mxu0 %v6362
  %6457 = vmatprep.subr.mxu0 %v6355
  %6458 = vmatpush1.msra.mxu0 %v6354
  %6459 = vmatprep.subr.mxu0 %v6347
  %6460 = vmatpush1.msra.mxu0 %v6346
  %6461 = vmatprep.subr.mxu0 %v6339
  %6462 = vmatpush1.msra.mxu0 %v6338
  %6463 = vmatprep.subr.mxu0 %v6331
  %6464 = vmatpush1.msra.mxu0 %v6330
  %6465 = vmatprep.subr.mxu0 %v6323
  %6466 = vmatpush1.msra.mxu0 %v6322
  %6467 = vmatprep.subr.mxu0 0.0
  %6468 = vmatpush2.msra.mxu0 0.0
  %6469 = vmatprep.subr.mxu0 0.0
  %6470 = vmatpush2.msra.mxu0 0.0
  %6471 = vmatprep.subr.mxu0 0.0
  %6472 = vmatpush2.msra.mxu0 0.0
  %6473 = vmatprep.subr.mxu0 0.0
  %6474 = vmatpush2.msra.mxu0 0.0
  %6475 = vmatprep.subr.mxu0 0.0
  %6476 = vmatpush2.msra.mxu0 0.0
  %6477 = vmatprep.subr.mxu0 0.0
  %6478 = vmatpush2.msra.mxu0 0.0
  %6479 = vmatprep.subr.mxu0 0.0
  %6480 = vmatpush2.msra.mxu0 0.0
  %6481 = vmatprep.subr.mxu0 0.0
  %6482 = vmatpush2.msra.mxu0 0.0
  %6483 = vmatprep.subr.mxu0 0.0
  %6484 = vmatpush2.msra.mxu0 0.0
  %6485 = vmatprep.subr.mxu0 0.0
  %6486 = vmatpush2.msra.mxu0 0.0
  %6487 = vmatprep.subr.mxu0 0.0
  %6488 = vmatpush2.msra.mxu0 0.0
  %6489 = vmatprep.subr.mxu0 0.0
  %6490 = vmatpush2.msra.mxu0 0.0
  %6491 = vmatprep.subr.mxu0 0.0
  %6492 = vmatpush2.msra.mxu0 0.0
  %6493 = vmatprep.subr.mxu0 0.0
  %6494 = vmatpush2.msra.mxu0 0.0
  %6495 = vmatprep.subr.mxu0 0.0
  %6496 = vmatpush2.msra.mxu0 0.0
  %6497 = vmatprep.subr.mxu0 0.0
  %6498 = vmatpush2.msra.mxu0 0.0
  %6499 = vmatprep.mubr.f32.mxu0 0.0
  %6500 = vmatmul.mubr.f32.gmra.mxu0 %v6418
  %v6501 = vpop.f32.mrf.mxu0
  %v6502 = vadd.f32 %v6389, %v6501
  %v6503 = vpop.f32.mrf.mxu0
  %v6504 = vadd.f32 %v6389, %v6503
  %6505 = vmatprep.mubr.f32.mxu0 0.0
  %6506 = vmatmul.mubr.f32.gmra.mxu0 %v6421
  %v6507 = vpop.f32.mrf.mxu0
  %v6508 = vadd.f32 %v6394, %v6507
  %v6509 = vpop.f32.mrf.mxu0
  %v6510 = vadd.f32 %v6394, %v6509
  %6511 = vmatprep.mubr.f32.mxu0 0.0
  %6512 = vmatmul.mubr.f32.gmra.mxu0 %v6424
  %v6513 = vpop.f32.mrf.mxu0
  %v6514 = vadd.f32 %v6399, %v6513
  %v6515 = vpop.f32.mrf.mxu0
  %v6516 = vadd.f32 %v6399, %v6515
  %6517 = vmatprep.mubr.f32.mxu0 0.0
  %6518 = vmatmul.mubr.f32.gmra.mxu0 %v6427
  %v6519 = vpop.f32.mrf.mxu0
  %v6520 = vadd.f32 %v6404, %v6519
  %v6521 = vpop.f32.mrf.mxu0
  %v6522 = vadd.f32 %v6404, %v6521
  %6523 = vmatprep.mubr.f32.mxu0 0.0
  %6524 = vmatmul.mubr.f32.gmra.mxu0 %v6430
  %v6525 = vpop.f32.mrf.mxu0
  %v6526 = vadd.f32 %v6409, %v6525
  %v6527 = vpop.f32.mrf.mxu0
  %v6528 = vadd.f32 %v6409, %v6527
  %6529 = vmatprep.mubr.f32.mxu0 0.0
  %6530 = vmatmul.mubr.f32.gmra.mxu0 %v6433
  %v6531 = vpop.f32.mrf.mxu0
  %v6532 = vadd.f32 %v6414, %v6531
  %v6533 = vpop.f32.mrf.mxu0
  %v6534 = vadd.f32 %v6414, %v6533
  %6535 = vdwg.mxu0
  %6536 = vmatprep.subr.mxu0 0.0
  %6537 = vmatpush1.msra.mxu0 0.0
  %6538 = vmatprep.subr.mxu0 0.0
  %6539 = vmatpush1.msra.mxu0 0.0
  %6540 = vmatprep.subr.mxu0 0.0
  %6541 = vmatpush1.msra.mxu0 0.0
  %6542 = vmatprep.subr.mxu0 0.0
  %6543 = vmatpush1.msra.mxu0 0.0
  %6544 = vmatprep.subr.mxu0 0.0
  %6545 = vmatpush1.msra.mxu0 0.0
  %6546 = vmatprep.subr.mxu0 0.0
  %6547 = vmatpush1.msra.mxu0 0.0
  %6548 = vmatprep.subr.mxu0 0.0
  %6549 = vmatpush1.msra.mxu0 0.0
  %6550 = vmatprep.subr.mxu0 0.0
  %6551 = vmatpush1.msra.mxu0 0.0
  %6552 = vmatprep.subr.mxu0 %v6381
  %6553 = vmatpush1.msra.mxu0 %v6380
  %6554 = vmatprep.subr.mxu0 %v6373
  %6555 = vmatpush1.msra.mxu0 %v6372
  %6556 = vmatprep.subr.mxu0 %v6365
  %6557 = vmatpush1.msra.mxu0 %v6364
  %6558 = vmatprep.subr.mxu0 %v6357
  %6559 = vmatpush1.msra.mxu0 %v6356
  %6560 = vmatprep.subr.mxu0 %v6349
  %6561 = vmatpush1.msra.mxu0 %v6348
  %6562 = vmatprep.subr.mxu0 %v6341
  %6563 = vmatpush1.msra.mxu0 %v6340
  %6564 = vmatprep.subr.mxu0 %v6333
  %6565 = vmatpush1.msra.mxu0 %v6332
  %6566 = vmatprep.subr.mxu0 %v6325
  %6567 = vmatpush1.msra.mxu0 %v6324
  %6568 = vmatprep.subr.mxu0 0.0
  %6569 = vmatpush2.msra.mxu0 0.0
  %6570 = vmatprep.subr.mxu0 0.0
  %6571 = vmatpush2.msra.mxu0 0.0
  %6572 = vmatprep.subr.mxu0 0.0
  %6573 = vmatpush2.msra.mxu0 0.0
  %6574 = vmatprep.subr.mxu0 0.0
  %6575 = vmatpush2.msra.mxu0 0.0
  %6576 = vmatprep.subr.mxu0 0.0
  %6577 = vmatpush2.msra.mxu0 0.0
  %6578 = vmatprep.subr.mxu0 0.0
  %6579 = vmatpush2.msra.mxu0 0.0
  %6580 = vmatprep.subr.mxu0 0.0
  %6581 = vmatpush2.msra.mxu0 0.0
  %6582 = vmatprep.subr.mxu0 0.0
  %6583 = vmatpush2.msra.mxu0 0.0
  %6584 = vmatprep.subr.mxu0 0.0
  %6585 = vmatpush2.msra.mxu0 0.0
  %6586 = vmatprep.subr.mxu0 0.0
  %6587 = vmatpush2.msra.mxu0 0.0
  %6588 = vmatprep.subr.mxu0 0.0
  %6589 = vmatpush2.msra.mxu0 0.0
  %6590 = vmatprep.subr.mxu0 0.0
  %6591 = vmatpush2.msra.mxu0 0.0
  %6592 = vmatprep.subr.mxu0 0.0
  %6593 = vmatpush2.msra.mxu0 0.0
  %6594 = vmatprep.subr.mxu0 0.0
  %6595 = vmatpush2.msra.mxu0 0.0
  %6596 = vmatprep.subr.mxu0 0.0
  %6597 = vmatpush2.msra.mxu0 0.0
  %6598 = vmatprep.subr.mxu0 0.0
  %6599 = vmatpush2.msra.mxu0 0.0
  %6600 = vmatprep.mubr.f32.mxu0 0.0
  %6601 = vmatmul.mubr.f32.gmra.mxu0 %v6418
  %v6602 = vpop.f32.mrf.mxu0
  %v6603 = vadd.f32 %v6389, %v6602
  %v6604 = vpop.f32.mrf.mxu0
  %v6605 = vadd.f32 %v6389, %v6604
  %6606 = vmatprep.mubr.f32.mxu0 0.0
  %6607 = vmatmul.mubr.f32.gmra.mxu0 %v6421
  %v6608 = vpop.f32.mrf.mxu0
  %v6609 = vadd.f32 %v6394, %v6608
  %v6610 = vpop.f32.mrf.mxu0
  %v6611 = vadd.f32 %v6394, %v6610
  %6612 = vmatprep.mubr.f32.mxu0 0.0
  %6613 = vmatmul.mubr.f32.gmra.mxu0 %v6424
  %v6614 = vpop.f32.mrf.mxu0
  %v6615 = vadd.f32 %v6399, %v6614
  %v6616 = vpop.f32.mrf.mxu0
  %v6617 = vadd.f32 %v6399, %v6616
  %6618 = vmatprep.mubr.f32.mxu0 0.0
  %6619 = vmatmul.mubr.f32.gmra.mxu0 %v6427
  %v6620 = vpop.f32.mrf.mxu0
  %v6621 = vadd.f32 %v6404, %v6620
  %v6622 = vpop.f32.mrf.mxu0
  %v6623 = vadd.f32 %v6404, %v6622
  %6624 = vmatprep.mubr.f32.mxu0 0.0
  %6625 = vmatmul.mubr.f32.gmra.mxu0 %v6430
  %v6626 = vpop.f32.mrf.mxu0
  %v6627 = vadd.f32 %v6409, %v6626
  %v6628 = vpop.f32.mrf.mxu0
  %v6629 = vadd.f32 %v6409, %v6628
  %6630 = vmatprep.mubr.f32.mxu0 0.0
  %6631 = vmatmul.mubr.f32.gmra.mxu0 %v6433
  %v6632 = vpop.f32.mrf.mxu0
  %v6633 = vadd.f32 %v6414, %v6632
  %v6634 = vpop.f32.mrf.mxu0
  %v6635 = vadd.f32 %v6414, %v6634
  %6636 = vdwg.mxu0
  %6637 = vmatprep.subr.mxu0 0.0
  %6638 = vmatpush1.msra.mxu0 0.0
  %6639 = vmatprep.subr.mxu0 0.0
  %6640 = vmatpush1.msra.mxu0 0.0
  %6641 = vmatprep.subr.mxu0 0.0
  %6642 = vmatpush1.msra.mxu0 0.0
  %6643 = vmatprep.subr.mxu0 0.0
  %6644 = vmatpush1.msra.mxu0 0.0
  %6645 = vmatprep.subr.mxu0 0.0
  %6646 = vmatpush1.msra.mxu0 0.0
  %6647 = vmatprep.subr.mxu0 0.0
  %6648 = vmatpush1.msra.mxu0 0.0
  %6649 = vmatprep.subr.mxu0 0.0
  %6650 = vmatpush1.msra.mxu0 0.0
  %6651 = vmatprep.subr.mxu0 0.0
  %6652 = vmatpush1.msra.mxu0 0.0
  %6653 = vmatprep.subr.mxu0 %v6383
  %6654 = vmatpush1.msra.mxu0 %v6382
  %6655 = vmatprep.subr.mxu0 %v6375
  %6656 = vmatpush1.msra.mxu0 %v6374
  %6657 = vmatprep.subr.mxu0 %v6367
  %6658 = vmatpush1.msra.mxu0 %v6366
  %6659 = vmatprep.subr.mxu0 %v6359
  %6660 = vmatpush1.msra.mxu0 %v6358
  %6661 = vmatprep.subr.mxu0 %v6351
  %6662 = vmatpush1.msra.mxu0 %v6350
  %6663 = vmatprep.subr.mxu0 %v6343
  %6664 = vmatpush1.msra.mxu0 %v6342
  %6665 = vmatprep.subr.mxu0 %v6335
  %6666 = vmatpush1.msra.mxu0 %v6334
  %6667 = vmatprep.subr.mxu0 %v6327
  %6668 = vmatpush1.msra.mxu0 %v6326
  %6669 = vmatprep.subr.mxu0 0.0
  %6670 = vmatpush2.msra.mxu0 0.0
  %6671 = vmatprep.subr.mxu0 0.0
  %6672 = vmatpush2.msra.mxu0 0.0
  %6673 = vmatprep.subr.mxu0 0.0
  %6674 = vmatpush2.msra.mxu0 0.0
  %6675 = vmatprep.subr.mxu0 0.0
  %6676 = vmatpush2.msra.mxu0 0.0
  %6677 = vmatprep.subr.mxu0 0.0
  %6678 = vmatpush2.msra.mxu0 0.0
  %6679 = vmatprep.subr.mxu0 0.0
  %6680 = vmatpush2.msra.mxu0 0.0
  %6681 = vmatprep.subr.mxu0 0.0
  %6682 = vmatpush2.msra.mxu0 0.0
  %6683 = vmatprep.subr.mxu0 0.0
  %6684 = vmatpush2.msra.mxu0 0.0
  %6685 = vmatprep.subr.mxu0 0.0
  %6686 = vmatpush2.msra.mxu0 0.0
  %6687 = vmatprep.subr.mxu0 0.0
  %6688 = vmatpush2.msra.mxu0 0.0
  %6689 = vmatprep.subr.mxu0 0.0
  %6690 = vmatpush2.msra.mxu0 0.0
  %6691 = vmatprep.subr.mxu0 0.0
  %6692 = vmatpush2.msra.mxu0 0.0
  %6693 = vmatprep.subr.mxu0 0.0
  %6694 = vmatpush2.msra.mxu0 0.0
  %6695 = vmatprep.subr.mxu0 0.0
  %6696 = vmatpush2.msra.mxu0 0.0
  %6697 = vmatprep.subr.mxu0 0.0
  %6698 = vmatpush2.msra.mxu0 0.0
  %6699 = vmatprep.subr.mxu0 0.0
  %6700 = vmatpush2.msra.mxu0 0.0
  %6701 = vmatprep.mubr.f32.mxu0 0.0
  %6702 = vmatmul.mubr.f32.gmra.mxu0 %v6418
  %v6703 = vpop.f32.mrf.mxu0
  %v6704 = vadd.f32 %v6389, %v6703
  %v6705 = vpop.f32.mrf.mxu0
  %v6706 = vadd.f32 %v6389, %v6705
  %6707 = vmatprep.mubr.f32.mxu0 0.0
  %6708 = vmatmul.mubr.f32.gmra.mxu0 %v6421
  %v6709 = vpop.f32.mrf.mxu0
  %v6710 = vadd.f32 %v6394, %v6709
  %v6711 = vpop.f32.mrf.mxu0
  %v6712 = vadd.f32 %v6394, %v6711
  %6713 = vmatprep.mubr.f32.mxu0 0.0
  %6714 = vmatmul.mubr.f32.gmra.mxu0 %v6424
  %v6715 = vpop.f32.mrf.mxu0
  %v6716 = vadd.f32 %v6399, %v6715
  %v6717 = vpop.f32.mrf.mxu0
  %v6718 = vadd.f32 %v6399, %v6717
  %6719 = vmatprep.mubr.f32.mxu0 0.0
  %6720 = vmatmul.mubr.f32.gmra.mxu0 %v6427
  %v6721 = vpop.f32.mrf.mxu0
  %v6722 = vadd.f32 %v6404, %v6721
  %v6723 = vpop.f32.mrf.mxu0
  %v6724 = vadd.f32 %v6404, %v6723
  %6725 = vmatprep.mubr.f32.mxu0 0.0
  %6726 = vmatmul.mubr.f32.gmra.mxu0 %v6430
  %v6727 = vpop.f32.mrf.mxu0
  %v6728 = vadd.f32 %v6409, %v6727
  %v6729 = vpop.f32.mrf.mxu0
  %v6730 = vadd.f32 %v6409, %v6729
  %6731 = vmatprep.mubr.f32.mxu0 0.0
  %6732 = vmatmul.mubr.f32.gmra.mxu0 %v6433
  %v6733 = vpop.f32.mrf.mxu0
  %v6734 = vadd.f32 %v6414, %v6733
  %v6735 = vpop.f32.mrf.mxu0
  %v6736 = vadd.f32 %v6414, %v6735
  %6737 = vdwg.mxu0
  %6738 = vmatprep.subr.mxu0 0.0
  %6739 = vmatpush1.msra.mxu0 0.0
  %6740 = vmatprep.subr.mxu0 0.0
  %6741 = vmatpush1.msra.mxu0 0.0
  %6742 = vmatprep.subr.mxu0 0.0
  %6743 = vmatpush1.msra.mxu0 0.0
  %6744 = vmatprep.subr.mxu0 0.0
  %6745 = vmatpush1.msra.mxu0 0.0
  %6746 = vmatprep.subr.mxu0 0.0
  %6747 = vmatpush1.msra.mxu0 0.0
  %6748 = vmatprep.subr.mxu0 0.0
  %6749 = vmatpush1.msra.mxu0 0.0
  %6750 = vmatprep.subr.mxu0 0.0
  %6751 = vmatpush1.msra.mxu0 0.0
  %6752 = vmatprep.subr.mxu0 0.0
  %6753 = vmatpush1.msra.mxu0 0.0
  %6754 = vmatprep.subr.mxu0 %v6385
  %6755 = vmatpush1.msra.mxu0 %v6384
  %6756 = vmatprep.subr.mxu0 %v6377
  %6757 = vmatpush1.msra.mxu0 %v6376
  %6758 = vmatprep.subr.mxu0 %v6369
  %6759 = vmatpush1.msra.mxu0 %v6368
  %6760 = vmatprep.subr.mxu0 %v6361
  %6761 = vmatpush1.msra.mxu0 %v6360
  %6762 = vmatprep.subr.mxu0 %v6353
  %6763 = vmatpush1.msra.mxu0 %v6352
  %6764 = vmatprep.subr.mxu0 %v6345
  %6765 = vmatpush1.msra.mxu0 %v6344
  %6766 = vmatprep.subr.mxu0 %v6337
  %6767 = vmatpush1.msra.mxu0 %v6336
  %6768 = vmatprep.subr.mxu0 %v6329
  %6769 = vmatpush1.msra.mxu0 %v6328
  %6770 = vmatprep.subr.mxu0 0.0
  %6771 = vmatpush2.msra.mxu0 0.0
  %6772 = vmatprep.subr.mxu0 0.0
  %6773 = vmatpush2.msra.mxu0 0.0
  %6774 = vmatprep.subr.mxu0 0.0
  %6775 = vmatpush2.msra.mxu0 0.0
  %6776 = vmatprep.subr.mxu0 0.0
  %6777 = vmatpush2.msra.mxu0 0.0
  %6778 = vmatprep.subr.mxu0 0.0
  %6779 = vmatpush2.msra.mxu0 0.0
  %6780 = vmatprep.subr.mxu0 0.0
  %6781 = vmatpush2.msra.mxu0 0.0
  %6782 = vmatprep.subr.mxu0 0.0
  %6783 = vmatpush2.msra.mxu0 0.0
  %6784 = vmatprep.subr.mxu0 0.0
  %6785 = vmatpush2.msra.mxu0 0.0
  %6786 = vmatprep.subr.mxu0 0.0
  %6787 = vmatpush2.msra.mxu0 0.0
  %6788 = vmatprep.subr.mxu0 0.0
  %6789 = vmatpush2.msra.mxu0 0.0
  %6790 = vmatprep.subr.mxu0 0.0
  %6791 = vmatpush2.msra.mxu0 0.0
  %6792 = vmatprep.subr.mxu0 0.0
  %6793 = vmatpush2.msra.mxu0 0.0
  %6794 = vmatprep.subr.mxu0 0.0
  %6795 = vmatpush2.msra.mxu0 0.0
  %6796 = vmatprep.subr.mxu0 0.0
  %6797 = vmatpush2.msra.mxu0 0.0
  %6798 = vmatprep.subr.mxu0 0.0
  %6799 = vmatpush2.msra.mxu0 0.0
  %6800 = vmatprep.subr.mxu0 0.0
  %6801 = vmatpush2.msra.mxu0 0.0
  %6802 = vmatprep.mubr.f32.mxu0 0.0
  %6803 = vmatmul.mubr.f32.gmra.mxu0 %v6418
  %v6804 = vpop.f32.mrf.mxu0
  %v6805 = vadd.f32 %v6389, %v6804
  %v6806 = vpop.f32.mrf.mxu0
  %v6807 = vadd.f32 %v6389, %v6806
  %6808 = vmatprep.mubr.f32.mxu0 0.0
  %6809 = vmatmul.mubr.f32.gmra.mxu0 %v6421
  %v6810 = vpop.f32.mrf.mxu0
  %v6811 = vadd.f32 %v6394, %v6810
  %v6812 = vpop.f32.mrf.mxu0
  %v6813 = vadd.f32 %v6394, %v6812
  %6814 = vmatprep.mubr.f32.mxu0 0.0
  %6815 = vmatmul.mubr.f32.gmra.mxu0 %v6424
  %v6816 = vpop.f32.mrf.mxu0
  %v6817 = vadd.f32 %v6399, %v6816
  %v6818 = vpop.f32.mrf.mxu0
  %v6819 = vadd.f32 %v6399, %v6818
  %6820 = vmatprep.mubr.f32.mxu0 0.0
  %6821 = vmatmul.mubr.f32.gmra.mxu0 %v6427
  %v6822 = vpop.f32.mrf.mxu0
  %v6823 = vadd.f32 %v6404, %v6822
  %v6824 = vpop.f32.mrf.mxu0
  %v6825 = vadd.f32 %v6404, %v6824
  %6826 = vmatprep.mubr.f32.mxu0 0.0
  %6827 = vmatmul.mubr.f32.gmra.mxu0 %v6430
  %v6828 = vpop.f32.mrf.mxu0
  %v6829 = vadd.f32 %v6409, %v6828
  %v6830 = vpop.f32.mrf.mxu0
  %v6831 = vadd.f32 %v6409, %v6830
  %6832 = vmatprep.mubr.f32.mxu0 0.0
  %6833 = vmatmul.mubr.f32.gmra.mxu0 %v6433
  %v6834 = vpop.f32.mrf.mxu0
  %v6835 = vadd.f32 %v6414, %v6834
  %v6836 = vpop.f32.mrf.mxu0
  %v6837 = vadd.f32 %v6414, %v6836
  %6838 = vdwg.mxu0
  %v6839 = vxor.u32 %v6502, 2147483648
  %v6840 = vxor.u32 %v6504, 2147483648
  %v6841 = vxor.u32 %v6603, 2147483648
  %v6842 = vxor.u32 %v6605, 2147483648
  %v6843 = vxor.u32 %v6704, 2147483648
  %v6844 = vxor.u32 %v6706, 2147483648
  %v6845 = vxor.u32 %v6805, 2147483648
  %v6846 = vxor.u32 %v6807, 2147483648
  %v6847 = vxor.u32 %v6508, 2147483648
  %v6848 = vxor.u32 %v6510, 2147483648
  %v6849 = vxor.u32 %v6609, 2147483648
  %v6850 = vxor.u32 %v6611, 2147483648
  %v6851 = vxor.u32 %v6710, 2147483648
  %v6852 = vxor.u32 %v6712, 2147483648
  %v6853 = vxor.u32 %v6811, 2147483648
  %v6854 = vxor.u32 %v6813, 2147483648
  %v6855 = vxor.u32 %v6514, 2147483648
  %v6856 = vxor.u32 %v6516, 2147483648
  %v6857 = vxor.u32 %v6615, 2147483648
  %v6858 = vxor.u32 %v6617, 2147483648
  %v6859 = vxor.u32 %v6716, 2147483648
  %v6860 = vxor.u32 %v6718, 2147483648
  %v6861 = vxor.u32 %v6817, 2147483648
  %v6862 = vxor.u32 %v6819, 2147483648
  %v6863 = vxor.u32 %v6520, 2147483648
  %v6864 = vxor.u32 %v6522, 2147483648
  %v6865 = vxor.u32 %v6621, 2147483648
  %v6866 = vxor.u32 %v6623, 2147483648
  %v6867 = vxor.u32 %v6722, 2147483648
  %v6868 = vxor.u32 %v6724, 2147483648
  %v6869 = vxor.u32 %v6823, 2147483648
  %v6870 = vxor.u32 %v6825, 2147483648
  %v6871 = vxor.u32 %v6526, 2147483648
  %v6872 = vxor.u32 %v6528, 2147483648
  %v6873 = vxor.u32 %v6627, 2147483648
  %v6874 = vxor.u32 %v6629, 2147483648
  %v6875 = vxor.u32 %v6728, 2147483648
  %v6876 = vxor.u32 %v6730, 2147483648
  %v6877 = vxor.u32 %v6829, 2147483648
  %v6878 = vxor.u32 %v6831, 2147483648
  %v6879 = vxor.u32 %v6532, 2147483648
  %v6880 = vxor.u32 %v6534, 2147483648
  %v6881 = vxor.u32 %v6633, 2147483648
  %v6882 = vxor.u32 %v6635, 2147483648
  %v6883 = vxor.u32 %v6734, 2147483648
  %v6884 = vxor.u32 %v6736, 2147483648
  %v6885 = vxor.u32 %v6835, 2147483648
  %v6886 = vxor.u32 %v6837, 2147483648
  %v6887 = vmul.f32 %v6839, 1.442695
  %v6888 = vpow.pop %v6887
  %v6889 = vmul.f32 %v6840, 1.442695
  %v6890 = vpow.pop %v6889
  %v6891 = vmul.f32 %v6841, 1.442695
  %v6892 = vpow.pop %v6891
  %v6893 = vmul.f32 %v6842, 1.442695
  %v6894 = vpow.pop %v6893
  %v6895 = vmul.f32 %v6843, 1.442695
  %v6896 = vpow.pop %v6895
  %v6897 = vmul.f32 %v6844, 1.442695
  %v6898 = vpow.pop %v6897
  %v6899 = vmul.f32 %v6845, 1.442695
  %v6900 = vpow.pop %v6899
  %v6901 = vmul.f32 %v6846, 1.442695
  %v6902 = vpow.pop %v6901
  %v6903 = vmul.f32 %v6847, 1.442695
  %v6904 = vpow.pop %v6903
  %v6905 = vmul.f32 %v6848, 1.442695
  %v6906 = vpow.pop %v6905
  %v6907 = vmul.f32 %v6849, 1.442695
  %v6908 = vpow.pop %v6907
  %v6909 = vmul.f32 %v6850, 1.442695
  %v6910 = vpow.pop %v6909
  %v6911 = vmul.f32 %v6851, 1.442695
  %v6912 = vpow.pop %v6911
  %v6913 = vmul.f32 %v6852, 1.442695
  %v6914 = vpow.pop %v6913
  %v6915 = vmul.f32 %v6853, 1.442695
  %v6916 = vpow.pop %v6915
  %v6917 = vmul.f32 %v6854, 1.442695
  %v6918 = vpow.pop %v6917
  %v6919 = vmul.f32 %v6855, 1.442695
  %v6920 = vpow.pop %v6919
  %v6921 = vmul.f32 %v6856, 1.442695
  %v6922 = vpow.pop %v6921
  %v6923 = vmul.f32 %v6857, 1.442695
  %v6924 = vpow.pop %v6923
  %v6925 = vmul.f32 %v6858, 1.442695
  %v6926 = vpow.pop %v6925
  %v6927 = vmul.f32 %v6859, 1.442695
  %v6928 = vpow.pop %v6927
  %v6929 = vmul.f32 %v6860, 1.442695
  %v6930 = vpow.pop %v6929
  %v6931 = vmul.f32 %v6861, 1.442695
  %v6932 = vpow.pop %v6931
  %v6933 = vmul.f32 %v6862, 1.442695
  %v6934 = vpow.pop %v6933
  %v6935 = vmul.f32 %v6863, 1.442695
  %v6936 = vpow.pop %v6935
  %v6937 = vmul.f32 %v6864, 1.442695
  %v6938 = vpow.pop %v6937
  %v6939 = vmul.f32 %v6865, 1.442695
  %v6940 = vpow.pop %v6939
  %v6941 = vmul.f32 %v6866, 1.442695
  %v6942 = vpow.pop %v6941
  %v6943 = vmul.f32 %v6867, 1.442695
  %v6944 = vpow.pop %v6943
  %v6945 = vmul.f32 %v6868, 1.442695
  %v6946 = vpow.pop %v6945
  %v6947 = vmul.f32 %v6869, 1.442695
  %v6948 = vpow.pop %v6947
  %v6949 = vmul.f32 %v6870, 1.442695
  %v6950 = vpow.pop %v6949
  %v6951 = vmul.f32 %v6871, 1.442695
  %v6952 = vpow.pop %v6951
  %v6953 = vmul.f32 %v6872, 1.442695
  %v6954 = vpow.pop %v6953
  %v6955 = vmul.f32 %v6873, 1.442695
  %v6956 = vpow.pop %v6955
  %v6957 = vmul.f32 %v6874, 1.442695
  %v6958 = vpow.pop %v6957
  %v6959 = vmul.f32 %v6875, 1.442695
  %v6960 = vpow.pop %v6959
  %v6961 = vmul.f32 %v6876, 1.442695
  %v6962 = vpow.pop %v6961
  %v6963 = vmul.f32 %v6877, 1.442695
  %v6964 = vpow.pop %v6963
  %v6965 = vmul.f32 %v6878, 1.442695
  %v6966 = vpow.pop %v6965
  %v6967 = vmul.f32 %v6879, 1.442695
  %v6968 = vpow.pop %v6967
  %v6969 = vmul.f32 %v6880, 1.442695
  %v6970 = vpow.pop %v6969
  %v6971 = vmul.f32 %v6881, 1.442695
  %v6972 = vpow.pop %v6971
  %v6973 = vmul.f32 %v6882, 1.442695
  %v6974 = vpow.pop %v6973
  %v6975 = vmul.f32 %v6883, 1.442695
  %v6976 = vpow.pop %v6975
  %v6977 = vmul.f32 %v6884, 1.442695
  %v6978 = vpow.pop %v6977
  %v6979 = vmul.f32 %v6885, 1.442695
  %v6980 = vpow.pop %v6979
  %v6981 = vmul.f32 %v6886, 1.442695
  %v6982 = vpow.pop %v6981
  %v6983 = vadd.f32 %v6888, 1.0
  %v6984 = vadd.f32 %v6890, 1.0
  %v6985 = vadd.f32 %v6892, 1.0
  %v6986 = vadd.f32 %v6894, 1.0
  %v6987 = vadd.f32 %v6896, 1.0
  %v6988 = vadd.f32 %v6898, 1.0
  %v6989 = vadd.f32 %v6900, 1.0
  %v6990 = vadd.f32 %v6902, 1.0
  %v6991 = vadd.f32 %v6904, 1.0
  %v6992 = vadd.f32 %v6906, 1.0
  %v6993 = vadd.f32 %v6908, 1.0
  %v6994 = vadd.f32 %v6910, 1.0
  %v6995 = vadd.f32 %v6912, 1.0
  %v6996 = vadd.f32 %v6914, 1.0
  %v6997 = vadd.f32 %v6916, 1.0
  %v6998 = vadd.f32 %v6918, 1.0
  %v6999 = vadd.f32 %v6920, 1.0
  %v7000 = vadd.f32 %v6922, 1.0
  %v7001 = vadd.f32 %v6924, 1.0
  %v7002 = vadd.f32 %v6926, 1.0
  %v7003 = vadd.f32 %v6928, 1.0
  %v7004 = vadd.f32 %v6930, 1.0
  %v7005 = vadd.f32 %v6932, 1.0
  %v7006 = vadd.f32 %v6934, 1.0
  %v7007 = vadd.f32 %v6936, 1.0
  %v7008 = vadd.f32 %v6938, 1.0
  %v7009 = vadd.f32 %v6940, 1.0
  %v7010 = vadd.f32 %v6942, 1.0
  %v7011 = vadd.f32 %v6944, 1.0
  %v7012 = vadd.f32 %v6946, 1.0
  %v7013 = vadd.f32 %v6948, 1.0
  %v7014 = vadd.f32 %v6950, 1.0
  %v7015 = vadd.f32 %v6952, 1.0
  %v7016 = vadd.f32 %v6954, 1.0
  %v7017 = vadd.f32 %v6956, 1.0
  %v7018 = vadd.f32 %v6958, 1.0
  %v7019 = vadd.f32 %v6960, 1.0
  %v7020 = vadd.f32 %v6962, 1.0
  %v7021 = vadd.f32 %v6964, 1.0
  %v7022 = vadd.f32 %v6966, 1.0
  %v7023 = vadd.f32 %v6968, 1.0
  %v7024 = vadd.f32 %v6970, 1.0
  %v7025 = vadd.f32 %v6972, 1.0
  %v7026 = vadd.f32 %v6974, 1.0
  %v7027 = vadd.f32 %v6976, 1.0
  %v7028 = vadd.f32 %v6978, 1.0
  %v7029 = vadd.f32 %v6980, 1.0
  %v7030 = vadd.f32 %v6982, 1.0
  %v7031 = vrcp.pop %v6983
  %v7032 = vmul.f32 1.0, %v7031
  %v7033 = vrcp.pop %v6984
  %v7034 = vmul.f32 1.0, %v7033
  %v7035 = vrcp.pop %v6985
  %v7036 = vmul.f32 1.0, %v7035
  %v7037 = vrcp.pop %v6986
  %v7038 = vmul.f32 1.0, %v7037
  %v7039 = vrcp.pop %v6987
  %v7040 = vmul.f32 1.0, %v7039
  %v7041 = vrcp.pop %v6988
  %v7042 = vmul.f32 1.0, %v7041
  %v7043 = vrcp.pop %v6989
  %v7044 = vmul.f32 1.0, %v7043
  %v7045 = vrcp.pop %v6990
  %v7046 = vmul.f32 1.0, %v7045
  %v7047 = vrcp.pop %v6991
  %v7048 = vmul.f32 1.0, %v7047
  %v7049 = vrcp.pop %v6992
  %v7050 = vmul.f32 1.0, %v7049
  %v7051 = vrcp.pop %v6993
  %v7052 = vmul.f32 1.0, %v7051
  %v7053 = vrcp.pop %v6994
  %v7054 = vmul.f32 1.0, %v7053
  %v7055 = vrcp.pop %v6995
  %v7056 = vmul.f32 1.0, %v7055
  %v7057 = vrcp.pop %v6996
  %v7058 = vmul.f32 1.0, %v7057
  %v7059 = vrcp.pop %v6997
  %v7060 = vmul.f32 1.0, %v7059
  %v7061 = vrcp.pop %v6998
  %v7062 = vmul.f32 1.0, %v7061
  %v7063 = vrcp.pop %v6999
  %v7064 = vmul.f32 1.0, %v7063
  %v7065 = vrcp.pop %v7000
  %v7066 = vmul.f32 1.0, %v7065
  %v7067 = vrcp.pop %v7001
  %v7068 = vmul.f32 1.0, %v7067
  %v7069 = vrcp.pop %v7002
  %v7070 = vmul.f32 1.0, %v7069
  %v7071 = vrcp.pop %v7003
  %v7072 = vmul.f32 1.0, %v7071
  %v7073 = vrcp.pop %v7004
  %v7074 = vmul.f32 1.0, %v7073
  %v7075 = vrcp.pop %v7005
  %v7076 = vmul.f32 1.0, %v7075
  %v7077 = vrcp.pop %v7006
  %v7078 = vmul.f32 1.0, %v7077
  %v7079 = vrcp.pop %v7007
  %v7080 = vmul.f32 1.0, %v7079
  %v7081 = vrcp.pop %v7008
  %v7082 = vmul.f32 1.0, %v7081
  %v7083 = vrcp.pop %v7009
  %v7084 = vmul.f32 1.0, %v7083
  %v7085 = vrcp.pop %v7010
  %v7086 = vmul.f32 1.0, %v7085
  %v7087 = vrcp.pop %v7011
  %v7088 = vmul.f32 1.0, %v7087
  %v7089 = vrcp.pop %v7012
  %v7090 = vmul.f32 1.0, %v7089
  %v7091 = vrcp.pop %v7013
  %v7092 = vmul.f32 1.0, %v7091
  %v7093 = vrcp.pop %v7014
  %v7094 = vmul.f32 1.0, %v7093
  %v7095 = vrcp.pop %v7015
  %v7096 = vmul.f32 1.0, %v7095
  %v7097 = vrcp.pop %v7016
  %v7098 = vmul.f32 1.0, %v7097
  %v7099 = vrcp.pop %v7017
  %v7100 = vmul.f32 1.0, %v7099
  %v7101 = vrcp.pop %v7018
  %v7102 = vmul.f32 1.0, %v7101
  %v7103 = vrcp.pop %v7019
  %v7104 = vmul.f32 1.0, %v7103
  %v7105 = vrcp.pop %v7020
  %v7106 = vmul.f32 1.0, %v7105
  %v7107 = vrcp.pop %v7021
  %v7108 = vmul.f32 1.0, %v7107
  %v7109 = vrcp.pop %v7022
  %v7110 = vmul.f32 1.0, %v7109
  %v7111 = vrcp.pop %v7023
  %v7112 = vmul.f32 1.0, %v7111
  %v7113 = vrcp.pop %v7024
  %v7114 = vmul.f32 1.0, %v7113
  %v7115 = vrcp.pop %v7025
  %v7116 = vmul.f32 1.0, %v7115
  %v7117 = vrcp.pop %v7026
  %v7118 = vmul.f32 1.0, %v7117
  %v7119 = vrcp.pop %v7027
  %v7120 = vmul.f32 1.0, %v7119
  %v7121 = vrcp.pop %v7028
  %v7122 = vmul.f32 1.0, %v7121
  %v7123 = vrcp.pop %v7029
  %v7124 = vmul.f32 1.0, %v7123
  %v7125 = vrcp.pop %v7030
  %v7126 = vmul.f32 1.0, %v7125
  %7127 = vst [vmem:[%s17] sm:$0xff] %v7032
  %7128 = vst [vmem:[%s17 + $0x8] sm:$0xff] %v7034
  %7129 = vst [vmem:[%s17 + $0x10] sm:$0xff] %v7036
  %7130 = vst [vmem:[%s17 + $0x18] sm:$0xff] %v7038
  %7131 = vst [vmem:[%s17 + $0x20] sm:$0xff] %v7040
  %7132 = vst [vmem:[%s17 + $0x28] sm:$0xff] %v7042
  %7133 = vst [vmem:[%s17 + $0x30] sm:$0xff] %v7044
  %7134 = vst [vmem:[%s17 + $0x38] sm:$0xff] %v7046
  %7135 = vst [vmem:[%s17 + $0x40] sm:$0xff] %v7048
  %7136 = vst [vmem:[%s17 + $0x48] sm:$0xff] %v7050
  %7137 = vst [vmem:[%s17 + $0x50] sm:$0xff] %v7052
  %7138 = vst [vmem:[%s17 + $0x58] sm:$0xff] %v7054
  %7139 = vst [vmem:[%s17 + $0x60] sm:$0xff] %v7056
  %7140 = vst [vmem:[%s17 + $0x68] sm:$0xff] %v7058
  %7141 = vst [vmem:[%s17 + $0x70] sm:$0xff] %v7060
  %7142 = vst [vmem:[%s17 + $0x78] sm:$0xff] %v7062
  %7143 = vst [vmem:[%s17 + $0x80] sm:$0xff] %v7064
  %7144 = vst [vmem:[%s17 + $0x88] sm:$0xff] %v7066
  %7145 = vst [vmem:[%s17 + $0x90] sm:$0xff] %v7068
  %7146 = vst [vmem:[%s17 + $0x98] sm:$0xff] %v7070
  %7147 = vst [vmem:[%s17 + $0xa0] sm:$0xff] %v7072
  %7148 = vst [vmem:[%s17 + $0xa8] sm:$0xff] %v7074
  %7149 = vst [vmem:[%s17 + $0xb0] sm:$0xff] %v7076
  %7150 = vst [vmem:[%s17 + $0xb8] sm:$0xff] %v7078
  %7151 = vst [vmem:[%s17 + $0xc0] sm:$0xff] %v7080
  %7152 = vst [vmem:[%s17 + $0xc8] sm:$0xff] %v7082
  %7153 = vst [vmem:[%s17 + $0xd0] sm:$0xff] %v7084
  %7154 = vst [vmem:[%s17 + $0xd8] sm:$0xff] %v7086
  %7155 = vst [vmem:[%s17 + $0xe0] sm:$0xff] %v7088
  %7156 = vst [vmem:[%s17 + $0xe8] sm:$0xff] %v7090
  %7157 = vst [vmem:[%s17 + $0xf0] sm:$0xff] %v7092
  %7158 = vst [vmem:[%s17 + $0xf8] sm:$0xff] %v7094
  %7159 = vst [vmem:[%s17 + $0x100] sm:$0xff] %v7096
  %7160 = vst [vmem:[%s17 + $0x108] sm:$0xff] %v7098
  %7161 = vst [vmem:[%s17 + $0x110] sm:$0xff] %v7100
  %7162 = vst [vmem:[%s17 + $0x118] sm:$0xff] %v7102
  %7163 = vst [vmem:[%s17 + $0x120] sm:$0xff] %v7104
  %7164 = vst [vmem:[%s17 + $0x128] sm:$0xff] %v7106
  %7165 = vst [vmem:[%s17 + $0x130] sm:$0xff] %v7108
  %7166 = vst [vmem:[%s17 + $0x138] sm:$0xff] %v7110
  %7167 = vst [vmem:[%s17 + $0x140] sm:$0xff] %v7112
  %7168 = vst [vmem:[%s17 + $0x148] sm:$0xff] %v7114
  %7169 = vst [vmem:[%s17 + $0x150] sm:$0xff] %v7116
  %7170 = vst [vmem:[%s17 + $0x158] sm:$0xff] %v7118
  %7171 = vst [vmem:[%s17 + $0x160] sm:$0xff] %v7120
  %7172 = vst [vmem:[%s17 + $0x168] sm:$0xff] %v7122
  %7173 = vst [vmem:[%s17 + $0x170] sm:$0xff] %v7124
  %7174 = vst [vmem:[%s17 + $0x178] sm:$0xff] %v7126
  %v7183 = vrot.slane %v4256, 1
  %v7184 = vrot.slane %v4257, 1
  %v7185 = vrot.slane %v4258, 1
  %v7186 = vrot.slane %v4259, 1
  %v7187 = vrot.slane %v4260, 1
  %v7188 = vrot.slane %v4261, 1
  %v7189 = vrot.slane %v4262, 1
  %v7190 = vrot.slane %v4263, 1
  %v7199 = vrot.slane %v5184, 7
  %v7200 = vrot.slane %v5185, 7
  %v7201 = vrot.slane %v5186, 7
  %v7202 = vrot.slane %v5187, 7
  %v7203 = vrot.slane %v5188, 7
  %v7204 = vrot.slane %v5189, 7
  %v7205 = vrot.slane %v5190, 7
  %v7206 = vrot.slane %v5191, 7
  %v7215 = vrot.slane %v5648, 6
  %v7216 = vrot.slane %v5649, 6
  %v7217 = vrot.slane %v5650, 6
  %v7218 = vrot.slane %v5651, 6
  %v7219 = vrot.slane %v5652, 6
  %v7220 = vrot.slane %v5653, 6
  %v7221 = vrot.slane %v5654, 6
  %v7222 = vrot.slane %v5655, 6
  %v7231 = vsel %vm3711, %v7183, %v4720
  %v7232 = vsel %vm3711, %v7184, %v4721
  %v7233 = vsel %vm3711, %v7185, %v4722
  %v7234 = vsel %vm3711, %v7186, %v4723
  %v7235 = vsel %vm3711, %v7187, %v4724
  %v7236 = vsel %vm3711, %v7188, %v4725
  %v7237 = vsel %vm3711, %v7189, %v4726
  %v7238 = vsel %vm3711, %v7190, %v4727
  %v7239 = vsel %vm5764, %v7231, %v7199
  %v7240 = vsel %vm5764, %v7232, %v7200
  %v7241 = vsel %vm5764, %v7233, %v7201
  %v7242 = vsel %vm5764, %v7234, %v7202
  %v7243 = vsel %vm5764, %v7235, %v7203
  %v7244 = vsel %vm5764, %v7236, %v7204
  %v7245 = vsel %vm5764, %v7237, %v7205
  %v7246 = vsel %vm5764, %v7238, %v7206
  %v7247 = vsel %vm5773, %v7239, %v7215
  %v7248 = vsel %vm5773, %v7240, %v7216
  %v7249 = vsel %vm5773, %v7241, %v7217
  %v7250 = vsel %vm5773, %v7242, %v7218
  %v7251 = vsel %vm5773, %v7243, %v7219
  %v7252 = vsel %vm5773, %v7244, %v7220
  %v7253 = vsel %vm5773, %v7245, %v7221
  %v7254 = vsel %vm5773, %v7246, %v7222
  %v7256 = vsel %vm3727, %v7247, 0
  %v7259 = vsel %vm3727, %v7248, 0
  %v7262 = vsel %vm3727, %v7249, 0
  %v7265 = vsel %vm3727, %v7250, 0
  %v7268 = vsel %vm3727, %v7251, 0
  %v7271 = vsel %vm3727, %v7252, 0
  %v7274 = vsel %vm3727, %v7253, 0
  %v7277 = vsel %vm3727, %v7254, 0
  %7279 = vmatprep.subr.mxu0 0.0
  %7280 = vmatpush1.msra.mxu0 0.0
  %7281 = vmatprep.subr.mxu0 0.0
  %7282 = vmatpush1.msra.mxu0 0.0
  %7283 = vmatprep.subr.mxu0 0.0
  %7284 = vmatpush1.msra.mxu0 0.0
  %7285 = vmatprep.subr.mxu0 0.0
  %7286 = vmatpush1.msra.mxu0 0.0
  %7287 = vmatprep.subr.mxu0 0.0
  %7288 = vmatpush1.msra.mxu0 0.0
  %7289 = vmatprep.subr.mxu0 0.0
  %7290 = vmatpush1.msra.mxu0 0.0
  %7291 = vmatprep.subr.mxu0 0.0
  %7292 = vmatpush1.msra.mxu0 0.0
  %7293 = vmatprep.subr.mxu0 0.0
  %7294 = vmatpush1.msra.mxu0 0.0
  %7295 = vmatprep.subr.mxu0 0.0
  %7296 = vmatpush1.msra.mxu0 0.0
  %7297 = vmatprep.subr.mxu0 0.0
  %7298 = vmatpush1.msra.mxu0 0.0
  %7299 = vmatprep.subr.mxu0 0.0
  %7300 = vmatpush1.msra.mxu0 0.0
  %7301 = vmatprep.subr.mxu0 0.0
  %7302 = vmatpush1.msra.mxu0 0.0
  %7303 = vmatprep.subr.mxu0 0.0
  %7304 = vmatpush1.msra.mxu0 0.0
  %7305 = vmatprep.subr.mxu0 0.0
  %7306 = vmatpush1.msra.mxu0 0.0
  %7307 = vmatprep.subr.mxu0 0.0
  %7308 = vmatpush1.msra.mxu0 0.0
  %7309 = vmatprep.subr.mxu0 %v7259
  %7310 = vmatpush1.msra.mxu0 %v7256
  %7311 = vmatprep.subr.mxu0 0.0
  %7312 = vmatpush2.msra.mxu0 0.0
  %7313 = vmatprep.subr.mxu0 0.0
  %7314 = vmatpush2.msra.mxu0 0.0
  %7315 = vmatprep.subr.mxu0 0.0
  %7316 = vmatpush2.msra.mxu0 0.0
  %7317 = vmatprep.subr.mxu0 0.0
  %7318 = vmatpush2.msra.mxu0 0.0
  %7319 = vmatprep.subr.mxu0 0.0
  %7320 = vmatpush2.msra.mxu0 0.0
  %7321 = vmatprep.subr.mxu0 0.0
  %7322 = vmatpush2.msra.mxu0 0.0
  %7323 = vmatprep.subr.mxu0 0.0
  %7324 = vmatpush2.msra.mxu0 0.0
  %7325 = vmatprep.subr.mxu0 0.0
  %7326 = vmatpush2.msra.mxu0 0.0
  %7327 = vmatprep.subr.mxu0 0.0
  %7328 = vmatpush2.msra.mxu0 0.0
  %7329 = vmatprep.subr.mxu0 0.0
  %7330 = vmatpush2.msra.mxu0 0.0
  %7331 = vmatprep.subr.mxu0 0.0
  %7332 = vmatpush2.msra.mxu0 0.0
  %7333 = vmatprep.subr.mxu0 0.0
  %7334 = vmatpush2.msra.mxu0 0.0
  %7335 = vmatprep.subr.mxu0 0.0
  %7336 = vmatpush2.msra.mxu0 0.0
  %7337 = vmatprep.subr.mxu0 0.0
  %7338 = vmatpush2.msra.mxu0 0.0
  %7339 = vmatprep.subr.mxu0 0.0
  %7340 = vmatpush2.msra.mxu0 0.0
  %7341 = vmatprep.subr.mxu0 0.0
  %7342 = vmatpush2.msra.mxu0 0.0
  %7343 = vmatprep.mubr.f32.mxu0 0.0
  %7344 = vmatmul.mubr.f32.gmra.mxu0 %v5823
  %v7345 = vpop.f32.mrf.mxu0
  %v7346 = vadd.f32 %v5785, %v7345
  %v7347 = vpop.f32.mrf.mxu0
  %v7348 = vadd.f32 %v5785, %v7347
  %7349 = vmatprep.mubr.f32.mxu0 0.0
  %7350 = vmatmul.mubr.f32.gmra.mxu0 %v5826
  %v7351 = vpop.f32.mrf.mxu0
  %v7352 = vadd.f32 %v5790, %v7351
  %v7353 = vpop.f32.mrf.mxu0
  %v7354 = vadd.f32 %v5790, %v7353
  %7355 = vmatprep.mubr.f32.mxu0 0.0
  %7356 = vmatmul.mubr.f32.gmra.mxu0 %v5829
  %v7357 = vpop.f32.mrf.mxu0
  %v7358 = vadd.f32 %v5795, %v7357
  %v7359 = vpop.f32.mrf.mxu0
  %v7360 = vadd.f32 %v5795, %v7359
  %7361 = vmatprep.mubr.f32.mxu0 0.0
  %7362 = vmatmul.mubr.f32.gmra.mxu0 %v5832
  %v7363 = vpop.f32.mrf.mxu0
  %v7364 = vadd.f32 %v5800, %v7363
  %v7365 = vpop.f32.mrf.mxu0
  %v7366 = vadd.f32 %v5800, %v7365
  %7367 = vmatprep.mubr.f32.mxu0 0.0
  %7368 = vmatmul.mubr.f32.gmra.mxu0 %v5835
  %v7369 = vpop.f32.mrf.mxu0
  %v7370 = vadd.f32 %v5805, %v7369
  %v7371 = vpop.f32.mrf.mxu0
  %v7372 = vadd.f32 %v5805, %v7371
  %7373 = vmatprep.mubr.f32.mxu0 0.0
  %7374 = vmatmul.mubr.f32.gmra.mxu0 %v5838
  %v7375 = vpop.f32.mrf.mxu0
  %v7376 = vadd.f32 %v5810, %v7375
  %v7377 = vpop.f32.mrf.mxu0
  %v7378 = vadd.f32 %v5810, %v7377
  %7379 = vmatprep.mubr.f32.mxu0 0.0
  %7380 = vmatmul.mubr.f32.gmra.mxu0 %v5841
  %v7381 = vpop.f32.mrf.mxu0
  %v7382 = vadd.f32 %v5815, %v7381
  %v7383 = vpop.f32.mrf.mxu0
  %v7384 = vadd.f32 %v5815, %v7383
  %7385 = vmatprep.mubr.f32.mxu0 0.0
  %7386 = vmatmul.mubr.f32.gmra.mxu0 %v5844
  %v7387 = vpop.f32.mrf.mxu0
  %v7388 = vadd.f32 %v5820, %v7387
  %v7389 = vpop.f32.mrf.mxu0
  %v7390 = vadd.f32 %v5820, %v7389
  %7391 = vdwg.mxu0
  %7392 = vmatprep.subr.mxu0 0.0
  %7393 = vmatpush1.msra.mxu0 0.0
  %7394 = vmatprep.subr.mxu0 0.0
  %7395 = vmatpush1.msra.mxu0 0.0
  %7396 = vmatprep.subr.mxu0 0.0
  %7397 = vmatpush1.msra.mxu0 0.0
  %7398 = vmatprep.subr.mxu0 0.0
  %7399 = vmatpush1.msra.mxu0 0.0
  %7400 = vmatprep.subr.mxu0 0.0
  %7401 = vmatpush1.msra.mxu0 0.0
  %7402 = vmatprep.subr.mxu0 0.0
  %7403 = vmatpush1.msra.mxu0 0.0
  %7404 = vmatprep.subr.mxu0 0.0
  %7405 = vmatpush1.msra.mxu0 0.0
  %7406 = vmatprep.subr.mxu0 0.0
  %7407 = vmatpush1.msra.mxu0 0.0
  %7408 = vmatprep.subr.mxu0 0.0
  %7409 = vmatpush1.msra.mxu0 0.0
  %7410 = vmatprep.subr.mxu0 0.0
  %7411 = vmatpush1.msra.mxu0 0.0
  %7412 = vmatprep.subr.mxu0 0.0
  %7413 = vmatpush1.msra.mxu0 0.0
  %7414 = vmatprep.subr.mxu0 0.0
  %7415 = vmatpush1.msra.mxu0 0.0
  %7416 = vmatprep.subr.mxu0 0.0
  %7417 = vmatpush1.msra.mxu0 0.0
  %7418 = vmatprep.subr.mxu0 0.0
  %7419 = vmatpush1.msra.mxu0 0.0
  %7420 = vmatprep.subr.mxu0 0.0
  %7421 = vmatpush1.msra.mxu0 0.0
  %7422 = vmatprep.subr.mxu0 %v7265
  %7423 = vmatpush1.msra.mxu0 %v7262
  %7424 = vmatprep.subr.mxu0 0.0
  %7425 = vmatpush2.msra.mxu0 0.0
  %7426 = vmatprep.subr.mxu0 0.0
  %7427 = vmatpush2.msra.mxu0 0.0
  %7428 = vmatprep.subr.mxu0 0.0
  %7429 = vmatpush2.msra.mxu0 0.0
  %7430 = vmatprep.subr.mxu0 0.0
  %7431 = vmatpush2.msra.mxu0 0.0
  %7432 = vmatprep.subr.mxu0 0.0
  %7433 = vmatpush2.msra.mxu0 0.0
  %7434 = vmatprep.subr.mxu0 0.0
  %7435 = vmatpush2.msra.mxu0 0.0
  %7436 = vmatprep.subr.mxu0 0.0
  %7437 = vmatpush2.msra.mxu0 0.0
  %7438 = vmatprep.subr.mxu0 0.0
  %7439 = vmatpush2.msra.mxu0 0.0
  %7440 = vmatprep.subr.mxu0 0.0
  %7441 = vmatpush2.msra.mxu0 0.0
  %7442 = vmatprep.subr.mxu0 0.0
  %7443 = vmatpush2.msra.mxu0 0.0
  %7444 = vmatprep.subr.mxu0 0.0
  %7445 = vmatpush2.msra.mxu0 0.0
  %7446 = vmatprep.subr.mxu0 0.0
  %7447 = vmatpush2.msra.mxu0 0.0
  %7448 = vmatprep.subr.mxu0 0.0
  %7449 = vmatpush2.msra.mxu0 0.0
  %7450 = vmatprep.subr.mxu0 0.0
  %7451 = vmatpush2.msra.mxu0 0.0
  %7452 = vmatprep.subr.mxu0 0.0
  %7453 = vmatpush2.msra.mxu0 0.0
  %7454 = vmatprep.subr.mxu0 0.0
  %7455 = vmatpush2.msra.mxu0 0.0
  %7456 = vmatprep.mubr.f32.mxu0 0.0
  %7457 = vmatmul.mubr.f32.gmra.mxu0 %v5823
  %v7458 = vpop.f32.mrf.mxu0
  %v7459 = vadd.f32 %v5785, %v7458
  %v7460 = vpop.f32.mrf.mxu0
  %v7461 = vadd.f32 %v5785, %v7460
  %7462 = vmatprep.mubr.f32.mxu0 0.0
  %7463 = vmatmul.mubr.f32.gmra.mxu0 %v5826
  %v7464 = vpop.f32.mrf.mxu0
  %v7465 = vadd.f32 %v5790, %v7464
  %v7466 = vpop.f32.mrf.mxu0
  %v7467 = vadd.f32 %v5790, %v7466
  %7468 = vmatprep.mubr.f32.mxu0 0.0
  %7469 = vmatmul.mubr.f32.gmra.mxu0 %v5829
  %v7470 = vpop.f32.mrf.mxu0
  %v7471 = vadd.f32 %v5795, %v7470
  %v7472 = vpop.f32.mrf.mxu0
  %v7473 = vadd.f32 %v5795, %v7472
  %7474 = vmatprep.mubr.f32.mxu0 0.0
  %7475 = vmatmul.mubr.f32.gmra.mxu0 %v5832
  %v7476 = vpop.f32.mrf.mxu0
  %v7477 = vadd.f32 %v5800, %v7476
  %v7478 = vpop.f32.mrf.mxu0
  %v7479 = vadd.f32 %v5800, %v7478
  %7480 = vmatprep.mubr.f32.mxu0 0.0
  %7481 = vmatmul.mubr.f32.gmra.mxu0 %v5835
  %v7482 = vpop.f32.mrf.mxu0
  %v7483 = vadd.f32 %v5805, %v7482
  %v7484 = vpop.f32.mrf.mxu0
  %v7485 = vadd.f32 %v5805, %v7484
  %7486 = vmatprep.mubr.f32.mxu0 0.0
  %7487 = vmatmul.mubr.f32.gmra.mxu0 %v5838
  %v7488 = vpop.f32.mrf.mxu0
  %v7489 = vadd.f32 %v5810, %v7488
  %v7490 = vpop.f32.mrf.mxu0
  %v7491 = vadd.f32 %v5810, %v7490
  %7492 = vmatprep.mubr.f32.mxu0 0.0
  %7493 = vmatmul.mubr.f32.gmra.mxu0 %v5841
  %v7494 = vpop.f32.mrf.mxu0
  %v7495 = vadd.f32 %v5815, %v7494
  %v7496 = vpop.f32.mrf.mxu0
  %v7497 = vadd.f32 %v5815, %v7496
  %7498 = vmatprep.mubr.f32.mxu0 0.0
  %7499 = vmatmul.mubr.f32.gmra.mxu0 %v5844
  %v7500 = vpop.f32.mrf.mxu0
  %v7501 = vadd.f32 %v5820, %v7500
  %v7502 = vpop.f32.mrf.mxu0
  %v7503 = vadd.f32 %v5820, %v7502
  %7504 = vdwg.mxu0
  %7505 = vmatprep.subr.mxu0 0.0
  %7506 = vmatpush1.msra.mxu0 0.0
  %7507 = vmatprep.subr.mxu0 0.0
  %7508 = vmatpush1.msra.mxu0 0.0
  %7509 = vmatprep.subr.mxu0 0.0
  %7510 = vmatpush1.msra.mxu0 0.0
  %7511 = vmatprep.subr.mxu0 0.0
  %7512 = vmatpush1.msra.mxu0 0.0
  %7513 = vmatprep.subr.mxu0 0.0
  %7514 = vmatpush1.msra.mxu0 0.0
  %7515 = vmatprep.subr.mxu0 0.0
  %7516 = vmatpush1.msra.mxu0 0.0
  %7517 = vmatprep.subr.mxu0 0.0
  %7518 = vmatpush1.msra.mxu0 0.0
  %7519 = vmatprep.subr.mxu0 0.0
  %7520 = vmatpush1.msra.mxu0 0.0
  %7521 = vmatprep.subr.mxu0 0.0
  %7522 = vmatpush1.msra.mxu0 0.0
  %7523 = vmatprep.subr.mxu0 0.0
  %7524 = vmatpush1.msra.mxu0 0.0
  %7525 = vmatprep.subr.mxu0 0.0
  %7526 = vmatpush1.msra.mxu0 0.0
  %7527 = vmatprep.subr.mxu0 0.0
  %7528 = vmatpush1.msra.mxu0 0.0
  %7529 = vmatprep.subr.mxu0 0.0
  %7530 = vmatpush1.msra.mxu0 0.0
  %7531 = vmatprep.subr.mxu0 0.0
  %7532 = vmatpush1.msra.mxu0 0.0
  %7533 = vmatprep.subr.mxu0 0.0
  %7534 = vmatpush1.msra.mxu0 0.0
  %7535 = vmatprep.subr.mxu0 %v7271
  %7536 = vmatpush1.msra.mxu0 %v7268
  %7537 = vmatprep.subr.mxu0 0.0
  %7538 = vmatpush2.msra.mxu0 0.0
  %7539 = vmatprep.subr.mxu0 0.0
  %7540 = vmatpush2.msra.mxu0 0.0
  %7541 = vmatprep.subr.mxu0 0.0
  %7542 = vmatpush2.msra.mxu0 0.0
  %7543 = vmatprep.subr.mxu0 0.0
  %7544 = vmatpush2.msra.mxu0 0.0
  %7545 = vmatprep.subr.mxu0 0.0
  %7546 = vmatpush2.msra.mxu0 0.0
  %7547 = vmatprep.subr.mxu0 0.0
  %7548 = vmatpush2.msra.mxu0 0.0
  %7549 = vmatprep.subr.mxu0 0.0
  %7550 = vmatpush2.msra.mxu0 0.0
  %7551 = vmatprep.subr.mxu0 0.0
  %7552 = vmatpush2.msra.mxu0 0.0
  %7553 = vmatprep.subr.mxu0 0.0
  %7554 = vmatpush2.msra.mxu0 0.0
  %7555 = vmatprep.subr.mxu0 0.0
  %7556 = vmatpush2.msra.mxu0 0.0
  %7557 = vmatprep.subr.mxu0 0.0
  %7558 = vmatpush2.msra.mxu0 0.0
  %7559 = vmatprep.subr.mxu0 0.0
  %7560 = vmatpush2.msra.mxu0 0.0
  %7561 = vmatprep.subr.mxu0 0.0
  %7562 = vmatpush2.msra.mxu0 0.0
  %7563 = vmatprep.subr.mxu0 0.0
  %7564 = vmatpush2.msra.mxu0 0.0
  %7565 = vmatprep.subr.mxu0 0.0
  %7566 = vmatpush2.msra.mxu0 0.0
  %7567 = vmatprep.subr.mxu0 0.0
  %7568 = vmatpush2.msra.mxu0 0.0
  %7569 = vmatprep.mubr.f32.mxu0 0.0
  %7570 = vmatmul.mubr.f32.gmra.mxu0 %v5823
  %v7571 = vpop.f32.mrf.mxu0
  %v7572 = vadd.f32 %v5785, %v7571
  %v7573 = vpop.f32.mrf.mxu0
  %v7574 = vadd.f32 %v5785, %v7573
  %7575 = vmatprep.mubr.f32.mxu0 0.0
  %7576 = vmatmul.mubr.f32.gmra.mxu0 %v5826
  %v7577 = vpop.f32.mrf.mxu0
  %v7578 = vadd.f32 %v5790, %v7577
  %v7579 = vpop.f32.mrf.mxu0
  %v7580 = vadd.f32 %v5790, %v7579
  %7581 = vmatprep.mubr.f32.mxu0 0.0
  %7582 = vmatmul.mubr.f32.gmra.mxu0 %v5829
  %v7583 = vpop.f32.mrf.mxu0
  %v7584 = vadd.f32 %v5795, %v7583
  %v7585 = vpop.f32.mrf.mxu0
  %v7586 = vadd.f32 %v5795, %v7585
  %7587 = vmatprep.mubr.f32.mxu0 0.0
  %7588 = vmatmul.mubr.f32.gmra.mxu0 %v5832
  %v7589 = vpop.f32.mrf.mxu0
  %v7590 = vadd.f32 %v5800, %v7589
  %v7591 = vpop.f32.mrf.mxu0
  %v7592 = vadd.f32 %v5800, %v7591
  %7593 = vmatprep.mubr.f32.mxu0 0.0
  %7594 = vmatmul.mubr.f32.gmra.mxu0 %v5835
  %v7595 = vpop.f32.mrf.mxu0
  %v7596 = vadd.f32 %v5805, %v7595
  %v7597 = vpop.f32.mrf.mxu0
  %v7598 = vadd.f32 %v5805, %v7597
  %7599 = vmatprep.mubr.f32.mxu0 0.0
  %7600 = vmatmul.mubr.f32.gmra.mxu0 %v5838
  %v7601 = vpop.f32.mrf.mxu0
  %v7602 = vadd.f32 %v5810, %v7601
  %v7603 = vpop.f32.mrf.mxu0
  %v7604 = vadd.f32 %v5810, %v7603
  %7605 = vmatprep.mubr.f32.mxu0 0.0
  %7606 = vmatmul.mubr.f32.gmra.mxu0 %v5841
  %v7607 = vpop.f32.mrf.mxu0
  %v7608 = vadd.f32 %v5815, %v7607
  %v7609 = vpop.f32.mrf.mxu0
  %v7610 = vadd.f32 %v5815, %v7609
  %7611 = vmatprep.mubr.f32.mxu0 0.0
  %7612 = vmatmul.mubr.f32.gmra.mxu0 %v5844
  %v7613 = vpop.f32.mrf.mxu0
  %v7614 = vadd.f32 %v5820, %v7613
  %v7615 = vpop.f32.mrf.mxu0
  %v7616 = vadd.f32 %v5820, %v7615
  %7617 = vdwg.mxu0
  %7618 = vmatprep.subr.mxu0 0.0
  %7619 = vmatpush1.msra.mxu0 0.0
  %7620 = vmatprep.subr.mxu0 0.0
  %7621 = vmatpush1.msra.mxu0 0.0
  %7622 = vmatprep.subr.mxu0 0.0
  %7623 = vmatpush1.msra.mxu0 0.0
  %7624 = vmatprep.subr.mxu0 0.0
  %7625 = vmatpush1.msra.mxu0 0.0
  %7626 = vmatprep.subr.mxu0 0.0
  %7627 = vmatpush1.msra.mxu0 0.0
  %7628 = vmatprep.subr.mxu0 0.0
  %7629 = vmatpush1.msra.mxu0 0.0
  %7630 = vmatprep.subr.mxu0 0.0
  %7631 = vmatpush1.msra.mxu0 0.0
  %7632 = vmatprep.subr.mxu0 0.0
  %7633 = vmatpush1.msra.mxu0 0.0
  %7634 = vmatprep.subr.mxu0 0.0
  %7635 = vmatpush1.msra.mxu0 0.0
  %7636 = vmatprep.subr.mxu0 0.0
  %7637 = vmatpush1.msra.mxu0 0.0
  %7638 = vmatprep.subr.mxu0 0.0
  %7639 = vmatpush1.msra.mxu0 0.0
  %7640 = vmatprep.subr.mxu0 0.0
  %7641 = vmatpush1.msra.mxu0 0.0
  %7642 = vmatprep.subr.mxu0 0.0
  %7643 = vmatpush1.msra.mxu0 0.0
  %7644 = vmatprep.subr.mxu0 0.0
  %7645 = vmatpush1.msra.mxu0 0.0
  %7646 = vmatprep.subr.mxu0 0.0
  %7647 = vmatpush1.msra.mxu0 0.0
  %7648 = vmatprep.subr.mxu0 %v7277
  %7649 = vmatpush1.msra.mxu0 %v7274
  %7650 = vmatprep.subr.mxu0 0.0
  %7651 = vmatpush2.msra.mxu0 0.0
  %7652 = vmatprep.subr.mxu0 0.0
  %7653 = vmatpush2.msra.mxu0 0.0
  %7654 = vmatprep.subr.mxu0 0.0
  %7655 = vmatpush2.msra.mxu0 0.0
  %7656 = vmatprep.subr.mxu0 0.0
  %7657 = vmatpush2.msra.mxu0 0.0
  %7658 = vmatprep.subr.mxu0 0.0
  %7659 = vmatpush2.msra.mxu0 0.0
  %7660 = vmatprep.subr.mxu0 0.0
  %7661 = vmatpush2.msra.mxu0 0.0
  %7662 = vmatprep.subr.mxu0 0.0
  %7663 = vmatpush2.msra.mxu0 0.0
  %7664 = vmatprep.subr.mxu0 0.0
  %7665 = vmatpush2.msra.mxu0 0.0
  %7666 = vmatprep.subr.mxu0 0.0
  %7667 = vmatpush2.msra.mxu0 0.0
  %7668 = vmatprep.subr.mxu0 0.0
  %7669 = vmatpush2.msra.mxu0 0.0
  %7670 = vmatprep.subr.mxu0 0.0
  %7671 = vmatpush2.msra.mxu0 0.0
  %7672 = vmatprep.subr.mxu0 0.0
  %7673 = vmatpush2.msra.mxu0 0.0
  %7674 = vmatprep.subr.mxu0 0.0
  %7675 = vmatpush2.msra.mxu0 0.0
  %7676 = vmatprep.subr.mxu0 0.0
  %7677 = vmatpush2.msra.mxu0 0.0
  %7678 = vmatprep.subr.mxu0 0.0
  %7679 = vmatpush2.msra.mxu0 0.0
  %7680 = vmatprep.subr.mxu0 0.0
  %7681 = vmatpush2.msra.mxu0 0.0
  %7682 = vmatprep.mubr.f32.mxu0 0.0
  %7683 = vmatmul.mubr.f32.gmra.mxu0 %v5823
  %v7684 = vpop.f32.mrf.mxu0
  %v7685 = vadd.f32 %v5785, %v7684
  %v7686 = vpop.f32.mrf.mxu0
  %v7687 = vadd.f32 %v5785, %v7686
  %7688 = vmatprep.mubr.f32.mxu0 0.0
  %7689 = vmatmul.mubr.f32.gmra.mxu0 %v5826
  %v7690 = vpop.f32.mrf.mxu0
  %v7691 = vadd.f32 %v5790, %v7690
  %v7692 = vpop.f32.mrf.mxu0
  %v7693 = vadd.f32 %v5790, %v7692
  %7694 = vmatprep.mubr.f32.mxu0 0.0
  %7695 = vmatmul.mubr.f32.gmra.mxu0 %v5829
  %v7696 = vpop.f32.mrf.mxu0
  %v7697 = vadd.f32 %v5795, %v7696
  %v7698 = vpop.f32.mrf.mxu0
  %v7699 = vadd.f32 %v5795, %v7698
  %7700 = vmatprep.mubr.f32.mxu0 0.0
  %7701 = vmatmul.mubr.f32.gmra.mxu0 %v5832
  %v7702 = vpop.f32.mrf.mxu0
  %v7703 = vadd.f32 %v5800, %v7702
  %v7704 = vpop.f32.mrf.mxu0
  %v7705 = vadd.f32 %v5800, %v7704
  %7706 = vmatprep.mubr.f32.mxu0 0.0
  %7707 = vmatmul.mubr.f32.gmra.mxu0 %v5835
  %v7708 = vpop.f32.mrf.mxu0
  %v7709 = vadd.f32 %v5805, %v7708
  %v7710 = vpop.f32.mrf.mxu0
  %v7711 = vadd.f32 %v5805, %v7710
  %7712 = vmatprep.mubr.f32.mxu0 0.0
  %7713 = vmatmul.mubr.f32.gmra.mxu0 %v5838
  %v7714 = vpop.f32.mrf.mxu0
  %v7715 = vadd.f32 %v5810, %v7714
  %v7716 = vpop.f32.mrf.mxu0
  %v7717 = vadd.f32 %v5810, %v7716
  %7718 = vmatprep.mubr.f32.mxu0 0.0
  %7719 = vmatmul.mubr.f32.gmra.mxu0 %v5841
  %v7720 = vpop.f32.mrf.mxu0
  %v7721 = vadd.f32 %v5815, %v7720
  %v7722 = vpop.f32.mrf.mxu0
  %v7723 = vadd.f32 %v5815, %v7722
  %7724 = vmatprep.mubr.f32.mxu0 0.0
  %7725 = vmatmul.mubr.f32.gmra.mxu0 %v5844
  %v7726 = vpop.f32.mrf.mxu0
  %v7727 = vadd.f32 %v5820, %v7726
  %v7728 = vpop.f32.mrf.mxu0
  %v7729 = vadd.f32 %v5820, %v7728
  %7730 = vdwg.mxu0
  %v7731 = vmax.f32 %v7346, 0.0
  %v7732 = vmax.f32 %v7348, 0.0
  %v7733 = vmax.f32 %v7459, 0.0
  %v7734 = vmax.f32 %v7461, 0.0
  %v7735 = vmax.f32 %v7572, 0.0
  %v7736 = vmax.f32 %v7574, 0.0
  %v7737 = vmax.f32 %v7685, 0.0
  %v7738 = vmax.f32 %v7687, 0.0
  %v7739 = vmax.f32 %v7352, 0.0
  %v7740 = vmax.f32 %v7354, 0.0
  %v7741 = vmax.f32 %v7465, 0.0
  %v7742 = vmax.f32 %v7467, 0.0
  %v7743 = vmax.f32 %v7578, 0.0
  %v7744 = vmax.f32 %v7580, 0.0
  %v7745 = vmax.f32 %v7691, 0.0
  %v7746 = vmax.f32 %v7693, 0.0
  %v7747 = vmax.f32 %v7358, 0.0
  %v7748 = vmax.f32 %v7360, 0.0
  %v7749 = vmax.f32 %v7471, 0.0
  %v7750 = vmax.f32 %v7473, 0.0
  %v7751 = vmax.f32 %v7584, 0.0
  %v7752 = vmax.f32 %v7586, 0.0
  %v7753 = vmax.f32 %v7697, 0.0
  %v7754 = vmax.f32 %v7699, 0.0
  %v7755 = vmax.f32 %v7364, 0.0
  %v7756 = vmax.f32 %v7366, 0.0
  %v7757 = vmax.f32 %v7477, 0.0
  %v7758 = vmax.f32 %v7479, 0.0
  %v7759 = vmax.f32 %v7590, 0.0
  %v7760 = vmax.f32 %v7592, 0.0
  %v7761 = vmax.f32 %v7703, 0.0
  %v7762 = vmax.f32 %v7705, 0.0
  %v7763 = vmax.f32 %v7370, 0.0
  %v7764 = vmax.f32 %v7372, 0.0
  %v7765 = vmax.f32 %v7483, 0.0
  %v7766 = vmax.f32 %v7485, 0.0
  %v7767 = vmax.f32 %v7596, 0.0
  %v7768 = vmax.f32 %v7598, 0.0
  %v7769 = vmax.f32 %v7709, 0.0
  %v7770 = vmax.f32 %v7711, 0.0
  %v7771 = vmax.f32 %v7376, 0.0
  %v7772 = vmax.f32 %v7378, 0.0
  %v7773 = vmax.f32 %v7489, 0.0
  %v7774 = vmax.f32 %v7491, 0.0
  %v7775 = vmax.f32 %v7602, 0.0
  %v7776 = vmax.f32 %v7604, 0.0
  %v7777 = vmax.f32 %v7715, 0.0
  %v7778 = vmax.f32 %v7717, 0.0
  %v7779 = vmax.f32 %v7382, 0.0
  %v7780 = vmax.f32 %v7384, 0.0
  %v7781 = vmax.f32 %v7495, 0.0
  %v7782 = vmax.f32 %v7497, 0.0
  %v7783 = vmax.f32 %v7608, 0.0
  %v7784 = vmax.f32 %v7610, 0.0
  %v7785 = vmax.f32 %v7721, 0.0
  %v7786 = vmax.f32 %v7723, 0.0
  %v7787 = vmax.f32 %v7388, 0.0
  %v7788 = vmax.f32 %v7390, 0.0
  %v7789 = vmax.f32 %v7501, 0.0
  %v7790 = vmax.f32 %v7503, 0.0
  %v7791 = vmax.f32 %v7614, 0.0
  %v7792 = vmax.f32 %v7616, 0.0
  %v7793 = vmax.f32 %v7727, 0.0
  %v7794 = vmax.f32 %v7729, 0.0
  %7795 = vmatprep.subr.mxu0 0.0
  %7796 = vmatpush1.msra.mxu0 0.0
  %7797 = vmatprep.subr.mxu0 0.0
  %7798 = vmatpush1.msra.mxu0 0.0
  %7799 = vmatprep.subr.mxu0 0.0
  %7800 = vmatpush1.msra.mxu0 0.0
  %7801 = vmatprep.subr.mxu0 0.0
  %7802 = vmatpush1.msra.mxu0 0.0
  %7803 = vmatprep.subr.mxu0 0.0
  %7804 = vmatpush1.msra.mxu0 0.0
  %7805 = vmatprep.subr.mxu0 0.0
  %7806 = vmatpush1.msra.mxu0 0.0
  %7807 = vmatprep.subr.mxu0 0.0
  %7808 = vmatpush1.msra.mxu0 0.0
  %7809 = vmatprep.subr.mxu0 0.0
  %7810 = vmatpush1.msra.mxu0 0.0
  %7811 = vmatprep.subr.mxu0 %v7788
  %7812 = vmatpush1.msra.mxu0 %v7787
  %7813 = vmatprep.subr.mxu0 %v7780
  %7814 = vmatpush1.msra.mxu0 %v7779
  %7815 = vmatprep.subr.mxu0 %v7772
  %7816 = vmatpush1.msra.mxu0 %v7771
  %7817 = vmatprep.subr.mxu0 %v7764
  %7818 = vmatpush1.msra.mxu0 %v7763
  %7819 = vmatprep.subr.mxu0 %v7756
  %7820 = vmatpush1.msra.mxu0 %v7755
  %7821 = vmatprep.subr.mxu0 %v7748
  %7822 = vmatpush1.msra.mxu0 %v7747
  %7823 = vmatprep.subr.mxu0 %v7740
  %7824 = vmatpush1.msra.mxu0 %v7739
  %7825 = vmatprep.subr.mxu0 %v7732
  %7826 = vmatpush1.msra.mxu0 %v7731
  %7827 = vmatprep.subr.mxu0 0.0
  %7828 = vmatpush2.msra.mxu0 0.0
  %7829 = vmatprep.subr.mxu0 0.0
  %7830 = vmatpush2.msra.mxu0 0.0
  %7831 = vmatprep.subr.mxu0 0.0
  %7832 = vmatpush2.msra.mxu0 0.0
  %7833 = vmatprep.subr.mxu0 0.0
  %7834 = vmatpush2.msra.mxu0 0.0
  %7835 = vmatprep.subr.mxu0 0.0
  %7836 = vmatpush2.msra.mxu0 0.0
  %7837 = vmatprep.subr.mxu0 0.0
  %7838 = vmatpush2.msra.mxu0 0.0
  %7839 = vmatprep.subr.mxu0 0.0
  %7840 = vmatpush2.msra.mxu0 0.0
  %7841 = vmatprep.subr.mxu0 0.0
  %7842 = vmatpush2.msra.mxu0 0.0
  %7843 = vmatprep.subr.mxu0 0.0
  %7844 = vmatpush2.msra.mxu0 0.0
  %7845 = vmatprep.subr.mxu0 0.0
  %7846 = vmatpush2.msra.mxu0 0.0
  %7847 = vmatprep.subr.mxu0 0.0
  %7848 = vmatpush2.msra.mxu0 0.0
  %7849 = vmatprep.subr.mxu0 0.0
  %7850 = vmatpush2.msra.mxu0 0.0
  %7851 = vmatprep.subr.mxu0 0.0
  %7852 = vmatpush2.msra.mxu0 0.0
  %7853 = vmatprep.subr.mxu0 0.0
  %7854 = vmatpush2.msra.mxu0 0.0
  %7855 = vmatprep.subr.mxu0 0.0
  %7856 = vmatpush2.msra.mxu0 0.0
  %7857 = vmatprep.subr.mxu0 0.0
  %7858 = vmatpush2.msra.mxu0 0.0
  %7859 = vmatprep.mubr.f32.mxu0 0.0
  %7860 = vmatmul.mubr.f32.gmra.mxu0 %v6418
  %v7861 = vpop.f32.mrf.mxu0
  %v7862 = vadd.f32 %v6389, %v7861
  %v7863 = vpop.f32.mrf.mxu0
  %v7864 = vadd.f32 %v6389, %v7863
  %7865 = vmatprep.mubr.f32.mxu0 0.0
  %7866 = vmatmul.mubr.f32.gmra.mxu0 %v6421
  %v7867 = vpop.f32.mrf.mxu0
  %v7868 = vadd.f32 %v6394, %v7867
  %v7869 = vpop.f32.mrf.mxu0
  %v7870 = vadd.f32 %v6394, %v7869
  %7871 = vmatprep.mubr.f32.mxu0 0.0
  %7872 = vmatmul.mubr.f32.gmra.mxu0 %v6424
  %v7873 = vpop.f32.mrf.mxu0
  %v7874 = vadd.f32 %v6399, %v7873
  %v7875 = vpop.f32.mrf.mxu0
  %v7876 = vadd.f32 %v6399, %v7875
  %7877 = vmatprep.mubr.f32.mxu0 0.0
  %7878 = vmatmul.mubr.f32.gmra.mxu0 %v6427
  %v7879 = vpop.f32.mrf.mxu0
  %v7880 = vadd.f32 %v6404, %v7879
  %v7881 = vpop.f32.mrf.mxu0
  %v7882 = vadd.f32 %v6404, %v7881
  %7883 = vmatprep.mubr.f32.mxu0 0.0
  %7884 = vmatmul.mubr.f32.gmra.mxu0 %v6430
  %v7885 = vpop.f32.mrf.mxu0
  %v7886 = vadd.f32 %v6409, %v7885
  %v7887 = vpop.f32.mrf.mxu0
  %v7888 = vadd.f32 %v6409, %v7887
  %7889 = vmatprep.mubr.f32.mxu0 0.0
  %7890 = vmatmul.mubr.f32.gmra.mxu0 %v6433
  %v7891 = vpop.f32.mrf.mxu0
  %v7892 = vadd.f32 %v6414, %v7891
  %v7893 = vpop.f32.mrf.mxu0
  %v7894 = vadd.f32 %v6414, %v7893
  %7895 = vdwg.mxu0
  %7896 = vmatprep.subr.mxu0 0.0
  %7897 = vmatpush1.msra.mxu0 0.0
  %7898 = vmatprep.subr.mxu0 0.0
  %7899 = vmatpush1.msra.mxu0 0.0
  %7900 = vmatprep.subr.mxu0 0.0
  %7901 = vmatpush1.msra.mxu0 0.0
  %7902 = vmatprep.subr.mxu0 0.0
  %7903 = vmatpush1.msra.mxu0 0.0
  %7904 = vmatprep.subr.mxu0 0.0
  %7905 = vmatpush1.msra.mxu0 0.0
  %7906 = vmatprep.subr.mxu0 0.0
  %7907 = vmatpush1.msra.mxu0 0.0
  %7908 = vmatprep.subr.mxu0 0.0
  %7909 = vmatpush1.msra.mxu0 0.0
  %7910 = vmatprep.subr.mxu0 0.0
  %7911 = vmatpush1.msra.mxu0 0.0
  %7912 = vmatprep.subr.mxu0 %v7790
  %7913 = vmatpush1.msra.mxu0 %v7789
  %7914 = vmatprep.subr.mxu0 %v7782
  %7915 = vmatpush1.msra.mxu0 %v7781
  %7916 = vmatprep.subr.mxu0 %v7774
  %7917 = vmatpush1.msra.mxu0 %v7773
  %7918 = vmatprep.subr.mxu0 %v7766
  %7919 = vmatpush1.msra.mxu0 %v7765
  %7920 = vmatprep.subr.mxu0 %v7758
  %7921 = vmatpush1.msra.mxu0 %v7757
  %7922 = vmatprep.subr.mxu0 %v7750
  %7923 = vmatpush1.msra.mxu0 %v7749
  %7924 = vmatprep.subr.mxu0 %v7742
  %7925 = vmatpush1.msra.mxu0 %v7741
  %7926 = vmatprep.subr.mxu0 %v7734
  %7927 = vmatpush1.msra.mxu0 %v7733
  %7928 = vmatprep.subr.mxu0 0.0
  %7929 = vmatpush2.msra.mxu0 0.0
  %7930 = vmatprep.subr.mxu0 0.0
  %7931 = vmatpush2.msra.mxu0 0.0
  %7932 = vmatprep.subr.mxu0 0.0
  %7933 = vmatpush2.msra.mxu0 0.0
  %7934 = vmatprep.subr.mxu0 0.0
  %7935 = vmatpush2.msra.mxu0 0.0
  %7936 = vmatprep.subr.mxu0 0.0
  %7937 = vmatpush2.msra.mxu0 0.0
  %7938 = vmatprep.subr.mxu0 0.0
  %7939 = vmatpush2.msra.mxu0 0.0
  %7940 = vmatprep.subr.mxu0 0.0
  %7941 = vmatpush2.msra.mxu0 0.0
  %7942 = vmatprep.subr.mxu0 0.0
  %7943 = vmatpush2.msra.mxu0 0.0
  %7944 = vmatprep.subr.mxu0 0.0
  %7945 = vmatpush2.msra.mxu0 0.0
  %7946 = vmatprep.subr.mxu0 0.0
  %7947 = vmatpush2.msra.mxu0 0.0
  %7948 = vmatprep.subr.mxu0 0.0
  %7949 = vmatpush2.msra.mxu0 0.0
  %7950 = vmatprep.subr.mxu0 0.0
  %7951 = vmatpush2.msra.mxu0 0.0
  %7952 = vmatprep.subr.mxu0 0.0
  %7953 = vmatpush2.msra.mxu0 0.0
  %7954 = vmatprep.subr.mxu0 0.0
  %7955 = vmatpush2.msra.mxu0 0.0
  %7956 = vmatprep.subr.mxu0 0.0
  %7957 = vmatpush2.msra.mxu0 0.0
  %7958 = vmatprep.subr.mxu0 0.0
  %7959 = vmatpush2.msra.mxu0 0.0
  %7960 = vmatprep.mubr.f32.mxu0 0.0
  %7961 = vmatmul.mubr.f32.gmra.mxu0 %v6418
  %v7962 = vpop.f32.mrf.mxu0
  %v7963 = vadd.f32 %v6389, %v7962
  %v7964 = vpop.f32.mrf.mxu0
  %v7965 = vadd.f32 %v6389, %v7964
  %7966 = vmatprep.mubr.f32.mxu0 0.0
  %7967 = vmatmul.mubr.f32.gmra.mxu0 %v6421
  %v7968 = vpop.f32.mrf.mxu0
  %v7969 = vadd.f32 %v6394, %v7968
  %v7970 = vpop.f32.mrf.mxu0
  %v7971 = vadd.f32 %v6394, %v7970
  %7972 = vmatprep.mubr.f32.mxu0 0.0
  %7973 = vmatmul.mubr.f32.gmra.mxu0 %v6424
  %v7974 = vpop.f32.mrf.mxu0
  %v7975 = vadd.f32 %v6399, %v7974
  %v7976 = vpop.f32.mrf.mxu0
  %v7977 = vadd.f32 %v6399, %v7976
  %7978 = vmatprep.mubr.f32.mxu0 0.0
  %7979 = vmatmul.mubr.f32.gmra.mxu0 %v6427
  %v7980 = vpop.f32.mrf.mxu0
  %v7981 = vadd.f32 %v6404, %v7980
  %v7982 = vpop.f32.mrf.mxu0
  %v7983 = vadd.f32 %v6404, %v7982
  %7984 = vmatprep.mubr.f32.mxu0 0.0
  %7985 = vmatmul.mubr.f32.gmra.mxu0 %v6430
  %v7986 = vpop.f32.mrf.mxu0
  %v7987 = vadd.f32 %v6409, %v7986
  %v7988 = vpop.f32.mrf.mxu0
  %v7989 = vadd.f32 %v6409, %v7988
  %7990 = vmatprep.mubr.f32.mxu0 0.0
  %7991 = vmatmul.mubr.f32.gmra.mxu0 %v6433
  %v7992 = vpop.f32.mrf.mxu0
  %v7993 = vadd.f32 %v6414, %v7992
  %v7994 = vpop.f32.mrf.mxu0
  %v7995 = vadd.f32 %v6414, %v7994
  %7996 = vdwg.mxu0
  %7997 = vmatprep.subr.mxu0 0.0
  %7998 = vmatpush1.msra.mxu0 0.0
  %7999 = vmatprep.subr.mxu0 0.0
  %8000 = vmatpush1.msra.mxu0 0.0
  %8001 = vmatprep.subr.mxu0 0.0
  %8002 = vmatpush1.msra.mxu0 0.0
  %8003 = vmatprep.subr.mxu0 0.0
  %8004 = vmatpush1.msra.mxu0 0.0
  %8005 = vmatprep.subr.mxu0 0.0
  %8006 = vmatpush1.msra.mxu0 0.0
  %8007 = vmatprep.subr.mxu0 0.0
  %8008 = vmatpush1.msra.mxu0 0.0
  %8009 = vmatprep.subr.mxu0 0.0
  %8010 = vmatpush1.msra.mxu0 0.0
  %8011 = vmatprep.subr.mxu0 0.0
  %8012 = vmatpush1.msra.mxu0 0.0
  %8013 = vmatprep.subr.mxu0 %v7792
  %8014 = vmatpush1.msra.mxu0 %v7791
  %8015 = vmatprep.subr.mxu0 %v7784
  %8016 = vmatpush1.msra.mxu0 %v7783
  %8017 = vmatprep.subr.mxu0 %v7776
  %8018 = vmatpush1.msra.mxu0 %v7775
  %8019 = vmatprep.subr.mxu0 %v7768
  %8020 = vmatpush1.msra.mxu0 %v7767
  %8021 = vmatprep.subr.mxu0 %v7760
  %8022 = vmatpush1.msra.mxu0 %v7759
  %8023 = vmatprep.subr.mxu0 %v7752
  %8024 = vmatpush1.msra.mxu0 %v7751
  %8025 = vmatprep.subr.mxu0 %v7744
  %8026 = vmatpush1.msra.mxu0 %v7743
  %8027 = vmatprep.subr.mxu0 %v7736
  %8028 = vmatpush1.msra.mxu0 %v7735
  %8029 = vmatprep.subr.mxu0 0.0
  %8030 = vmatpush2.msra.mxu0 0.0
  %8031 = vmatprep.subr.mxu0 0.0
  %8032 = vmatpush2.msra.mxu0 0.0
  %8033 = vmatprep.subr.mxu0 0.0
  %8034 = vmatpush2.msra.mxu0 0.0
  %8035 = vmatprep.subr.mxu0 0.0
  %8036 = vmatpush2.msra.mxu0 0.0
  %8037 = vmatprep.subr.mxu0 0.0
  %8038 = vmatpush2.msra.mxu0 0.0
  %8039 = vmatprep.subr.mxu0 0.0
  %8040 = vmatpush2.msra.mxu0 0.0
  %8041 = vmatprep.subr.mxu0 0.0
  %8042 = vmatpush2.msra.mxu0 0.0
  %8043 = vmatprep.subr.mxu0 0.0
  %8044 = vmatpush2.msra.mxu0 0.0
  %8045 = vmatprep.subr.mxu0 0.0
  %8046 = vmatpush2.msra.mxu0 0.0
  %8047 = vmatprep.subr.mxu0 0.0
  %8048 = vmatpush2.msra.mxu0 0.0
  %8049 = vmatprep.subr.mxu0 0.0
  %8050 = vmatpush2.msra.mxu0 0.0
  %8051 = vmatprep.subr.mxu0 0.0
  %8052 = vmatpush2.msra.mxu0 0.0
  %8053 = vmatprep.subr.mxu0 0.0
  %8054 = vmatpush2.msra.mxu0 0.0
  %8055 = vmatprep.subr.mxu0 0.0
  %8056 = vmatpush2.msra.mxu0 0.0
  %8057 = vmatprep.subr.mxu0 0.0
  %8058 = vmatpush2.msra.mxu0 0.0
  %8059 = vmatprep.subr.mxu0 0.0
  %8060 = vmatpush2.msra.mxu0 0.0
  %8061 = vmatprep.mubr.f32.mxu0 0.0
  %8062 = vmatmul.mubr.f32.gmra.mxu0 %v6418
  %v8063 = vpop.f32.mrf.mxu0
  %v8064 = vadd.f32 %v6389, %v8063
  %v8065 = vpop.f32.mrf.mxu0
  %v8066 = vadd.f32 %v6389, %v8065
  %8067 = vmatprep.mubr.f32.mxu0 0.0
  %8068 = vmatmul.mubr.f32.gmra.mxu0 %v6421
  %v8069 = vpop.f32.mrf.mxu0
  %v8070 = vadd.f32 %v6394, %v8069
  %v8071 = vpop.f32.mrf.mxu0
  %v8072 = vadd.f32 %v6394, %v8071
  %8073 = vmatprep.mubr.f32.mxu0 0.0
  %8074 = vmatmul.mubr.f32.gmra.mxu0 %v6424
  %v8075 = vpop.f32.mrf.mxu0
  %v8076 = vadd.f32 %v6399, %v8075
  %v8077 = vpop.f32.mrf.mxu0
  %v8078 = vadd.f32 %v6399, %v8077
  %8079 = vmatprep.mubr.f32.mxu0 0.0
  %8080 = vmatmul.mubr.f32.gmra.mxu0 %v6427
  %v8081 = vpop.f32.mrf.mxu0
  %v8082 = vadd.f32 %v6404, %v8081
  %v8083 = vpop.f32.mrf.mxu0
  %v8084 = vadd.f32 %v6404, %v8083
  %8085 = vmatprep.mubr.f32.mxu0 0.0
  %8086 = vmatmul.mubr.f32.gmra.mxu0 %v6430
  %v8087 = vpop.f32.mrf.mxu0
  %v8088 = vadd.f32 %v6409, %v8087
  %v8089 = vpop.f32.mrf.mxu0
  %v8090 = vadd.f32 %v6409, %v8089
  %8091 = vmatprep.mubr.f32.mxu0 0.0
  %8092 = vmatmul.mubr.f32.gmra.mxu0 %v6433
  %v8093 = vpop.f32.mrf.mxu0
  %v8094 = vadd.f32 %v6414, %v8093
  %v8095 = vpop.f32.mrf.mxu0
  %v8096 = vadd.f32 %v6414, %v8095
  %8097 = vdwg.mxu0
  %8098 = vmatprep.subr.mxu0 0.0
  %8099 = vmatpush1.msra.mxu0 0.0
  %8100 = vmatprep.subr.mxu0 0.0
  %8101 = vmatpush1.msra.mxu0 0.0
  %8102 = vmatprep.subr.mxu0 0.0
  %8103 = vmatpush1.msra.mxu0 0.0
  %8104 = vmatprep.subr.mxu0 0.0
  %8105 = vmatpush1.msra.mxu0 0.0
  %8106 = vmatprep.subr.mxu0 0.0
  %8107 = vmatpush1.msra.mxu0 0.0
  %8108 = vmatprep.subr.mxu0 0.0
  %8109 = vmatpush1.msra.mxu0 0.0
  %8110 = vmatprep.subr.mxu0 0.0
  %8111 = vmatpush1.msra.mxu0 0.0
  %8112 = vmatprep.subr.mxu0 0.0
  %8113 = vmatpush1.msra.mxu0 0.0
  %8114 = vmatprep.subr.mxu0 %v7794
  %8115 = vmatpush1.msra.mxu0 %v7793
  %8116 = vmatprep.subr.mxu0 %v7786
  %8117 = vmatpush1.msra.mxu0 %v7785
  %8118 = vmatprep.subr.mxu0 %v7778
  %8119 = vmatpush1.msra.mxu0 %v7777
  %8120 = vmatprep.subr.mxu0 %v7770
  %8121 = vmatpush1.msra.mxu0 %v7769
  %8122 = vmatprep.subr.mxu0 %v7762
  %8123 = vmatpush1.msra.mxu0 %v7761
  %8124 = vmatprep.subr.mxu0 %v7754
  %8125 = vmatpush1.msra.mxu0 %v7753
  %8126 = vmatprep.subr.mxu0 %v7746
  %8127 = vmatpush1.msra.mxu0 %v7745
  %8128 = vmatprep.subr.mxu0 %v7738
  %8129 = vmatpush1.msra.mxu0 %v7737
  %8130 = vmatprep.subr.mxu0 0.0
  %8131 = vmatpush2.msra.mxu0 0.0
  %8132 = vmatprep.subr.mxu0 0.0
  %8133 = vmatpush2.msra.mxu0 0.0
  %8134 = vmatprep.subr.mxu0 0.0
  %8135 = vmatpush2.msra.mxu0 0.0
  %8136 = vmatprep.subr.mxu0 0.0
  %8137 = vmatpush2.msra.mxu0 0.0
  %8138 = vmatprep.subr.mxu0 0.0
  %8139 = vmatpush2.msra.mxu0 0.0
  %8140 = vmatprep.subr.mxu0 0.0
  %8141 = vmatpush2.msra.mxu0 0.0
  %8142 = vmatprep.subr.mxu0 0.0
  %8143 = vmatpush2.msra.mxu0 0.0
  %8144 = vmatprep.subr.mxu0 0.0
  %8145 = vmatpush2.msra.mxu0 0.0
  %8146 = vmatprep.subr.mxu0 0.0
  %8147 = vmatpush2.msra.mxu0 0.0
  %8148 = vmatprep.subr.mxu0 0.0
  %8149 = vmatpush2.msra.mxu0 0.0
  %8150 = vmatprep.subr.mxu0 0.0
  %8151 = vmatpush2.msra.mxu0 0.0
  %8152 = vmatprep.subr.mxu0 0.0
  %8153 = vmatpush2.msra.mxu0 0.0
  %8154 = vmatprep.subr.mxu0 0.0
  %8155 = vmatpush2.msra.mxu0 0.0
  %8156 = vmatprep.subr.mxu0 0.0
  %8157 = vmatpush2.msra.mxu0 0.0
  %8158 = vmatprep.subr.mxu0 0.0
  %8159 = vmatpush2.msra.mxu0 0.0
  %8160 = vmatprep.subr.mxu0 0.0
  %8161 = vmatpush2.msra.mxu0 0.0
  %8162 = vmatprep.mubr.f32.mxu0 0.0
  %8163 = vmatmul.mubr.f32.gmra.mxu0 %v6418
  %v8164 = vpop.f32.mrf.mxu0
  %v8165 = vadd.f32 %v6389, %v8164
  %v8166 = vpop.f32.mrf.mxu0
  %v8167 = vadd.f32 %v6389, %v8166
  %8168 = vmatprep.mubr.f32.mxu0 0.0
  %8169 = vmatmul.mubr.f32.gmra.mxu0 %v6421
  %v8170 = vpop.f32.mrf.mxu0
  %v8171 = vadd.f32 %v6394, %v8170
  %v8172 = vpop.f32.mrf.mxu0
  %v8173 = vadd.f32 %v6394, %v8172
  %8174 = vmatprep.mubr.f32.mxu0 0.0
  %8175 = vmatmul.mubr.f32.gmra.mxu0 %v6424
  %v8176 = vpop.f32.mrf.mxu0
  %v8177 = vadd.f32 %v6399, %v8176
  %v8178 = vpop.f32.mrf.mxu0
  %v8179 = vadd.f32 %v6399, %v8178
  %8180 = vmatprep.mubr.f32.mxu0 0.0
  %8181 = vmatmul.mubr.f32.gmra.mxu0 %v6427
  %v8182 = vpop.f32.mrf.mxu0
  %v8183 = vadd.f32 %v6404, %v8182
  %v8184 = vpop.f32.mrf.mxu0
  %v8185 = vadd.f32 %v6404, %v8184
  %8186 = vmatprep.mubr.f32.mxu0 0.0
  %8187 = vmatmul.mubr.f32.gmra.mxu0 %v6430
  %v8188 = vpop.f32.mrf.mxu0
  %v8189 = vadd.f32 %v6409, %v8188
  %v8190 = vpop.f32.mrf.mxu0
  %v8191 = vadd.f32 %v6409, %v8190
  %8192 = vmatprep.mubr.f32.mxu0 0.0
  %8193 = vmatmul.mubr.f32.gmra.mxu0 %v6433
  %v8194 = vpop.f32.mrf.mxu0
  %v8195 = vadd.f32 %v6414, %v8194
  %v8196 = vpop.f32.mrf.mxu0
  %v8197 = vadd.f32 %v6414, %v8196
  %8198 = vdwg.mxu0
  %v8199 = vxor.u32 %v7862, 2147483648
  %v8200 = vxor.u32 %v7864, 2147483648
  %v8201 = vxor.u32 %v7963, 2147483648
  %v8202 = vxor.u32 %v7965, 2147483648
  %v8203 = vxor.u32 %v8064, 2147483648
  %v8204 = vxor.u32 %v8066, 2147483648
  %v8205 = vxor.u32 %v8165, 2147483648
  %v8206 = vxor.u32 %v8167, 2147483648
  %v8207 = vxor.u32 %v7868, 2147483648
  %v8208 = vxor.u32 %v7870, 2147483648
  %v8209 = vxor.u32 %v7969, 2147483648
  %v8210 = vxor.u32 %v7971, 2147483648
  %v8211 = vxor.u32 %v8070, 2147483648
  %v8212 = vxor.u32 %v8072, 2147483648
  %v8213 = vxor.u32 %v8171, 2147483648
  %v8214 = vxor.u32 %v8173, 2147483648
  %v8215 = vxor.u32 %v7874, 2147483648
  %v8216 = vxor.u32 %v7876, 2147483648
  %v8217 = vxor.u32 %v7975, 2147483648
  %v8218 = vxor.u32 %v7977, 2147483648
  %v8219 = vxor.u32 %v8076, 2147483648
  %v8220 = vxor.u32 %v8078, 2147483648
  %v8221 = vxor.u32 %v8177, 2147483648
  %v8222 = vxor.u32 %v8179, 2147483648
  %v8223 = vxor.u32 %v7880, 2147483648
  %v8224 = vxor.u32 %v7882, 2147483648
  %v8225 = vxor.u32 %v7981, 2147483648
  %v8226 = vxor.u32 %v7983, 2147483648
  %v8227 = vxor.u32 %v8082, 2147483648
  %v8228 = vxor.u32 %v8084, 2147483648
  %v8229 = vxor.u32 %v8183, 2147483648
  %v8230 = vxor.u32 %v8185, 2147483648
  %v8231 = vxor.u32 %v7886, 2147483648
  %v8232 = vxor.u32 %v7888, 2147483648
  %v8233 = vxor.u32 %v7987, 2147483648
  %v8234 = vxor.u32 %v7989, 2147483648
  %v8235 = vxor.u32 %v8088, 2147483648
  %v8236 = vxor.u32 %v8090, 2147483648
  %v8237 = vxor.u32 %v8189, 2147483648
  %v8238 = vxor.u32 %v8191, 2147483648
  %v8239 = vxor.u32 %v7892, 2147483648
  %v8240 = vxor.u32 %v7894, 2147483648
  %v8241 = vxor.u32 %v7993, 2147483648
  %v8242 = vxor.u32 %v7995, 2147483648
  %v8243 = vxor.u32 %v8094, 2147483648
  %v8244 = vxor.u32 %v8096, 2147483648
  %v8245 = vxor.u32 %v8195, 2147483648
  %v8246 = vxor.u32 %v8197, 2147483648
  %v8247 = vmul.f32 %v8199, 1.442695
  %v8248 = vpow.pop %v8247
  %v8249 = vmul.f32 %v8200, 1.442695
  %v8250 = vpow.pop %v8249
  %v8251 = vmul.f32 %v8201, 1.442695
  %v8252 = vpow.pop %v8251
  %v8253 = vmul.f32 %v8202, 1.442695
  %v8254 = vpow.pop %v8253
  %v8255 = vmul.f32 %v8203, 1.442695
  %v8256 = vpow.pop %v8255
  %v8257 = vmul.f32 %v8204, 1.442695
  %v8258 = vpow.pop %v8257
  %v8259 = vmul.f32 %v8205, 1.442695
  %v8260 = vpow.pop %v8259
  %v8261 = vmul.f32 %v8206, 1.442695
  %v8262 = vpow.pop %v8261
  %v8263 = vmul.f32 %v8207, 1.442695
  %v8264 = vpow.pop %v8263
  %v8265 = vmul.f32 %v8208, 1.442695
  %v8266 = vpow.pop %v8265
  %v8267 = vmul.f32 %v8209, 1.442695
  %v8268 = vpow.pop %v8267
  %v8269 = vmul.f32 %v8210, 1.442695
  %v8270 = vpow.pop %v8269
  %v8271 = vmul.f32 %v8211, 1.442695
  %v8272 = vpow.pop %v8271
  %v8273 = vmul.f32 %v8212, 1.442695
  %v8274 = vpow.pop %v8273
  %v8275 = vmul.f32 %v8213, 1.442695
  %v8276 = vpow.pop %v8275
  %v8277 = vmul.f32 %v8214, 1.442695
  %v8278 = vpow.pop %v8277
  %v8279 = vmul.f32 %v8215, 1.442695
  %v8280 = vpow.pop %v8279
  %v8281 = vmul.f32 %v8216, 1.442695
  %v8282 = vpow.pop %v8281
  %v8283 = vmul.f32 %v8217, 1.442695
  %v8284 = vpow.pop %v8283
  %v8285 = vmul.f32 %v8218, 1.442695
  %v8286 = vpow.pop %v8285
  %v8287 = vmul.f32 %v8219, 1.442695
  %v8288 = vpow.pop %v8287
  %v8289 = vmul.f32 %v8220, 1.442695
  %v8290 = vpow.pop %v8289
  %v8291 = vmul.f32 %v8221, 1.442695
  %v8292 = vpow.pop %v8291
  %v8293 = vmul.f32 %v8222, 1.442695
  %v8294 = vpow.pop %v8293
  %v8295 = vmul.f32 %v8223, 1.442695
  %v8296 = vpow.pop %v8295
  %v8297 = vmul.f32 %v8224, 1.442695
  %v8298 = vpow.pop %v8297
  %v8299 = vmul.f32 %v8225, 1.442695
  %v8300 = vpow.pop %v8299
  %v8301 = vmul.f32 %v8226, 1.442695
  %v8302 = vpow.pop %v8301
  %v8303 = vmul.f32 %v8227, 1.442695
  %v8304 = vpow.pop %v8303
  %v8305 = vmul.f32 %v8228, 1.442695
  %v8306 = vpow.pop %v8305
  %v8307 = vmul.f32 %v8229, 1.442695
  %v8308 = vpow.pop %v8307
  %v8309 = vmul.f32 %v8230, 1.442695
  %v8310 = vpow.pop %v8309
  %v8311 = vmul.f32 %v8231, 1.442695
  %v8312 = vpow.pop %v8311
  %v8313 = vmul.f32 %v8232, 1.442695
  %v8314 = vpow.pop %v8313
  %v8315 = vmul.f32 %v8233, 1.442695
  %v8316 = vpow.pop %v8315
  %v8317 = vmul.f32 %v8234, 1.442695
  %v8318 = vpow.pop %v8317
  %v8319 = vmul.f32 %v8235, 1.442695
  %v8320 = vpow.pop %v8319
  %v8321 = vmul.f32 %v8236, 1.442695
  %v8322 = vpow.pop %v8321
  %v8323 = vmul.f32 %v8237, 1.442695
  %v8324 = vpow.pop %v8323
  %v8325 = vmul.f32 %v8238, 1.442695
  %v8326 = vpow.pop %v8325
  %v8327 = vmul.f32 %v8239, 1.442695
  %v8328 = vpow.pop %v8327
  %v8329 = vmul.f32 %v8240, 1.442695
  %v8330 = vpow.pop %v8329
  %v8331 = vmul.f32 %v8241, 1.442695
  %v8332 = vpow.pop %v8331
  %v8333 = vmul.f32 %v8242, 1.442695
  %v8334 = vpow.pop %v8333
  %v8335 = vmul.f32 %v8243, 1.442695
  %v8336 = vpow.pop %v8335
  %v8337 = vmul.f32 %v8244, 1.442695
  %v8338 = vpow.pop %v8337
  %v8339 = vmul.f32 %v8245, 1.442695
  %v8340 = vpow.pop %v8339
  %v8341 = vmul.f32 %v8246, 1.442695
  %v8342 = vpow.pop %v8341
  %v8343 = vadd.f32 %v8248, 1.0
  %v8344 = vadd.f32 %v8250, 1.0
  %v8345 = vadd.f32 %v8252, 1.0
  %v8346 = vadd.f32 %v8254, 1.0
  %v8347 = vadd.f32 %v8256, 1.0
  %v8348 = vadd.f32 %v8258, 1.0
  %v8349 = vadd.f32 %v8260, 1.0
  %v8350 = vadd.f32 %v8262, 1.0
  %v8351 = vadd.f32 %v8264, 1.0
  %v8352 = vadd.f32 %v8266, 1.0
  %v8353 = vadd.f32 %v8268, 1.0
  %v8354 = vadd.f32 %v8270, 1.0
  %v8355 = vadd.f32 %v8272, 1.0
  %v8356 = vadd.f32 %v8274, 1.0
  %v8357 = vadd.f32 %v8276, 1.0
  %v8358 = vadd.f32 %v8278, 1.0
  %v8359 = vadd.f32 %v8280, 1.0
  %v8360 = vadd.f32 %v8282, 1.0
  %v8361 = vadd.f32 %v8284, 1.0
  %v8362 = vadd.f32 %v8286, 1.0
  %v8363 = vadd.f32 %v8288, 1.0
  %v8364 = vadd.f32 %v8290, 1.0
  %v8365 = vadd.f32 %v8292, 1.0
  %v8366 = vadd.f32 %v8294, 1.0
  %v8367 = vadd.f32 %v8296, 1.0
  %v8368 = vadd.f32 %v8298, 1.0
  %v8369 = vadd.f32 %v8300, 1.0
  %v8370 = vadd.f32 %v8302, 1.0
  %v8371 = vadd.f32 %v8304, 1.0
  %v8372 = vadd.f32 %v8306, 1.0
  %v8373 = vadd.f32 %v8308, 1.0
  %v8374 = vadd.f32 %v8310, 1.0
  %v8375 = vadd.f32 %v8312, 1.0
  %v8376 = vadd.f32 %v8314, 1.0
  %v8377 = vadd.f32 %v8316, 1.0
  %v8378 = vadd.f32 %v8318, 1.0
  %v8379 = vadd.f32 %v8320, 1.0
  %v8380 = vadd.f32 %v8322, 1.0
  %v8381 = vadd.f32 %v8324, 1.0
  %v8382 = vadd.f32 %v8326, 1.0
  %v8383 = vadd.f32 %v8328, 1.0
  %v8384 = vadd.f32 %v8330, 1.0
  %v8385 = vadd.f32 %v8332, 1.0
  %v8386 = vadd.f32 %v8334, 1.0
  %v8387 = vadd.f32 %v8336, 1.0
  %v8388 = vadd.f32 %v8338, 1.0
  %v8389 = vadd.f32 %v8340, 1.0
  %v8390 = vadd.f32 %v8342, 1.0
  %v8391 = vrcp.pop %v8343
  %v8392 = vmul.f32 1.0, %v8391
  %v8393 = vrcp.pop %v8344
  %v8394 = vmul.f32 1.0, %v8393
  %v8395 = vrcp.pop %v8345
  %v8396 = vmul.f32 1.0, %v8395
  %v8397 = vrcp.pop %v8346
  %v8398 = vmul.f32 1.0, %v8397
  %v8399 = vrcp.pop %v8347
  %v8400 = vmul.f32 1.0, %v8399
  %v8401 = vrcp.pop %v8348
  %v8402 = vmul.f32 1.0, %v8401
  %v8403 = vrcp.pop %v8349
  %v8404 = vmul.f32 1.0, %v8403
  %v8405 = vrcp.pop %v8350
  %v8406 = vmul.f32 1.0, %v8405
  %v8407 = vrcp.pop %v8351
  %v8408 = vmul.f32 1.0, %v8407
  %v8409 = vrcp.pop %v8352
  %v8410 = vmul.f32 1.0, %v8409
  %v8411 = vrcp.pop %v8353
  %v8412 = vmul.f32 1.0, %v8411
  %v8413 = vrcp.pop %v8354
  %v8414 = vmul.f32 1.0, %v8413
  %v8415 = vrcp.pop %v8355
  %v8416 = vmul.f32 1.0, %v8415
  %v8417 = vrcp.pop %v8356
  %v8418 = vmul.f32 1.0, %v8417
  %v8419 = vrcp.pop %v8357
  %v8420 = vmul.f32 1.0, %v8419
  %v8421 = vrcp.pop %v8358
  %v8422 = vmul.f32 1.0, %v8421
  %v8423 = vrcp.pop %v8359
  %v8424 = vmul.f32 1.0, %v8423
  %v8425 = vrcp.pop %v8360
  %v8426 = vmul.f32 1.0, %v8425
  %v8427 = vrcp.pop %v8361
  %v8428 = vmul.f32 1.0, %v8427
  %v8429 = vrcp.pop %v8362
  %v8430 = vmul.f32 1.0, %v8429
  %v8431 = vrcp.pop %v8363
  %v8432 = vmul.f32 1.0, %v8431
  %v8433 = vrcp.pop %v8364
  %v8434 = vmul.f32 1.0, %v8433
  %v8435 = vrcp.pop %v8365
  %v8436 = vmul.f32 1.0, %v8435
  %v8437 = vrcp.pop %v8366
  %v8438 = vmul.f32 1.0, %v8437
  %v8439 = vrcp.pop %v8367
  %v8440 = vmul.f32 1.0, %v8439
  %v8441 = vrcp.pop %v8368
  %v8442 = vmul.f32 1.0, %v8441
  %v8443 = vrcp.pop %v8369
  %v8444 = vmul.f32 1.0, %v8443
  %v8445 = vrcp.pop %v8370
  %v8446 = vmul.f32 1.0, %v8445
  %v8447 = vrcp.pop %v8371
  %v8448 = vmul.f32 1.0, %v8447
  %v8449 = vrcp.pop %v8372
  %v8450 = vmul.f32 1.0, %v8449
  %v8451 = vrcp.pop %v8373
  %v8452 = vmul.f32 1.0, %v8451
  %v8453 = vrcp.pop %v8374
  %v8454 = vmul.f32 1.0, %v8453
  %v8455 = vrcp.pop %v8375
  %v8456 = vmul.f32 1.0, %v8455
  %v8457 = vrcp.pop %v8376
  %v8458 = vmul.f32 1.0, %v8457
  %v8459 = vrcp.pop %v8377
  %v8460 = vmul.f32 1.0, %v8459
  %v8461 = vrcp.pop %v8378
  %v8462 = vmul.f32 1.0, %v8461
  %v8463 = vrcp.pop %v8379
  %v8464 = vmul.f32 1.0, %v8463
  %v8465 = vrcp.pop %v8380
  %v8466 = vmul.f32 1.0, %v8465
  %v8467 = vrcp.pop %v8381
  %v8468 = vmul.f32 1.0, %v8467
  %v8469 = vrcp.pop %v8382
  %v8470 = vmul.f32 1.0, %v8469
  %v8471 = vrcp.pop %v8383
  %v8472 = vmul.f32 1.0, %v8471
  %v8473 = vrcp.pop %v8384
  %v8474 = vmul.f32 1.0, %v8473
  %v8475 = vrcp.pop %v8385
  %v8476 = vmul.f32 1.0, %v8475
  %v8477 = vrcp.pop %v8386
  %v8478 = vmul.f32 1.0, %v8477
  %v8479 = vrcp.pop %v8387
  %v8480 = vmul.f32 1.0, %v8479
  %v8481 = vrcp.pop %v8388
  %v8482 = vmul.f32 1.0, %v8481
  %v8483 = vrcp.pop %v8389
  %v8484 = vmul.f32 1.0, %v8483
  %v8485 = vrcp.pop %v8390
  %v8486 = vmul.f32 1.0, %v8485
  %s8487 = scalar_lea.vmem %s17, 384
  %8488 = vst [vmem:[%s8487] sm:$0xff] %v8392
  %8489 = vst [vmem:[%s8487 + $0x8] sm:$0xff] %v8394
  %8490 = vst [vmem:[%s8487 + $0x10] sm:$0xff] %v8396
  %8491 = vst [vmem:[%s8487 + $0x18] sm:$0xff] %v8398
  %8492 = vst [vmem:[%s8487 + $0x20] sm:$0xff] %v8400
  %8493 = vst [vmem:[%s8487 + $0x28] sm:$0xff] %v8402
  %8494 = vst [vmem:[%s8487 + $0x30] sm:$0xff] %v8404
  %8495 = vst [vmem:[%s8487 + $0x38] sm:$0xff] %v8406
  %8496 = vst [vmem:[%s8487 + $0x40] sm:$0xff] %v8408
  %8497 = vst [vmem:[%s8487 + $0x48] sm:$0xff] %v8410
  %8498 = vst [vmem:[%s8487 + $0x50] sm:$0xff] %v8412
  %8499 = vst [vmem:[%s8487 + $0x58] sm:$0xff] %v8414
  %8500 = vst [vmem:[%s8487 + $0x60] sm:$0xff] %v8416
  %8501 = vst [vmem:[%s8487 + $0x68] sm:$0xff] %v8418
  %8502 = vst [vmem:[%s8487 + $0x70] sm:$0xff] %v8420
  %8503 = vst [vmem:[%s8487 + $0x78] sm:$0xff] %v8422
  %8504 = vst [vmem:[%s8487 + $0x80] sm:$0xff] %v8424
  %8505 = vst [vmem:[%s8487 + $0x88] sm:$0xff] %v8426
  %8506 = vst [vmem:[%s8487 + $0x90] sm:$0xff] %v8428
  %8507 = vst [vmem:[%s8487 + $0x98] sm:$0xff] %v8430
  %8508 = vst [vmem:[%s8487 + $0xa0] sm:$0xff] %v8432
  %8509 = vst [vmem:[%s8487 + $0xa8] sm:$0xff] %v8434
  %8510 = vst [vmem:[%s8487 + $0xb0] sm:$0xff] %v8436
  %8511 = vst [vmem:[%s8487 + $0xb8] sm:$0xff] %v8438
  %8512 = vst [vmem:[%s8487 + $0xc0] sm:$0xff] %v8440
  %8513 = vst [vmem:[%s8487 + $0xc8] sm:$0xff] %v8442
  %8514 = vst [vmem:[%s8487 + $0xd0] sm:$0xff] %v8444
  %8515 = vst [vmem:[%s8487 + $0xd8] sm:$0xff] %v8446
  %8516 = vst [vmem:[%s8487 + $0xe0] sm:$0xff] %v8448
  %8517 = vst [vmem:[%s8487 + $0xe8] sm:$0xff] %v8450
  %8518 = vst [vmem:[%s8487 + $0xf0] sm:$0xff] %v8452
  %8519 = vst [vmem:[%s8487 + $0xf8] sm:$0xff] %v8454
  %8520 = vst [vmem:[%s8487 + $0x100] sm:$0xff] %v8456
  %8521 = vst [vmem:[%s8487 + $0x108] sm:$0xff] %v8458
  %8522 = vst [vmem:[%s8487 + $0x110] sm:$0xff] %v8460
  %8523 = vst [vmem:[%s8487 + $0x118] sm:$0xff] %v8462
  %8524 = vst [vmem:[%s8487 + $0x120] sm:$0xff] %v8464
  %8525 = vst [vmem:[%s8487 + $0x128] sm:$0xff] %v8466
  %8526 = vst [vmem:[%s8487 + $0x130] sm:$0xff] %v8468
  %8527 = vst [vmem:[%s8487 + $0x138] sm:$0xff] %v8470
  %8528 = vst [vmem:[%s8487 + $0x140] sm:$0xff] %v8472
  %8529 = vst [vmem:[%s8487 + $0x148] sm:$0xff] %v8474
  %8530 = vst [vmem:[%s8487 + $0x150] sm:$0xff] %v8476
  %8531 = vst [vmem:[%s8487 + $0x158] sm:$0xff] %v8478
  %8532 = vst [vmem:[%s8487 + $0x160] sm:$0xff] %v8480
  %8533 = vst [vmem:[%s8487 + $0x168] sm:$0xff] %v8482
  %8534 = vst [vmem:[%s8487 + $0x170] sm:$0xff] %v8484
  %8535 = vst [vmem:[%s8487 + $0x178] sm:$0xff] %v8486
  // Predicated region
  $region66: #{forward.3} parent=0 // pred_check
    _
  $region67: #{forward.3} parent=0 // pred_check_branch
    %8537 = sbr.rel (0) target = $region69
  $region68: #{forward.3} parent=0 // pred_region
    _
  $region69: #{forward.3} parent=0 // pred_fallthru
    _
  // Predicated region
  $region70: #{forward.3} parent=0 // pred_check
    _
  $region71: #{forward.3} parent=0 // pred_check_branch
    %8539 = sbr.rel (0) target = $region73
  $region72: #{forward.3} parent=0 // pred_region
    _
  $region73: #{forward.3} parent=0 // pred_fallthru
    _
  // Predicated region
  $region74: #{forward.3} parent=0 // pred_check
    _
  $region75: #{forward.3} parent=0 // pred_check_branch
    %8541 = sbr.rel (0) target = $region77
  $region76: #{forward.3} parent=0 // pred_region
    _
  $region77: #{forward.3} parent=0 // pred_fallthru
    _
  // Predicated region
  $region78: #{forward.3} parent=0 // pred_check
    _
  $region79: #{forward.3} parent=0 // pred_check_branch
    %8543 = sbr.rel (0) target = $region81
  $region80: #{forward.3} parent=0 // pred_region
    _
  $region81: #{forward.3} parent=0 // pred_fallthru
    _

</llo_original>
